<compile_context>
chip_gen: v7x
topology: tpu7x:2x2x1
jax: 0.10.0
libtpu: 0.0.40
codegen_flags: <defaults>
</compile_context>

<pallas_src>
import jax
import jax.numpy as jnp
import numpy as np
from jax import lax
from jax.experimental import pallas as pl
from jax.experimental.pallas import tpu as pltpu

# Keep glue GEMMs / reference GEMMs in full f32 so kernel-vs-reference comparison is tight.
jax.config.update("jax_default_matmul_precision", "highest")


# ----------------------------------------------------------------------------
# Encoder LSTM kernel: grid=(2,) over direction (0=fwd, 1=time-reversed bwd), parallel axis.
# Input projections x@W_ih + b are precomputed (batched GEMM in glue); inputs for the
# backward direction are already time-reversed, so the kernel always scans forward.
# ----------------------------------------------------------------------------
def encoder_lstm_kernel(xp_ref,      # (S, B, 4H)  precomputed x-projection (scan order)
                        w_hh_ref,    # (H, 4H)
                        out_ref):    # (S, B, H)   hidden states in scan order
    S, B, four_h = xp_ref.shape
    H = four_h // 4

    w_hh = w_hh_ref[...]
    lane = lax.broadcasted_iota(jnp.int32, (B, four_h), 1)
    is_g = jnp.logical_and(lane >= 2 * H, lane < 3 * H)   # tanh band (gate g)

    def body(k, carry):
        h, c = carry
        gates = xp_ref[k] + jnp.dot(h, w_hh, preferred_element_type=jnp.float32)
        # full-vreg activation: tanh only on the g band, sigmoid elsewhere
        act = jnp.where(is_g, jnp.tanh(gates), jax.nn.sigmoid(gates))
        i_g = act[:, 0:H]
        f_g = act[:, H:2 * H]
        g_g = act[:, 2 * H:3 * H]
        o_g = act[:, 3 * H:4 * H]
        c = f_g * c + i_g * g_g
        h = o_g * jnp.tanh(c)
        out_ref[k] = h
        return (h, c)

    lax.fori_loop(0, S, body,
                  (jnp.zeros((B, H), jnp.float32), jnp.zeros((B, H), jnp.float32)),
                  unroll=True)


# ----------------------------------------------------------------------------
# Decode kernel: grid=(B_tiles, T), (parallel, arbitrary). Carries (h, c, sum_attn)
# in VMEM scratch; emits only target-prob and coverage per step (resident outputs).
# ----------------------------------------------------------------------------
def decode_step_kernel(xp_ref,          # (T, Bt, 4H)   dec_emb @ W_ih + b (precomputed)
                       enc_rep_ref,     # (Bt, S, 2H)
                       enc_proj_ref,    # (Bt, S, H)    enc_rep @ W_attn[:, :2H]^T (precomputed)
                       enc_ids_ref,     # (Bt, S) int32
                       tgt_ref,         # (T, Bt, 1) int32  (all steps, resident)
                       copy_const_ref,  # (Bt, 1)       emb0 @ W_copy[:, 3H:]^T + b_copy
                       w_hh_ref,        # (H, 4H)
                       w_attn_h_ref,    # (H, H)        W_attn[:, 2H:]^T
                       attn_cov_ref,    # (1, H)
                       attn_v_ref,      # (1, H)
                       attn_bias_ref,   # (1, H)
                       w_out_enc_ref,   # (2H, E)       W_out[:, :2H]^T
                       w_out_h_ref,     # (H, E)        W_out[:, 2H:]^T
                       b_out_ref,       # (1, E)
                       emb_t_ref,       # (E, V)        shared embedding^T
                       gen_bias_ref,    # (1, V)
                       wc_enc_ref,      # (1, 2H)       W_copy[:, :2H]
                       wc_h_ref,        # (1, H)        W_copy[:, 2H:3H]
                       predict_ref,     # out (T, Bt, 1)  prob at target id
                       cov_ref,         # out (T, Bt, 1)  coverage term
                       h_sc, c_sc, sum_attn_sc):
    t = pl.program_id(1)
    Bt, S, two_h = enc_rep_ref.shape
    H = two_h // 2
    V = gen_bias_ref.shape[1]

    @pl.when(t == 0)
    def _():
        h_sc[...] = jnp.zeros_like(h_sc)
        c_sc[...] = jnp.zeros_like(c_sc)
        sum_attn_sc[...] = jnp.zeros_like(sum_attn_sc)

    w_hh = w_hh_ref[...]
    lane = lax.broadcasted_iota(jnp.int32, (Bt, 4 * H), 1)
    is_g = jnp.logical_and(lane >= 2 * H, lane < 3 * H)

    # decoder LSTM re-runs over the full prefix 0..t starting from the carried
    # state (exactly what the PyTorch code does).
    def lstm_body(k, carry):
        h, c = carry
        gates = xp_ref[k] + jnp.dot(h, w_hh, preferred_element_type=jnp.float32)
        act = jnp.where(is_g, jnp.tanh(gates), jax.nn.sigmoid(gates))
        i_g = act[:, 0:H]
        f_g = act[:, H:2 * H]
        g_g = act[:, 2 * H:3 * H]
        o_g = act[:, 3 * H:4 * H]
        c = f_g * c + i_g * g_g
        h = o_g * jnp.tanh(c)
        return (h, c)

    h, c = lax.fori_loop(0, t + 1, lstm_body, (h_sc[...], c_sc[...]))
    h_sc[...] = h
    c_sc[...] = c

    sum_attn = sum_attn_sc[...]                                    # (Bt, S)

    # --- coverage attention (encoder-side projection hoisted out of the loop) ---
    h_proj = jnp.dot(h, w_attn_h_ref[...], preferred_element_type=jnp.float32)  # (Bt, H)
    av = (enc_proj_ref[...] + h_proj[:, None, :]
          + sum_attn[:, :, None] * attn_cov_ref[...][None, :, :]
          + attn_bias_ref[...][None, :, :])
    av = jnp.tanh(av)
    score = jnp.sum(av * attn_v_ref[...][None, :, :], axis=-1)     # (Bt, S)
    score = score - jnp.max(score, axis=-1, keepdims=True)
    e_s = jnp.exp(score)
    attn_prob = e_s * pl.reciprocal(jnp.sum(e_s, axis=-1, keepdims=True), approx=True)

    sum_enc = jnp.sum(enc_rep_ref[...] * attn_prob[:, :, None], axis=1)          # (Bt, 2H)

    # --- output projection + generation distribution (concat split into matmuls) ---
    dec_rep = (jnp.dot(sum_enc, w_out_enc_ref[...], preferred_element_type=jnp.float32)
               + jnp.dot(h, w_out_h_ref[...], preferred_element_type=jnp.float32)
               + b_out_ref[...])                                                  # (Bt, E)
    vocab_logits = (jnp.dot(dec_rep, emb_t_ref[...], preferred_element_type=jnp.float32)
                    + gen_bias_ref[...])                                          # (Bt, V)
    vocab_logits = vocab_logits - jnp.max(vocab_logits, axis=-1, keepdims=True)
    e_v = jnp.exp(vocab_logits)
    vocab_prob = e_v * pl.reciprocal(jnp.sum(e_v, axis=-1, keepdims=True), approx=True)

    # --- copy gate (concat split; emb_0 contribution precomputed in glue) ---
    copy_logit = (jnp.sum(sum_enc * wc_enc_ref[...], axis=-1, keepdims=True)
                  + jnp.sum(h * wc_h_ref[...], axis=-1, keepdims=True)
                  + copy_const_ref[...])
    combine = jax.nn.sigmoid(copy_logit)                                          # (Bt, 1)

    # --- fused loss gather: prob at the target id (generation + pointer scatter) ---
    tgt = tgt_ref[t]                                                              # (Bt, 1) int32
    vlane = lax.broadcasted_iota(jnp.int32, (Bt, V), 1)
    gen_pick = jnp.sum(jnp.where(vlane == tgt, vocab_prob, 0.0),
                       axis=-1, keepdims=True)                                    # (Bt, 1)
    add_src = attn_prob * (1.0 - combine)                                         # (Bt, S)
    copy_pick = jnp.sum(jnp.where(enc_ids_ref[...] == tgt, add_src, 0.0),
                        axis=-1, keepdims=True)                                   # (Bt, 1)
    predict_t = combine * gen_pick + copy_pick                                    # (Bt, 1)

    # --- coverage loss term + coverage update ---
    cov_t = jnp.sum(jnp.minimum(sum_attn, attn_prob), axis=-1, keepdims=True)     # (Bt, 1)
    sum_attn_sc[...] = sum_attn + attn_prob

    predict_ref[t] = predict_t
    cov_ref[t] = cov_t


# ----------------------------------------------------------------------------
# Wrapper
# ----------------------------------------------------------------------------
def s2s_forward_pallas(p, enc_ids, dec_ids, dec_tgt, lambda_cov, eps):
    emb = p["embedding"]                     # (V, E)
    V, E = emb.shape
    H = p["dec_w_hh"].shape[1]
    B, S = enc_ids.shape
    T = dec_ids.shape[1]
    B_TILE = B                               # batch tile for the (parallel) grid axis
    nb = B // B_TILE

    f32 = jnp.float32

    # ----- encoder: batched input projections (one GEMM per direction) + recurrent kernel -----
    enc_emb = emb[enc_ids].astype(f32)                                         # (B, S, E)
    xp_f = jnp.einsum("bse,ge->bsg", enc_emb, p["enc_w_ih_f"]) + p["enc_b_f"]  # (B, S, 4H)
    xp_b = jnp.einsum("bse,ge->bsg", enc_emb, p["enc_w_ih_b"]) + p["enc_b_b"]
    xp_b_rev = jnp.flip(xp_b, axis=1)        # backward direction scans the reversed sequence
    xp_enc = jnp.transpose(jnp.stack([xp_f, xp_b_rev], axis=0), (0, 2, 1, 3))  # (2, S, B, 4H)
    whh_stack = jnp.stack([p["enc_w_hh_f"].T, p["enc_w_hh_b"].T], axis=0)      # (2, H, 4H)

    enc_out = pl.pallas_call(
        encoder_lstm_kernel,
        out_shape=jax.ShapeDtypeStruct((2, S, B, H), f32),
        grid=(2,),
        in_specs=[
            pl.BlockSpec((None, S, B, 4 * H), lambda d: (d, 0, 0, 0)),
            pl.BlockSpec((None, H, 4 * H), lambda d: (d, 0, 0)),
        ],
        out_specs=pl.BlockSpec((None, S, B, H), lambda d: (d, 0, 0, 0)),
        compiler_params=pltpu.CompilerParams(
            dimension_semantics=("parallel",),
            vmem_limit_bytes=32 * 1024 * 1024),
    )(xp_enc, whh_stack)

    # Re-assemble [fwd | bwd] on the feature axis (bwd states flipped back to natural order).
    fwd_h = enc_out[0]                              # (S, B, H)
    bwd_h = jnp.flip(enc_out[1], axis=0)            # (S, B, H)
    enc_rep = jnp.transpose(jnp.concatenate([fwd_h, bwd_h], axis=-1), (1, 0, 2))  # (B, S, 2H)

    # hoisted encoder-side attention projection (done once, not per decode step)
    enc_proj = jnp.einsum("bsd,hd->bsh", enc_rep, p["attn_w"][:, :2 * H])      # (B, S, H)
    w_attn_h = p["attn_w"][:, 2 * H:].T                                        # (H, H)

    # ----- decoder precomputation (glue GEMMs, step-invariant pieces) -----
    dec_emb = emb[dec_ids].astype(f32)                                         # (B, T, E)
    xp_dec = jnp.transpose(
        jnp.einsum("bte,ge->btg", dec_emb, p["dec_w_ih"]) + p["dec_b"],
        (1, 0, 2))                                                             # (T, B, 4H)
    emb0 = dec_emb[:, 0, :]                                                    # (B, E) first token — matches reference
    copy_const = emb0 @ p["copy_w"][:, 3 * H:].T + p["copy_b"]                 # (B, 1)

    w_out_enc = p["out_w"][:, :2 * H].T                                        # (2H, E)
    w_out_h = p["out_w"][:, 2 * H:].T                                          # (H, E)
    wc_enc = p["copy_w"][:, :2 * H]                                            # (1, 2H)
    wc_h = p["copy_w"][:, 2 * H:3 * H]                                         # (1, H)

    dec_tgt_in = jnp.transpose(dec_tgt).astype(jnp.int32)[:, :, None]          # (T, B, 1)
    enc_ids_in = enc_ids.astype(jnp.int32)                                     # (B, S)

    predict_out, cov_out = pl.pallas_call(
        decode_step_kernel,
        out_shape=(jax.ShapeDtypeStruct((T, B, 1), f32),
                   jax.ShapeDtypeStruct((T, B, 1), f32)),
        grid_spec=pltpu.PrefetchScalarGridSpec(
            num_scalar_prefetch=0,
            grid=(nb, T),
            in_specs=[
                pl.BlockSpec((T, B_TILE, 4 * H), lambda b, t: (0, b, 0)),   # x-proj (dec), resident
                pl.BlockSpec((B_TILE, S, 2 * H), lambda b, t: (b, 0, 0)),   # enc_rep, resident
                pl.BlockSpec((B_TILE, S, H), lambda b, t: (b, 0, 0)),       # enc_proj, resident
                pl.BlockSpec((B_TILE, S), lambda b, t: (b, 0)),             # enc ids, resident
                pl.BlockSpec((T, B_TILE, 1), lambda b, t: (0, b, 0)),       # dec targets, resident
                pl.BlockSpec((B_TILE, 1), lambda b, t: (b, 0)),             # copy emb const
                pl.BlockSpec((H, 4 * H), lambda b, t: (0, 0)),              # dec W_hh^T
                pl.BlockSpec((H, H), lambda b, t: (0, 0)),                  # attn W (h)^T
                pl.BlockSpec((1, H), lambda b, t: (0, 0)),                  # attn_coverage
                pl.BlockSpec((1, H), lambda b, t: (0, 0)),                  # attn_v
                pl.BlockSpec((1, H), lambda b, t: (0, 0)),                  # attn_bias
                pl.BlockSpec((2 * H, E), lambda b, t: (0, 0)),              # out W (enc)^T
                pl.BlockSpec((H, E), lambda b, t: (0, 0)),                  # out W (h)^T
                pl.BlockSpec((1, E), lambda b, t: (0, 0)),                  # out bias
                pl.BlockSpec((E, V), lambda b, t: (0, 0)),                  # embedding^T
                pl.BlockSpec((1, V), lambda b, t: (0, 0)),                  # generate_bias
                pl.BlockSpec((1, 2 * H), lambda b, t: (0, 0)),              # copy W (enc)
                pl.BlockSpec((1, H), lambda b, t: (0, 0)),                  # copy W (h)
            ],
            out_specs=[pl.BlockSpec((T, B_TILE, 1), lambda b, t: (0, b, 0)),
                       pl.BlockSpec((T, B_TILE, 1), lambda b, t: (0, b, 0))],
            scratch_shapes=[pltpu.VMEM((B_TILE, H), f32),
                            pltpu.VMEM((B_TILE, H), f32),
                            pltpu.VMEM((B_TILE, S), f32)],
        ),
        compiler_params=pltpu.CompilerParams(
            dimension_semantics=("parallel", "arbitrary"),
            vmem_limit_bytes=32 * 1024 * 1024),
    )(xp_dec, enc_rep, enc_proj, enc_ids_in, dec_tgt_in, copy_const,
      p["dec_w_hh"].T, w_attn_h,
      p["attn_cov"].reshape(1, H), p["attn_v"].reshape(1, H), p["attn_bias"].reshape(1, H),
      w_out_enc, w_out_h, p["out_b"].reshape(1, E),
      emb.T, p["gen_bias"].reshape(1, V),
      wc_enc, wc_h)

    # ----- loss assembly (tiny glue; kernel already gathered target probabilities) -----
    predict = jnp.transpose(predict_out[:, :, 0])      # (B, T)
    covs = jnp.transpose(cov_out[:, :, 0])             # (B, T)
    dec_loss = -jnp.log(predict + eps)
    init_loss = dec_loss + lambda_cov * covs
    mask = (dec_tgt != 0).astype(f32)
    loss = jnp.sum(init_loss * mask) / jnp.sum(dec_tgt != 0)
    return loss


# ----------------------------------------------------------------------------
# Pure-JAX reference (same math, no Pallas)
# ----------------------------------------------------------------------------
def s2s_forward_reference(p, enc_ids, dec_ids, dec_tgt, lambda_cov, eps):
    emb = p["embedding"]
    V, E = emb.shape
    H = p["dec_w_hh"].shape[1]
    B, S = enc_ids.shape
    T = dec_ids.shape[1]

    def cell(x, h, c, w_ih, w_hh, b):
        gates = x @ w_ih.T + h @ w_hh.T + b
        i = jax.nn.sigmoid(gates[:, 0:H])
        f = jax.nn.sigmoid(gates[:, H:2 * H])
        g = jnp.tanh(gates[:, 2 * H:3 * H])
        o = jax.nn.sigmoid(gates[:, 3 * H:4 * H])
        c = f * c + i * g
        return o * jnp.tanh(c), c

    enc_e = emb[enc_ids]
    h = c = jnp.zeros((B, H), jnp.float32)
    fwd = []
    for s in range(S):
        h, c = cell(enc_e[:, s], h, c, p["enc_w_ih_f"], p["enc_w_hh_f"], p["enc_b_f"])
        fwd.append(h)
    h = c = jnp.zeros((B, H), jnp.float32)
    bwd = [None] * S
    for s in reversed(range(S)):
        h, c = cell(enc_e[:, s], h, c, p["enc_w_ih_b"], p["enc_w_hh_b"], p["enc_b_b"])
        bwd[s] = h
    enc_rep = jnp.concatenate([jnp.stack(fwd, 1), jnp.stack(bwd, 1)], axis=-1)

    dec_e = emb[dec_ids]
    onehot = jax.nn.one_hot(enc_ids, V, dtype=jnp.float32)
    h = c = jnp.zeros((B, H), jnp.float32)
    sum_attn = jnp.zeros((B, S), jnp.float32)
    probs_list, cov_list = [], []
    for t in range(T):
        for k in range(t + 1):
            h, c = cell(dec_e[:, k], h, c, p["dec_w_ih"], p["dec_w_hh"], p["dec_b"])
        emb_t = dec_e[:, 0]
        last_h = h
        cat = jnp.concatenate(
            [enc_rep, jnp.broadcast_to(last_h[:, None, :], (B, S, H))], axis=-1)
        av = cat @ p["attn_w"].T
        av = av + sum_attn[:, :, None] * p["attn_cov"][None, None, :]
        av = jnp.tanh(av + p["attn_bias"][None, None, :])
        score = jnp.sum(av * p["attn_v"][None, None, :], axis=-1)
        attn_prob = jax.nn.softmax(score, axis=-1)
        sum_enc = jnp.einsum("bsd,bs->bd", enc_rep, attn_prob)
        dec_rep = jnp.concatenate([sum_enc, last_h], -1) @ p["out_w"].T + p["out_b"]
        vprob = jax.nn.softmax(dec_rep @ emb.T + p["gen_bias"], axis=-1)
        copy_in = jnp.concatenate([sum_enc, last_h, emb_t], -1)
        combine = jax.nn.sigmoid(copy_in @ p["copy_w"].T + p["copy_b"])
        vprob = combine * vprob
        vprob = vprob + jnp.einsum("bsv,bs->bv", onehot, attn_prob * (1 - combine))
        cov_t = jnp.sum(jnp.where(sum_attn > attn_prob, attn_prob, sum_attn), -1)
        sum_attn = sum_attn + attn_prob
        probs_list.append(vprob[:, None, :])
        cov_list.append(cov_t[:, None])

    predict = jnp.concatenate(probs_list, 1).reshape(-1, V)
    tgt = dec_tgt.reshape(-1)
    predict = predict[jnp.arange(B * T), tgt]
    init_loss = -jnp.log(predict + eps) + lambda_cov * jnp.concatenate(cov_list, -1).reshape(-1)
    mask = (tgt != 0).astype(jnp.float32)
    return jnp.sum(init_loss * mask) / jnp.sum(tgt != 0)


# ----------------------------------------------------------------------------
def init_params(key, V, E, H):
    ks = jax.random.split(key, 24)
    n = lambda k, s, sc=0.1: (sc * jax.random.normal(k, s)).astype(jnp.float32)
    return {
        "embedding": n(ks[0], (V, E)),
        "enc_w_ih_f": n(ks[1], (4 * H, E)), "enc_w_hh_f": n(ks[2], (4 * H, H)),
        "enc_b_f": n(ks[3], (4 * H,)),
        "enc_w_ih_b": n(ks[4], (4 * H, E)), "enc_w_hh_b": n(ks[5], (4 * H, H)),
        "enc_b_b": n(ks[6], (4 * H,)),
        "dec_w_ih": n(ks[7], (4 * H, E)), "dec_w_hh": n(ks[8], (4 * H, H)),
        "dec_b": n(ks[9], (4 * H,)),
        "attn_w": n(ks[10], (H, 3 * H)),
        "attn_cov": n(ks[11], (H,)),
        "attn_v": n(ks[12], (H,)),
        "attn_bias": n(ks[13], (H,)),
        "out_w": n(ks[14], (E, 3 * H)), "out_b": n(ks[15], (E,)),
        "gen_bias": n(ks[16], (V,)),                       # is_embedding_share=True
        "copy_w": n(ks[17], (1, 3 * H + E)), "copy_b": n(ks[18], (1,)),
    }


if __name__ == "__main__":
    V, E, H = 128, 32, 32        # vocab, embedding dim, hidden dim
    B, S, T = 2, 8, 4            # batch, encoder seq len, max_question_len
    LAMBDA_COV = 0.5
    EPS = 1e-6

    key = jax.random.PRNGKey(0)
    kp, k1, k2, k3 = jax.random.split(key, 4)
    params = init_params(kp, V, E, H)

    encoder_input_ids = jax.random.randint(k1, (B, S), 1, V, dtype=jnp.int32)
    decoder_input_ids = jax.random.randint(k2, (B, T), 1, V, dtype=jnp.int32)
    decoder_target = jax.random.randint(k3, (B, T), 1, V, dtype=jnp.int32)
    decoder_target = decoder_target.at[0, -1].set(0)   # exercise the padding mask

    forward = jax.jit(s2s_forward_pallas)
    loss = forward(params, encoder_input_ids, decoder_input_ids,
                   decoder_target, LAMBDA_COV, EPS)
    loss = jax.block_until_ready(loss)

    loss_ref = s2s_forward_reference(params, encoder_input_ids, decoder_input_ids,
                                     decoder_target, LAMBDA_COV, EPS)
    assert np.isfinite(float(loss))
    assert np.allclose(float(loss), float(loss_ref), rtol=5e-3, atol=5e-3), \
        (float(loss), float(loss_ref))

    print("KERNEL_OK")
</pallas_src>

<mosaic_0001>
module attributes {stable_mosaic.version = 11 : i64} {
  func.func @encoder_lstm_kernel(%arg0: i32, %arg1: memref<1x8x2x128xf32, #tpu.memory_space<vmem>>, %arg2: memref<1x32x128xf32, #tpu.memory_space<vmem>>, %arg3: memref<1x8x2x32xf32, #tpu.memory_space<vmem>>) attributes {dimension_semantics = [#tpu.dimension_semantics<parallel>], iteration_bounds = array<i64: 2>, scalar_prefetch = 0 : i64, scratch_operands = 0 : i64, tpu.core_type = #tpu.core_type<tc>, window_params = [{transform_indices = @transform_0, window_bounds = array<i64: 1, 8, 2, 128>}, {transform_indices = @transform_1, window_bounds = array<i64: 1, 32, 128>}, {transform_indices = @transform_2, window_bounds = array<i64: 1, 8, 2, 32>}]} {
    %c0 = arith.constant 0 : index
    %c0_0 = arith.constant 0 : index
    %c0_1 = arith.constant 0 : index
    %0 = vector.load %arg2[%c0, %c0_0, %c0_1] : memref<1x32x128xf32, #tpu.memory_space<vmem>>, vector<1x32x128xf32>
    %1 = vector.shape_cast %0 : vector<1x32x128xf32> to vector<32x128xf32>
    %2 = tpu.iota {dimensions = array<i32: 1>} : vector<2x128xi32>
    %c64_i32 = arith.constant 64 : i32
    %3 = vector.broadcast %c64_i32 : i32 to vector<2x128xi32>
    %4 = arith.cmpi sge, %2, %3 : vector<2x128xi32>
    %c96_i32 = arith.constant 96 : i32
    %5 = vector.broadcast %c96_i32 : i32 to vector<2x128xi32>
    %6 = arith.cmpi slt, %2, %5 : vector<2x128xi32>
    %7 = arith.andi %4, %6 : vector<2x128xi1>
    %cst = arith.constant 0.000000e+00 : f32
    %8 = vector.broadcast %cst : f32 to vector<2x32xf32>
    %cst_2 = arith.constant 0.000000e+00 : f32
    %9 = vector.broadcast %cst_2 : f32 to vector<2x32xf32>
    %c0_i32 = arith.constant 0 : i32
    %c0_3 = arith.constant 0 : index
    %10 = arith.index_cast %c0_i32 : i32 to index
    %c0_4 = arith.constant 0 : index
    %c0_5 = arith.constant 0 : index
    %11 = vector.load %arg1[%c0_3, %10, %c0_4, %c0_5] : memref<1x8x2x128xf32, #tpu.memory_space<vmem>>, vector<1x1x2x128xf32>
    %12 = vector.shape_cast %11 : vector<1x1x2x128xf32> to vector<2x128xf32>
    %cst_6 = arith.constant dense<0.000000e+00> : vector<2x128xf32>
    %13 = tpu.matmul %8, %1, %cst_6 {dimension_numbers = #tpu.dot_dimension_numbers<[1], [0], [0], [1], [0, 0, 1, 1], [], []>, precision = #tpu.contract_precision<fp32>} : vector<2x32xf32>, vector<32x128xf32>, vector<2x128xf32> -> vector<2x128xf32>
    %14 = arith.addf %12, %13 : vector<2x128xf32>
    %15 = math.tanh %14 : vector<2x128xf32>
    %16 = arith.negf %14 : vector<2x128xf32>
    %17 = math.exp %16 : vector<2x128xf32>
    %cst_7 = arith.constant 1.000000e+00 : f32
    %18 = vector.broadcast %cst_7 : f32 to vector<2x128xf32>
    %19 = arith.addf %18, %17 : vector<2x128xf32>
    %20 = arith.divf %18, %19 : vector<2x128xf32>
    %21 = arith.select %7, %15, %20 : vector<2x128xi1>, vector<2x128xf32>
    %22 = vector.extract_strided_slice %21 {offsets = [0, 0], sizes = [2, 32], strides = [1, 1]} : vector<2x128xf32> to vector<2x32xf32>
    %23 = vector.extract_strided_slice %21 {offsets = [0, 32], sizes = [2, 32], strides = [1, 1]} : vector<2x128xf32> to vector<2x32xf32>
    %24 = vector.extract_strided_slice %21 {offsets = [0, 64], sizes = [2, 32], strides = [1, 1]} : vector<2x128xf32> to vector<2x32xf32>
    %25 = vector.extract_strided_slice %21 {offsets = [0, 96], sizes = [2, 32], strides = [1, 1]} : vector<2x128xf32> to vector<2x32xf32>
    %26 = arith.mulf %23, %9 : vector<2x32xf32>
    %27 = arith.mulf %22, %24 : vector<2x32xf32>
    %28 = arith.addf %26, %27 : vector<2x32xf32>
    %29 = math.tanh %28 : vector<2x32xf32>
    %30 = arith.mulf %25, %29 : vector<2x32xf32>
    %c0_8 = arith.constant 0 : index
    %31 = arith.index_cast %c0_i32 : i32 to index
    %c0_9 = arith.constant 0 : index
    %c0_10 = arith.constant 0 : index
    %32 = vector.load %arg3[%c0_8, %31, %c0_9, %c0_10] : memref<1x8x2x32xf32, #tpu.memory_space<vmem>>, vector<1x1x2x32xf32>
    %33 = vector.shape_cast %32 : vector<1x1x2x32xf32> to vector<2x32xf32>
    %34 = vector.shape_cast %30 : vector<2x32xf32> to vector<1x1x2x32xf32>
    tpu.vector_store %arg3[%c0_8, %31, %c0_9, %c0_10], %34 {strides = array<i32>} : memref<1x8x2x32xf32, #tpu.memory_space<vmem>>, vector<1x1x2x32xf32>,
    %c1_i32 = arith.constant 1 : i32
    %c0_11 = arith.constant 0 : index
    %35 = arith.index_cast %c1_i32 : i32 to index
    %c0_12 = arith.constant 0 : index
    %c0_13 = arith.constant 0 : index
    %36 = vector.load %arg1[%c0_11, %35, %c0_12, %c0_13] : memref<1x8x2x128xf32, #tpu.memory_space<vmem>>, vector<1x1x2x128xf32>
    %37 = vector.shape_cast %36 : vector<1x1x2x128xf32> to vector<2x128xf32>
    %cst_14 = arith.constant dense<0.000000e+00> : vector<2x128xf32>
    %38 = tpu.matmul %30, %1, %cst_14 {dimension_numbers = #tpu.dot_dimension_numbers<[1], [0], [0], [1], [0, 0, 1, 1], [], []>, precision = #tpu.contract_precision<fp32>} : vector<2x32xf32>, vector<32x128xf32>, vector<2x128xf32> -> vector<2x128xf32>
    %39 = arith.addf %37, %38 : vector<2x128xf32>
    %40 = math.tanh %39 : vector<2x128xf32>
    %41 = arith.negf %39 : vector<2x128xf32>
    %42 = math.exp %41 : vector<2x128xf32>
    %cst_15 = arith.constant 1.000000e+00 : f32
    %43 = vector.broadcast %cst_15 : f32 to vector<2x128xf32>
    %44 = arith.addf %43, %42 : vector<2x128xf32>
    %45 = arith.divf %43, %44 : vector<2x128xf32>
    %46 = arith.select %7, %40, %45 : vector<2x128xi1>, vector<2x128xf32>
    %47 = vector.extract_strided_slice %46 {offsets = [0, 0], sizes = [2, 32], strides = [1, 1]} : vector<2x128xf32> to vector<2x32xf32>
    %48 = vector.extract_strided_slice %46 {offsets = [0, 32], sizes = [2, 32], strides = [1, 1]} : vector<2x128xf32> to vector<2x32xf32>
    %49 = vector.extract_strided_slice %46 {offsets = [0, 64], sizes = [2, 32], strides = [1, 1]} : vector<2x128xf32> to vector<2x32xf32>
    %50 = vector.extract_strided_slice %46 {offsets = [0, 96], sizes = [2, 32], strides = [1, 1]} : vector<2x128xf32> to vector<2x32xf32>
    %51 = arith.mulf %48, %28 : vector<2x32xf32>
    %52 = arith.mulf %47, %49 : vector<2x32xf32>
    %53 = arith.addf %51, %52 : vector<2x32xf32>
    %54 = math.tanh %53 : vector<2x32xf32>
    %55 = arith.mulf %50, %54 : vector<2x32xf32>
    %c0_16 = arith.constant 0 : index
    %56 = arith.index_cast %c1_i32 : i32 to index
    %c0_17 = arith.constant 0 : index
    %c0_18 = arith.constant 0 : index
    %57 = vector.load %arg3[%c0_16, %56, %c0_17, %c0_18] : memref<1x8x2x32xf32, #tpu.memory_space<vmem>>, vector<1x1x2x32xf32>
    %58 = vector.shape_cast %57 : vector<1x1x2x32xf32> to vector<2x32xf32>
    %59 = vector.shape_cast %55 : vector<2x32xf32> to vector<1x1x2x32xf32>
    tpu.vector_store %arg3[%c0_16, %56, %c0_17, %c0_18], %59 {strides = array<i32>} : memref<1x8x2x32xf32, #tpu.memory_space<vmem>>, vector<1x1x2x32xf32>,
    %c2_i32 = arith.constant 2 : i32
    %c0_19 = arith.constant 0 : index
    %60 = arith.index_cast %c2_i32 : i32 to index
    %c0_20 = arith.constant 0 : index
    %c0_21 = arith.constant 0 : index
    %61 = vector.load %arg1[%c0_19, %60, %c0_20, %c0_21] : memref<1x8x2x128xf32, #tpu.memory_space<vmem>>, vector<1x1x2x128xf32>
    %62 = vector.shape_cast %61 : vector<1x1x2x128xf32> to vector<2x128xf32>
    %cst_22 = arith.constant dense<0.000000e+00> : vector<2x128xf32>
    %63 = tpu.matmul %55, %1, %cst_22 {dimension_numbers = #tpu.dot_dimension_numbers<[1], [0], [0], [1], [0, 0, 1, 1], [], []>, precision = #tpu.contract_precision<fp32>} : vector<2x32xf32>, vector<32x128xf32>, vector<2x128xf32> -> vector<2x128xf32>
    %64 = arith.addf %62, %63 : vector<2x128xf32>
    %65 = math.tanh %64 : vector<2x128xf32>
    %66 = arith.negf %64 : vector<2x128xf32>
    %67 = math.exp %66 : vector<2x128xf32>
    %cst_23 = arith.constant 1.000000e+00 : f32
    %68 = vector.broadcast %cst_23 : f32 to vector<2x128xf32>
    %69 = arith.addf %68, %67 : vector<2x128xf32>
    %70 = arith.divf %68, %69 : vector<2x128xf32>
    %71 = arith.select %7, %65, %70 : vector<2x128xi1>, vector<2x128xf32>
    %72 = vector.extract_strided_slice %71 {offsets = [0, 0], sizes = [2, 32], strides = [1, 1]} : vector<2x128xf32> to vector<2x32xf32>
    %73 = vector.extract_strided_slice %71 {offsets = [0, 32], sizes = [2, 32], strides = [1, 1]} : vector<2x128xf32> to vector<2x32xf32>
    %74 = vector.extract_strided_slice %71 {offsets = [0, 64], sizes = [2, 32], strides = [1, 1]} : vector<2x128xf32> to vector<2x32xf32>
    %75 = vector.extract_strided_slice %71 {offsets = [0, 96], sizes = [2, 32], strides = [1, 1]} : vector<2x128xf32> to vector<2x32xf32>
    %76 = arith.mulf %73, %53 : vector<2x32xf32>
    %77 = arith.mulf %72, %74 : vector<2x32xf32>
    %78 = arith.addf %76, %77 : vector<2x32xf32>
    %79 = math.tanh %78 : vector<2x32xf32>
    %80 = arith.mulf %75, %79 : vector<2x32xf32>
    %c0_24 = arith.constant 0 : index
    %81 = arith.index_cast %c2_i32 : i32 to index
    %c0_25 = arith.constant 0 : index
    %c0_26 = arith.constant 0 : index
    %82 = vector.load %arg3[%c0_24, %81, %c0_25, %c0_26] : memref<1x8x2x32xf32, #tpu.memory_space<vmem>>, vector<1x1x2x32xf32>
    %83 = vector.shape_cast %82 : vector<1x1x2x32xf32> to vector<2x32xf32>
    %84 = vector.shape_cast %80 : vector<2x32xf32> to vector<1x1x2x32xf32>
    tpu.vector_store %arg3[%c0_24, %81, %c0_25, %c0_26], %84 {strides = array<i32>} : memref<1x8x2x32xf32, #tpu.memory_space<vmem>>, vector<1x1x2x32xf32>,
    %c3_i32 = arith.constant 3 : i32
    %c0_27 = arith.constant 0 : index
    %85 = arith.index_cast %c3_i32 : i32 to index
    %c0_28 = arith.constant 0 : index
    %c0_29 = arith.constant 0 : index
    %86 = vector.load %arg1[%c0_27, %85, %c0_28, %c0_29] : memref<1x8x2x128xf32, #tpu.memory_space<vmem>>, vector<1x1x2x128xf32>
    %87 = vector.shape_cast %86 : vector<1x1x2x128xf32> to vector<2x128xf32>
    %cst_30 = arith.constant dense<0.000000e+00> : vector<2x128xf32>
    %88 = tpu.matmul %80, %1, %cst_30 {dimension_numbers = #tpu.dot_dimension_numbers<[1], [0], [0], [1], [0, 0, 1, 1], [], []>, precision = #tpu.contract_precision<fp32>} : vector<2x32xf32>, vector<32x128xf32>, vector<2x128xf32> -> vector<2x128xf32>
    %89 = arith.addf %87, %88 : vector<2x128xf32>
    %90 = math.tanh %89 : vector<2x128xf32>
    %91 = arith.negf %89 : vector<2x128xf32>
    %92 = math.exp %91 : vector<2x128xf32>
    %cst_31 = arith.constant 1.000000e+00 : f32
    %93 = vector.broadcast %cst_31 : f32 to vector<2x128xf32>
    %94 = arith.addf %93, %92 : vector<2x128xf32>
    %95 = arith.divf %93, %94 : vector<2x128xf32>
    %96 = arith.select %7, %90, %95 : vector<2x128xi1>, vector<2x128xf32>
    %97 = vector.extract_strided_slice %96 {offsets = [0, 0], sizes = [2, 32], strides = [1, 1]} : vector<2x128xf32> to vector<2x32xf32>
    %98 = vector.extract_strided_slice %96 {offsets = [0, 32], sizes = [2, 32], strides = [1, 1]} : vector<2x128xf32> to vector<2x32xf32>
    %99 = vector.extract_strided_slice %96 {offsets = [0, 64], sizes = [2, 32], strides = [1, 1]} : vector<2x128xf32> to vector<2x32xf32>
    %100 = vector.extract_strided_slice %96 {offsets = [0, 96], sizes = [2, 32], strides = [1, 1]} : vector<2x128xf32> to vector<2x32xf32>
    %101 = arith.mulf %98, %78 : vector<2x32xf32>
    %102 = arith.mulf %97, %99 : vector<2x32xf32>
    %103 = arith.addf %101, %102 : vector<2x32xf32>
    %104 = math.tanh %103 : vector<2x32xf32>
    %105 = arith.mulf %100, %104 : vector<2x32xf32>
    %c0_32 = arith.constant 0 : index
    %106 = arith.index_cast %c3_i32 : i32 to index
    %c0_33 = arith.constant 0 : index
    %c0_34 = arith.constant 0 : index
    %107 = vector.load %arg3[%c0_32, %106, %c0_33, %c0_34] : memref<1x8x2x32xf32, #tpu.memory_space<vmem>>, vector<1x1x2x32xf32>
    %108 = vector.shape_cast %107 : vector<1x1x2x32xf32> to vector<2x32xf32>
    %109 = vector.shape_cast %105 : vector<2x32xf32> to vector<1x1x2x32xf32>
    tpu.vector_store %arg3[%c0_32, %106, %c0_33, %c0_34], %109 {strides = array<i32>} : memref<1x8x2x32xf32, #tpu.memory_space<vmem>>, vector<1x1x2x32xf32>,
    %c4_i32 = arith.constant 4 : i32
    %c0_35 = arith.constant 0 : index
    %110 = arith.index_cast %c4_i32 : i32 to index
    %c0_36 = arith.constant 0 : index
    %c0_37 = arith.constant 0 : index
    %111 = vector.load %arg1[%c0_35, %110, %c0_36, %c0_37] : memref<1x8x2x128xf32, #tpu.memory_space<vmem>>, vector<1x1x2x128xf32>
    %112 = vector.shape_cast %111 : vector<1x1x2x128xf32> to vector<2x128xf32>
    %cst_38 = arith.constant dense<0.000000e+00> : vector<2x128xf32>
    %113 = tpu.matmul %105, %1, %cst_38 {dimension_numbers = #tpu.dot_dimension_numbers<[1], [0], [0], [1], [0, 0, 1, 1], [], []>, precision = #tpu.contract_precision<fp32>} : vector<2x32xf32>, vector<32x128xf32>, vector<2x128xf32> -> vector<2x128xf32>
    %114 = arith.addf %112, %113 : vector<2x128xf32>
    %115 = math.tanh %114 : vector<2x128xf32>
    %116 = arith.negf %114 : vector<2x128xf32>
    %117 = math.exp %116 : vector<2x128xf32>
    %cst_39 = arith.constant 1.000000e+00 : f32
    %118 = vector.broadcast %cst_39 : f32 to vector<2x128xf32>
    %119 = arith.addf %118, %117 : vector<2x128xf32>
    %120 = arith.divf %118, %119 : vector<2x128xf32>
    %121 = arith.select %7, %115, %120 : vector<2x128xi1>, vector<2x128xf32>
    %122 = vector.extract_strided_slice %121 {offsets = [0, 0], sizes = [2, 32], strides = [1, 1]} : vector<2x128xf32> to vector<2x32xf32>
    %123 = vector.extract_strided_slice %121 {offsets = [0, 32], sizes = [2, 32], strides = [1, 1]} : vector<2x128xf32> to vector<2x32xf32>
    %124 = vector.extract_strided_slice %121 {offsets = [0, 64], sizes = [2, 32], strides = [1, 1]} : vector<2x128xf32> to vector<2x32xf32>
    %125 = vector.extract_strided_slice %121 {offsets = [0, 96], sizes = [2, 32], strides = [1, 1]} : vector<2x128xf32> to vector<2x32xf32>
    %126 = arith.mulf %123, %103 : vector<2x32xf32>
    %127 = arith.mulf %122, %124 : vector<2x32xf32>
    %128 = arith.addf %126, %127 : vector<2x32xf32>
    %129 = math.tanh %128 : vector<2x32xf32>
    %130 = arith.mulf %125, %129 : vector<2x32xf32>
    %c0_40 = arith.constant 0 : index
    %131 = arith.index_cast %c4_i32 : i32 to index
    %c0_41 = arith.constant 0 : index
    %c0_42 = arith.constant 0 : index
    %132 = vector.load %arg3[%c0_40, %131, %c0_41, %c0_42] : memref<1x8x2x32xf32, #tpu.memory_space<vmem>>, vector<1x1x2x32xf32>
    %133 = vector.shape_cast %132 : vector<1x1x2x32xf32> to vector<2x32xf32>
    %134 = vector.shape_cast %130 : vector<2x32xf32> to vector<1x1x2x32xf32>
    tpu.vector_store %arg3[%c0_40, %131, %c0_41, %c0_42], %134 {strides = array<i32>} : memref<1x8x2x32xf32, #tpu.memory_space<vmem>>, vector<1x1x2x32xf32>,
    %c5_i32 = arith.constant 5 : i32
    %c0_43 = arith.constant 0 : index
    %135 = arith.index_cast %c5_i32 : i32 to index
    %c0_44 = arith.constant 0 : index
    %c0_45 = arith.constant 0 : index
    %136 = vector.load %arg1[%c0_43, %135, %c0_44, %c0_45] : memref<1x8x2x128xf32, #tpu.memory_space<vmem>>, vector<1x1x2x128xf32>
    %137 = vector.shape_cast %136 : vector<1x1x2x128xf32> to vector<2x128xf32>
    %cst_46 = arith.constant dense<0.000000e+00> : vector<2x128xf32>
    %138 = tpu.matmul %130, %1, %cst_46 {dimension_numbers = #tpu.dot_dimension_numbers<[1], [0], [0], [1], [0, 0, 1, 1], [], []>, precision = #tpu.contract_precision<fp32>} : vector<2x32xf32>, vector<32x128xf32>, vector<2x128xf32> -> vector<2x128xf32>
    %139 = arith.addf %137, %138 : vector<2x128xf32>
    %140 = math.tanh %139 : vector<2x128xf32>
    %141 = arith.negf %139 : vector<2x128xf32>
    %142 = math.exp %141 : vector<2x128xf32>
    %cst_47 = arith.constant 1.000000e+00 : f32
    %143 = vector.broadcast %cst_47 : f32 to vector<2x128xf32>
    %144 = arith.addf %143, %142 : vector<2x128xf32>
    %145 = arith.divf %143, %144 : vector<2x128xf32>
    %146 = arith.select %7, %140, %145 : vector<2x128xi1>, vector<2x128xf32>
    %147 = vector.extract_strided_slice %146 {offsets = [0, 0], sizes = [2, 32], strides = [1, 1]} : vector<2x128xf32> to vector<2x32xf32>
    %148 = vector.extract_strided_slice %146 {offsets = [0, 32], sizes = [2, 32], strides = [1, 1]} : vector<2x128xf32> to vector<2x32xf32>
    %149 = vector.extract_strided_slice %146 {offsets = [0, 64], sizes = [2, 32], strides = [1, 1]} : vector<2x128xf32> to vector<2x32xf32>
    %150 = vector.extract_strided_slice %146 {offsets = [0, 96], sizes = [2, 32], strides = [1, 1]} : vector<2x128xf32> to vector<2x32xf32>
    %151 = arith.mulf %148, %128 : vector<2x32xf32>
    %152 = arith.mulf %147, %149 : vector<2x32xf32>
    %153 = arith.addf %151, %152 : vector<2x32xf32>
    %154 = math.tanh %153 : vector<2x32xf32>
    %155 = arith.mulf %150, %154 : vector<2x32xf32>
    %c0_48 = arith.constant 0 : index
    %156 = arith.index_cast %c5_i32 : i32 to index
    %c0_49 = arith.constant 0 : index
    %c0_50 = arith.constant 0 : index
    %157 = vector.load %arg3[%c0_48, %156, %c0_49, %c0_50] : memref<1x8x2x32xf32, #tpu.memory_space<vmem>>, vector<1x1x2x32xf32>
    %158 = vector.shape_cast %157 : vector<1x1x2x32xf32> to vector<2x32xf32>
    %159 = vector.shape_cast %155 : vector<2x32xf32> to vector<1x1x2x32xf32>
    tpu.vector_store %arg3[%c0_48, %156, %c0_49, %c0_50], %159 {strides = array<i32>} : memref<1x8x2x32xf32, #tpu.memory_space<vmem>>, vector<1x1x2x32xf32>,
    %c6_i32 = arith.constant 6 : i32
    %c0_51 = arith.constant 0 : index
    %160 = arith.index_cast %c6_i32 : i32 to index
    %c0_52 = arith.constant 0 : index
    %c0_53 = arith.constant 0 : index
    %161 = vector.load %arg1[%c0_51, %160, %c0_52, %c0_53] : memref<1x8x2x128xf32, #tpu.memory_space<vmem>>, vector<1x1x2x128xf32>
    %162 = vector.shape_cast %161 : vector<1x1x2x128xf32> to vector<2x128xf32>
    %cst_54 = arith.constant dense<0.000000e+00> : vector<2x128xf32>
    %163 = tpu.matmul %155, %1, %cst_54 {dimension_numbers = #tpu.dot_dimension_numbers<[1], [0], [0], [1], [0, 0, 1, 1], [], []>, precision = #tpu.contract_precision<fp32>} : vector<2x32xf32>, vector<32x128xf32>, vector<2x128xf32> -> vector<2x128xf32>
    %164 = arith.addf %162, %163 : vector<2x128xf32>
    %165 = math.tanh %164 : vector<2x128xf32>
    %166 = arith.negf %164 : vector<2x128xf32>
    %167 = math.exp %166 : vector<2x128xf32>
    %cst_55 = arith.constant 1.000000e+00 : f32
    %168 = vector.broadcast %cst_55 : f32 to vector<2x128xf32>
    %169 = arith.addf %168, %167 : vector<2x128xf32>
    %170 = arith.divf %168, %169 : vector<2x128xf32>
    %171 = arith.select %7, %165, %170 : vector<2x128xi1>, vector<2x128xf32>
    %172 = vector.extract_strided_slice %171 {offsets = [0, 0], sizes = [2, 32], strides = [1, 1]} : vector<2x128xf32> to vector<2x32xf32>
    %173 = vector.extract_strided_slice %171 {offsets = [0, 32], sizes = [2, 32], strides = [1, 1]} : vector<2x128xf32> to vector<2x32xf32>
    %174 = vector.extract_strided_slice %171 {offsets = [0, 64], sizes = [2, 32], strides = [1, 1]} : vector<2x128xf32> to vector<2x32xf32>
    %175 = vector.extract_strided_slice %171 {offsets = [0, 96], sizes = [2, 32], strides = [1, 1]} : vector<2x128xf32> to vector<2x32xf32>
    %176 = arith.mulf %173, %153 : vector<2x32xf32>
    %177 = arith.mulf %172, %174 : vector<2x32xf32>
    %178 = arith.addf %176, %177 : vector<2x32xf32>
    %179 = math.tanh %178 : vector<2x32xf32>
    %180 = arith.mulf %175, %179 : vector<2x32xf32>
    %c0_56 = arith.constant 0 : index
    %181 = arith.index_cast %c6_i32 : i32 to index
    %c0_57 = arith.constant 0 : index
    %c0_58 = arith.constant 0 : index
    %182 = vector.load %arg3[%c0_56, %181, %c0_57, %c0_58] : memref<1x8x2x32xf32, #tpu.memory_space<vmem>>, vector<1x1x2x32xf32>
    %183 = vector.shape_cast %182 : vector<1x1x2x32xf32> to vector<2x32xf32>
    %184 = vector.shape_cast %180 : vector<2x32xf32> to vector<1x1x2x32xf32>
    tpu.vector_store %arg3[%c0_56, %181, %c0_57, %c0_58], %184 {strides = array<i32>} : memref<1x8x2x32xf32, #tpu.memory_space<vmem>>, vector<1x1x2x32xf32>,
    %c7_i32 = arith.constant 7 : i32
    %c0_59 = arith.constant 0 : index
    %185 = arith.index_cast %c7_i32 : i32 to index
    %c0_60 = arith.constant 0 : index
    %c0_61 = arith.constant 0 : index
    %186 = vector.load %arg1[%c0_59, %185, %c0_60, %c0_61] : memref<1x8x2x128xf32, #tpu.memory_space<vmem>>, vector<1x1x2x128xf32>
    %187 = vector.shape_cast %186 : vector<1x1x2x128xf32> to vector<2x128xf32>
    %cst_62 = arith.constant dense<0.000000e+00> : vector<2x128xf32>
    %188 = tpu.matmul %180, %1, %cst_62 {dimension_numbers = #tpu.dot_dimension_numbers<[1], [0], [0], [1], [0, 0, 1, 1], [], []>, precision = #tpu.contract_precision<fp32>} : vector<2x32xf32>, vector<32x128xf32>, vector<2x128xf32> -> vector<2x128xf32>
    %189 = arith.addf %187, %188 : vector<2x128xf32>
    %190 = math.tanh %189 : vector<2x128xf32>
    %191 = arith.negf %189 : vector<2x128xf32>
    %192 = math.exp %191 : vector<2x128xf32>
    %cst_63 = arith.constant 1.000000e+00 : f32
    %193 = vector.broadcast %cst_63 : f32 to vector<2x128xf32>
    %194 = arith.addf %193, %192 : vector<2x128xf32>
    %195 = arith.divf %193, %194 : vector<2x128xf32>
    %196 = arith.select %7, %190, %195 : vector<2x128xi1>, vector<2x128xf32>
    %197 = vector.extract_strided_slice %196 {offsets = [0, 0], sizes = [2, 32], strides = [1, 1]} : vector<2x128xf32> to vector<2x32xf32>
    %198 = vector.extract_strided_slice %196 {offsets = [0, 32], sizes = [2, 32], strides = [1, 1]} : vector<2x128xf32> to vector<2x32xf32>
    %199 = vector.extract_strided_slice %196 {offsets = [0, 64], sizes = [2, 32], strides = [1, 1]} : vector<2x128xf32> to vector<2x32xf32>
    %200 = vector.extract_strided_slice %196 {offsets = [0, 96], sizes = [2, 32], strides = [1, 1]} : vector<2x128xf32> to vector<2x32xf32>
    %201 = arith.mulf %198, %178 : vector<2x32xf32>
    %202 = arith.mulf %197, %199 : vector<2x32xf32>
    %203 = arith.addf %201, %202 : vector<2x32xf32>
    %204 = math.tanh %203 : vector<2x32xf32>
    %205 = arith.mulf %200, %204 : vector<2x32xf32>
    %c0_64 = arith.constant 0 : index
    %206 = arith.index_cast %c7_i32 : i32 to index
    %c0_65 = arith.constant 0 : index
    %c0_66 = arith.constant 0 : index
    %207 = vector.load %arg3[%c0_64, %206, %c0_65, %c0_66] : memref<1x8x2x32xf32, #tpu.memory_space<vmem>>, vector<1x1x2x32xf32>
    %208 = vector.shape_cast %207 : vector<1x1x2x32xf32> to vector<2x32xf32>
    %209 = vector.shape_cast %205 : vector<2x32xf32> to vector<1x1x2x32xf32>
    tpu.vector_store %arg3[%c0_64, %206, %c0_65, %c0_66], %209 {strides = array<i32>} : memref<1x8x2x32xf32, #tpu.memory_space<vmem>>, vector<1x1x2x32xf32>,
    %c8_i32 = arith.constant 8 : i32
    return
  }
  func.func @transform_0(%arg0: i32) -> (i32, i32, i32, i32) {
    %c0_i32 = arith.constant 0 : i32
    %c0_i32_0 = arith.constant 0 : i32
    %c0_i32_1 = arith.constant 0 : i32
    %c0_i32_2 = arith.constant 0 : i32
    return %arg0, %c0_i32, %c0_i32_0, %c0_i32_1 : i32, i32, i32, i32
  }
  func.func @transform_1(%arg0: i32) -> (i32, i32, i32) {
    %c0_i32 = arith.constant 0 : i32
    %c0_i32_0 = arith.constant 0 : i32
    %c0_i32_1 = arith.constant 0 : i32
    return %arg0, %c0_i32, %c0_i32_0 : i32, i32, i32
  }
  func.func @transform_2(%arg0: i32) -> (i32, i32, i32, i32) {
    %c0_i32 = arith.constant 0 : i32
    %c0_i32_0 = arith.constant 0 : i32
    %c0_i32_1 = arith.constant 0 : i32
    %c0_i32_2 = arith.constant 0 : i32
    return %arg0, %c0_i32, %c0_i32_0, %c0_i32_1 : i32, i32, i32, i32
  }
}

module attributes {stable_mosaic.version = 11 : i64} {
  func.func @decode_step_kernel(%arg0: i32, %arg1: i32, %arg2: memref<4x2x128xf32, #tpu.memory_space<vmem>>, %arg3: memref<2x8x64xf32, #tpu.memory_space<vmem>>, %arg4: memref<2x8x32xf32, #tpu.memory_space<vmem>>, %arg5: memref<2x8xi32, #tpu.memory_space<vmem>>, %arg6: memref<4x2x1xi32, #tpu.memory_space<vmem>>, %arg7: memref<2x1xf32, #tpu.memory_space<vmem>>, %arg8: memref<32x128xf32, #tpu.memory_space<vmem>>, %arg9: memref<32x32xf32, #tpu.memory_space<vmem>>, %arg10: memref<1x32xf32, #tpu.memory_space<vmem>>, %arg11: memref<1x32xf32, #tpu.memory_space<vmem>>, %arg12: memref<1x32xf32, #tpu.memory_space<vmem>>, %arg13: memref<64x32xf32, #tpu.memory_space<vmem>>, %arg14: memref<32x32xf32, #tpu.memory_space<vmem>>, %arg15: memref<1x32xf32, #tpu.memory_space<vmem>>, %arg16: memref<32x128xf32, #tpu.memory_space<vmem>>, %arg17: memref<1x128xf32, #tpu.memory_space<vmem>>, %arg18: memref<1x64xf32, #tpu.memory_space<vmem>>, %arg19: memref<1x32xf32, #tpu.memory_space<vmem>>, %arg20: memref<4x2x1xf32, #tpu.memory_space<vmem>>, %arg21: memref<4x2x1xf32, #tpu.memory_space<vmem>>, %arg22: memref<2x32xf32, #tpu.memory_space<vmem>>, %arg23: memref<2x32xf32, #tpu.memory_space<vmem>>, %arg24: memref<2x8xf32, #tpu.memory_space<vmem>>) attributes {dimension_semantics = [#tpu.dimension_semantics<parallel>, #tpu.dimension_semantics<arbitrary>], iteration_bounds = array<i64: 1, 4>, scalar_prefetch = 0 : i64, scratch_operands = 3 : i64, tpu.core_type = #tpu.core_type<tc>, window_params = [{transform_indices = @transform_0, window_bounds = array<i64: 4, 2, 128>}, {transform_indices = @transform_1, window_bounds = array<i64: 2, 8, 64>}, {transform_indices = @transform_2, window_bounds = array<i64: 2, 8, 32>}, {transform_indices = @transform_3, window_bounds = array<i64: 2, 8>}, {transform_indices = @transform_4, window_bounds = array<i64: 4, 2, 1>}, {transform_indices = @transform_5, window_bounds = array<i64: 2, 1>}, {pipeline_mode = #tpu.pipeline_mode<synchronous>, transform_indices = @transform_6, window_bounds = array<i64: 32, 128>}, {pipeline_mode = #tpu.pipeline_mode<synchronous>, transform_indices = @transform_7, window_bounds = array<i64: 32, 32>}, {pipeline_mode = #tpu.pipeline_mode<synchronous>, transform_indices = @transform_8, window_bounds = array<i64: 1, 32>}, {pipeline_mode = #tpu.pipeline_mode<synchronous>, transform_indices = @transform_9, window_bounds = array<i64: 1, 32>}, {pipeline_mode = #tpu.pipeline_mode<synchronous>, transform_indices = @transform_10, window_bounds = array<i64: 1, 32>}, {pipeline_mode = #tpu.pipeline_mode<synchronous>, transform_indices = @transform_11, window_bounds = array<i64: 64, 32>}, {pipeline_mode = #tpu.pipeline_mode<synchronous>, transform_indices = @transform_12, window_bounds = array<i64: 32, 32>}, {pipeline_mode = #tpu.pipeline_mode<synchronous>, transform_indices = @transform_13, window_bounds = array<i64: 1, 32>}, {pipeline_mode = #tpu.pipeline_mode<synchronous>, transform_indices = @transform_14, window_bounds = array<i64: 32, 128>}, {pipeline_mode = #tpu.pipeline_mode<synchronous>, transform_indices = @transform_15, window_bounds = array<i64: 1, 128>}, {pipeline_mode = #tpu.pipeline_mode<synchronous>, transform_indices = @transform_16, window_bounds = array<i64: 1, 64>}, {pipeline_mode = #tpu.pipeline_mode<synchronous>, transform_indices = @transform_17, window_bounds = array<i64: 1, 32>}, {transform_indices = @transform_18, window_bounds = array<i64: 4, 2, 1>}, {transform_indices = @transform_19, window_bounds = array<i64: 4, 2, 1>}]} {
    %c0_i32 = arith.constant 0 : i32
    %0 = arith.cmpi eq, %arg1, %c0_i32 : i32
    %1 = arith.extui %0 : i1 to i32
    %c0_i32_0 = arith.constant 0 : i32
    %2 = arith.cmpi ne, %1, %c0_i32_0 : i32
    scf.if %2 {
      %cst_72 = arith.constant 0.000000e+00 : f32
      %134 = vector.broadcast %cst_72 : f32 to vector<2x32xf32>
      %c0_73 = arith.constant 0 : index
      %c0_74 = arith.constant 0 : index
      %135 = vector.load %arg22[%c0_73, %c0_74] : memref<2x32xf32, #tpu.memory_space<vmem>>, vector<2x32xf32>
      tpu.vector_store %arg22[%c0_73, %c0_74], %134 {strides = array<i32>} : memref<2x32xf32, #tpu.memory_space<vmem>>, vector<2x32xf32>,
      %cst_75 = arith.constant 0.000000e+00 : f32
      %136 = vector.broadcast %cst_75 : f32 to vector<2x32xf32>
      %c0_76 = arith.constant 0 : index
      %c0_77 = arith.constant 0 : index
      %137 = vector.load %arg23[%c0_76, %c0_77] : memref<2x32xf32, #tpu.memory_space<vmem>>, vector<2x32xf32>
      tpu.vector_store %arg23[%c0_76, %c0_77], %136 {strides = array<i32>} : memref<2x32xf32, #tpu.memory_space<vmem>>, vector<2x32xf32>,
      %cst_78 = arith.constant 0.000000e+00 : f32
      %138 = vector.broadcast %cst_78 : f32 to vector<2x8xf32>
      %c0_79 = arith.constant 0 : index
      %c0_80 = arith.constant 0 : index
      %139 = vector.load %arg24[%c0_79, %c0_80] : memref<2x8xf32, #tpu.memory_space<vmem>>, vector<2x8xf32>
      tpu.vector_store %arg24[%c0_79, %c0_80], %138 {strides = array<i32>} : memref<2x8xf32, #tpu.memory_space<vmem>>, vector<2x8xf32>,
    } else {
    }
    %c0 = arith.constant 0 : index
    %c0_1 = arith.constant 0 : index
    %3 = vector.load %arg8[%c0, %c0_1] : memref<32x128xf32, #tpu.memory_space<vmem>>, vector<32x128xf32>
    %4 = tpu.iota {dimensions = array<i32: 1>} : vector<2x128xi32>
    %c64_i32 = arith.constant 64 : i32
    %5 = vector.broadcast %c64_i32 : i32 to vector<2x128xi32>
    %6 = arith.cmpi sge, %4, %5 : vector<2x128xi32>
    %c96_i32 = arith.constant 96 : i32
    %7 = vector.broadcast %c96_i32 : i32 to vector<2x128xi32>
    %8 = arith.cmpi slt, %4, %7 : vector<2x128xi32>
    %9 = arith.andi %6, %8 : vector<2x128xi1>
    %c1_i32 = arith.constant 1 : i32
    %10 = arith.addi %arg1, %c1_i32 : i32
    %c0_2 = arith.constant 0 : index
    %c0_3 = arith.constant 0 : index
    %11 = vector.load %arg22[%c0_2, %c0_3] : memref<2x32xf32, #tpu.memory_space<vmem>>, vector<2x32xf32>
    %c0_4 = arith.constant 0 : index
    %c0_5 = arith.constant 0 : index
    %12 = vector.load %arg23[%c0_4, %c0_5] : memref<2x32xf32, #tpu.memory_space<vmem>>, vector<2x32xf32>
    %c0_i32_6 = arith.constant 0 : i32
    %13 = arith.subi %10, %c0_i32_6 : i32
    %14 = arith.addi %c0_i32_6, %13 : i32
    %c1_i32_7 = arith.constant 1 : i32
    %15:2 = scf.for %arg25 = %c0_i32_6 to %14 step %c1_i32_7 iter_args(%arg26 = %11, %arg27 = %12) -> (vector<2x32xf32>, vector<2x32xf32>)  : i32 {
      %134 = arith.index_cast %arg25 : i32 to index
      %c0_72 = arith.constant 0 : index
      %c0_73 = arith.constant 0 : index
      %135 = vector.load %arg2[%134, %c0_72, %c0_73] : memref<4x2x128xf32, #tpu.memory_space<vmem>>, vector<1x2x128xf32>
      %136 = vector.shape_cast %135 : vector<1x2x128xf32> to vector<2x128xf32>
      %cst_74 = arith.constant dense<0.000000e+00> : vector<2x128xf32>
      %137 = tpu.matmul %arg26, %3, %cst_74 {dimension_numbers = #tpu.dot_dimension_numbers<[1], [0], [0], [1], [0, 0, 1, 1], [], []>, precision = #tpu.contract_precision<fp32>} : vector<2x32xf32>, vector<32x128xf32>, vector<2x128xf32> -> vector<2x128xf32>
      %138 = arith.addf %136, %137 : vector<2x128xf32>
      %139 = math.tanh %138 : vector<2x128xf32>
      %140 = arith.negf %138 : vector<2x128xf32>
      %141 = math.exp %140 : vector<2x128xf32>
      %cst_75 = arith.constant 1.000000e+00 : f32
      %142 = vector.broadcast %cst_75 : f32 to vector<2x128xf32>
      %143 = arith.addf %142, %141 : vector<2x128xf32>
      %144 = arith.divf %142, %143 : vector<2x128xf32>
      %145 = arith.select %9, %139, %144 : vector<2x128xi1>, vector<2x128xf32>
      %146 = vector.extract_strided_slice %145 {offsets = [0, 0], sizes = [2, 32], strides = [1, 1]} : vector<2x128xf32> to vector<2x32xf32>
      %147 = vector.extract_strided_slice %145 {offsets = [0, 32], sizes = [2, 32], strides = [1, 1]} : vector<2x128xf32> to vector<2x32xf32>
      %148 = vector.extract_strided_slice %145 {offsets = [0, 64], sizes = [2, 32], strides = [1, 1]} : vector<2x128xf32> to vector<2x32xf32>
      %149 = vector.extract_strided_slice %145 {offsets = [0, 96], sizes = [2, 32], strides = [1, 1]} : vector<2x128xf32> to vector<2x32xf32>
      %150 = arith.mulf %147, %arg27 : vector<2x32xf32>
      %151 = arith.mulf %146, %148 : vector<2x32xf32>
      %152 = arith.addf %150, %151 : vector<2x32xf32>
      %153 = math.tanh %152 : vector<2x32xf32>
      %154 = arith.mulf %149, %153 : vector<2x32xf32>
      scf.yield %154, %152 : vector<2x32xf32>, vector<2x32xf32>
    }
    %c0_8 = arith.constant 0 : index
    %c0_9 = arith.constant 0 : index
    %16 = vector.load %arg22[%c0_8, %c0_9] : memref<2x32xf32, #tpu.memory_space<vmem>>, vector<2x32xf32>
    tpu.vector_store %arg22[%c0_8, %c0_9], %15#0 {strides = array<i32>} : memref<2x32xf32, #tpu.memory_space<vmem>>, vector<2x32xf32>,
    %c0_10 = arith.constant 0 : index
    %c0_11 = arith.constant 0 : index
    %17 = vector.load %arg23[%c0_10, %c0_11] : memref<2x32xf32, #tpu.memory_space<vmem>>, vector<2x32xf32>
    tpu.vector_store %arg23[%c0_10, %c0_11], %15#1 {strides = array<i32>} : memref<2x32xf32, #tpu.memory_space<vmem>>, vector<2x32xf32>,
    %c0_12 = arith.constant 0 : index
    %c0_13 = arith.constant 0 : index
    %18 = vector.load %arg24[%c0_12, %c0_13] : memref<2x8xf32, #tpu.memory_space<vmem>>, vector<2x8xf32>
    %c0_14 = arith.constant 0 : index
    %c0_15 = arith.constant 0 : index
    %19 = vector.load %arg9[%c0_14, %c0_15] : memref<32x32xf32, #tpu.memory_space<vmem>>, vector<32x32xf32>
    %cst = arith.constant dense<0.000000e+00> : vector<2x32xf32>
    %20 = tpu.matmul %15#0, %19, %cst {dimension_numbers = #tpu.dot_dimension_numbers<[1], [0], [0], [1], [0, 0, 1, 1], [], []>, precision = #tpu.contract_precision<fp32>} : vector<2x32xf32>, vector<32x32xf32>, vector<2x32xf32> -> vector<2x32xf32>
    %c0_16 = arith.constant 0 : index
    %c0_17 = arith.constant 0 : index
    %c0_18 = arith.constant 0 : index
    %21 = vector.load %arg4[%c0_16, %c0_17, %c0_18] : memref<2x8x32xf32, #tpu.memory_space<vmem>>, vector<2x8x32xf32>
    %22 = vector.shape_cast %20 : vector<2x32xf32> to vector<2x1x32xf32>
    %23 = vector.broadcast %22 : vector<2x1x32xf32> to vector<2x8x32xf32>
    %24 = arith.addf %21, %23 : vector<2x8x32xf32>
    %25 = vector.shape_cast %18 : vector<2x8xf32> to vector<2x8x1xf32>
    %c0_19 = arith.constant 0 : index
    %c0_20 = arith.constant 0 : index
    %26 = vector.load %arg10[%c0_19, %c0_20] : memref<1x32xf32, #tpu.memory_space<vmem>>, vector<1x32xf32>
    %27 = vector.shape_cast %26 : vector<1x32xf32> to vector<1x1x32xf32>
    %28 = vector.broadcast %25 : vector<2x8x1xf32> to vector<2x8x32xf32>
    %29 = vector.broadcast %27 : vector<1x1x32xf32> to vector<2x8x32xf32>
    %30 = arith.mulf %28, %29 : vector<2x8x32xf32>
    %31 = arith.addf %24, %30 : vector<2x8x32xf32>
    %c0_21 = arith.constant 0 : index
    %c0_22 = arith.constant 0 : index
    %32 = vector.load %arg12[%c0_21, %c0_22] : memref<1x32xf32, #tpu.memory_space<vmem>>, vector<1x32xf32>
    %33 = vector.shape_cast %32 : vector<1x32xf32> to vector<1x1x32xf32>
    %34 = vector.broadcast %33 : vector<1x1x32xf32> to vector<2x8x32xf32>
    %35 = arith.addf %31, %34 : vector<2x8x32xf32>
    %36 = math.tanh %35 : vector<2x8x32xf32>
    %c0_23 = arith.constant 0 : index
    %c0_24 = arith.constant 0 : index
    %37 = vector.load %arg11[%c0_23, %c0_24] : memref<1x32xf32, #tpu.memory_space<vmem>>, vector<1x32xf32>
    %38 = vector.shape_cast %37 : vector<1x32xf32> to vector<1x1x32xf32>
    %39 = vector.broadcast %38 : vector<1x1x32xf32> to vector<2x8x32xf32>
    %40 = arith.mulf %36, %39 : vector<2x8x32xf32>
    %cst_25 = arith.constant dense<0.000000e+00> : vector<2x8xf32>
    %41 = vector.multi_reduction <add>, %40, %cst_25 [2] : vector<2x8x32xf32> to vector<2x8xf32>
    %cst_26 = arith.constant dense<0xFF800000> : vector<2xf32>
    %42 = vector.multi_reduction <maximumf>, %41, %cst_26 [1] : vector<2x8xf32> to vector<2xf32>
    %43 = vector.shape_cast %42 : vector<2xf32> to vector<2x1xf32>
    %44 = vector.broadcast %43 : vector<2x1xf32> to vector<2x8xf32>
    %45 = arith.subf %41, %44 : vector<2x8xf32>
    %46 = math.exp %45 : vector<2x8xf32>
    %cst_27 = arith.constant dense<0.000000e+00> : vector<2xf32>
    %47 = vector.multi_reduction <add>, %46, %cst_27 [1] : vector<2x8xf32> to vector<2xf32>
    %48 = vector.shape_cast %47 : vector<2xf32> to vector<2x1xf32>
    %49 = tpu.reciprocal %48 {approx = true} : vector<2x1xf32> -> vector<2x1xf32>
    %50 = vector.broadcast %49 : vector<2x1xf32> to vector<2x8xf32>
    %51 = arith.mulf %46, %50 : vector<2x8xf32>
    %c0_28 = arith.constant 0 : index
    %c0_29 = arith.constant 0 : index
    %c0_30 = arith.constant 0 : index
    %52 = vector.load %arg3[%c0_28, %c0_29, %c0_30] : memref<2x8x64xf32, #tpu.memory_space<vmem>>, vector<2x8x64xf32>
    %53 = vector.shape_cast %51 : vector<2x8xf32> to vector<2x8x1xf32>
    %54 = vector.broadcast %53 : vector<2x8x1xf32> to vector<2x8x64xf32>
    %55 = arith.mulf %52, %54 : vector<2x8x64xf32>
    %cst_31 = arith.constant dense<0.000000e+00> : vector<2x64xf32>
    %56 = vector.multi_reduction <add>, %55, %cst_31 [1] : vector<2x8x64xf32> to vector<2x64xf32>
    %c0_32 = arith.constant 0 : index
    %c0_33 = arith.constant 0 : index
    %57 = vector.load %arg13[%c0_32, %c0_33] : memref<64x32xf32, #tpu.memory_space<vmem>>, vector<64x32xf32>
    %cst_34 = arith.constant dense<0.000000e+00> : vector<2x32xf32>
    %58 = tpu.matmul %56, %57, %cst_34 {dimension_numbers = #tpu.dot_dimension_numbers<[1], [0], [0], [1], [0, 0, 1, 1], [], []>, precision = #tpu.contract_precision<fp32>} : vector<2x64xf32>, vector<64x32xf32>, vector<2x32xf32> -> vector<2x32xf32>
    %c0_35 = arith.constant 0 : index
    %c0_36 = arith.constant 0 : index
    %59 = vector.load %arg14[%c0_35, %c0_36] : memref<32x32xf32, #tpu.memory_space<vmem>>, vector<32x32xf32>
    %cst_37 = arith.constant dense<0.000000e+00> : vector<2x32xf32>
    %60 = tpu.matmul %15#0, %59, %cst_37 {dimension_numbers = #tpu.dot_dimension_numbers<[1], [0], [0], [1], [0, 0, 1, 1], [], []>, precision = #tpu.contract_precision<fp32>} : vector<2x32xf32>, vector<32x32xf32>, vector<2x32xf32> -> vector<2x32xf32>
    %61 = arith.addf %58, %60 : vector<2x32xf32>
    %c0_38 = arith.constant 0 : index
    %c0_39 = arith.constant 0 : index
    %62 = vector.load %arg15[%c0_38, %c0_39] : memref<1x32xf32, #tpu.memory_space<vmem>>, vector<1x32xf32>
    %63 = vector.broadcast %62 : vector<1x32xf32> to vector<2x32xf32>
    %64 = arith.addf %61, %63 : vector<2x32xf32>
    %c0_40 = arith.constant 0 : index
    %c0_41 = arith.constant 0 : index
    %65 = vector.load %arg16[%c0_40, %c0_41] : memref<32x128xf32, #tpu.memory_space<vmem>>, vector<32x128xf32>
    %cst_42 = arith.constant dense<0.000000e+00> : vector<2x128xf32>
    %66 = tpu.matmul %64, %65, %cst_42 {dimension_numbers = #tpu.dot_dimension_numbers<[1], [0], [0], [1], [0, 0, 1, 1], [], []>, precision = #tpu.contract_precision<fp32>} : vector<2x32xf32>, vector<32x128xf32>, vector<2x128xf32> -> vector<2x128xf32>
    %c0_43 = arith.constant 0 : index
    %c0_44 = arith.constant 0 : index
    %67 = vector.load %arg17[%c0_43, %c0_44] : memref<1x128xf32, #tpu.memory_space<vmem>>, vector<1x128xf32>
    %68 = vector.broadcast %67 : vector<1x128xf32> to vector<2x128xf32>
    %69 = arith.addf %66, %68 : vector<2x128xf32>
    %cst_45 = arith.constant dense<0xFF800000> : vector<2xf32>
    %70 = vector.multi_reduction <maximumf>, %69, %cst_45 [1] : vector<2x128xf32> to vector<2xf32>
    %71 = vector.shape_cast %70 : vector<2xf32> to vector<2x1xf32>
    %72 = vector.broadcast %71 : vector<2x1xf32> to vector<2x128xf32>
    %73 = arith.subf %69, %72 : vector<2x128xf32>
    %74 = math.exp %73 : vector<2x128xf32>
    %cst_46 = arith.constant dense<0.000000e+00> : vector<2xf32>
    %75 = vector.multi_reduction <add>, %74, %cst_46 [1] : vector<2x128xf32> to vector<2xf32>
    %76 = vector.shape_cast %75 : vector<2xf32> to vector<2x1xf32>
    %77 = tpu.reciprocal %76 {approx = true} : vector<2x1xf32> -> vector<2x1xf32>
    %78 = vector.broadcast %77 : vector<2x1xf32> to vector<2x128xf32>
    %79 = arith.mulf %74, %78 : vector<2x128xf32>
    %c0_47 = arith.constant 0 : index
    %c0_48 = arith.constant 0 : index
    %80 = vector.load %arg18[%c0_47, %c0_48] : memref<1x64xf32, #tpu.memory_space<vmem>>, vector<1x64xf32>
    %81 = vector.broadcast %80 : vector<1x64xf32> to vector<2x64xf32>
    %82 = arith.mulf %56, %81 : vector<2x64xf32>
    %cst_49 = arith.constant dense<0.000000e+00> : vector<2xf32>
    %83 = vector.multi_reduction <add>, %82, %cst_49 [1] : vector<2x64xf32> to vector<2xf32>
    %84 = vector.shape_cast %83 : vector<2xf32> to vector<2x1xf32>
    %c0_50 = arith.constant 0 : index
    %c0_51 = arith.constant 0 : index
    %85 = vector.load %arg19[%c0_50, %c0_51] : memref<1x32xf32, #tpu.memory_space<vmem>>, vector<1x32xf32>
    %86 = vector.broadcast %85 : vector<1x32xf32> to vector<2x32xf32>
    %87 = arith.mulf %15#0, %86 : vector<2x32xf32>
    %cst_52 = arith.constant dense<0.000000e+00> : vector<2xf32>
    %88 = vector.multi_reduction <add>, %87, %cst_52 [1] : vector<2x32xf32> to vector<2xf32>
    %89 = vector.shape_cast %88 : vector<2xf32> to vector<2x1xf32>
    %90 = arith.addf %84, %89 : vector<2x1xf32>
    %c0_53 = arith.constant 0 : index
    %c0_54 = arith.constant 0 : index
    %91 = vector.load %arg7[%c0_53, %c0_54] : memref<2x1xf32, #tpu.memory_space<vmem>>, vector<2x1xf32>
    %92 = arith.addf %90, %91 : vector<2x1xf32>
    %93 = arith.negf %92 : vector<2x1xf32>
    %94 = math.exp %93 : vector<2x1xf32>
    %cst_55 = arith.constant 1.000000e+00 : f32
    %95 = vector.broadcast %cst_55 : f32 to vector<2x1xf32>
    %96 = arith.addf %95, %94 : vector<2x1xf32>
    %97 = arith.divf %95, %96 : vector<2x1xf32>
    %98 = arith.index_cast %arg1 : i32 to index
    %c0_56 = arith.constant 0 : index
    %c0_57 = arith.constant 0 : index
    %99 = vector.load %arg6[%98, %c0_56, %c0_57] : memref<4x2x1xi32, #tpu.memory_space<vmem>>, vector<1x2x1xi32>
    %100 = vector.shape_cast %99 : vector<1x2x1xi32> to vector<2x1xi32>
    %101 = tpu.iota {dimensions = array<i32: 1>} : vector<2x128xi32>
    %102 = vector.broadcast %100 : vector<2x1xi32> to vector<2x128xi32>
    %103 = arith.cmpi eq, %101, %102 : vector<2x128xi32>
    %cst_58 = arith.constant 0.000000e+00 : f32
    %104 = vector.broadcast %cst_58 : f32 to vector<2x128xf32>
    %105 = arith.select %103, %79, %104 : vector<2x128xi1>, vector<2x128xf32>
    %cst_59 = arith.constant dense<0.000000e+00> : vector<2xf32>
    %106 = vector.multi_reduction <add>, %105, %cst_59 [1] : vector<2x128xf32> to vector<2xf32>
    %107 = vector.shape_cast %106 : vector<2xf32> to vector<2x1xf32>
    %cst_60 = arith.constant 1.000000e+00 : f32
    %108 = vector.broadcast %cst_60 : f32 to vector<2x1xf32>
    %109 = arith.subf %108, %97 : vector<2x1xf32>
    %110 = vector.broadcast %109 : vector<2x1xf32> to vector<2x8xf32>
    %111 = arith.mulf %51, %110 : vector<2x8xf32>
    %c0_61 = arith.constant 0 : index
    %c0_62 = arith.constant 0 : index
    %112 = vector.load %arg5[%c0_61, %c0_62] : memref<2x8xi32, #tpu.memory_space<vmem>>, vector<2x8xi32>
    %113 = vector.broadcast %100 : vector<2x1xi32> to vector<2x8xi32>
    %114 = arith.cmpi eq, %112, %113 : vector<2x8xi32>
    %cst_63 = arith.constant 0.000000e+00 : f32
    %115 = vector.broadcast %cst_63 : f32 to vector<2x8xf32>
    %116 = arith.select %114, %111, %115 : vector<2x8xi1>, vector<2x8xf32>
    %cst_64 = arith.constant dense<0.000000e+00> : vector<2xf32>
    %117 = vector.multi_reduction <add>, %116, %cst_64 [1] : vector<2x8xf32> to vector<2xf32>
    %118 = vector.shape_cast %117 : vector<2xf32> to vector<2x1xf32>
    %119 = arith.mulf %97, %107 : vector<2x1xf32>
    %120 = arith.addf %119, %118 : vector<2x1xf32>
    %121 = arith.minimumf %18, %51 : vector<2x8xf32>
    %cst_65 = arith.constant dense<0.000000e+00> : vector<2xf32>
    %122 = vector.multi_reduction <add>, %121, %cst_65 [1] : vector<2x8xf32> to vector<2xf32>
    %123 = vector.shape_cast %122 : vector<2xf32> to vector<2x1xf32>
    %124 = arith.addf %18, %51 : vector<2x8xf32>
    %c0_66 = arith.constant 0 : index
    %c0_67 = arith.constant 0 : index
    %125 = vector.load %arg24[%c0_66, %c0_67] : memref<2x8xf32, #tpu.memory_space<vmem>>, vector<2x8xf32>
    tpu.vector_store %arg24[%c0_66, %c0_67], %124 {strides = array<i32>} : memref<2x8xf32, #tpu.memory_space<vmem>>, vector<2x8xf32>,
    %126 = arith.index_cast %arg1 : i32 to index
    %c0_68 = arith.constant 0 : index
    %c0_69 = arith.constant 0 : index
    %127 = vector.load %arg20[%126, %c0_68, %c0_69] : memref<4x2x1xf32, #tpu.memory_space<vmem>>, vector<1x2x1xf32>
    %128 = vector.shape_cast %127 : vector<1x2x1xf32> to vector<2x1xf32>
    %129 = vector.shape_cast %120 : vector<2x1xf32> to vector<1x2x1xf32>
    tpu.vector_store %arg20[%126, %c0_68, %c0_69], %129 {strides = array<i32>} : memref<4x2x1xf32, #tpu.memory_space<vmem>>, vector<1x2x1xf32>,
    %130 = arith.index_cast %arg1 : i32 to index
    %c0_70 = arith.constant 0 : index
    %c0_71 = arith.constant 0 : index
    %131 = vector.load %arg21[%130, %c0_70, %c0_71] : memref<4x2x1xf32, #tpu.memory_space<vmem>>, vector<1x2x1xf32>
    %132 = vector.shape_cast %131 : vector<1x2x1xf32> to vector<2x1xf32>
    %133 = vector.shape_cast %123 : vector<2x1xf32> to vector<1x2x1xf32>
    tpu.vector_store %arg21[%130, %c0_70, %c0_71], %133 {strides = array<i32>} : memref<4x2x1xf32, #tpu.memory_space<vmem>>, vector<1x2x1xf32>,
    return
  }
  func.func @transform_0(%arg0: i32, %arg1: i32) -> (i32, i32, i32) {
    %c0_i32 = arith.constant 0 : i32
    %c0_i32_0 = arith.constant 0 : i32
    %c0_i32_1 = arith.constant 0 : i32
    return %c0_i32, %arg0, %c0_i32_0 : i32, i32, i32
  }
  func.func @transform_1(%arg0: i32, %arg1: i32) -> (i32, i32, i32) {
    %c0_i32 = arith.constant 0 : i32
    %c0_i32_0 = arith.constant 0 : i32
    %c0_i32_1 = arith.constant 0 : i32
    return %arg0, %c0_i32, %c0_i32_0 : i32, i32, i32
  }
  func.func @transform_2(%arg0: i32, %arg1: i32) -> (i32, i32, i32) {
    %c0_i32 = arith.constant 0 : i32
    %c0_i32_0 = arith.constant 0 : i32
    %c0_i32_1 = arith.constant 0 : i32
    return %arg0, %c0_i32, %c0_i32_0 : i32, i32, i32
  }
  func.func @transform_3(%arg0: i32, %arg1: i32) -> (i32, i32) {
    %c0_i32 = arith.constant 0 : i32
    %c0_i32_0 = arith.constant 0 : i32
    return %arg0, %c0_i32 : i32, i32
  }
  func.func @transform_4(%arg0: i32, %arg1: i32) -> (i32, i32, i32) {
    %c0_i32 = arith.constant 0 : i32
    %c0_i32_0 = arith.constant 0 : i32
    %c0_i32_1 = arith.constant 0 : i32
    return %c0_i32, %arg0, %c0_i32_0 : i32, i32, i32
  }
  func.func @transform_5(%arg0: i32, %arg1: i32) -> (i32, i32) {
    %c0_i32 = arith.constant 0 : i32
    %c0_i32_0 = arith.constant 0 : i32
    return %arg0, %c0_i32 : i32, i32
  }
  func.func @transform_6(%arg0: i32, %arg1: i32) -> (i32, i32) {
    %c0_i32 = arith.constant 0 : i32
    %c0_i32_0 = arith.constant 0 : i32
    %c0_i32_1 = arith.constant 0 : i32
    return %c0_i32, %c0_i32_0 : i32, i32
  }
  func.func @transform_7(%arg0: i32, %arg1: i32) -> (i32, i32) {
    %c0_i32 = arith.constant 0 : i32
    %c0_i32_0 = arith.constant 0 : i32
    %c0_i32_1 = arith.constant 0 : i32
    return %c0_i32, %c0_i32_0 : i32, i32
  }
  func.func @transform_8(%arg0: i32, %arg1: i32) -> (i32, i32) {
    %c0_i32 = arith.constant 0 : i32
    %c0_i32_0 = arith.constant 0 : i32
    %c0_i32_1 = arith.constant 0 : i32
    return %c0_i32, %c0_i32_0 : i32, i32
  }
  func.func @transform_9(%arg0: i32, %arg1: i32) -> (i32, i32) {
    %c0_i32 = arith.constant 0 : i32
    %c0_i32_0 = arith.constant 0 : i32
    %c0_i32_1 = arith.constant 0 : i32
    return %c0_i32, %c0_i32_0 : i32, i32
  }
  func.func @transform_10(%arg0: i32, %arg1: i32) -> (i32, i32) {
    %c0_i32 = arith.constant 0 : i32
    %c0_i32_0 = arith.constant 0 : i32
    %c0_i32_1 = arith.constant 0 : i32
    return %c0_i32, %c0_i32_0 : i32, i32
  }
  func.func @transform_11(%arg0: i32, %arg1: i32) -> (i32, i32) {
    %c0_i32 = arith.constant 0 : i32
    %c0_i32_0 = arith.constant 0 : i32
    %c0_i32_1 = arith.constant 0 : i32
    return %c0_i32, %c0_i32_0 : i32, i32
  }
  func.func @transform_12(%arg0: i32, %arg1: i32) -> (i32, i32) {
    %c0_i32 = arith.constant 0 : i32
    %c0_i32_0 = arith.constant 0 : i32
    %c0_i32_1 = arith.constant 0 : i32
    return %c0_i32, %c0_i32_0 : i32, i32
  }
  func.func @transform_13(%arg0: i32, %arg1: i32) -> (i32, i32) {
    %c0_i32 = arith.constant 0 : i32
    %c0_i32_0 = arith.constant 0 : i32
    %c0_i32_1 = arith.constant 0 : i32
    return %c0_i32, %c0_i32_0 : i32, i32
  }
  func.func @transform_14(%arg0: i32, %arg1: i32) -> (i32, i32) {
    %c0_i32 = arith.constant 0 : i32
    %c0_i32_0 = arith.constant 0 : i32
    %c0_i32_1 = arith.constant 0 : i32
    return %c0_i32, %c0_i32_0 : i32, i32
  }
  func.func @transform_15(%arg0: i32, %arg1: i32) -> (i32, i32) {
    %c0_i32 = arith.constant 0 : i32
    %c0_i32_0 = arith.constant 0 : i32
    %c0_i32_1 = arith.constant 0 : i32
    return %c0_i32, %c0_i32_0 : i32, i32
  }
  func.func @transform_16(%arg0: i32, %arg1: i32) -> (i32, i32) {
    %c0_i32 = arith.constant 0 : i32
    %c0_i32_0 = arith.constant 0 : i32
    %c0_i32_1 = arith.constant 0 : i32
    return %c0_i32, %c0_i32_0 : i32, i32
  }
  func.func @transform_17(%arg0: i32, %arg1: i32) -> (i32, i32) {
    %c0_i32 = arith.constant 0 : i32
    %c0_i32_0 = arith.constant 0 : i32
    %c0_i32_1 = arith.constant 0 : i32
    return %c0_i32, %c0_i32_0 : i32, i32
  }
  func.func @transform_18(%arg0: i32, %arg1: i32) -> (i32, i32, i32) {
    %c0_i32 = arith.constant 0 : i32
    %c0_i32_0 = arith.constant 0 : i32
    %c0_i32_1 = arith.constant 0 : i32
    return %c0_i32, %arg0, %c0_i32_0 : i32, i32, i32
  }
  func.func @transform_19(%arg0: i32, %arg1: i32) -> (i32, i32, i32) {
    %c0_i32 = arith.constant 0 : i32
    %c0_i32_0 = arith.constant 0 : i32
    %c0_i32_1 = arith.constant 0 : i32
    return %c0_i32, %arg0, %c0_i32_0 : i32, i32, i32
  }
}

</mosaic_0001>

<llo_original>
// kernel: s2s_forward_pallas.3
$region0: #{s2s_forward_pallas.3}
  #allocation0 [shape = 'u32[]', space=smem, size = 0x4, offset = 0x4, fixed_abs, tag = 'smem constant byte address 0x4 - core index']
  #allocation1 [shape = 'u32[144,128]{1,0:T(1,128)}', space=vmem, size = 0x12000, scoped, tag = 'internal scratch']
  #allocation2 [shape = 'f32[2,32]{1,0:T(2,128)}', space=vmem, size = 0x400, scoped, tag = 'scratch operand']
  #allocation3 [shape = 'f32[2,32]{1,0:T(2,128)}', space=vmem, size = 0x400, scoped, tag = 'scratch operand']
  #allocation4 [shape = 'f32[2,8]{1,0:T(2,128)}', space=vmem, size = 0x400, scoped, tag = 'scratch operand']
  %s0 = inlined_call_operand.vmem [shape: f32[4,2,128], index: 0, kind: input, shape index: {}]
  %s1 = inlined_call_operand.vmem [shape: f32[2,8,64], index: 1, kind: input, shape index: {}]
  %s2 = inlined_call_operand.vmem [shape: f32[2,8,32], index: 2, kind: input, shape index: {}]
  %s3 = inlined_call_operand.vmem [shape: s32[2,8], index: 3, kind: input, shape index: {}]
  %s4 = inlined_call_operand.vmem [shape: s32[4,2,1], index: 4, kind: input, shape index: {}]
  %s5 = inlined_call_operand.vmem [shape: f32[2,1], index: 5, kind: input, shape index: {}]
  %s6 = inlined_call_operand.vmem [shape: f32[32,128], index: 6, kind: input, shape index: {}]
  %s7 = inlined_call_operand.vmem [shape: f32[32,32], index: 7, kind: input, shape index: {}]
  %s8 = inlined_call_operand.vmem [shape: f32[1,32], index: 8, kind: input, shape index: {}]
  %s9 = inlined_call_operand.vmem [shape: f32[1,32], index: 9, kind: input, shape index: {}]
  %s10 = inlined_call_operand.vmem [shape: f32[1,32], index: 10, kind: input, shape index: {}]
  %s11 = inlined_call_operand.vmem [shape: f32[64,32], index: 11, kind: input, shape index: {}]
  %s12 = inlined_call_operand.vmem [shape: f32[32,32], index: 12, kind: input, shape index: {}]
  %s13 = inlined_call_operand.vmem [shape: f32[1,32], index: 13, kind: input, shape index: {}]
  %s14 = inlined_call_operand.vmem [shape: f32[32,128], index: 14, kind: input, shape index: {}]
  %s15 = inlined_call_operand.vmem [shape: f32[1,128], index: 15, kind: input, shape index: {}]
  %s16 = inlined_call_operand.vmem [shape: f32[1,64], index: 16, kind: input, shape index: {}]
  %s17 = inlined_call_operand.vmem [shape: f32[1,32], index: 17, kind: input, shape index: {}]
  %s18 = inlined_call_operand.vmem [shape: f32[4,2,1], index: 18, kind: output, shape index: {0}]
  %s19 = inlined_call_operand.vmem [shape: f32[4,2,1], index: 19, kind: output, shape index: {1}]
  %20 = xla_tuple %s18, %s19
  %s21 = sld [smem:[#allocation0]]
  $region124: #{s2s_forward_pallas.3} parent=0
    _
  %s23 = ssub.s32 1, %s21
  %s24 = scalar_select 0, %s23, %s21
  loop: start=0, step=1, limit=6
  $region2: #{s2s_forward_pallas.3} parent=0 // loop_pre_header
    _
  $region3: #{s2s_forward_pallas.3} parent=0 // loop_header
    %s26 = sphi 0, %s30
    %p27 = scmp.ge.s32.totalorder %s26, 6
    %s33 = sphi 0, %s45
    %s34 = sphi 0, %s41
    %s35 = sphi 0, %s33
    %s36 = sphi 0, %s34
    %s37 = sphi 0, %s35
    %s38 = sphi 0, %s36
    %s48 = sphi 0, %s50
    %s51 = sphi 0, %s48
    %s52 = sphi 0, %s51
    %s68 = sphi 0, %s52
    %s74 = sphi 0, %s76
    %s77 = sphi 0, %s74
    %s78 = sphi 0, %s77
    %s94 = sphi 0, %s78
    %s100 = sphi 0, %s102
    %s103 = sphi 0, %s100
    %s104 = sphi 0, %s103
    %s120 = sphi 0, %s104
    %s126 = sphi 0, %s128
    %s129 = sphi 0, %s126
    %s130 = sphi 0, %s129
    %s146 = sphi 0, %s130
    %s152 = sphi 0, %s154
    %s155 = sphi 0, %s152
    %s156 = sphi 0, %s155
    %s172 = sphi 0, %s156
    %s178 = sphi 0, %s180
    %s181 = sphi 0, %s178
    %s182 = sphi 0, %s181
    %s198 = sphi 0, %s182
    %s202 = sphi 0, %s202
    %s204 = sphi 0, %s202
    %s205 = sphi 0, %s204
    %s219 = sphi 0, %s205
    %s223 = sphi 0, %s223
    %s225 = sphi 0, %s223
    %s226 = sphi 0, %s225
    %s240 = sphi 0, %s226
    %s244 = sphi 0, %s244
    %s246 = sphi 0, %s244
    %s247 = sphi 0, %s246
    %s261 = sphi 0, %s247
    %s265 = sphi 0, %s265
    %s267 = sphi 0, %s265
    %s268 = sphi 0, %s267
    %s282 = sphi 0, %s268
    %s286 = sphi 0, %s286
    %s288 = sphi 0, %s286
    %s289 = sphi 0, %s288
    %s303 = sphi 0, %s289
    %s307 = sphi 0, %s307
    %s309 = sphi 0, %s307
    %s310 = sphi 0, %s309
    %s324 = sphi 0, %s310
    %s328 = sphi 0, %s328
    %s330 = sphi 0, %s328
    %s331 = sphi 0, %s330
    %s345 = sphi 0, %s331
    %s349 = sphi 0, %s349
    %s351 = sphi 0, %s349
    %s352 = sphi 0, %s351
    %s366 = sphi 0, %s352
    %s370 = sphi 0, %s370
    %s372 = sphi 0, %s370
    %s373 = sphi 0, %s372
    %s387 = sphi 0, %s373
    %s391 = sphi 0, %s391
    %s393 = sphi 0, %s391
    %s394 = sphi 0, %s393
    %s408 = sphi 0, %s394
    %s412 = sphi 0, %s412
    %s414 = sphi 0, %s412
    %s415 = sphi 0, %s414
    %s429 = sphi 0, %s415
    %s433 = sphi 0, %s433
    %s435 = sphi 0, %s433
    %s436 = sphi 0, %s435
    %s450 = sphi 0, %s436
    %s456 = sphi 0, %s458
    %s459 = sphi 0, %s456
    %s460 = sphi 0, %s459
    %s476 = sphi 0, %s460
    %s482 = sphi 0, %s484
    %s485 = sphi 0, %s482
    %s486 = sphi 0, %s485
    %s502 = sphi 0, %s486
  $region4: #{s2s_forward_pallas.3} parent=0 // loop_header_branch
    %29 = sbr.rel (%p27) target = $region8
  $region5: #{s2s_forward_pallas.3} parent=0 // loop_body
    %s31 = ssub.s32 %s26, 1
    %s32 = ssub.s32 %s26, 2
    %s39 = sadd.s32 1, %s34
    %p40 = scmp.ge.s32.totalorder %s39, 4
    %s41 = scalar_select %p40, 0, %s39
    %s42 = sadd.s32 1, %s33
    %s43 = scalar_select %p40, %s42, %s33
    %p44 = scmp.ge.s32.totalorder %s43, 1
    %s45 = scalar_select %p44, 0, %s43
    %s46 = ssub.s32 %s33, %s45
    %p47 = scmp.eq.s32.totalorder %s46, 0
    %s49 = sadd.s32 %s48, 1
    %s50 = scalar_select %p47, %s48, %s49
    %p53 = pneg %p47
    %p54 = scmp.eq.s32.totalorder %s26, 3
    %p55 = por %p53, %p54
    %p56 = scmp.ne.s32.totalorder %s48, %s51
    %p57 = scmp.eq.s32.totalorder %s26, 0
    %p58 = por %p56, %p57
    %p59 = scmp.ne.s32.totalorder %s48, %s51
    %p60 = scmp.eq.s32.totalorder %s31, 3
    %p61 = por %p59, %p60
    %p62 = scmp.ne.s32.totalorder %s51, %s52
    %p63 = scmp.eq.s32.totalorder %s31, 0
    %p64 = por %p62, %p63
    %p65 = scmp.ne.s32.totalorder %s51, %s52
    %p66 = scmp.eq.s32.totalorder %s32, 3
    %p67 = por %p65, %p66
    %p69 = scmp.ne.s32.totalorder %s52, %s68
    %p70 = scmp.eq.s32.totalorder %s32, 0
    %p71 = por %p69, %p70
    %s72 = ssub.s32 %s33, %s45
    %p73 = scmp.eq.s32.totalorder %s72, 0
    %s75 = sadd.s32 %s74, 1
    %s76 = scalar_select %p73, %s74, %s75
    %p79 = pneg %p73
    %p80 = scmp.eq.s32.totalorder %s26, 3
    %p81 = por %p79, %p80
    %p82 = scmp.ne.s32.totalorder %s74, %s77
    %p83 = scmp.eq.s32.totalorder %s26, 0
    %p84 = por %p82, %p83
    %p85 = scmp.ne.s32.totalorder %s74, %s77
    %p86 = scmp.eq.s32.totalorder %s31, 3
    %p87 = por %p85, %p86
    %p88 = scmp.ne.s32.totalorder %s77, %s78
    %p89 = scmp.eq.s32.totalorder %s31, 0
    %p90 = por %p88, %p89
    %p91 = scmp.ne.s32.totalorder %s77, %s78
    %p92 = scmp.eq.s32.totalorder %s32, 3
    %p93 = por %p91, %p92
    %p95 = scmp.ne.s32.totalorder %s78, %s94
    %p96 = scmp.eq.s32.totalorder %s32, 0
    %p97 = por %p95, %p96
    %s98 = ssub.s32 %s33, %s45
    %p99 = scmp.eq.s32.totalorder %s98, 0
    %s101 = sadd.s32 %s100, 1
    %s102 = scalar_select %p99, %s100, %s101
    %p105 = pneg %p99
    %p106 = scmp.eq.s32.totalorder %s26, 3
    %p107 = por %p105, %p106
    %p108 = scmp.ne.s32.totalorder %s100, %s103
    %p109 = scmp.eq.s32.totalorder %s26, 0
    %p110 = por %p108, %p109
    %p111 = scmp.ne.s32.totalorder %s100, %s103
    %p112 = scmp.eq.s32.totalorder %s31, 3
    %p113 = por %p111, %p112
    %p114 = scmp.ne.s32.totalorder %s103, %s104
    %p115 = scmp.eq.s32.totalorder %s31, 0
    %p116 = por %p114, %p115
    %p117 = scmp.ne.s32.totalorder %s103, %s104
    %p118 = scmp.eq.s32.totalorder %s32, 3
    %p119 = por %p117, %p118
    %p121 = scmp.ne.s32.totalorder %s104, %s120
    %p122 = scmp.eq.s32.totalorder %s32, 0
    %p123 = por %p121, %p122
    %s124 = ssub.s32 %s33, %s45
    %p125 = scmp.eq.s32.totalorder %s124, 0
    %s127 = sadd.s32 %s126, 1
    %s128 = scalar_select %p125, %s126, %s127
    %p131 = pneg %p125
    %p132 = scmp.eq.s32.totalorder %s26, 3
    %p133 = por %p131, %p132
    %p134 = scmp.ne.s32.totalorder %s126, %s129
    %p135 = scmp.eq.s32.totalorder %s26, 0
    %p136 = por %p134, %p135
    %p137 = scmp.ne.s32.totalorder %s126, %s129
    %p138 = scmp.eq.s32.totalorder %s31, 3
    %p139 = por %p137, %p138
    %p140 = scmp.ne.s32.totalorder %s129, %s130
    %p141 = scmp.eq.s32.totalorder %s31, 0
    %p142 = por %p140, %p141
    %p143 = scmp.ne.s32.totalorder %s129, %s130
    %p144 = scmp.eq.s32.totalorder %s32, 3
    %p145 = por %p143, %p144
    %p147 = scmp.ne.s32.totalorder %s130, %s146
    %p148 = scmp.eq.s32.totalorder %s32, 0
    %p149 = por %p147, %p148
    %s150 = ssub.s32 %s33, %s45
    %p151 = scmp.eq.s32.totalorder %s150, 0
    %s153 = sadd.s32 %s152, 1
    %s154 = scalar_select %p151, %s152, %s153
    %p157 = pneg %p151
    %p158 = scmp.eq.s32.totalorder %s26, 3
    %p159 = por %p157, %p158
    %p160 = scmp.ne.s32.totalorder %s152, %s155
    %p161 = scmp.eq.s32.totalorder %s26, 0
    %p162 = por %p160, %p161
    %p163 = scmp.ne.s32.totalorder %s152, %s155
    %p164 = scmp.eq.s32.totalorder %s31, 3
    %p165 = por %p163, %p164
    %p166 = scmp.ne.s32.totalorder %s155, %s156
    %p167 = scmp.eq.s32.totalorder %s31, 0
    %p168 = por %p166, %p167
    %p169 = scmp.ne.s32.totalorder %s155, %s156
    %p170 = scmp.eq.s32.totalorder %s32, 3
    %p171 = por %p169, %p170
    %p173 = scmp.ne.s32.totalorder %s156, %s172
    %p174 = scmp.eq.s32.totalorder %s32, 0
    %p175 = por %p173, %p174
    %s176 = ssub.s32 %s33, %s45
    %p177 = scmp.eq.s32.totalorder %s176, 0
    %s179 = sadd.s32 %s178, 1
    %s180 = scalar_select %p177, %s178, %s179
    %p183 = pneg %p177
    %p184 = scmp.eq.s32.totalorder %s26, 3
    %p185 = por %p183, %p184
    %p186 = scmp.ne.s32.totalorder %s178, %s181
    %p187 = scmp.eq.s32.totalorder %s26, 0
    %p188 = por %p186, %p187
    %p189 = scmp.ne.s32.totalorder %s178, %s181
    %p190 = scmp.eq.s32.totalorder %s31, 3
    %p191 = por %p189, %p190
    %p192 = scmp.ne.s32.totalorder %s181, %s182
    %p193 = scmp.eq.s32.totalorder %s31, 0
    %p194 = por %p192, %p193
    %p195 = scmp.ne.s32.totalorder %s181, %s182
    %p196 = scmp.eq.s32.totalorder %s32, 3
    %p197 = por %p195, %p196
    %p199 = scmp.ne.s32.totalorder %s182, %s198
    %p200 = scmp.eq.s32.totalorder %s32, 0
    %p201 = por %p199, %p200
    %s203 = sadd.s32 %s202, 1
    %p206 = scmp.eq.s32.totalorder %s26, 3
    %p207 = scmp.ne.s32.totalorder %s202, %s204
    %p208 = scmp.eq.s32.totalorder %s26, 0
    %p209 = por %p207, %p208
    %p210 = scmp.ne.s32.totalorder %s202, %s204
    %p211 = scmp.eq.s32.totalorder %s31, 3
    %p212 = por %p210, %p211
    %p213 = scmp.ne.s32.totalorder %s204, %s205
    %p214 = scmp.eq.s32.totalorder %s31, 0
    %p215 = por %p213, %p214
    %p216 = scmp.ne.s32.totalorder %s204, %s205
    %p217 = scmp.eq.s32.totalorder %s32, 3
    %p218 = por %p216, %p217
    %p220 = scmp.ne.s32.totalorder %s205, %s219
    %p221 = scmp.eq.s32.totalorder %s32, 0
    %p222 = por %p220, %p221
    %s224 = sadd.s32 %s223, 1
    %p227 = scmp.eq.s32.totalorder %s26, 3
    %p228 = scmp.ne.s32.totalorder %s223, %s225
    %p229 = scmp.eq.s32.totalorder %s26, 0
    %p230 = por %p228, %p229
    %p231 = scmp.ne.s32.totalorder %s223, %s225
    %p232 = scmp.eq.s32.totalorder %s31, 3
    %p233 = por %p231, %p232
    %p234 = scmp.ne.s32.totalorder %s225, %s226
    %p235 = scmp.eq.s32.totalorder %s31, 0
    %p236 = por %p234, %p235
    %p237 = scmp.ne.s32.totalorder %s225, %s226
    %p238 = scmp.eq.s32.totalorder %s32, 3
    %p239 = por %p237, %p238
    %p241 = scmp.ne.s32.totalorder %s226, %s240
    %p242 = scmp.eq.s32.totalorder %s32, 0
    %p243 = por %p241, %p242
    %s245 = sadd.s32 %s244, 1
    %p248 = scmp.eq.s32.totalorder %s26, 3
    %p249 = scmp.ne.s32.totalorder %s244, %s246
    %p250 = scmp.eq.s32.totalorder %s26, 0
    %p251 = por %p249, %p250
    %p252 = scmp.ne.s32.totalorder %s244, %s246
    %p253 = scmp.eq.s32.totalorder %s31, 3
    %p254 = por %p252, %p253
    %p255 = scmp.ne.s32.totalorder %s246, %s247
    %p256 = scmp.eq.s32.totalorder %s31, 0
    %p257 = por %p255, %p256
    %p258 = scmp.ne.s32.totalorder %s246, %s247
    %p259 = scmp.eq.s32.totalorder %s32, 3
    %p260 = por %p258, %p259
    %p262 = scmp.ne.s32.totalorder %s247, %s261
    %p263 = scmp.eq.s32.totalorder %s32, 0
    %p264 = por %p262, %p263
    %s266 = sadd.s32 %s265, 1
    %p269 = scmp.eq.s32.totalorder %s26, 3
    %p270 = scmp.ne.s32.totalorder %s265, %s267
    %p271 = scmp.eq.s32.totalorder %s26, 0
    %p272 = por %p270, %p271
    %p273 = scmp.ne.s32.totalorder %s265, %s267
    %p274 = scmp.eq.s32.totalorder %s31, 3
    %p275 = por %p273, %p274
    %p276 = scmp.ne.s32.totalorder %s267, %s268
    %p277 = scmp.eq.s32.totalorder %s31, 0
    %p278 = por %p276, %p277
    %p279 = scmp.ne.s32.totalorder %s267, %s268
    %p280 = scmp.eq.s32.totalorder %s32, 3
    %p281 = por %p279, %p280
    %p283 = scmp.ne.s32.totalorder %s268, %s282
    %p284 = scmp.eq.s32.totalorder %s32, 0
    %p285 = por %p283, %p284
    %s287 = sadd.s32 %s286, 1
    %p290 = scmp.eq.s32.totalorder %s26, 3
    %p291 = scmp.ne.s32.totalorder %s286, %s288
    %p292 = scmp.eq.s32.totalorder %s26, 0
    %p293 = por %p291, %p292
    %p294 = scmp.ne.s32.totalorder %s286, %s288
    %p295 = scmp.eq.s32.totalorder %s31, 3
    %p296 = por %p294, %p295
    %p297 = scmp.ne.s32.totalorder %s288, %s289
    %p298 = scmp.eq.s32.totalorder %s31, 0
    %p299 = por %p297, %p298
    %p300 = scmp.ne.s32.totalorder %s288, %s289
    %p301 = scmp.eq.s32.totalorder %s32, 3
    %p302 = por %p300, %p301
    %p304 = scmp.ne.s32.totalorder %s289, %s303
    %p305 = scmp.eq.s32.totalorder %s32, 0
    %p306 = por %p304, %p305
    %s308 = sadd.s32 %s307, 1
    %p311 = scmp.eq.s32.totalorder %s26, 3
    %p312 = scmp.ne.s32.totalorder %s307, %s309
    %p313 = scmp.eq.s32.totalorder %s26, 0
    %p314 = por %p312, %p313
    %p315 = scmp.ne.s32.totalorder %s307, %s309
    %p316 = scmp.eq.s32.totalorder %s31, 3
    %p317 = por %p315, %p316
    %p318 = scmp.ne.s32.totalorder %s309, %s310
    %p319 = scmp.eq.s32.totalorder %s31, 0
    %p320 = por %p318, %p319
    %p321 = scmp.ne.s32.totalorder %s309, %s310
    %p322 = scmp.eq.s32.totalorder %s32, 3
    %p323 = por %p321, %p322
    %p325 = scmp.ne.s32.totalorder %s310, %s324
    %p326 = scmp.eq.s32.totalorder %s32, 0
    %p327 = por %p325, %p326
    %s329 = sadd.s32 %s328, 1
    %p332 = scmp.eq.s32.totalorder %s26, 3
    %p333 = scmp.ne.s32.totalorder %s328, %s330
    %p334 = scmp.eq.s32.totalorder %s26, 0
    %p335 = por %p333, %p334
    %p336 = scmp.ne.s32.totalorder %s328, %s330
    %p337 = scmp.eq.s32.totalorder %s31, 3
    %p338 = por %p336, %p337
    %p339 = scmp.ne.s32.totalorder %s330, %s331
    %p340 = scmp.eq.s32.totalorder %s31, 0
    %p341 = por %p339, %p340
    %p342 = scmp.ne.s32.totalorder %s330, %s331
    %p343 = scmp.eq.s32.totalorder %s32, 3
    %p344 = por %p342, %p343
    %p346 = scmp.ne.s32.totalorder %s331, %s345
    %p347 = scmp.eq.s32.totalorder %s32, 0
    %p348 = por %p346, %p347
    %s350 = sadd.s32 %s349, 1
    %p353 = scmp.eq.s32.totalorder %s26, 3
    %p354 = scmp.ne.s32.totalorder %s349, %s351
    %p355 = scmp.eq.s32.totalorder %s26, 0
    %p356 = por %p354, %p355
    %p357 = scmp.ne.s32.totalorder %s349, %s351
    %p358 = scmp.eq.s32.totalorder %s31, 3
    %p359 = por %p357, %p358
    %p360 = scmp.ne.s32.totalorder %s351, %s352
    %p361 = scmp.eq.s32.totalorder %s31, 0
    %p362 = por %p360, %p361
    %p363 = scmp.ne.s32.totalorder %s351, %s352
    %p364 = scmp.eq.s32.totalorder %s32, 3
    %p365 = por %p363, %p364
    %p367 = scmp.ne.s32.totalorder %s352, %s366
    %p368 = scmp.eq.s32.totalorder %s32, 0
    %p369 = por %p367, %p368
    %s371 = sadd.s32 %s370, 1
    %p374 = scmp.eq.s32.totalorder %s26, 3
    %p375 = scmp.ne.s32.totalorder %s370, %s372
    %p376 = scmp.eq.s32.totalorder %s26, 0
    %p377 = por %p375, %p376
    %p378 = scmp.ne.s32.totalorder %s370, %s372
    %p379 = scmp.eq.s32.totalorder %s31, 3
    %p380 = por %p378, %p379
    %p381 = scmp.ne.s32.totalorder %s372, %s373
    %p382 = scmp.eq.s32.totalorder %s31, 0
    %p383 = por %p381, %p382
    %p384 = scmp.ne.s32.totalorder %s372, %s373
    %p385 = scmp.eq.s32.totalorder %s32, 3
    %p386 = por %p384, %p385
    %p388 = scmp.ne.s32.totalorder %s373, %s387
    %p389 = scmp.eq.s32.totalorder %s32, 0
    %p390 = por %p388, %p389
    %s392 = sadd.s32 %s391, 1
    %p395 = scmp.eq.s32.totalorder %s26, 3
    %p396 = scmp.ne.s32.totalorder %s391, %s393
    %p397 = scmp.eq.s32.totalorder %s26, 0
    %p398 = por %p396, %p397
    %p399 = scmp.ne.s32.totalorder %s391, %s393
    %p400 = scmp.eq.s32.totalorder %s31, 3
    %p401 = por %p399, %p400
    %p402 = scmp.ne.s32.totalorder %s393, %s394
    %p403 = scmp.eq.s32.totalorder %s31, 0
    %p404 = por %p402, %p403
    %p405 = scmp.ne.s32.totalorder %s393, %s394
    %p406 = scmp.eq.s32.totalorder %s32, 3
    %p407 = por %p405, %p406
    %p409 = scmp.ne.s32.totalorder %s394, %s408
    %p410 = scmp.eq.s32.totalorder %s32, 0
    %p411 = por %p409, %p410
    %s413 = sadd.s32 %s412, 1
    %p416 = scmp.eq.s32.totalorder %s26, 3
    %p417 = scmp.ne.s32.totalorder %s412, %s414
    %p418 = scmp.eq.s32.totalorder %s26, 0
    %p419 = por %p417, %p418
    %p420 = scmp.ne.s32.totalorder %s412, %s414
    %p421 = scmp.eq.s32.totalorder %s31, 3
    %p422 = por %p420, %p421
    %p423 = scmp.ne.s32.totalorder %s414, %s415
    %p424 = scmp.eq.s32.totalorder %s31, 0
    %p425 = por %p423, %p424
    %p426 = scmp.ne.s32.totalorder %s414, %s415
    %p427 = scmp.eq.s32.totalorder %s32, 3
    %p428 = por %p426, %p427
    %p430 = scmp.ne.s32.totalorder %s415, %s429
    %p431 = scmp.eq.s32.totalorder %s32, 0
    %p432 = por %p430, %p431
    %s434 = sadd.s32 %s433, 1
    %p437 = scmp.eq.s32.totalorder %s26, 3
    %p438 = scmp.ne.s32.totalorder %s433, %s435
    %p439 = scmp.eq.s32.totalorder %s26, 0
    %p440 = por %p438, %p439
    %p441 = scmp.ne.s32.totalorder %s433, %s435
    %p442 = scmp.eq.s32.totalorder %s31, 3
    %p443 = por %p441, %p442
    %p444 = scmp.ne.s32.totalorder %s435, %s436
    %p445 = scmp.eq.s32.totalorder %s31, 0
    %p446 = por %p444, %p445
    %p447 = scmp.ne.s32.totalorder %s435, %s436
    %p448 = scmp.eq.s32.totalorder %s32, 3
    %p449 = por %p447, %p448
    %p451 = scmp.ne.s32.totalorder %s436, %s450
    %p452 = scmp.eq.s32.totalorder %s32, 0
    %p453 = por %p451, %p452
    %s454 = ssub.s32 %s33, %s45
    %p455 = scmp.eq.s32.totalorder %s454, 0
    %s457 = sadd.s32 %s456, 1
    %s458 = scalar_select %p455, %s456, %s457
    %p461 = pneg %p455
    %p462 = scmp.eq.s32.totalorder %s26, 3
    %p463 = por %p461, %p462
    %p464 = scmp.ne.s32.totalorder %s456, %s459
    %p465 = scmp.eq.s32.totalorder %s26, 0
    %p466 = por %p464, %p465
    %p467 = scmp.ne.s32.totalorder %s456, %s459
    %p468 = scmp.eq.s32.totalorder %s31, 3
    %p469 = por %p467, %p468
    %p470 = scmp.ne.s32.totalorder %s459, %s460
    %p471 = scmp.eq.s32.totalorder %s31, 0
    %p472 = por %p470, %p471
    %p473 = scmp.ne.s32.totalorder %s459, %s460
    %p474 = scmp.eq.s32.totalorder %s32, 3
    %p475 = por %p473, %p474
    %p477 = scmp.ne.s32.totalorder %s460, %s476
    %p478 = scmp.eq.s32.totalorder %s32, 0
    %p479 = por %p477, %p478
    %s480 = ssub.s32 %s33, %s45
    %p481 = scmp.eq.s32.totalorder %s480, 0
    %s483 = sadd.s32 %s482, 1
    %s484 = scalar_select %p481, %s482, %s483
    %p487 = pneg %p481
    %p488 = scmp.eq.s32.totalorder %s26, 3
    %p489 = por %p487, %p488
    %p490 = scmp.ne.s32.totalorder %s482, %s485
    %p491 = scmp.eq.s32.totalorder %s26, 0
    %p492 = por %p490, %p491
    %p493 = scmp.ne.s32.totalorder %s482, %s485
    %p494 = scmp.eq.s32.totalorder %s31, 3
    %p495 = por %p493, %p494
    %p496 = scmp.ne.s32.totalorder %s485, %s486
    %p497 = scmp.eq.s32.totalorder %s31, 0
    %p498 = por %p496, %p497
    %p499 = scmp.ne.s32.totalorder %s485, %s486
    %p500 = scmp.eq.s32.totalorder %s32, 3
    %p501 = por %p499, %p500
    %p503 = scmp.ne.s32.totalorder %s486, %s502
    %p504 = scmp.eq.s32.totalorder %s32, 0
    %p505 = por %p503, %p504
    %p506 = scmp.le.s32.totalorder 1, %s26
    %p507 = scmp.lt.s32.totalorder %s26, 5
    %p508 = pnand %p506, %p507
    %p509 = pneg %p508
    // Predicated region
    $region9: #{s2s_forward_pallas.3} parent=5 // pred_check
      _
    $region10: #{s2s_forward_pallas.3} parent=5 // pred_check_branch
      %511 = sbr.rel (%p508) target = $region12
    $region11: #{s2s_forward_pallas.3} parent=5 // pred_region
      %s512 = ssub.s32 %s26, 1
      // Predicated region
      $region13: #{s2s_forward_pallas.3} parent=11 // pred_check
        %p513 = pneg %p64
      $region14: #{s2s_forward_pallas.3} parent=11 // pred_check_branch
        %515 = sbr.rel (%p513) target = $region16
      $region15: #{s2s_forward_pallas.3} parent=11 // pred_region
        %p516 = scmp.lt.s32.totalorder %s35, 0
        %s517 = scalar_select %p516, %s35, 0
        %s518 = smul.addr %s517, 2
        %s519 = scalar_lea.vmem %s0, %s518
      $region16: #{s2s_forward_pallas.3} parent=11 // pred_fallthru
        _
      // Predicated region
      $region17: #{s2s_forward_pallas.3} parent=11 // pred_check
        %p520 = pneg %p90
      $region18: #{s2s_forward_pallas.3} parent=11 // pred_check_branch
        %522 = sbr.rel (%p520) target = $region20
      $region19: #{s2s_forward_pallas.3} parent=11 // pred_region
        %s523 = smul.u32 2, %s35
        %p524 = scmp.lt.s32.totalorder %s523, 1
        %s525 = scalar_select %p524, %s523, 1
        %s526 = smul.addr %s525, 8
        %s527 = scalar_lea.vmem %s1, %s526
        %s528 = smul.u32 2, %s35
      $region20: #{s2s_forward_pallas.3} parent=11 // pred_fallthru
        _
      // Predicated region
      $region21: #{s2s_forward_pallas.3} parent=11 // pred_check
        %p529 = pneg %p116
      $region22: #{s2s_forward_pallas.3} parent=11 // pred_check_branch
        %531 = sbr.rel (%p529) target = $region24
      $region23: #{s2s_forward_pallas.3} parent=11 // pred_region
        %s532 = smul.u32 2, %s35
        %p533 = scmp.lt.s32.totalorder %s532, 1
        %s534 = scalar_select %p533, %s532, 1
        %s535 = smul.addr %s534, 8
        %s536 = scalar_lea.vmem %s2, %s535
        %s537 = smul.u32 2, %s35
      $region24: #{s2s_forward_pallas.3} parent=11 // pred_fallthru
        _
      // Predicated region
      $region25: #{s2s_forward_pallas.3} parent=11 // pred_check
        %p538 = pneg %p142
      $region26: #{s2s_forward_pallas.3} parent=11 // pred_check_branch
        %540 = sbr.rel (%p538) target = $region28
      $region27: #{s2s_forward_pallas.3} parent=11 // pred_region
        %p541 = scmp.lt.s32.totalorder %s35, 0
        %s542 = scalar_select %p541, %s35, 0
        %s543 = smul.addr %s542, 2
        %s544 = scalar_lea.vmem %s3, %s543
      $region28: #{s2s_forward_pallas.3} parent=11 // pred_fallthru
        _
      // Predicated region
      $region29: #{s2s_forward_pallas.3} parent=11 // pred_check
        %p545 = pneg %p168
      $region30: #{s2s_forward_pallas.3} parent=11 // pred_check_branch
        %547 = sbr.rel (%p545) target = $region32
      $region31: #{s2s_forward_pallas.3} parent=11 // pred_region
        %p548 = scmp.lt.s32.totalorder %s35, 0
        %s549 = scalar_select %p548, %s35, 0
        %s550 = smul.addr %s549, 2
        %s551 = scalar_lea.vmem %s4, %s550
      $region32: #{s2s_forward_pallas.3} parent=11 // pred_fallthru
        _
      // Predicated region
      $region33: #{s2s_forward_pallas.3} parent=11 // pred_check
        %p552 = pneg %p194
      $region34: #{s2s_forward_pallas.3} parent=11 // pred_check_branch
        %554 = sbr.rel (%p552) target = $region36
      $region35: #{s2s_forward_pallas.3} parent=11 // pred_region
        %p555 = scmp.lt.s32.totalorder %s35, 0
        %s556 = scalar_select %p555, %s35, 0
        %s557 = smul.addr %s556, 2
        %s558 = scalar_lea.vmem %s5, %s557
      $region36: #{s2s_forward_pallas.3} parent=11 // pred_fallthru
        _
      // Predicated region
      $region37: #{s2s_forward_pallas.3} parent=11 // pred_check
        %p559 = pneg %p215
      $region38: #{s2s_forward_pallas.3} parent=11 // pred_check_branch
        %561 = sbr.rel (%p559) target = $region40
      $region39: #{s2s_forward_pallas.3} parent=11 // pred_region
        _
      $region40: #{s2s_forward_pallas.3} parent=11 // pred_fallthru
        _
      // Predicated region
      $region41: #{s2s_forward_pallas.3} parent=11 // pred_check
        %p562 = pneg %p236
      $region42: #{s2s_forward_pallas.3} parent=11 // pred_check_branch
        %564 = sbr.rel (%p562) target = $region44
      $region43: #{s2s_forward_pallas.3} parent=11 // pred_region
        _
      $region44: #{s2s_forward_pallas.3} parent=11 // pred_fallthru
        _
      // Predicated region
      $region45: #{s2s_forward_pallas.3} parent=11 // pred_check
        %p565 = pneg %p257
      $region46: #{s2s_forward_pallas.3} parent=11 // pred_check_branch
        %567 = sbr.rel (%p565) target = $region48
      $region47: #{s2s_forward_pallas.3} parent=11 // pred_region
        _
      $region48: #{s2s_forward_pallas.3} parent=11 // pred_fallthru
        _
      // Predicated region
      $region49: #{s2s_forward_pallas.3} parent=11 // pred_check
        %p568 = pneg %p278
      $region50: #{s2s_forward_pallas.3} parent=11 // pred_check_branch
        %570 = sbr.rel (%p568) target = $region52
      $region51: #{s2s_forward_pallas.3} parent=11 // pred_region
        _
      $region52: #{s2s_forward_pallas.3} parent=11 // pred_fallthru
        _
      // Predicated region
      $region53: #{s2s_forward_pallas.3} parent=11 // pred_check
        %p571 = pneg %p299
      $region54: #{s2s_forward_pallas.3} parent=11 // pred_check_branch
        %573 = sbr.rel (%p571) target = $region56
      $region55: #{s2s_forward_pallas.3} parent=11 // pred_region
        _
      $region56: #{s2s_forward_pallas.3} parent=11 // pred_fallthru
        _
      // Predicated region
      $region57: #{s2s_forward_pallas.3} parent=11 // pred_check
        %p574 = pneg %p320
      $region58: #{s2s_forward_pallas.3} parent=11 // pred_check_branch
        %576 = sbr.rel (%p574) target = $region60
      $region59: #{s2s_forward_pallas.3} parent=11 // pred_region
        _
      $region60: #{s2s_forward_pallas.3} parent=11 // pred_fallthru
        _
      // Predicated region
      $region61: #{s2s_forward_pallas.3} parent=11 // pred_check
        %p577 = pneg %p341
      $region62: #{s2s_forward_pallas.3} parent=11 // pred_check_branch
        %579 = sbr.rel (%p577) target = $region64
      $region63: #{s2s_forward_pallas.3} parent=11 // pred_region
        _
      $region64: #{s2s_forward_pallas.3} parent=11 // pred_fallthru
        _
      // Predicated region
      $region65: #{s2s_forward_pallas.3} parent=11 // pred_check
        %p580 = pneg %p362
      $region66: #{s2s_forward_pallas.3} parent=11 // pred_check_branch
        %582 = sbr.rel (%p580) target = $region68
      $region67: #{s2s_forward_pallas.3} parent=11 // pred_region
        _
      $region68: #{s2s_forward_pallas.3} parent=11 // pred_fallthru
        _
      // Predicated region
      $region69: #{s2s_forward_pallas.3} parent=11 // pred_check
        %p583 = pneg %p383
      $region70: #{s2s_forward_pallas.3} parent=11 // pred_check_branch
        %585 = sbr.rel (%p583) target = $region72
      $region71: #{s2s_forward_pallas.3} parent=11 // pred_region
        _
      $region72: #{s2s_forward_pallas.3} parent=11 // pred_fallthru
        _
      // Predicated region
      $region73: #{s2s_forward_pallas.3} parent=11 // pred_check
        %p586 = pneg %p404
      $region74: #{s2s_forward_pallas.3} parent=11 // pred_check_branch
        %588 = sbr.rel (%p586) target = $region76
      $region75: #{s2s_forward_pallas.3} parent=11 // pred_region
        _
      $region76: #{s2s_forward_pallas.3} parent=11 // pred_fallthru
        _
      // Predicated region
      $region77: #{s2s_forward_pallas.3} parent=11 // pred_check
        %p589 = pneg %p425
      $region78: #{s2s_forward_pallas.3} parent=11 // pred_check_branch
        %591 = sbr.rel (%p589) target = $region80
      $region79: #{s2s_forward_pallas.3} parent=11 // pred_region
        _
      $region80: #{s2s_forward_pallas.3} parent=11 // pred_fallthru
        _
      // Predicated region
      $region81: #{s2s_forward_pallas.3} parent=11 // pred_check
        %p592 = pneg %p446
      $region82: #{s2s_forward_pallas.3} parent=11 // pred_check_branch
        %594 = sbr.rel (%p592) target = $region84
      $region83: #{s2s_forward_pallas.3} parent=11 // pred_region
        _
      $region84: #{s2s_forward_pallas.3} parent=11 // pred_fallthru
        _
    $region12: #{s2s_forward_pallas.3} parent=5 // pred_fallthru
      _
    %p595 = scmp.lt.s32.totalorder %s26, 4
    // Predicated region
    $region85: #{s2s_forward_pallas.3} parent=5 // pred_check
      %p596 = pneg %p595
    $region86: #{s2s_forward_pallas.3} parent=5 // pred_check_branch
      %598 = sbr.rel (%p596) target = $region88
    $region87: #{s2s_forward_pallas.3} parent=5 // pred_region
      _
    $region88: #{s2s_forward_pallas.3} parent=5 // pred_fallthru
      _
    %p599 = scmp.le.s32.totalorder 1, %s26
    %p600 = scmp.lt.s32.totalorder %s26, 5
    %p601 = pnand %p599, %p600
    %p602 = pneg %p601
    // Predicated region
    $region89: #{s2s_forward_pallas.3} parent=5 // pred_check
      _
    $region90: #{s2s_forward_pallas.3} parent=5 // pred_check_branch
      %604 = sbr.rel (%p601) target = $region92
    $region91: #{s2s_forward_pallas.3} parent=5 // pred_region
      %s605 = ssub.s32 %s26, 1
      %p606 = scmp.lt.s32.totalorder %s35, 0
      %s607 = scalar_select %p606, %s35, 0
      %s608 = smul.addr %s607, 2
      %s609 = scalar_lea.vmem %s0, %s608
      %p610 = pneg %p64
      %p611 = pneg %p61
      %s612 = smul.u32 2, %s35
      %p613 = scmp.lt.s32.totalorder %s612, 1
      %s614 = scalar_select %p613, %s612, 1
      %s615 = smul.addr %s614, 8
      %s616 = scalar_lea.vmem %s1, %s615
      %p617 = pneg %p90
      %p618 = pneg %p87
      %s619 = smul.u32 2, %s35
      %p620 = scmp.lt.s32.totalorder %s619, 1
      %s621 = scalar_select %p620, %s619, 1
      %s622 = smul.addr %s621, 8
      %s623 = scalar_lea.vmem %s2, %s622
      %p624 = pneg %p116
      %p625 = pneg %p113
      %p626 = scmp.lt.s32.totalorder %s35, 0
      %s627 = scalar_select %p626, %s35, 0
      %s628 = smul.addr %s627, 2
      %s629 = scalar_lea.vmem %s3, %s628
      %p630 = pneg %p142
      %p631 = pneg %p139
      %p632 = scmp.lt.s32.totalorder %s35, 0
      %s633 = scalar_select %p632, %s35, 0
      %s634 = smul.addr %s633, 2
      %s635 = scalar_lea.vmem %s4, %s634
      %p636 = pneg %p168
      %p637 = pneg %p165
      %p638 = scmp.lt.s32.totalorder %s35, 0
      %s639 = scalar_select %p638, %s35, 0
      %s640 = smul.addr %s639, 2
      %s641 = scalar_lea.vmem %s5, %s640
      %p642 = pneg %p194
      %p643 = pneg %p191
      %p644 = pneg %p215
      %p645 = pneg %p212
      %p646 = pneg %p236
      %p647 = pneg %p233
      %p648 = pneg %p257
      %p649 = pneg %p254
      %p650 = pneg %p278
      %p651 = pneg %p275
      %p652 = pneg %p299
      %p653 = pneg %p296
      %p654 = pneg %p320
      %p655 = pneg %p317
      %p656 = pneg %p341
      %p657 = pneg %p338
      %p658 = pneg %p362
      %p659 = pneg %p359
      %p660 = pneg %p383
      %p661 = pneg %p380
      %p662 = pneg %p404
      %p663 = pneg %p401
      %p664 = pneg %p425
      %p665 = pneg %p422
      %p666 = pneg %p446
      %p667 = pneg %p443
      %p668 = pneg %p472
      %p669 = pneg %p469
      %p670 = scmp.lt.s32.totalorder %s35, 0
      %s671 = scalar_select %p670, %s35, 0
      %s672 = smul.addr %s671, 2
      %s673 = scalar_lea.vmem %s18, %s672
      %p674 = pneg %p498
      %p675 = pneg %p495
      %p676 = scmp.lt.s32.totalorder %s35, 0
      %s677 = scalar_select %p676, %s35, 0
      %s678 = smul.addr %s677, 2
      %s679 = scalar_lea.vmem %s19, %s678
      %p680 = scmp.lt.s32.totalorder %s35, 0
      %s681 = scalar_select %p680, %s35, 0
      %s682 = smul.addr %s681, 2
      %s683 = scalar_lea.vmem %s0, %s682
      %s684 = smul.u32 2, %s35
      %p685 = scmp.lt.s32.totalorder %s684, 1
      %s686 = scalar_select %p685, %s684, 1
      %s687 = smul.addr %s686, 8
      %s688 = scalar_lea.vmem %s1, %s687
      %s689 = smul.u32 2, %s35
      %s690 = smul.u32 2, %s35
      %p691 = scmp.lt.s32.totalorder %s690, 1
      %s692 = scalar_select %p691, %s690, 1
      %s693 = smul.addr %s692, 8
      %s694 = scalar_lea.vmem %s2, %s693
      %s695 = smul.u32 2, %s35
      %p696 = scmp.lt.s32.totalorder %s35, 0
      %s697 = scalar_select %p696, %s35, 0
      %s698 = smul.addr %s697, 2
      %s699 = scalar_lea.vmem %s3, %s698
      %p700 = scmp.lt.s32.totalorder %s35, 0
      %s701 = scalar_select %p700, %s35, 0
      %s702 = smul.addr %s701, 2
      %s703 = scalar_lea.vmem %s4, %s702
      %p704 = scmp.lt.s32.totalorder %s35, 0
      %s705 = scalar_select %p704, %s35, 0
      %s706 = smul.addr %s705, 2
      %s707 = scalar_lea.vmem %s5, %s706
      %p708 = scmp.lt.s32.totalorder %s35, 0
      %s709 = scalar_select %p708, %s35, 0
      %s710 = smul.addr %s709, 2
      %s711 = scalar_lea.vmem %s18, %s710
      %p712 = scmp.lt.s32.totalorder %s35, 0
      %s713 = scalar_select %p712, %s35, 0
      %s714 = smul.addr %s713, 2
      %s715 = scalar_lea.vmem %s19, %s714
      %p716 = scmp.eq.s32.totalorder %s36, 0
      // Predicated region
      $region93: #{s2s_forward_pallas.3} parent=91 // pred_check
        %p717 = pneg %p716
      $region94: #{s2s_forward_pallas.3} parent=91 // pred_check_branch
        %719 = sbr.rel (%p717) target = $region96
      $region95: #{s2s_forward_pallas.3} parent=91 // pred_region
        %vm720 = vcmask 254976
        %721 = vst.msk [vmem:[#allocation2] sm:$0x3] %vm720, 0.0
        %722 = vst.msk [vmem:[#allocation3] sm:$0x3] %vm720, 0.0
        %vm723 = vcmask 58368
        %724 = vst.msk [vmem:[#allocation4] sm:$0x3] %vm723, 0.0
      $region96: #{s2s_forward_pallas.3} parent=91 // pred_fallthru
        _
      %v725 = vld [vmem:[%s6] sm:$0xff]
      %v726 = vld [vmem:[%s6 + $0x8] sm:$0xff]
      %v727 = vld [vmem:[%s6 + $0x10] sm:$0xff]
      %v728 = vld [vmem:[%s6 + $0x18] sm:$0xff]
      %v729 = vlaneseq
      %v730 = vand.u32 %v729, 127
      %vm731 = vcmp.ge.s32.totalorder %v730, 64
      %vm732 = vcmp.lt.s32.totalorder %v730, 96
      %vm733 = vmand %vm731, %vm732
      %s734 = sadd.s32 %s36, 1
      %v735 = vld [vmem:[#allocation2] sm:$0x3]
      %v736 = vld [vmem:[#allocation3] sm:$0x3]
      // While loop
      $region97: #{s2s_forward_pallas.3} parent=91 // loop_pre_header
        _
      $region98: #{s2s_forward_pallas.3} parent=91 // loop_header
        %s738 = sphi 0, %s740
        %p739 = scmp.ge.s32.totalorder %s738, %s734
        %v743 = vphi %v735, %v1269
        %v744 = vphi %v736, %v1273
      $region99: #{s2s_forward_pallas.3} parent=91 // loop_header_branch
        %742 = sbr.rel (%p739) target = $region103
      $region100: #{s2s_forward_pallas.3} parent=91 // loop_body
        %s745 = smul.u32 %s738, 2
        %s746 = scalar_lea.vmem %s683, %s745
        %v747 = vld [vmem:[%s746] sm:$0x3]
        %vm748 = vcmask 261120
        %v750 = vsel %vm748, %v743, 0
        %752 = vmatprep.subr.mxu0 0.0
        %v753 = vand.u32 %v725, 4294901760
        %754 = vmatpush1.msra.mxu0 %v753
        %755 = vmatprep.subr.mxu0 0.0
        %v756 = vand.u32 %v726, 4294901760
        %757 = vmatpush1.msra.mxu0 %v756
        %758 = vmatprep.subr.mxu0 0.0
        %v759 = vand.u32 %v727, 4294901760
        %760 = vmatpush1.msra.mxu0 %v759
        %761 = vmatprep.subr.mxu0 0.0
        %v762 = vand.u32 %v728, 4294901760
        %763 = vmatpush1.msra.mxu0 %v762
        %764 = vmatprep.subr.mxu0 0.0
        %765 = vmatpush1.msra.mxu0 0.0
        %766 = vmatprep.subr.mxu0 0.0
        %767 = vmatpush1.msra.mxu0 0.0
        %768 = vmatprep.subr.mxu0 0.0
        %769 = vmatpush1.msra.mxu0 0.0
        %770 = vmatprep.subr.mxu0 0.0
        %771 = vmatpush1.msra.mxu0 0.0
        %772 = vmatprep.subr.mxu0 0.0
        %773 = vmatpush1.msra.mxu0 0.0
        %774 = vmatprep.subr.mxu0 0.0
        %775 = vmatpush1.msra.mxu0 0.0
        %776 = vmatprep.subr.mxu0 0.0
        %777 = vmatpush1.msra.mxu0 0.0
        %778 = vmatprep.subr.mxu0 0.0
        %779 = vmatpush1.msra.mxu0 0.0
        %780 = vmatprep.subr.mxu0 0.0
        %781 = vmatpush1.msra.mxu0 0.0
        %782 = vmatprep.subr.mxu0 0.0
        %783 = vmatpush1.msra.mxu0 0.0
        %784 = vmatprep.subr.mxu0 0.0
        %785 = vmatpush1.msra.mxu0 0.0
        %786 = vmatprep.subr.mxu0 0.0
        %787 = vmatpush1.msra.mxu0 0.0
        %788 = vmatprep.subr.mxu0 0.0
        %789 = vmatpush1.msra.mxu0 0.0
        %790 = vmatprep.subr.mxu0 0.0
        %791 = vmatpush1.msra.mxu0 0.0
        %792 = vmatprep.subr.mxu0 0.0
        %793 = vmatpush1.msra.mxu0 0.0
        %794 = vmatprep.subr.mxu0 0.0
        %795 = vmatpush1.msra.mxu0 0.0
        %796 = vmatprep.subr.mxu0 0.0
        %797 = vmatpush1.msra.mxu0 0.0
        %798 = vmatprep.subr.mxu0 0.0
        %799 = vmatpush1.msra.mxu0 0.0
        %800 = vmatprep.subr.mxu0 0.0
        %801 = vmatpush1.msra.mxu0 0.0
        %802 = vmatprep.subr.mxu0 0.0
        %803 = vmatpush1.msra.mxu0 0.0
        %804 = vmatprep.subr.mxu0 0.0
        %805 = vmatpush1.msra.mxu0 0.0
        %806 = vmatprep.subr.mxu0 0.0
        %807 = vmatpush1.msra.mxu0 0.0
        %808 = vmatprep.subr.mxu0 0.0
        %809 = vmatpush1.msra.mxu0 0.0
        %810 = vmatprep.subr.mxu0 0.0
        %811 = vmatpush1.msra.mxu0 0.0
        %812 = vmatprep.subr.mxu0 0.0
        %813 = vmatpush1.msra.mxu0 0.0
        %814 = vmatprep.subr.mxu0 0.0
        %815 = vmatpush1.msra.mxu0 0.0
        %816 = vmatprep.subr.mxu0 0.0
        %817 = vmatpush1.msra.mxu0 0.0
        %818 = vmatprep.subr.mxu0 0.0
        %819 = vmatpush1.msra.mxu0 0.0
        %820 = vmatprep.mubr.f32.mxu0 0.0
        %v821 = vand.u32 %v750, 4294901760
        %v822 = vsub.f32 %v750, %v821
        %v823 = vand.u32 %v822, 4294901760
        %v824 = vsub.f32 %v822, %v823
        %v825 = vand.u32 %v824, 4294901760
        %826 = vmatmul.mubr.f32.gmra.mrb[0].mxu0 %v825
        %v827 = vpop.f32.mrb[0].mxu0
        %v828 = vadd.f32 0.0, %v827
        %v829 = vpop.f32.mrb[0].mxu0
        %830 = vdwg.mxu0
        %831 = vmatprep.subr.mxu0 0.0
        %v832 = vand.u32 %v725, 4294901760
        %v833 = vsub.f32 %v725, %v832
        %v834 = vand.u32 %v833, 4294901760
        %v835 = vsub.f32 %v833, %v834
        %v836 = vand.u32 %v835, 4294901760
        %837 = vmatpush1.msra.mxu0 %v836
        %838 = vmatprep.subr.mxu0 0.0
        %v839 = vand.u32 %v726, 4294901760
        %v840 = vsub.f32 %v726, %v839
        %v841 = vand.u32 %v840, 4294901760
        %v842 = vsub.f32 %v840, %v841
        %v843 = vand.u32 %v842, 4294901760
        %844 = vmatpush1.msra.mxu0 %v843
        %845 = vmatprep.subr.mxu0 0.0
        %v846 = vand.u32 %v727, 4294901760
        %v847 = vsub.f32 %v727, %v846
        %v848 = vand.u32 %v847, 4294901760
        %v849 = vsub.f32 %v847, %v848
        %v850 = vand.u32 %v849, 4294901760
        %851 = vmatpush1.msra.mxu0 %v850
        %852 = vmatprep.subr.mxu0 0.0
        %v853 = vand.u32 %v728, 4294901760
        %v854 = vsub.f32 %v728, %v853
        %v855 = vand.u32 %v854, 4294901760
        %v856 = vsub.f32 %v854, %v855
        %v857 = vand.u32 %v856, 4294901760
        %858 = vmatpush1.msra.mxu0 %v857
        %859 = vmatprep.subr.mxu0 0.0
        %860 = vmatpush1.msra.mxu0 0.0
        %861 = vmatprep.subr.mxu0 0.0
        %862 = vmatpush1.msra.mxu0 0.0
        %863 = vmatprep.subr.mxu0 0.0
        %864 = vmatpush1.msra.mxu0 0.0
        %865 = vmatprep.subr.mxu0 0.0
        %866 = vmatpush1.msra.mxu0 0.0
        %867 = vmatprep.subr.mxu0 0.0
        %868 = vmatpush1.msra.mxu0 0.0
        %869 = vmatprep.subr.mxu0 0.0
        %870 = vmatpush1.msra.mxu0 0.0
        %871 = vmatprep.subr.mxu0 0.0
        %872 = vmatpush1.msra.mxu0 0.0
        %873 = vmatprep.subr.mxu0 0.0
        %874 = vmatpush1.msra.mxu0 0.0
        %875 = vmatprep.subr.mxu0 0.0
        %876 = vmatpush1.msra.mxu0 0.0
        %877 = vmatprep.subr.mxu0 0.0
        %878 = vmatpush1.msra.mxu0 0.0
        %879 = vmatprep.subr.mxu0 0.0
        %880 = vmatpush1.msra.mxu0 0.0
        %881 = vmatprep.subr.mxu0 0.0
        %882 = vmatpush1.msra.mxu0 0.0
        %883 = vmatprep.subr.mxu0 0.0
        %884 = vmatpush1.msra.mxu0 0.0
        %885 = vmatprep.subr.mxu0 0.0
        %886 = vmatpush1.msra.mxu0 0.0
        %887 = vmatprep.subr.mxu0 0.0
        %888 = vmatpush1.msra.mxu0 0.0
        %889 = vmatprep.subr.mxu0 0.0
        %890 = vmatpush1.msra.mxu0 0.0
        %891 = vmatprep.subr.mxu0 0.0
        %892 = vmatpush1.msra.mxu0 0.0
        %893 = vmatprep.subr.mxu0 0.0
        %894 = vmatpush1.msra.mxu0 0.0
        %895 = vmatprep.subr.mxu0 0.0
        %896 = vmatpush1.msra.mxu0 0.0
        %897 = vmatprep.subr.mxu0 0.0
        %898 = vmatpush1.msra.mxu0 0.0
        %899 = vmatprep.subr.mxu0 0.0
        %900 = vmatpush1.msra.mxu0 0.0
        %901 = vmatprep.subr.mxu0 0.0
        %902 = vmatpush1.msra.mxu0 0.0
        %903 = vmatprep.subr.mxu0 0.0
        %904 = vmatpush1.msra.mxu0 0.0
        %905 = vmatprep.subr.mxu0 0.0
        %906 = vmatpush1.msra.mxu0 0.0
        %907 = vmatprep.subr.mxu0 0.0
        %908 = vmatpush1.msra.mxu0 0.0
        %909 = vmatprep.subr.mxu0 0.0
        %910 = vmatpush1.msra.mxu0 0.0
        %911 = vmatprep.subr.mxu0 0.0
        %912 = vmatpush1.msra.mxu0 0.0
        %913 = vmatprep.subr.mxu0 0.0
        %914 = vmatpush1.msra.mxu0 0.0
        %915 = vmatprep.mubr.f32.mxu0 0.0
        %v916 = vand.u32 %v750, 4294901760
        %917 = vmatmul.mubr.f32.gmra.mrb[0].mxu0 %v916
        %v918 = vpop.f32.mrb[0].mxu0
        %v919 = vadd.f32 %v828, %v918
        %v920 = vpop.f32.mrb[0].mxu0
        %921 = vdwg.mxu0
        %922 = vmatprep.subr.mxu0 0.0
        %v923 = vand.u32 %v725, 4294901760
        %v924 = vsub.f32 %v725, %v923
        %925 = vmatpush1.msra.mxu0 %v924
        %926 = vmatprep.subr.mxu0 0.0
        %v927 = vand.u32 %v726, 4294901760
        %v928 = vsub.f32 %v726, %v927
        %929 = vmatpush1.msra.mxu0 %v928
        %930 = vmatprep.subr.mxu0 0.0
        %v931 = vand.u32 %v727, 4294901760
        %v932 = vsub.f32 %v727, %v931
        %933 = vmatpush1.msra.mxu0 %v932
        %934 = vmatprep.subr.mxu0 0.0
        %v935 = vand.u32 %v728, 4294901760
        %v936 = vsub.f32 %v728, %v935
        %937 = vmatpush1.msra.mxu0 %v936
        %938 = vmatprep.subr.mxu0 0.0
        %939 = vmatpush1.msra.mxu0 0.0
        %940 = vmatprep.subr.mxu0 0.0
        %941 = vmatpush1.msra.mxu0 0.0
        %942 = vmatprep.subr.mxu0 0.0
        %943 = vmatpush1.msra.mxu0 0.0
        %944 = vmatprep.subr.mxu0 0.0
        %945 = vmatpush1.msra.mxu0 0.0
        %946 = vmatprep.subr.mxu0 0.0
        %947 = vmatpush1.msra.mxu0 0.0
        %948 = vmatprep.subr.mxu0 0.0
        %949 = vmatpush1.msra.mxu0 0.0
        %950 = vmatprep.subr.mxu0 0.0
        %951 = vmatpush1.msra.mxu0 0.0
        %952 = vmatprep.subr.mxu0 0.0
        %953 = vmatpush1.msra.mxu0 0.0
        %954 = vmatprep.subr.mxu0 0.0
        %955 = vmatpush1.msra.mxu0 0.0
        %956 = vmatprep.subr.mxu0 0.0
        %957 = vmatpush1.msra.mxu0 0.0
        %958 = vmatprep.subr.mxu0 0.0
        %959 = vmatpush1.msra.mxu0 0.0
        %960 = vmatprep.subr.mxu0 0.0
        %961 = vmatpush1.msra.mxu0 0.0
        %962 = vmatprep.subr.mxu0 0.0
        %963 = vmatpush1.msra.mxu0 0.0
        %964 = vmatprep.subr.mxu0 0.0
        %965 = vmatpush1.msra.mxu0 0.0
        %966 = vmatprep.subr.mxu0 0.0
        %967 = vmatpush1.msra.mxu0 0.0
        %968 = vmatprep.subr.mxu0 0.0
        %969 = vmatpush1.msra.mxu0 0.0
        %970 = vmatprep.subr.mxu0 0.0
        %971 = vmatpush1.msra.mxu0 0.0
        %972 = vmatprep.subr.mxu0 0.0
        %973 = vmatpush1.msra.mxu0 0.0
        %974 = vmatprep.subr.mxu0 0.0
        %975 = vmatpush1.msra.mxu0 0.0
        %976 = vmatprep.subr.mxu0 0.0
        %977 = vmatpush1.msra.mxu0 0.0
        %978 = vmatprep.subr.mxu0 0.0
        %979 = vmatpush1.msra.mxu0 0.0
        %980 = vmatprep.subr.mxu0 0.0
        %981 = vmatpush1.msra.mxu0 0.0
        %982 = vmatprep.subr.mxu0 0.0
        %983 = vmatpush1.msra.mxu0 0.0
        %984 = vmatprep.subr.mxu0 0.0
        %985 = vmatpush1.msra.mxu0 0.0
        %986 = vmatprep.subr.mxu0 0.0
        %987 = vmatpush1.msra.mxu0 0.0
        %988 = vmatprep.subr.mxu0 0.0
        %989 = vmatpush1.msra.mxu0 0.0
        %990 = vmatprep.subr.mxu0 0.0
        %991 = vmatpush1.msra.mxu0 0.0
        %992 = vmatprep.subr.mxu0 0.0
        %993 = vmatpush1.msra.mxu0 0.0
        %994 = vmatprep.mubr.f32.mxu0 0.0
        %v995 = vand.u32 %v750, 4294901760
        %v996 = vsub.f32 %v750, %v995
        %997 = vmatmul.mubr.f32.gmra.mrb[0].mxu0 %v996
        %v998 = vpop.f32.mrb[0].mxu0
        %v999 = vadd.f32 %v919, %v998
        %v1000 = vpop.f32.mrb[0].mxu0
        %1001 = vdwg.mxu0
        %1002 = vmatprep.subr.mxu0 0.0
        %v1003 = vand.u32 %v725, 4294901760
        %1004 = vmatpush1.msra.mxu0 %v1003
        %1005 = vmatprep.subr.mxu0 0.0
        %v1006 = vand.u32 %v726, 4294901760
        %1007 = vmatpush1.msra.mxu0 %v1006
        %1008 = vmatprep.subr.mxu0 0.0
        %v1009 = vand.u32 %v727, 4294901760
        %1010 = vmatpush1.msra.mxu0 %v1009
        %1011 = vmatprep.subr.mxu0 0.0
        %v1012 = vand.u32 %v728, 4294901760
        %1013 = vmatpush1.msra.mxu0 %v1012
        %1014 = vmatprep.subr.mxu0 0.0
        %1015 = vmatpush1.msra.mxu0 0.0
        %1016 = vmatprep.subr.mxu0 0.0
        %1017 = vmatpush1.msra.mxu0 0.0
        %1018 = vmatprep.subr.mxu0 0.0
        %1019 = vmatpush1.msra.mxu0 0.0
        %1020 = vmatprep.subr.mxu0 0.0
        %1021 = vmatpush1.msra.mxu0 0.0
        %1022 = vmatprep.subr.mxu0 0.0
        %1023 = vmatpush1.msra.mxu0 0.0
        %1024 = vmatprep.subr.mxu0 0.0
        %1025 = vmatpush1.msra.mxu0 0.0
        %1026 = vmatprep.subr.mxu0 0.0
        %1027 = vmatpush1.msra.mxu0 0.0
        %1028 = vmatprep.subr.mxu0 0.0
        %1029 = vmatpush1.msra.mxu0 0.0
        %1030 = vmatprep.subr.mxu0 0.0
        %1031 = vmatpush1.msra.mxu0 0.0
        %1032 = vmatprep.subr.mxu0 0.0
        %1033 = vmatpush1.msra.mxu0 0.0
        %1034 = vmatprep.subr.mxu0 0.0
        %1035 = vmatpush1.msra.mxu0 0.0
        %1036 = vmatprep.subr.mxu0 0.0
        %1037 = vmatpush1.msra.mxu0 0.0
        %1038 = vmatprep.subr.mxu0 0.0
        %1039 = vmatpush1.msra.mxu0 0.0
        %1040 = vmatprep.subr.mxu0 0.0
        %1041 = vmatpush1.msra.mxu0 0.0
        %1042 = vmatprep.subr.mxu0 0.0
        %1043 = vmatpush1.msra.mxu0 0.0
        %1044 = vmatprep.subr.mxu0 0.0
        %1045 = vmatpush1.msra.mxu0 0.0
        %1046 = vmatprep.subr.mxu0 0.0
        %1047 = vmatpush1.msra.mxu0 0.0
        %1048 = vmatprep.subr.mxu0 0.0
        %1049 = vmatpush1.msra.mxu0 0.0
        %1050 = vmatprep.subr.mxu0 0.0
        %1051 = vmatpush1.msra.mxu0 0.0
        %1052 = vmatprep.subr.mxu0 0.0
        %1053 = vmatpush1.msra.mxu0 0.0
        %1054 = vmatprep.subr.mxu0 0.0
        %1055 = vmatpush1.msra.mxu0 0.0
        %1056 = vmatprep.subr.mxu0 0.0
        %1057 = vmatpush1.msra.mxu0 0.0
        %1058 = vmatprep.subr.mxu0 0.0
        %1059 = vmatpush1.msra.mxu0 0.0
        %1060 = vmatprep.subr.mxu0 0.0
        %1061 = vmatpush1.msra.mxu0 0.0
        %1062 = vmatprep.subr.mxu0 0.0
        %1063 = vmatpush1.msra.mxu0 0.0
        %1064 = vmatprep.subr.mxu0 0.0
        %1065 = vmatpush1.msra.mxu0 0.0
        %1066 = vmatprep.subr.mxu0 0.0
        %1067 = vmatpush1.msra.mxu0 0.0
        %1068 = vmatprep.subr.mxu0 0.0
        %1069 = vmatpush1.msra.mxu0 0.0
        %1070 = vmatprep.mubr.f32.mxu0 0.0
        %v1071 = vand.u32 %v750, 4294901760
        %v1072 = vsub.f32 %v750, %v1071
        %v1073 = vand.u32 %v1072, 4294901760
        %1074 = vmatmul.mubr.f32.gmra.mrb[0].mxu0 %v1073
        %v1075 = vpop.f32.mrb[0].mxu0
        %v1076 = vadd.f32 %v999, %v1075
        %v1077 = vpop.f32.mrb[0].mxu0
        %1078 = vdwg.mxu0
        %1079 = vmatprep.subr.mxu0 0.0
        %v1080 = vand.u32 %v725, 4294901760
        %v1081 = vsub.f32 %v725, %v1080
        %v1082 = vand.u32 %v1081, 4294901760
        %1083 = vmatpush1.msra.mxu0 %v1082
        %1084 = vmatprep.subr.mxu0 0.0
        %v1085 = vand.u32 %v726, 4294901760
        %v1086 = vsub.f32 %v726, %v1085
        %v1087 = vand.u32 %v1086, 4294901760
        %1088 = vmatpush1.msra.mxu0 %v1087
        %1089 = vmatprep.subr.mxu0 0.0
        %v1090 = vand.u32 %v727, 4294901760
        %v1091 = vsub.f32 %v727, %v1090
        %v1092 = vand.u32 %v1091, 4294901760
        %1093 = vmatpush1.msra.mxu0 %v1092
        %1094 = vmatprep.subr.mxu0 0.0
        %v1095 = vand.u32 %v728, 4294901760
        %v1096 = vsub.f32 %v728, %v1095
        %v1097 = vand.u32 %v1096, 4294901760
        %1098 = vmatpush1.msra.mxu0 %v1097
        %1099 = vmatprep.subr.mxu0 0.0
        %1100 = vmatpush1.msra.mxu0 0.0
        %1101 = vmatprep.subr.mxu0 0.0
        %1102 = vmatpush1.msra.mxu0 0.0
        %1103 = vmatprep.subr.mxu0 0.0
        %1104 = vmatpush1.msra.mxu0 0.0
        %1105 = vmatprep.subr.mxu0 0.0
        %1106 = vmatpush1.msra.mxu0 0.0
        %1107 = vmatprep.subr.mxu0 0.0
        %1108 = vmatpush1.msra.mxu0 0.0
        %1109 = vmatprep.subr.mxu0 0.0
        %1110 = vmatpush1.msra.mxu0 0.0
        %1111 = vmatprep.subr.mxu0 0.0
        %1112 = vmatpush1.msra.mxu0 0.0
        %1113 = vmatprep.subr.mxu0 0.0
        %1114 = vmatpush1.msra.mxu0 0.0
        %1115 = vmatprep.subr.mxu0 0.0
        %1116 = vmatpush1.msra.mxu0 0.0
        %1117 = vmatprep.subr.mxu0 0.0
        %1118 = vmatpush1.msra.mxu0 0.0
        %1119 = vmatprep.subr.mxu0 0.0
        %1120 = vmatpush1.msra.mxu0 0.0
        %1121 = vmatprep.subr.mxu0 0.0
        %1122 = vmatpush1.msra.mxu0 0.0
        %1123 = vmatprep.subr.mxu0 0.0
        %1124 = vmatpush1.msra.mxu0 0.0
        %1125 = vmatprep.subr.mxu0 0.0
        %1126 = vmatpush1.msra.mxu0 0.0
        %1127 = vmatprep.subr.mxu0 0.0
        %1128 = vmatpush1.msra.mxu0 0.0
        %1129 = vmatprep.subr.mxu0 0.0
        %1130 = vmatpush1.msra.mxu0 0.0
        %1131 = vmatprep.subr.mxu0 0.0
        %1132 = vmatpush1.msra.mxu0 0.0
        %1133 = vmatprep.subr.mxu0 0.0
        %1134 = vmatpush1.msra.mxu0 0.0
        %1135 = vmatprep.subr.mxu0 0.0
        %1136 = vmatpush1.msra.mxu0 0.0
        %1137 = vmatprep.subr.mxu0 0.0
        %1138 = vmatpush1.msra.mxu0 0.0
        %1139 = vmatprep.subr.mxu0 0.0
        %1140 = vmatpush1.msra.mxu0 0.0
        %1141 = vmatprep.subr.mxu0 0.0
        %1142 = vmatpush1.msra.mxu0 0.0
        %1143 = vmatprep.subr.mxu0 0.0
        %1144 = vmatpush1.msra.mxu0 0.0
        %1145 = vmatprep.subr.mxu0 0.0
        %1146 = vmatpush1.msra.mxu0 0.0
        %1147 = vmatprep.subr.mxu0 0.0
        %1148 = vmatpush1.msra.mxu0 0.0
        %1149 = vmatprep.subr.mxu0 0.0
        %1150 = vmatpush1.msra.mxu0 0.0
        %1151 = vmatprep.subr.mxu0 0.0
        %1152 = vmatpush1.msra.mxu0 0.0
        %1153 = vmatprep.subr.mxu0 0.0
        %1154 = vmatpush1.msra.mxu0 0.0
        %1155 = vmatprep.mubr.f32.mxu0 0.0
        %v1156 = vand.u32 %v750, 4294901760
        %1157 = vmatmul.mubr.f32.gmra.mrb[0].mxu0 %v1156
        %v1158 = vpop.f32.mrb[0].mxu0
        %v1159 = vadd.f32 %v1076, %v1158
        %v1160 = vpop.f32.mrb[0].mxu0
        %1161 = vdwg.mxu0
        %1162 = vmatprep.subr.mxu0 0.0
        %v1163 = vand.u32 %v725, 4294901760
        %1164 = vmatpush1.msra.mxu0 %v1163
        %1165 = vmatprep.subr.mxu0 0.0
        %v1166 = vand.u32 %v726, 4294901760
        %1167 = vmatpush1.msra.mxu0 %v1166
        %1168 = vmatprep.subr.mxu0 0.0
        %v1169 = vand.u32 %v727, 4294901760
        %1170 = vmatpush1.msra.mxu0 %v1169
        %1171 = vmatprep.subr.mxu0 0.0
        %v1172 = vand.u32 %v728, 4294901760
        %1173 = vmatpush1.msra.mxu0 %v1172
        %1174 = vmatprep.subr.mxu0 0.0
        %1175 = vmatpush1.msra.mxu0 0.0
        %1176 = vmatprep.subr.mxu0 0.0
        %1177 = vmatpush1.msra.mxu0 0.0
        %1178 = vmatprep.subr.mxu0 0.0
        %1179 = vmatpush1.msra.mxu0 0.0
        %1180 = vmatprep.subr.mxu0 0.0
        %1181 = vmatpush1.msra.mxu0 0.0
        %1182 = vmatprep.subr.mxu0 0.0
        %1183 = vmatpush1.msra.mxu0 0.0
        %1184 = vmatprep.subr.mxu0 0.0
        %1185 = vmatpush1.msra.mxu0 0.0
        %1186 = vmatprep.subr.mxu0 0.0
        %1187 = vmatpush1.msra.mxu0 0.0
        %1188 = vmatprep.subr.mxu0 0.0
        %1189 = vmatpush1.msra.mxu0 0.0
        %1190 = vmatprep.subr.mxu0 0.0
        %1191 = vmatpush1.msra.mxu0 0.0
        %1192 = vmatprep.subr.mxu0 0.0
        %1193 = vmatpush1.msra.mxu0 0.0
        %1194 = vmatprep.subr.mxu0 0.0
        %1195 = vmatpush1.msra.mxu0 0.0
        %1196 = vmatprep.subr.mxu0 0.0
        %1197 = vmatpush1.msra.mxu0 0.0
        %1198 = vmatprep.subr.mxu0 0.0
        %1199 = vmatpush1.msra.mxu0 0.0
        %1200 = vmatprep.subr.mxu0 0.0
        %1201 = vmatpush1.msra.mxu0 0.0
        %1202 = vmatprep.subr.mxu0 0.0
        %1203 = vmatpush1.msra.mxu0 0.0
        %1204 = vmatprep.subr.mxu0 0.0
        %1205 = vmatpush1.msra.mxu0 0.0
        %1206 = vmatprep.subr.mxu0 0.0
        %1207 = vmatpush1.msra.mxu0 0.0
        %1208 = vmatprep.subr.mxu0 0.0
        %1209 = vmatpush1.msra.mxu0 0.0
        %1210 = vmatprep.subr.mxu0 0.0
        %1211 = vmatpush1.msra.mxu0 0.0
        %1212 = vmatprep.subr.mxu0 0.0
        %1213 = vmatpush1.msra.mxu0 0.0
        %1214 = vmatprep.subr.mxu0 0.0
        %1215 = vmatpush1.msra.mxu0 0.0
        %1216 = vmatprep.subr.mxu0 0.0
        %1217 = vmatpush1.msra.mxu0 0.0
        %1218 = vmatprep.subr.mxu0 0.0
        %1219 = vmatpush1.msra.mxu0 0.0
        %1220 = vmatprep.subr.mxu0 0.0
        %1221 = vmatpush1.msra.mxu0 0.0
        %1222 = vmatprep.subr.mxu0 0.0
        %1223 = vmatpush1.msra.mxu0 0.0
        %1224 = vmatprep.subr.mxu0 0.0
        %1225 = vmatpush1.msra.mxu0 0.0
        %1226 = vmatprep.subr.mxu0 0.0
        %1227 = vmatpush1.msra.mxu0 0.0
        %1228 = vmatprep.subr.mxu0 0.0
        %1229 = vmatpush1.msra.mxu0 0.0
        %1230 = vmatprep.mubr.f32.mxu0 0.0
        %v1231 = vand.u32 %v750, 4294901760
        %1232 = vmatmul.mubr.f32.gmra.mrb[0].mxu0 %v1231
        %v1233 = vpop.f32.mrb[0].mxu0
        %v1234 = vadd.f32 %v1159, %v1233
        %v1235 = vpop.f32.mrb[0].mxu0
        %1236 = vdwg.mxu0
        %v1237 = vadd.f32 %v747, %v1234
        %v1238 = vtanh.pop %v1237
        %v1239 = vxor.u32 %v1237, 2147483648
        %v1240 = vmul.f32 %v1239, 1.442695
        %v1241 = vpow.pop %v1240
        %v1242 = vadd.f32 %v1241, 1.0
        %v1243 = vrcp.pop %v1242
        %v1244 = vmul.f32 1.0, %v1243
        %v1245 = vsel %vm733, %v1238, %v1244
        %1247 = vrot.lane.b32.xlu0 %v744, 32
        %v1248 = vpop.permute.xlu0 %1247
        %v1250 = vmul.f32 %v1245, %v1248
        %1252 = vrot.lane.b32.xlu0 %v1245, 64
        %v1253 = vpop.permute.xlu0 %1252
        %v1255 = vmul.f32 %v1245, %v1253
        %1257 = vrot.lane.b32.xlu0 %v1255, 32
        %v1258 = vpop.permute.xlu0 %1257
        %v1260 = vadd.f32 %v1250, %v1258
        %v1261 = vtanh.pop %v1260
        %1263 = vrot.lane.b32.xlu0 %v1261, 64
        %v1264 = vpop.permute.xlu0 %1263
        %v1266 = vmul.f32 %v1245, %v1264
        %1268 = vrot.lane.b32.xlu0 %v1266, 32
        %v1269 = vpop.permute.xlu0 %1268
        %1272 = vrot.lane.b32.xlu0 %v1260, 96
        %v1273 = vpop.permute.xlu0 %1272
      $region101: #{s2s_forward_pallas.3} parent=91 // loop_footer
        %s740 = sadd.s32 %s738, 1
      $region102: #{s2s_forward_pallas.3} parent=91 // loop_footer_branch
        %737 = sbr.rel target = $region98
      $region103: #{s2s_forward_pallas.3} parent=91 // loop_exit
        _
      %vm1275 = vcmask 254976
      %1276 = vst.msk [vmem:[#allocation2] sm:$0x3] %vm1275, %v743
      %1277 = vst.msk [vmem:[#allocation3] sm:$0x3] %vm1275, %v744
      %v1278 = vld [vmem:[#allocation4] sm:$0x3]
      %v1279 = vld [vmem:[%s7] sm:$0xff]
      %v1280 = vld [vmem:[%s7 + $0x8] sm:$0xff]
      %v1281 = vld [vmem:[%s7 + $0x10] sm:$0xff]
      %v1282 = vld [vmem:[%s7 + $0x18] sm:$0xff]
      %vm1283 = vcmask 261120
      %v1285 = vsel %vm1283, %v743, 0
      %1287 = vmatprep.subr.mxu0 0.0
      %v1288 = vand.u32 %v1279, 4294901760
      %1289 = vmatpush1.msra.mxu0 %v1288
      %1290 = vmatprep.subr.mxu0 0.0
      %v1291 = vand.u32 %v1280, 4294901760
      %1292 = vmatpush1.msra.mxu0 %v1291
      %1293 = vmatprep.subr.mxu0 0.0
      %v1294 = vand.u32 %v1281, 4294901760
      %1295 = vmatpush1.msra.mxu0 %v1294
      %1296 = vmatprep.subr.mxu0 0.0
      %v1297 = vand.u32 %v1282, 4294901760
      %1298 = vmatpush1.msra.mxu0 %v1297
      %1299 = vmatprep.subr.mxu0 0.0
      %1300 = vmatpush1.msra.mxu0 0.0
      %1301 = vmatprep.subr.mxu0 0.0
      %1302 = vmatpush1.msra.mxu0 0.0
      %1303 = vmatprep.subr.mxu0 0.0
      %1304 = vmatpush1.msra.mxu0 0.0
      %1305 = vmatprep.subr.mxu0 0.0
      %1306 = vmatpush1.msra.mxu0 0.0
      %1307 = vmatprep.subr.mxu0 0.0
      %1308 = vmatpush1.msra.mxu0 0.0
      %1309 = vmatprep.subr.mxu0 0.0
      %1310 = vmatpush1.msra.mxu0 0.0
      %1311 = vmatprep.subr.mxu0 0.0
      %1312 = vmatpush1.msra.mxu0 0.0
      %1313 = vmatprep.subr.mxu0 0.0
      %1314 = vmatpush1.msra.mxu0 0.0
      %1315 = vmatprep.subr.mxu0 0.0
      %1316 = vmatpush1.msra.mxu0 0.0
      %1317 = vmatprep.subr.mxu0 0.0
      %1318 = vmatpush1.msra.mxu0 0.0
      %1319 = vmatprep.subr.mxu0 0.0
      %1320 = vmatpush1.msra.mxu0 0.0
      %1321 = vmatprep.subr.mxu0 0.0
      %1322 = vmatpush1.msra.mxu0 0.0
      %1323 = vmatprep.subr.mxu0 0.0
      %1324 = vmatpush1.msra.mxu0 0.0
      %1325 = vmatprep.subr.mxu0 0.0
      %1326 = vmatpush1.msra.mxu0 0.0
      %1327 = vmatprep.subr.mxu0 0.0
      %1328 = vmatpush1.msra.mxu0 0.0
      %1329 = vmatprep.subr.mxu0 0.0
      %1330 = vmatpush1.msra.mxu0 0.0
      %1331 = vmatprep.subr.mxu0 0.0
      %1332 = vmatpush1.msra.mxu0 0.0
      %1333 = vmatprep.subr.mxu0 0.0
      %1334 = vmatpush1.msra.mxu0 0.0
      %1335 = vmatprep.subr.mxu0 0.0
      %1336 = vmatpush1.msra.mxu0 0.0
      %1337 = vmatprep.subr.mxu0 0.0
      %1338 = vmatpush1.msra.mxu0 0.0
      %1339 = vmatprep.subr.mxu0 0.0
      %1340 = vmatpush1.msra.mxu0 0.0
      %1341 = vmatprep.subr.mxu0 0.0
      %1342 = vmatpush1.msra.mxu0 0.0
      %1343 = vmatprep.subr.mxu0 0.0
      %1344 = vmatpush1.msra.mxu0 0.0
      %1345 = vmatprep.subr.mxu0 0.0
      %1346 = vmatpush1.msra.mxu0 0.0
      %1347 = vmatprep.subr.mxu0 0.0
      %1348 = vmatpush1.msra.mxu0 0.0
      %1349 = vmatprep.subr.mxu0 0.0
      %1350 = vmatpush1.msra.mxu0 0.0
      %1351 = vmatprep.subr.mxu0 0.0
      %1352 = vmatpush1.msra.mxu0 0.0
      %1353 = vmatprep.subr.mxu0 0.0
      %1354 = vmatpush1.msra.mxu0 0.0
      %1355 = vmatprep.mubr.f32.mxu0 0.0
      %v1356 = vand.u32 %v1285, 4294901760
      %v1357 = vsub.f32 %v1285, %v1356
      %v1358 = vand.u32 %v1357, 4294901760
      %v1359 = vsub.f32 %v1357, %v1358
      %v1360 = vand.u32 %v1359, 4294901760
      %1361 = vmatmul.mubr.f32.gmra.mrb[0].mxu0 %v1360
      %v1362 = vpop.f32.mrb[0].mxu0
      %v1363 = vadd.f32 0.0, %v1362
      %v1364 = vpop.f32.mrb[0].mxu0
      %1365 = vdwg.mxu0
      %1366 = vmatprep.subr.mxu0 0.0
      %v1367 = vand.u32 %v1279, 4294901760
      %v1368 = vsub.f32 %v1279, %v1367
      %v1369 = vand.u32 %v1368, 4294901760
      %v1370 = vsub.f32 %v1368, %v1369
      %v1371 = vand.u32 %v1370, 4294901760
      %1372 = vmatpush1.msra.mxu0 %v1371
      %1373 = vmatprep.subr.mxu0 0.0
      %v1374 = vand.u32 %v1280, 4294901760
      %v1375 = vsub.f32 %v1280, %v1374
      %v1376 = vand.u32 %v1375, 4294901760
      %v1377 = vsub.f32 %v1375, %v1376
      %v1378 = vand.u32 %v1377, 4294901760
      %1379 = vmatpush1.msra.mxu0 %v1378
      %1380 = vmatprep.subr.mxu0 0.0
      %v1381 = vand.u32 %v1281, 4294901760
      %v1382 = vsub.f32 %v1281, %v1381
      %v1383 = vand.u32 %v1382, 4294901760
      %v1384 = vsub.f32 %v1382, %v1383
      %v1385 = vand.u32 %v1384, 4294901760
      %1386 = vmatpush1.msra.mxu0 %v1385
      %1387 = vmatprep.subr.mxu0 0.0
      %v1388 = vand.u32 %v1282, 4294901760
      %v1389 = vsub.f32 %v1282, %v1388
      %v1390 = vand.u32 %v1389, 4294901760
      %v1391 = vsub.f32 %v1389, %v1390
      %v1392 = vand.u32 %v1391, 4294901760
      %1393 = vmatpush1.msra.mxu0 %v1392
      %1394 = vmatprep.subr.mxu0 0.0
      %1395 = vmatpush1.msra.mxu0 0.0
      %1396 = vmatprep.subr.mxu0 0.0
      %1397 = vmatpush1.msra.mxu0 0.0
      %1398 = vmatprep.subr.mxu0 0.0
      %1399 = vmatpush1.msra.mxu0 0.0
      %1400 = vmatprep.subr.mxu0 0.0
      %1401 = vmatpush1.msra.mxu0 0.0
      %1402 = vmatprep.subr.mxu0 0.0
      %1403 = vmatpush1.msra.mxu0 0.0
      %1404 = vmatprep.subr.mxu0 0.0
      %1405 = vmatpush1.msra.mxu0 0.0
      %1406 = vmatprep.subr.mxu0 0.0
      %1407 = vmatpush1.msra.mxu0 0.0
      %1408 = vmatprep.subr.mxu0 0.0
      %1409 = vmatpush1.msra.mxu0 0.0
      %1410 = vmatprep.subr.mxu0 0.0
      %1411 = vmatpush1.msra.mxu0 0.0
      %1412 = vmatprep.subr.mxu0 0.0
      %1413 = vmatpush1.msra.mxu0 0.0
      %1414 = vmatprep.subr.mxu0 0.0
      %1415 = vmatpush1.msra.mxu0 0.0
      %1416 = vmatprep.subr.mxu0 0.0
      %1417 = vmatpush1.msra.mxu0 0.0
      %1418 = vmatprep.subr.mxu0 0.0
      %1419 = vmatpush1.msra.mxu0 0.0
      %1420 = vmatprep.subr.mxu0 0.0
      %1421 = vmatpush1.msra.mxu0 0.0
      %1422 = vmatprep.subr.mxu0 0.0
      %1423 = vmatpush1.msra.mxu0 0.0
      %1424 = vmatprep.subr.mxu0 0.0
      %1425 = vmatpush1.msra.mxu0 0.0
      %1426 = vmatprep.subr.mxu0 0.0
      %1427 = vmatpush1.msra.mxu0 0.0
      %1428 = vmatprep.subr.mxu0 0.0
      %1429 = vmatpush1.msra.mxu0 0.0
      %1430 = vmatprep.subr.mxu0 0.0
      %1431 = vmatpush1.msra.mxu0 0.0
      %1432 = vmatprep.subr.mxu0 0.0
      %1433 = vmatpush1.msra.mxu0 0.0
      %1434 = vmatprep.subr.mxu0 0.0
      %1435 = vmatpush1.msra.mxu0 0.0
      %1436 = vmatprep.subr.mxu0 0.0
      %1437 = vmatpush1.msra.mxu0 0.0
      %1438 = vmatprep.subr.mxu0 0.0
      %1439 = vmatpush1.msra.mxu0 0.0
      %1440 = vmatprep.subr.mxu0 0.0
      %1441 = vmatpush1.msra.mxu0 0.0
      %1442 = vmatprep.subr.mxu0 0.0
      %1443 = vmatpush1.msra.mxu0 0.0
      %1444 = vmatprep.subr.mxu0 0.0
      %1445 = vmatpush1.msra.mxu0 0.0
      %1446 = vmatprep.subr.mxu0 0.0
      %1447 = vmatpush1.msra.mxu0 0.0
      %1448 = vmatprep.subr.mxu0 0.0
      %1449 = vmatpush1.msra.mxu0 0.0
      %1450 = vmatprep.mubr.f32.mxu0 0.0
      %v1451 = vand.u32 %v1285, 4294901760
      %1452 = vmatmul.mubr.f32.gmra.mrb[0].mxu0 %v1451
      %v1453 = vpop.f32.mrb[0].mxu0
      %v1454 = vadd.f32 %v1363, %v1453
      %v1455 = vpop.f32.mrb[0].mxu0
      %1456 = vdwg.mxu0
      %1457 = vmatprep.subr.mxu0 0.0
      %v1458 = vand.u32 %v1279, 4294901760
      %v1459 = vsub.f32 %v1279, %v1458
      %1460 = vmatpush1.msra.mxu0 %v1459
      %1461 = vmatprep.subr.mxu0 0.0
      %v1462 = vand.u32 %v1280, 4294901760
      %v1463 = vsub.f32 %v1280, %v1462
      %1464 = vmatpush1.msra.mxu0 %v1463
      %1465 = vmatprep.subr.mxu0 0.0
      %v1466 = vand.u32 %v1281, 4294901760
      %v1467 = vsub.f32 %v1281, %v1466
      %1468 = vmatpush1.msra.mxu0 %v1467
      %1469 = vmatprep.subr.mxu0 0.0
      %v1470 = vand.u32 %v1282, 4294901760
      %v1471 = vsub.f32 %v1282, %v1470
      %1472 = vmatpush1.msra.mxu0 %v1471
      %1473 = vmatprep.subr.mxu0 0.0
      %1474 = vmatpush1.msra.mxu0 0.0
      %1475 = vmatprep.subr.mxu0 0.0
      %1476 = vmatpush1.msra.mxu0 0.0
      %1477 = vmatprep.subr.mxu0 0.0
      %1478 = vmatpush1.msra.mxu0 0.0
      %1479 = vmatprep.subr.mxu0 0.0
      %1480 = vmatpush1.msra.mxu0 0.0
      %1481 = vmatprep.subr.mxu0 0.0
      %1482 = vmatpush1.msra.mxu0 0.0
      %1483 = vmatprep.subr.mxu0 0.0
      %1484 = vmatpush1.msra.mxu0 0.0
      %1485 = vmatprep.subr.mxu0 0.0
      %1486 = vmatpush1.msra.mxu0 0.0
      %1487 = vmatprep.subr.mxu0 0.0
      %1488 = vmatpush1.msra.mxu0 0.0
      %1489 = vmatprep.subr.mxu0 0.0
      %1490 = vmatpush1.msra.mxu0 0.0
      %1491 = vmatprep.subr.mxu0 0.0
      %1492 = vmatpush1.msra.mxu0 0.0
      %1493 = vmatprep.subr.mxu0 0.0
      %1494 = vmatpush1.msra.mxu0 0.0
      %1495 = vmatprep.subr.mxu0 0.0
      %1496 = vmatpush1.msra.mxu0 0.0
      %1497 = vmatprep.subr.mxu0 0.0
      %1498 = vmatpush1.msra.mxu0 0.0
      %1499 = vmatprep.subr.mxu0 0.0
      %1500 = vmatpush1.msra.mxu0 0.0
      %1501 = vmatprep.subr.mxu0 0.0
      %1502 = vmatpush1.msra.mxu0 0.0
      %1503 = vmatprep.subr.mxu0 0.0
      %1504 = vmatpush1.msra.mxu0 0.0
      %1505 = vmatprep.subr.mxu0 0.0
      %1506 = vmatpush1.msra.mxu0 0.0
      %1507 = vmatprep.subr.mxu0 0.0
      %1508 = vmatpush1.msra.mxu0 0.0
      %1509 = vmatprep.subr.mxu0 0.0
      %1510 = vmatpush1.msra.mxu0 0.0
      %1511 = vmatprep.subr.mxu0 0.0
      %1512 = vmatpush1.msra.mxu0 0.0
      %1513 = vmatprep.subr.mxu0 0.0
      %1514 = vmatpush1.msra.mxu0 0.0
      %1515 = vmatprep.subr.mxu0 0.0
      %1516 = vmatpush1.msra.mxu0 0.0
      %1517 = vmatprep.subr.mxu0 0.0
      %1518 = vmatpush1.msra.mxu0 0.0
      %1519 = vmatprep.subr.mxu0 0.0
      %1520 = vmatpush1.msra.mxu0 0.0
      %1521 = vmatprep.subr.mxu0 0.0
      %1522 = vmatpush1.msra.mxu0 0.0
      %1523 = vmatprep.subr.mxu0 0.0
      %1524 = vmatpush1.msra.mxu0 0.0
      %1525 = vmatprep.subr.mxu0 0.0
      %1526 = vmatpush1.msra.mxu0 0.0
      %1527 = vmatprep.subr.mxu0 0.0
      %1528 = vmatpush1.msra.mxu0 0.0
      %1529 = vmatprep.mubr.f32.mxu0 0.0
      %v1530 = vand.u32 %v1285, 4294901760
      %v1531 = vsub.f32 %v1285, %v1530
      %1532 = vmatmul.mubr.f32.gmra.mrb[0].mxu0 %v1531
      %v1533 = vpop.f32.mrb[0].mxu0
      %v1534 = vadd.f32 %v1454, %v1533
      %v1535 = vpop.f32.mrb[0].mxu0
      %1536 = vdwg.mxu0
      %1537 = vmatprep.subr.mxu0 0.0
      %v1538 = vand.u32 %v1279, 4294901760
      %1539 = vmatpush1.msra.mxu0 %v1538
      %1540 = vmatprep.subr.mxu0 0.0
      %v1541 = vand.u32 %v1280, 4294901760
      %1542 = vmatpush1.msra.mxu0 %v1541
      %1543 = vmatprep.subr.mxu0 0.0
      %v1544 = vand.u32 %v1281, 4294901760
      %1545 = vmatpush1.msra.mxu0 %v1544
      %1546 = vmatprep.subr.mxu0 0.0
      %v1547 = vand.u32 %v1282, 4294901760
      %1548 = vmatpush1.msra.mxu0 %v1547
      %1549 = vmatprep.subr.mxu0 0.0
      %1550 = vmatpush1.msra.mxu0 0.0
      %1551 = vmatprep.subr.mxu0 0.0
      %1552 = vmatpush1.msra.mxu0 0.0
      %1553 = vmatprep.subr.mxu0 0.0
      %1554 = vmatpush1.msra.mxu0 0.0
      %1555 = vmatprep.subr.mxu0 0.0
      %1556 = vmatpush1.msra.mxu0 0.0
      %1557 = vmatprep.subr.mxu0 0.0
      %1558 = vmatpush1.msra.mxu0 0.0
      %1559 = vmatprep.subr.mxu0 0.0
      %1560 = vmatpush1.msra.mxu0 0.0
      %1561 = vmatprep.subr.mxu0 0.0
      %1562 = vmatpush1.msra.mxu0 0.0
      %1563 = vmatprep.subr.mxu0 0.0
      %1564 = vmatpush1.msra.mxu0 0.0
      %1565 = vmatprep.subr.mxu0 0.0
      %1566 = vmatpush1.msra.mxu0 0.0
      %1567 = vmatprep.subr.mxu0 0.0
      %1568 = vmatpush1.msra.mxu0 0.0
      %1569 = vmatprep.subr.mxu0 0.0
      %1570 = vmatpush1.msra.mxu0 0.0
      %1571 = vmatprep.subr.mxu0 0.0
      %1572 = vmatpush1.msra.mxu0 0.0
      %1573 = vmatprep.subr.mxu0 0.0
      %1574 = vmatpush1.msra.mxu0 0.0
      %1575 = vmatprep.subr.mxu0 0.0
      %1576 = vmatpush1.msra.mxu0 0.0
      %1577 = vmatprep.subr.mxu0 0.0
      %1578 = vmatpush1.msra.mxu0 0.0
      %1579 = vmatprep.subr.mxu0 0.0
      %1580 = vmatpush1.msra.mxu0 0.0
      %1581 = vmatprep.subr.mxu0 0.0
      %1582 = vmatpush1.msra.mxu0 0.0
      %1583 = vmatprep.subr.mxu0 0.0
      %1584 = vmatpush1.msra.mxu0 0.0
      %1585 = vmatprep.subr.mxu0 0.0
      %1586 = vmatpush1.msra.mxu0 0.0
      %1587 = vmatprep.subr.mxu0 0.0
      %1588 = vmatpush1.msra.mxu0 0.0
      %1589 = vmatprep.subr.mxu0 0.0
      %1590 = vmatpush1.msra.mxu0 0.0
      %1591 = vmatprep.subr.mxu0 0.0
      %1592 = vmatpush1.msra.mxu0 0.0
      %1593 = vmatprep.subr.mxu0 0.0
      %1594 = vmatpush1.msra.mxu0 0.0
      %1595 = vmatprep.subr.mxu0 0.0
      %1596 = vmatpush1.msra.mxu0 0.0
      %1597 = vmatprep.subr.mxu0 0.0
      %1598 = vmatpush1.msra.mxu0 0.0
      %1599 = vmatprep.subr.mxu0 0.0
      %1600 = vmatpush1.msra.mxu0 0.0
      %1601 = vmatprep.subr.mxu0 0.0
      %1602 = vmatpush1.msra.mxu0 0.0
      %1603 = vmatprep.subr.mxu0 0.0
      %1604 = vmatpush1.msra.mxu0 0.0
      %1605 = vmatprep.mubr.f32.mxu0 0.0
      %v1606 = vand.u32 %v1285, 4294901760
      %v1607 = vsub.f32 %v1285, %v1606
      %v1608 = vand.u32 %v1607, 4294901760
      %1609 = vmatmul.mubr.f32.gmra.mrb[0].mxu0 %v1608
      %v1610 = vpop.f32.mrb[0].mxu0
      %v1611 = vadd.f32 %v1534, %v1610
      %v1612 = vpop.f32.mrb[0].mxu0
      %1613 = vdwg.mxu0
      %1614 = vmatprep.subr.mxu0 0.0
      %v1615 = vand.u32 %v1279, 4294901760
      %v1616 = vsub.f32 %v1279, %v1615
      %v1617 = vand.u32 %v1616, 4294901760
      %1618 = vmatpush1.msra.mxu0 %v1617
      %1619 = vmatprep.subr.mxu0 0.0
      %v1620 = vand.u32 %v1280, 4294901760
      %v1621 = vsub.f32 %v1280, %v1620
      %v1622 = vand.u32 %v1621, 4294901760
      %1623 = vmatpush1.msra.mxu0 %v1622
      %1624 = vmatprep.subr.mxu0 0.0
      %v1625 = vand.u32 %v1281, 4294901760
      %v1626 = vsub.f32 %v1281, %v1625
      %v1627 = vand.u32 %v1626, 4294901760
      %1628 = vmatpush1.msra.mxu0 %v1627
      %1629 = vmatprep.subr.mxu0 0.0
      %v1630 = vand.u32 %v1282, 4294901760
      %v1631 = vsub.f32 %v1282, %v1630
      %v1632 = vand.u32 %v1631, 4294901760
      %1633 = vmatpush1.msra.mxu0 %v1632
      %1634 = vmatprep.subr.mxu0 0.0
      %1635 = vmatpush1.msra.mxu0 0.0
      %1636 = vmatprep.subr.mxu0 0.0
      %1637 = vmatpush1.msra.mxu0 0.0
      %1638 = vmatprep.subr.mxu0 0.0
      %1639 = vmatpush1.msra.mxu0 0.0
      %1640 = vmatprep.subr.mxu0 0.0
      %1641 = vmatpush1.msra.mxu0 0.0
      %1642 = vmatprep.subr.mxu0 0.0
      %1643 = vmatpush1.msra.mxu0 0.0
      %1644 = vmatprep.subr.mxu0 0.0
      %1645 = vmatpush1.msra.mxu0 0.0
      %1646 = vmatprep.subr.mxu0 0.0
      %1647 = vmatpush1.msra.mxu0 0.0
      %1648 = vmatprep.subr.mxu0 0.0
      %1649 = vmatpush1.msra.mxu0 0.0
      %1650 = vmatprep.subr.mxu0 0.0
      %1651 = vmatpush1.msra.mxu0 0.0
      %1652 = vmatprep.subr.mxu0 0.0
      %1653 = vmatpush1.msra.mxu0 0.0
      %1654 = vmatprep.subr.mxu0 0.0
      %1655 = vmatpush1.msra.mxu0 0.0
      %1656 = vmatprep.subr.mxu0 0.0
      %1657 = vmatpush1.msra.mxu0 0.0
      %1658 = vmatprep.subr.mxu0 0.0
      %1659 = vmatpush1.msra.mxu0 0.0
      %1660 = vmatprep.subr.mxu0 0.0
      %1661 = vmatpush1.msra.mxu0 0.0
      %1662 = vmatprep.subr.mxu0 0.0
      %1663 = vmatpush1.msra.mxu0 0.0
      %1664 = vmatprep.subr.mxu0 0.0
      %1665 = vmatpush1.msra.mxu0 0.0
      %1666 = vmatprep.subr.mxu0 0.0
      %1667 = vmatpush1.msra.mxu0 0.0
      %1668 = vmatprep.subr.mxu0 0.0
      %1669 = vmatpush1.msra.mxu0 0.0
      %1670 = vmatprep.subr.mxu0 0.0
      %1671 = vmatpush1.msra.mxu0 0.0
      %1672 = vmatprep.subr.mxu0 0.0
      %1673 = vmatpush1.msra.mxu0 0.0
      %1674 = vmatprep.subr.mxu0 0.0
      %1675 = vmatpush1.msra.mxu0 0.0
      %1676 = vmatprep.subr.mxu0 0.0
      %1677 = vmatpush1.msra.mxu0 0.0
      %1678 = vmatprep.subr.mxu0 0.0
      %1679 = vmatpush1.msra.mxu0 0.0
      %1680 = vmatprep.subr.mxu0 0.0
      %1681 = vmatpush1.msra.mxu0 0.0
      %1682 = vmatprep.subr.mxu0 0.0
      %1683 = vmatpush1.msra.mxu0 0.0
      %1684 = vmatprep.subr.mxu0 0.0
      %1685 = vmatpush1.msra.mxu0 0.0
      %1686 = vmatprep.subr.mxu0 0.0
      %1687 = vmatpush1.msra.mxu0 0.0
      %1688 = vmatprep.subr.mxu0 0.0
      %1689 = vmatpush1.msra.mxu0 0.0
      %1690 = vmatprep.mubr.f32.mxu0 0.0
      %v1691 = vand.u32 %v1285, 4294901760
      %1692 = vmatmul.mubr.f32.gmra.mrb[0].mxu0 %v1691
      %v1693 = vpop.f32.mrb[0].mxu0
      %v1694 = vadd.f32 %v1611, %v1693
      %v1695 = vpop.f32.mrb[0].mxu0
      %1696 = vdwg.mxu0
      %1697 = vmatprep.subr.mxu0 0.0
      %v1698 = vand.u32 %v1279, 4294901760
      %1699 = vmatpush1.msra.mxu0 %v1698
      %1700 = vmatprep.subr.mxu0 0.0
      %v1701 = vand.u32 %v1280, 4294901760
      %1702 = vmatpush1.msra.mxu0 %v1701
      %1703 = vmatprep.subr.mxu0 0.0
      %v1704 = vand.u32 %v1281, 4294901760
      %1705 = vmatpush1.msra.mxu0 %v1704
      %1706 = vmatprep.subr.mxu0 0.0
      %v1707 = vand.u32 %v1282, 4294901760
      %1708 = vmatpush1.msra.mxu0 %v1707
      %1709 = vmatprep.subr.mxu0 0.0
      %1710 = vmatpush1.msra.mxu0 0.0
      %1711 = vmatprep.subr.mxu0 0.0
      %1712 = vmatpush1.msra.mxu0 0.0
      %1713 = vmatprep.subr.mxu0 0.0
      %1714 = vmatpush1.msra.mxu0 0.0
      %1715 = vmatprep.subr.mxu0 0.0
      %1716 = vmatpush1.msra.mxu0 0.0
      %1717 = vmatprep.subr.mxu0 0.0
      %1718 = vmatpush1.msra.mxu0 0.0
      %1719 = vmatprep.subr.mxu0 0.0
      %1720 = vmatpush1.msra.mxu0 0.0
      %1721 = vmatprep.subr.mxu0 0.0
      %1722 = vmatpush1.msra.mxu0 0.0
      %1723 = vmatprep.subr.mxu0 0.0
      %1724 = vmatpush1.msra.mxu0 0.0
      %1725 = vmatprep.subr.mxu0 0.0
      %1726 = vmatpush1.msra.mxu0 0.0
      %1727 = vmatprep.subr.mxu0 0.0
      %1728 = vmatpush1.msra.mxu0 0.0
      %1729 = vmatprep.subr.mxu0 0.0
      %1730 = vmatpush1.msra.mxu0 0.0
      %1731 = vmatprep.subr.mxu0 0.0
      %1732 = vmatpush1.msra.mxu0 0.0
      %1733 = vmatprep.subr.mxu0 0.0
      %1734 = vmatpush1.msra.mxu0 0.0
      %1735 = vmatprep.subr.mxu0 0.0
      %1736 = vmatpush1.msra.mxu0 0.0
      %1737 = vmatprep.subr.mxu0 0.0
      %1738 = vmatpush1.msra.mxu0 0.0
      %1739 = vmatprep.subr.mxu0 0.0
      %1740 = vmatpush1.msra.mxu0 0.0
      %1741 = vmatprep.subr.mxu0 0.0
      %1742 = vmatpush1.msra.mxu0 0.0
      %1743 = vmatprep.subr.mxu0 0.0
      %1744 = vmatpush1.msra.mxu0 0.0
      %1745 = vmatprep.subr.mxu0 0.0
      %1746 = vmatpush1.msra.mxu0 0.0
      %1747 = vmatprep.subr.mxu0 0.0
      %1748 = vmatpush1.msra.mxu0 0.0
      %1749 = vmatprep.subr.mxu0 0.0
      %1750 = vmatpush1.msra.mxu0 0.0
      %1751 = vmatprep.subr.mxu0 0.0
      %1752 = vmatpush1.msra.mxu0 0.0
      %1753 = vmatprep.subr.mxu0 0.0
      %1754 = vmatpush1.msra.mxu0 0.0
      %1755 = vmatprep.subr.mxu0 0.0
      %1756 = vmatpush1.msra.mxu0 0.0
      %1757 = vmatprep.subr.mxu0 0.0
      %1758 = vmatpush1.msra.mxu0 0.0
      %1759 = vmatprep.subr.mxu0 0.0
      %1760 = vmatpush1.msra.mxu0 0.0
      %1761 = vmatprep.subr.mxu0 0.0
      %1762 = vmatpush1.msra.mxu0 0.0
      %1763 = vmatprep.subr.mxu0 0.0
      %1764 = vmatpush1.msra.mxu0 0.0
      %1765 = vmatprep.mubr.f32.mxu0 0.0
      %v1766 = vand.u32 %v1285, 4294901760
      %1767 = vmatmul.mubr.f32.gmra.mrb[0].mxu0 %v1766
      %v1768 = vpop.f32.mrb[0].mxu0
      %v1769 = vadd.f32 %v1694, %v1768
      %v1770 = vpop.f32.mrb[0].mxu0
      %1771 = vdwg.mxu0
      %v1772 = vld [vmem:[%s694] sm:$0xff]
      %v1773 = vld [vmem:[%s694 + $0x8] sm:$0xff]
      %v1776 = vunpack.c.l.s4 1966171168
      %v1777 = vunpack.c.0.s8 %v1776
      %v1778 = vlaneseq
      %v1779 = vshrl.u32 %v1778, 7
      %v1780 = vsub.s32 %v1777, %v1779
      %v1781 = vrot.slane %v1769, %v1780
      %v1782 = vcombine.high %v1781, %v1781
      %v1784 = vunpack.c.l.s4 1966171168
      %v1785 = vunpack.c.0.s8 %v1784
      %v1786 = vlaneseq
      %v1787 = vshrl.u32 %v1786, 7
      %v1788 = vsub.s32 %v1785, %v1787
      %v1789 = vrot.slane %v1781, %v1788
      %v1791 = vunpack.c.l.s4 1966171168
      %v1792 = vunpack.c.0.s8 %v1791
      %v1793 = vlaneseq
      %v1794 = vshrl.u32 %v1793, 7
      %v1795 = vsub.s32 %v1792, %v1794
      %v1796 = vrot.slane %v1782, %v1795
      %v1797 = vlaneseq
      %v1798 = vshrl.u32 %v1797, 7
      %v1799 = vsub.s32 0, %v1798
      %v1800 = vrot.slane %v1789, %v1799
      %v1801 = vlaneseq
      %v1802 = vshrl.u32 %v1801, 7
      %v1803 = vsub.s32 0, %v1802
      %v1804 = vrot.slane %v1796, %v1803
      %v1807 = vadd.f32 %v1772, %v1800
      %v1808 = vadd.f32 %v1773, %v1804
      %v1809 = vlaneseq
      %v1810 = vshrl.u32 %v1809, 7
      %v1811 = vsub.s32 0, %v1810
      %v1812 = vrot.slane %v1278, %v1811
      %1814 = vbcast.lane.b32.xlu0 %v1812, 256
      %v1815 = vpop.permute.xlu0 %1814
      %v1816 = vlaneseq
      %v1817 = vshrl.u32 %v1816, 7
      %v1818 = vsub.s32 1, %v1817
      %v1819 = vrot.slane %v1278, %v1818
      %1821 = vbcast.lane.b32.xlu0 %v1819, 256
      %v1822 = vpop.permute.xlu0 %1821
      %v1823 = vld [vmem:[%s8] sm:$0x1]
      %v1825 = vlaneseq
      %v1826 = vshrl.u32 %v1825, 7
      %v1827 = vsub.s32 0, %v1826
      %v1828 = vrot.slane %v1823, %v1827
      %v1830 = vmul.f32 %v1815, %v1828
      %v1831 = vmul.f32 %v1822, %v1828
      %v1832 = vadd.f32 %v1807, %v1830
      %v1833 = vadd.f32 %v1808, %v1831
      %v1834 = vld [vmem:[%s10] sm:$0x1]
      %v1836 = vlaneseq
      %v1837 = vshrl.u32 %v1836, 7
      %v1838 = vsub.s32 0, %v1837
      %v1839 = vrot.slane %v1834, %v1838
      %v1841 = vadd.f32 %v1832, %v1839
      %v1842 = vadd.f32 %v1833, %v1839
      %v1843 = vtanh.pop %v1841
      %v1844 = vtanh.pop %v1842
      %v1845 = vld [vmem:[%s9] sm:$0x1]
      %v1847 = vlaneseq
      %v1848 = vshrl.u32 %v1847, 7
      %v1849 = vsub.s32 0, %v1848
      %v1850 = vrot.slane %v1845, %v1849
      %v1852 = vmul.f32 %v1843, %v1850
      %v1853 = vmul.f32 %v1844, %v1850
      %v1854 = vsel %vm1283, %v1852, 0.0
      %1855 = vadd.xlane.f32.xlu0 %v1854
      %v1856 = vpop.xlane.xlu0 %1855
      %v1857 = vsel %vm1283, %v1853, 0.0
      %1858 = vadd.xlane.f32.xlu0 %v1857
      %v1859 = vpop.xlane.xlu0 %1858
      %v1862 = vlaneseq
      %v1863 = vshrl.u32 %v1862, 7
      %v1864 = vsub.s32 %v730, %v1863
      %v1865 = vrot.slane %v1856, %v1864
      %v1866 = vlaneseq
      %v1867 = vshrl.u32 %v1866, 7
      %v1868 = vsub.s32 %v730, %v1867
      %v1869 = vrot.slane %v1859, %v1868
      %vm1870 = vcmask 1041409
      %v1871 = vsel %vm1870, %v1869, %v1865
      %vm1873 = vcmask 58368
      %v1874 = vsel %vm1873, %v1871, -inf
      %1875 = vmax.xlane.f32.xlu0 %v1874
      %v1876 = vpop.xlane.xlu0 %1875
      %v1878 = vlaneseq
      %v1879 = vshrl.u32 %v1878, 7
      %v1880 = vsub.s32 0, %v1879
      %v1881 = vrot.slane %v1876, %v1880
      %v1882 = vlaneseq
      %v1883 = vshrl.u32 %v1882, 7
      %v1884 = vsub.s32 1, %v1883
      %v1885 = vrot.slane %v1876, %v1884
      %v1888 = vsub.f32 %v1856, %v1881
      %v1889 = vsub.f32 %v1859, %v1885
      %v1890 = vmul.f32 %v1888, 1.442695
      %v1891 = vpow.pop %v1890
      %v1892 = vmul.f32 %v1889, 1.442695
      %v1893 = vpow.pop %v1892
      %1896 = vset.pattern.permute.xlu0 0
      %1897 = vperm.xlu0 %1896, %v1891
      %v1898 = vpop.permute.xlu0 %1897
      %1899 = vset.pattern.permute.xlu0 0
      %1900 = vperm.xlu0 %1899, %v1893
      %v1901 = vpop.permute.xlu0 %1900
      %v1902 = vlaneseq
      %v1903 = vshrl.u32 %v1902, 7
      %v1904 = vsub.s32 %v730, %v1903
      %v1905 = vrot.slane %v1898, %v1904
      %v1906 = vlaneseq
      %v1907 = vshrl.u32 %v1906, 7
      %v1908 = vsub.s32 %v730, %v1907
      %v1909 = vrot.slane %v1901, %v1908
      %v1910 = vsel %vm1870, %v1909, %v1905
      %v1912 = vsel %vm1873, %v1910, 0.0
      %1913 = vadd.xlane.f32.xlu0 %v1912
      %v1914 = vpop.xlane.xlu0 %1913
      %v1915 = vrcp.pop %v1914
      %v1917 = vlaneseq
      %v1918 = vshrl.u32 %v1917, 7
      %v1919 = vsub.s32 0, %v1918
      %v1920 = vrot.slane %v1915, %v1919
      %v1921 = vlaneseq
      %v1922 = vshrl.u32 %v1921, 7
      %v1923 = vsub.s32 1, %v1922
      %v1924 = vrot.slane %v1915, %v1923
      %v1927 = vmul.f32 %v1891, %v1920
      %v1928 = vmul.f32 %v1893, %v1924
      %v1929 = vld [vmem:[%s688] sm:$0xff]
      %v1930 = vld [vmem:[%s688 + $0x8] sm:$0xff]
      %1932 = vset.pattern.permute.xlu0 0
      %1933 = vperm.xlu0 %1932, %v1927
      %v1934 = vpop.permute.xlu0 %1933
      %1937 = vset.pattern.permute.xlu0 0
      %1938 = vperm.xlu0 %1937, %v1928
      %v1939 = vpop.permute.xlu0 %1938
      %v1941 = vmul.f32 %v1929, %v1934
      %v1942 = vmul.f32 %v1930, %v1939
      %vm1943 = vcmask 523264
      %v1944 = vsel %vm1943, %v1941, 0.0
      %v1945 = vrot.slane %v1944, 4
      %v1946 = vadd.f32 %v1944, %v1945
      %v1947 = vrot.slane %v1946, 2
      %v1948 = vadd.f32 %v1946, %v1947
      %v1949 = vrot.slane %v1948, 1
      %v1950 = vadd.f32 %v1948, %v1949
      %v1951 = vsel %vm1943, %v1942, 0.0
      %v1952 = vrot.slane %v1951, 4
      %v1953 = vadd.f32 %v1951, %v1952
      %v1954 = vrot.slane %v1953, 2
      %v1955 = vadd.f32 %v1953, %v1954
      %v1956 = vrot.slane %v1955, 1
      %v1957 = vadd.f32 %v1955, %v1956
      %v1958 = vld [vmem:[%s11] sm:$0xff]
      %v1959 = vld [vmem:[%s11 + $0x8] sm:$0xff]
      %v1960 = vld [vmem:[%s11 + $0x10] sm:$0xff]
      %v1961 = vld [vmem:[%s11 + $0x18] sm:$0xff]
      %v1962 = vld [vmem:[%s11 + $0x20] sm:$0xff]
      %v1963 = vld [vmem:[%s11 + $0x28] sm:$0xff]
      %v1964 = vld [vmem:[%s11 + $0x30] sm:$0xff]
      %v1965 = vld [vmem:[%s11 + $0x38] sm:$0xff]
      %v1966 = vld [vmem:[%s12] sm:$0xff]
      %v1967 = vld [vmem:[%s12 + $0x8] sm:$0xff]
      %v1968 = vld [vmem:[%s12 + $0x10] sm:$0xff]
      %v1969 = vld [vmem:[%s12 + $0x18] sm:$0xff]
      %1970 = vmatprep.subr.mxu0 0.0
      %v1971 = vand.u32 %v1966, 4294901760
      %1972 = vmatpush1.msra.mxu0 %v1971
      %1973 = vmatprep.subr.mxu0 0.0
      %v1974 = vand.u32 %v1967, 4294901760
      %1975 = vmatpush1.msra.mxu0 %v1974
      %1976 = vmatprep.subr.mxu0 0.0
      %v1977 = vand.u32 %v1968, 4294901760
      %1978 = vmatpush1.msra.mxu0 %v1977
      %1979 = vmatprep.subr.mxu0 0.0
      %v1980 = vand.u32 %v1969, 4294901760
      %1981 = vmatpush1.msra.mxu0 %v1980
      %1982 = vmatprep.subr.mxu0 0.0
      %1983 = vmatpush1.msra.mxu0 0.0
      %1984 = vmatprep.subr.mxu0 0.0
      %1985 = vmatpush1.msra.mxu0 0.0
      %1986 = vmatprep.subr.mxu0 0.0
      %1987 = vmatpush1.msra.mxu0 0.0
      %1988 = vmatprep.subr.mxu0 0.0
      %1989 = vmatpush1.msra.mxu0 0.0
      %1990 = vmatprep.subr.mxu0 0.0
      %1991 = vmatpush1.msra.mxu0 0.0
      %1992 = vmatprep.subr.mxu0 0.0
      %1993 = vmatpush1.msra.mxu0 0.0
      %1994 = vmatprep.subr.mxu0 0.0
      %1995 = vmatpush1.msra.mxu0 0.0
      %1996 = vmatprep.subr.mxu0 0.0
      %1997 = vmatpush1.msra.mxu0 0.0
      %1998 = vmatprep.subr.mxu0 0.0
      %1999 = vmatpush1.msra.mxu0 0.0
      %2000 = vmatprep.subr.mxu0 0.0
      %2001 = vmatpush1.msra.mxu0 0.0
      %2002 = vmatprep.subr.mxu0 0.0
      %2003 = vmatpush1.msra.mxu0 0.0
      %2004 = vmatprep.subr.mxu0 0.0
      %2005 = vmatpush1.msra.mxu0 0.0
      %2006 = vmatprep.subr.mxu0 0.0
      %2007 = vmatpush1.msra.mxu0 0.0
      %2008 = vmatprep.subr.mxu0 0.0
      %2009 = vmatpush1.msra.mxu0 0.0
      %2010 = vmatprep.subr.mxu0 0.0
      %2011 = vmatpush1.msra.mxu0 0.0
      %2012 = vmatprep.subr.mxu0 0.0
      %2013 = vmatpush1.msra.mxu0 0.0
      %2014 = vmatprep.subr.mxu0 0.0
      %2015 = vmatpush1.msra.mxu0 0.0
      %2016 = vmatprep.subr.mxu0 0.0
      %2017 = vmatpush1.msra.mxu0 0.0
      %2018 = vmatprep.subr.mxu0 0.0
      %2019 = vmatpush1.msra.mxu0 0.0
      %2020 = vmatprep.subr.mxu0 0.0
      %2021 = vmatpush1.msra.mxu0 0.0
      %2022 = vmatprep.subr.mxu0 0.0
      %2023 = vmatpush1.msra.mxu0 0.0
      %2024 = vmatprep.subr.mxu0 0.0
      %2025 = vmatpush1.msra.mxu0 0.0
      %2026 = vmatprep.subr.mxu0 0.0
      %2027 = vmatpush1.msra.mxu0 0.0
      %2028 = vmatprep.subr.mxu0 0.0
      %2029 = vmatpush1.msra.mxu0 0.0
      %2030 = vmatprep.subr.mxu0 0.0
      %2031 = vmatpush1.msra.mxu0 0.0
      %2032 = vmatprep.subr.mxu0 0.0
      %2033 = vmatpush1.msra.mxu0 0.0
      %2034 = vmatprep.subr.mxu0 0.0
      %2035 = vmatpush1.msra.mxu0 0.0
      %2036 = vmatprep.subr.mxu0 0.0
      %2037 = vmatpush1.msra.mxu0 0.0
      %2038 = vmatprep.mubr.f32.mxu0 0.0
      %v2039 = vand.u32 %v1285, 4294901760
      %v2040 = vsub.f32 %v1285, %v2039
      %v2041 = vand.u32 %v2040, 4294901760
      %v2042 = vsub.f32 %v2040, %v2041
      %v2043 = vand.u32 %v2042, 4294901760
      %2044 = vmatmul.mubr.f32.gmra.mrb[0].mxu0 %v2043
      %v2045 = vpop.f32.mrb[0].mxu0
      %v2046 = vadd.f32 0.0, %v2045
      %v2047 = vpop.f32.mrb[0].mxu0
      %2048 = vdwg.mxu0
      %2049 = vmatprep.subr.mxu0 0.0
      %v2050 = vand.u32 %v1966, 4294901760
      %v2051 = vsub.f32 %v1966, %v2050
      %v2052 = vand.u32 %v2051, 4294901760
      %v2053 = vsub.f32 %v2051, %v2052
      %v2054 = vand.u32 %v2053, 4294901760
      %2055 = vmatpush1.msra.mxu0 %v2054
      %2056 = vmatprep.subr.mxu0 0.0
      %v2057 = vand.u32 %v1967, 4294901760
      %v2058 = vsub.f32 %v1967, %v2057
      %v2059 = vand.u32 %v2058, 4294901760
      %v2060 = vsub.f32 %v2058, %v2059
      %v2061 = vand.u32 %v2060, 4294901760
      %2062 = vmatpush1.msra.mxu0 %v2061
      %2063 = vmatprep.subr.mxu0 0.0
      %v2064 = vand.u32 %v1968, 4294901760
      %v2065 = vsub.f32 %v1968, %v2064
      %v2066 = vand.u32 %v2065, 4294901760
      %v2067 = vsub.f32 %v2065, %v2066
      %v2068 = vand.u32 %v2067, 4294901760
      %2069 = vmatpush1.msra.mxu0 %v2068
      %2070 = vmatprep.subr.mxu0 0.0
      %v2071 = vand.u32 %v1969, 4294901760
      %v2072 = vsub.f32 %v1969, %v2071
      %v2073 = vand.u32 %v2072, 4294901760
      %v2074 = vsub.f32 %v2072, %v2073
      %v2075 = vand.u32 %v2074, 4294901760
      %2076 = vmatpush1.msra.mxu0 %v2075
      %2077 = vmatprep.subr.mxu0 0.0
      %2078 = vmatpush1.msra.mxu0 0.0
      %2079 = vmatprep.subr.mxu0 0.0
      %2080 = vmatpush1.msra.mxu0 0.0
      %2081 = vmatprep.subr.mxu0 0.0
      %2082 = vmatpush1.msra.mxu0 0.0
      %2083 = vmatprep.subr.mxu0 0.0
      %2084 = vmatpush1.msra.mxu0 0.0
      %2085 = vmatprep.subr.mxu0 0.0
      %2086 = vmatpush1.msra.mxu0 0.0
      %2087 = vmatprep.subr.mxu0 0.0
      %2088 = vmatpush1.msra.mxu0 0.0
      %2089 = vmatprep.subr.mxu0 0.0
      %2090 = vmatpush1.msra.mxu0 0.0
      %2091 = vmatprep.subr.mxu0 0.0
      %2092 = vmatpush1.msra.mxu0 0.0
      %2093 = vmatprep.subr.mxu0 0.0
      %2094 = vmatpush1.msra.mxu0 0.0
      %2095 = vmatprep.subr.mxu0 0.0
      %2096 = vmatpush1.msra.mxu0 0.0
      %2097 = vmatprep.subr.mxu0 0.0
      %2098 = vmatpush1.msra.mxu0 0.0
      %2099 = vmatprep.subr.mxu0 0.0
      %2100 = vmatpush1.msra.mxu0 0.0
      %2101 = vmatprep.subr.mxu0 0.0
      %2102 = vmatpush1.msra.mxu0 0.0
      %2103 = vmatprep.subr.mxu0 0.0
      %2104 = vmatpush1.msra.mxu0 0.0
      %2105 = vmatprep.subr.mxu0 0.0
      %2106 = vmatpush1.msra.mxu0 0.0
      %2107 = vmatprep.subr.mxu0 0.0
      %2108 = vmatpush1.msra.mxu0 0.0
      %2109 = vmatprep.subr.mxu0 0.0
      %2110 = vmatpush1.msra.mxu0 0.0
      %2111 = vmatprep.subr.mxu0 0.0
      %2112 = vmatpush1.msra.mxu0 0.0
      %2113 = vmatprep.subr.mxu0 0.0
      %2114 = vmatpush1.msra.mxu0 0.0
      %2115 = vmatprep.subr.mxu0 0.0
      %2116 = vmatpush1.msra.mxu0 0.0
      %2117 = vmatprep.subr.mxu0 0.0
      %2118 = vmatpush1.msra.mxu0 0.0
      %2119 = vmatprep.subr.mxu0 0.0
      %2120 = vmatpush1.msra.mxu0 0.0
      %2121 = vmatprep.subr.mxu0 0.0
      %2122 = vmatpush1.msra.mxu0 0.0
      %2123 = vmatprep.subr.mxu0 0.0
      %2124 = vmatpush1.msra.mxu0 0.0
      %2125 = vmatprep.subr.mxu0 0.0
      %2126 = vmatpush1.msra.mxu0 0.0
      %2127 = vmatprep.subr.mxu0 0.0
      %2128 = vmatpush1.msra.mxu0 0.0
      %2129 = vmatprep.subr.mxu0 0.0
      %2130 = vmatpush1.msra.mxu0 0.0
      %2131 = vmatprep.subr.mxu0 0.0
      %2132 = vmatpush1.msra.mxu0 0.0
      %2133 = vmatprep.mubr.f32.mxu0 0.0
      %v2134 = vand.u32 %v1285, 4294901760
      %2135 = vmatmul.mubr.f32.gmra.mrb[0].mxu0 %v2134
      %v2136 = vpop.f32.mrb[0].mxu0
      %v2137 = vadd.f32 %v2046, %v2136
      %v2138 = vpop.f32.mrb[0].mxu0
      %2139 = vdwg.mxu0
      %2140 = vmatprep.subr.mxu0 0.0
      %v2141 = vand.u32 %v1966, 4294901760
      %v2142 = vsub.f32 %v1966, %v2141
      %2143 = vmatpush1.msra.mxu0 %v2142
      %2144 = vmatprep.subr.mxu0 0.0
      %v2145 = vand.u32 %v1967, 4294901760
      %v2146 = vsub.f32 %v1967, %v2145
      %2147 = vmatpush1.msra.mxu0 %v2146
      %2148 = vmatprep.subr.mxu0 0.0
      %v2149 = vand.u32 %v1968, 4294901760
      %v2150 = vsub.f32 %v1968, %v2149
      %2151 = vmatpush1.msra.mxu0 %v2150
      %2152 = vmatprep.subr.mxu0 0.0
      %v2153 = vand.u32 %v1969, 4294901760
      %v2154 = vsub.f32 %v1969, %v2153
      %2155 = vmatpush1.msra.mxu0 %v2154
      %2156 = vmatprep.subr.mxu0 0.0
      %2157 = vmatpush1.msra.mxu0 0.0
      %2158 = vmatprep.subr.mxu0 0.0
      %2159 = vmatpush1.msra.mxu0 0.0
      %2160 = vmatprep.subr.mxu0 0.0
      %2161 = vmatpush1.msra.mxu0 0.0
      %2162 = vmatprep.subr.mxu0 0.0
      %2163 = vmatpush1.msra.mxu0 0.0
      %2164 = vmatprep.subr.mxu0 0.0
      %2165 = vmatpush1.msra.mxu0 0.0
      %2166 = vmatprep.subr.mxu0 0.0
      %2167 = vmatpush1.msra.mxu0 0.0
      %2168 = vmatprep.subr.mxu0 0.0
      %2169 = vmatpush1.msra.mxu0 0.0
      %2170 = vmatprep.subr.mxu0 0.0
      %2171 = vmatpush1.msra.mxu0 0.0
      %2172 = vmatprep.subr.mxu0 0.0
      %2173 = vmatpush1.msra.mxu0 0.0
      %2174 = vmatprep.subr.mxu0 0.0
      %2175 = vmatpush1.msra.mxu0 0.0
      %2176 = vmatprep.subr.mxu0 0.0
      %2177 = vmatpush1.msra.mxu0 0.0
      %2178 = vmatprep.subr.mxu0 0.0
      %2179 = vmatpush1.msra.mxu0 0.0
      %2180 = vmatprep.subr.mxu0 0.0
      %2181 = vmatpush1.msra.mxu0 0.0
      %2182 = vmatprep.subr.mxu0 0.0
      %2183 = vmatpush1.msra.mxu0 0.0
      %2184 = vmatprep.subr.mxu0 0.0
      %2185 = vmatpush1.msra.mxu0 0.0
      %2186 = vmatprep.subr.mxu0 0.0
      %2187 = vmatpush1.msra.mxu0 0.0
      %2188 = vmatprep.subr.mxu0 0.0
      %2189 = vmatpush1.msra.mxu0 0.0
      %2190 = vmatprep.subr.mxu0 0.0
      %2191 = vmatpush1.msra.mxu0 0.0
      %2192 = vmatprep.subr.mxu0 0.0
      %2193 = vmatpush1.msra.mxu0 0.0
      %2194 = vmatprep.subr.mxu0 0.0
      %2195 = vmatpush1.msra.mxu0 0.0
      %2196 = vmatprep.subr.mxu0 0.0
      %2197 = vmatpush1.msra.mxu0 0.0
      %2198 = vmatprep.subr.mxu0 0.0
      %2199 = vmatpush1.msra.mxu0 0.0
      %2200 = vmatprep.subr.mxu0 0.0
      %2201 = vmatpush1.msra.mxu0 0.0
      %2202 = vmatprep.subr.mxu0 0.0
      %2203 = vmatpush1.msra.mxu0 0.0
      %2204 = vmatprep.subr.mxu0 0.0
      %2205 = vmatpush1.msra.mxu0 0.0
      %2206 = vmatprep.subr.mxu0 0.0
      %2207 = vmatpush1.msra.mxu0 0.0
      %2208 = vmatprep.subr.mxu0 0.0
      %2209 = vmatpush1.msra.mxu0 0.0
      %2210 = vmatprep.subr.mxu0 0.0
      %2211 = vmatpush1.msra.mxu0 0.0
      %2212 = vmatprep.mubr.f32.mxu0 0.0
      %v2213 = vand.u32 %v1285, 4294901760
      %v2214 = vsub.f32 %v1285, %v2213
      %2215 = vmatmul.mubr.f32.gmra.mrb[0].mxu0 %v2214
      %v2216 = vpop.f32.mrb[0].mxu0
      %v2217 = vadd.f32 %v2137, %v2216
      %v2218 = vpop.f32.mrb[0].mxu0
      %2219 = vdwg.mxu0
      %2220 = vmatprep.subr.mxu0 0.0
      %v2221 = vand.u32 %v1966, 4294901760
      %2222 = vmatpush1.msra.mxu0 %v2221
      %2223 = vmatprep.subr.mxu0 0.0
      %v2224 = vand.u32 %v1967, 4294901760
      %2225 = vmatpush1.msra.mxu0 %v2224
      %2226 = vmatprep.subr.mxu0 0.0
      %v2227 = vand.u32 %v1968, 4294901760
      %2228 = vmatpush1.msra.mxu0 %v2227
      %2229 = vmatprep.subr.mxu0 0.0
      %v2230 = vand.u32 %v1969, 4294901760
      %2231 = vmatpush1.msra.mxu0 %v2230
      %2232 = vmatprep.subr.mxu0 0.0
      %2233 = vmatpush1.msra.mxu0 0.0
      %2234 = vmatprep.subr.mxu0 0.0
      %2235 = vmatpush1.msra.mxu0 0.0
      %2236 = vmatprep.subr.mxu0 0.0
      %2237 = vmatpush1.msra.mxu0 0.0
      %2238 = vmatprep.subr.mxu0 0.0
      %2239 = vmatpush1.msra.mxu0 0.0
      %2240 = vmatprep.subr.mxu0 0.0
      %2241 = vmatpush1.msra.mxu0 0.0
      %2242 = vmatprep.subr.mxu0 0.0
      %2243 = vmatpush1.msra.mxu0 0.0
      %2244 = vmatprep.subr.mxu0 0.0
      %2245 = vmatpush1.msra.mxu0 0.0
      %2246 = vmatprep.subr.mxu0 0.0
      %2247 = vmatpush1.msra.mxu0 0.0
      %2248 = vmatprep.subr.mxu0 0.0
      %2249 = vmatpush1.msra.mxu0 0.0
      %2250 = vmatprep.subr.mxu0 0.0
      %2251 = vmatpush1.msra.mxu0 0.0
      %2252 = vmatprep.subr.mxu0 0.0
      %2253 = vmatpush1.msra.mxu0 0.0
      %2254 = vmatprep.subr.mxu0 0.0
      %2255 = vmatpush1.msra.mxu0 0.0
      %2256 = vmatprep.subr.mxu0 0.0
      %2257 = vmatpush1.msra.mxu0 0.0
      %2258 = vmatprep.subr.mxu0 0.0
      %2259 = vmatpush1.msra.mxu0 0.0
      %2260 = vmatprep.subr.mxu0 0.0
      %2261 = vmatpush1.msra.mxu0 0.0
      %2262 = vmatprep.subr.mxu0 0.0
      %2263 = vmatpush1.msra.mxu0 0.0
      %2264 = vmatprep.subr.mxu0 0.0
      %2265 = vmatpush1.msra.mxu0 0.0
      %2266 = vmatprep.subr.mxu0 0.0
      %2267 = vmatpush1.msra.mxu0 0.0
      %2268 = vmatprep.subr.mxu0 0.0
      %2269 = vmatpush1.msra.mxu0 0.0
      %2270 = vmatprep.subr.mxu0 0.0
      %2271 = vmatpush1.msra.mxu0 0.0
      %2272 = vmatprep.subr.mxu0 0.0
      %2273 = vmatpush1.msra.mxu0 0.0
      %2274 = vmatprep.subr.mxu0 0.0
      %2275 = vmatpush1.msra.mxu0 0.0
      %2276 = vmatprep.subr.mxu0 0.0
      %2277 = vmatpush1.msra.mxu0 0.0
      %2278 = vmatprep.subr.mxu0 0.0
      %2279 = vmatpush1.msra.mxu0 0.0
      %2280 = vmatprep.subr.mxu0 0.0
      %2281 = vmatpush1.msra.mxu0 0.0
      %2282 = vmatprep.subr.mxu0 0.0
      %2283 = vmatpush1.msra.mxu0 0.0
      %2284 = vmatprep.subr.mxu0 0.0
      %2285 = vmatpush1.msra.mxu0 0.0
      %2286 = vmatprep.subr.mxu0 0.0
      %2287 = vmatpush1.msra.mxu0 0.0
      %2288 = vmatprep.mubr.f32.mxu0 0.0
      %v2289 = vand.u32 %v1285, 4294901760
      %v2290 = vsub.f32 %v1285, %v2289
      %v2291 = vand.u32 %v2290, 4294901760
      %2292 = vmatmul.mubr.f32.gmra.mrb[0].mxu0 %v2291
      %v2293 = vpop.f32.mrb[0].mxu0
      %v2294 = vadd.f32 %v2217, %v2293
      %v2295 = vpop.f32.mrb[0].mxu0
      %2296 = vdwg.mxu0
      %2297 = vmatprep.subr.mxu0 0.0
      %v2298 = vand.u32 %v1966, 4294901760
      %v2299 = vsub.f32 %v1966, %v2298
      %v2300 = vand.u32 %v2299, 4294901760
      %2301 = vmatpush1.msra.mxu0 %v2300
      %2302 = vmatprep.subr.mxu0 0.0
      %v2303 = vand.u32 %v1967, 4294901760
      %v2304 = vsub.f32 %v1967, %v2303
      %v2305 = vand.u32 %v2304, 4294901760
      %2306 = vmatpush1.msra.mxu0 %v2305
      %2307 = vmatprep.subr.mxu0 0.0
      %v2308 = vand.u32 %v1968, 4294901760
      %v2309 = vsub.f32 %v1968, %v2308
      %v2310 = vand.u32 %v2309, 4294901760
      %2311 = vmatpush1.msra.mxu0 %v2310
      %2312 = vmatprep.subr.mxu0 0.0
      %v2313 = vand.u32 %v1969, 4294901760
      %v2314 = vsub.f32 %v1969, %v2313
      %v2315 = vand.u32 %v2314, 4294901760
      %2316 = vmatpush1.msra.mxu0 %v2315
      %2317 = vmatprep.subr.mxu0 0.0
      %2318 = vmatpush1.msra.mxu0 0.0
      %2319 = vmatprep.subr.mxu0 0.0
      %2320 = vmatpush1.msra.mxu0 0.0
      %2321 = vmatprep.subr.mxu0 0.0
      %2322 = vmatpush1.msra.mxu0 0.0
      %2323 = vmatprep.subr.mxu0 0.0
      %2324 = vmatpush1.msra.mxu0 0.0
      %2325 = vmatprep.subr.mxu0 0.0
      %2326 = vmatpush1.msra.mxu0 0.0
      %2327 = vmatprep.subr.mxu0 0.0
      %2328 = vmatpush1.msra.mxu0 0.0
      %2329 = vmatprep.subr.mxu0 0.0
      %2330 = vmatpush1.msra.mxu0 0.0
      %2331 = vmatprep.subr.mxu0 0.0
      %2332 = vmatpush1.msra.mxu0 0.0
      %2333 = vmatprep.subr.mxu0 0.0
      %2334 = vmatpush1.msra.mxu0 0.0
      %2335 = vmatprep.subr.mxu0 0.0
      %2336 = vmatpush1.msra.mxu0 0.0
      %2337 = vmatprep.subr.mxu0 0.0
      %2338 = vmatpush1.msra.mxu0 0.0
      %2339 = vmatprep.subr.mxu0 0.0
      %2340 = vmatpush1.msra.mxu0 0.0
      %2341 = vmatprep.subr.mxu0 0.0
      %2342 = vmatpush1.msra.mxu0 0.0
      %2343 = vmatprep.subr.mxu0 0.0
      %2344 = vmatpush1.msra.mxu0 0.0
      %2345 = vmatprep.subr.mxu0 0.0
      %2346 = vmatpush1.msra.mxu0 0.0
      %2347 = vmatprep.subr.mxu0 0.0
      %2348 = vmatpush1.msra.mxu0 0.0
      %2349 = vmatprep.subr.mxu0 0.0
      %2350 = vmatpush1.msra.mxu0 0.0
      %2351 = vmatprep.subr.mxu0 0.0
      %2352 = vmatpush1.msra.mxu0 0.0
      %2353 = vmatprep.subr.mxu0 0.0
      %2354 = vmatpush1.msra.mxu0 0.0
      %2355 = vmatprep.subr.mxu0 0.0
      %2356 = vmatpush1.msra.mxu0 0.0
      %2357 = vmatprep.subr.mxu0 0.0
      %2358 = vmatpush1.msra.mxu0 0.0
      %2359 = vmatprep.subr.mxu0 0.0
      %2360 = vmatpush1.msra.mxu0 0.0
      %2361 = vmatprep.subr.mxu0 0.0
      %2362 = vmatpush1.msra.mxu0 0.0
      %2363 = vmatprep.subr.mxu0 0.0
      %2364 = vmatpush1.msra.mxu0 0.0
      %2365 = vmatprep.subr.mxu0 0.0
      %2366 = vmatpush1.msra.mxu0 0.0
      %2367 = vmatprep.subr.mxu0 0.0
      %2368 = vmatpush1.msra.mxu0 0.0
      %2369 = vmatprep.subr.mxu0 0.0
      %2370 = vmatpush1.msra.mxu0 0.0
      %2371 = vmatprep.subr.mxu0 0.0
      %2372 = vmatpush1.msra.mxu0 0.0
      %2373 = vmatprep.mubr.f32.mxu0 0.0
      %v2374 = vand.u32 %v1285, 4294901760
      %2375 = vmatmul.mubr.f32.gmra.mrb[0].mxu0 %v2374
      %v2376 = vpop.f32.mrb[0].mxu0
      %v2377 = vadd.f32 %v2294, %v2376
      %v2378 = vpop.f32.mrb[0].mxu0
      %2379 = vdwg.mxu0
      %2380 = vmatprep.subr.mxu0 0.0
      %v2381 = vand.u32 %v1966, 4294901760
      %2382 = vmatpush1.msra.mxu0 %v2381
      %2383 = vmatprep.subr.mxu0 0.0
      %v2384 = vand.u32 %v1967, 4294901760
      %2385 = vmatpush1.msra.mxu0 %v2384
      %2386 = vmatprep.subr.mxu0 0.0
      %v2387 = vand.u32 %v1968, 4294901760
      %2388 = vmatpush1.msra.mxu0 %v2387
      %2389 = vmatprep.subr.mxu0 0.0
      %v2390 = vand.u32 %v1969, 4294901760
      %2391 = vmatpush1.msra.mxu0 %v2390
      %2392 = vmatprep.subr.mxu0 0.0
      %2393 = vmatpush1.msra.mxu0 0.0
      %2394 = vmatprep.subr.mxu0 0.0
      %2395 = vmatpush1.msra.mxu0 0.0
      %2396 = vmatprep.subr.mxu0 0.0
      %2397 = vmatpush1.msra.mxu0 0.0
      %2398 = vmatprep.subr.mxu0 0.0
      %2399 = vmatpush1.msra.mxu0 0.0
      %2400 = vmatprep.subr.mxu0 0.0
      %2401 = vmatpush1.msra.mxu0 0.0
      %2402 = vmatprep.subr.mxu0 0.0
      %2403 = vmatpush1.msra.mxu0 0.0
      %2404 = vmatprep.subr.mxu0 0.0
      %2405 = vmatpush1.msra.mxu0 0.0
      %2406 = vmatprep.subr.mxu0 0.0
      %2407 = vmatpush1.msra.mxu0 0.0
      %2408 = vmatprep.subr.mxu0 0.0
      %2409 = vmatpush1.msra.mxu0 0.0
      %2410 = vmatprep.subr.mxu0 0.0
      %2411 = vmatpush1.msra.mxu0 0.0
      %2412 = vmatprep.subr.mxu0 0.0
      %2413 = vmatpush1.msra.mxu0 0.0
      %2414 = vmatprep.subr.mxu0 0.0
      %2415 = vmatpush1.msra.mxu0 0.0
      %2416 = vmatprep.subr.mxu0 0.0
      %2417 = vmatpush1.msra.mxu0 0.0
      %2418 = vmatprep.subr.mxu0 0.0
      %2419 = vmatpush1.msra.mxu0 0.0
      %2420 = vmatprep.subr.mxu0 0.0
      %2421 = vmatpush1.msra.mxu0 0.0
      %2422 = vmatprep.subr.mxu0 0.0
      %2423 = vmatpush1.msra.mxu0 0.0
      %2424 = vmatprep.subr.mxu0 0.0
      %2425 = vmatpush1.msra.mxu0 0.0
      %2426 = vmatprep.subr.mxu0 0.0
      %2427 = vmatpush1.msra.mxu0 0.0
      %2428 = vmatprep.subr.mxu0 0.0
      %2429 = vmatpush1.msra.mxu0 0.0
      %2430 = vmatprep.subr.mxu0 0.0
      %2431 = vmatpush1.msra.mxu0 0.0
      %2432 = vmatprep.subr.mxu0 0.0
      %2433 = vmatpush1.msra.mxu0 0.0
      %2434 = vmatprep.subr.mxu0 0.0
      %2435 = vmatpush1.msra.mxu0 0.0
      %2436 = vmatprep.subr.mxu0 0.0
      %2437 = vmatpush1.msra.mxu0 0.0
      %2438 = vmatprep.subr.mxu0 0.0
      %2439 = vmatpush1.msra.mxu0 0.0
      %2440 = vmatprep.subr.mxu0 0.0
      %2441 = vmatpush1.msra.mxu0 0.0
      %2442 = vmatprep.subr.mxu0 0.0
      %2443 = vmatpush1.msra.mxu0 0.0
      %2444 = vmatprep.subr.mxu0 0.0
      %2445 = vmatpush1.msra.mxu0 0.0
      %2446 = vmatprep.subr.mxu0 0.0
      %2447 = vmatpush1.msra.mxu0 0.0
      %2448 = vmatprep.mubr.f32.mxu0 0.0
      %v2449 = vand.u32 %v1285, 4294901760
      %2450 = vmatmul.mubr.f32.gmra.mrb[0].mxu0 %v2449
      %v2451 = vpop.f32.mrb[0].mxu0
      %v2452 = vadd.f32 %v2377, %v2451
      %v2453 = vpop.f32.mrb[0].mxu0
      %2454 = vdwg.mxu0
      %v2457 = vsel %vm1870, %v1957, %v1950
      %v2458 = vsel %vm1943, %v2457, 0
      %2460 = vmatprep.subr.mxu0 0.0
      %v2461 = vand.u32 %v1958, 4294901760
      %2462 = vmatpush1.msra.mxu0 %v2461
      %2463 = vmatprep.subr.mxu0 0.0
      %v2464 = vand.u32 %v1959, 4294901760
      %2465 = vmatpush1.msra.mxu0 %v2464
      %2466 = vmatprep.subr.mxu0 0.0
      %v2467 = vand.u32 %v1960, 4294901760
      %2468 = vmatpush1.msra.mxu0 %v2467
      %2469 = vmatprep.subr.mxu0 0.0
      %v2470 = vand.u32 %v1961, 4294901760
      %2471 = vmatpush1.msra.mxu0 %v2470
      %2472 = vmatprep.subr.mxu0 0.0
      %v2473 = vand.u32 %v1962, 4294901760
      %2474 = vmatpush1.msra.mxu0 %v2473
      %2475 = vmatprep.subr.mxu0 0.0
      %v2476 = vand.u32 %v1963, 4294901760
      %2477 = vmatpush1.msra.mxu0 %v2476
      %2478 = vmatprep.subr.mxu0 0.0
      %v2479 = vand.u32 %v1964, 4294901760
      %2480 = vmatpush1.msra.mxu0 %v2479
      %2481 = vmatprep.subr.mxu0 0.0
      %v2482 = vand.u32 %v1965, 4294901760
      %2483 = vmatpush1.msra.mxu0 %v2482
      %2484 = vmatprep.subr.mxu0 0.0
      %2485 = vmatpush1.msra.mxu0 0.0
      %2486 = vmatprep.subr.mxu0 0.0
      %2487 = vmatpush1.msra.mxu0 0.0
      %2488 = vmatprep.subr.mxu0 0.0
      %2489 = vmatpush1.msra.mxu0 0.0
      %2490 = vmatprep.subr.mxu0 0.0
      %2491 = vmatpush1.msra.mxu0 0.0
      %2492 = vmatprep.subr.mxu0 0.0
      %2493 = vmatpush1.msra.mxu0 0.0
      %2494 = vmatprep.subr.mxu0 0.0
      %2495 = vmatpush1.msra.mxu0 0.0
      %2496 = vmatprep.subr.mxu0 0.0
      %2497 = vmatpush1.msra.mxu0 0.0
      %2498 = vmatprep.subr.mxu0 0.0
      %2499 = vmatpush1.msra.mxu0 0.0
      %2500 = vmatprep.subr.mxu0 0.0
      %2501 = vmatpush1.msra.mxu0 0.0
      %2502 = vmatprep.subr.mxu0 0.0
      %2503 = vmatpush1.msra.mxu0 0.0
      %2504 = vmatprep.subr.mxu0 0.0
      %2505 = vmatpush1.msra.mxu0 0.0
      %2506 = vmatprep.subr.mxu0 0.0
      %2507 = vmatpush1.msra.mxu0 0.0
      %2508 = vmatprep.subr.mxu0 0.0
      %2509 = vmatpush1.msra.mxu0 0.0
      %2510 = vmatprep.subr.mxu0 0.0
      %2511 = vmatpush1.msra.mxu0 0.0
      %2512 = vmatprep.subr.mxu0 0.0
      %2513 = vmatpush1.msra.mxu0 0.0
      %2514 = vmatprep.subr.mxu0 0.0
      %2515 = vmatpush1.msra.mxu0 0.0
      %2516 = vmatprep.subr.mxu0 0.0
      %2517 = vmatpush1.msra.mxu0 0.0
      %2518 = vmatprep.subr.mxu0 0.0
      %2519 = vmatpush1.msra.mxu0 0.0
      %2520 = vmatprep.subr.mxu0 0.0
      %2521 = vmatpush1.msra.mxu0 0.0
      %2522 = vmatprep.subr.mxu0 0.0
      %2523 = vmatpush1.msra.mxu0 0.0
      %2524 = vmatprep.subr.mxu0 0.0
      %2525 = vmatpush1.msra.mxu0 0.0
      %2526 = vmatprep.subr.mxu0 0.0
      %2527 = vmatpush1.msra.mxu0 0.0
      %2528 = vmatprep.subr.mxu0 0.0
      %2529 = vmatpush1.msra.mxu0 0.0
      %2530 = vmatprep.subr.mxu0 0.0
      %2531 = vmatpush1.msra.mxu0 0.0
      %2532 = vmatprep.mubr.f32.mxu0 0.0
      %v2533 = vand.u32 %v2458, 4294901760
      %v2534 = vsub.f32 %v2458, %v2533
      %v2535 = vand.u32 %v2534, 4294901760
      %v2536 = vsub.f32 %v2534, %v2535
      %v2537 = vand.u32 %v2536, 4294901760
      %2538 = vmatmul.mubr.f32.gmra.mrb[0].mxu0 %v2537
      %v2539 = vpop.f32.mrb[0].mxu0
      %v2540 = vadd.f32 %v2452, %v2539
      %v2541 = vpop.f32.mrb[0].mxu0
      %2542 = vdwg.mxu0
      %2543 = vmatprep.subr.mxu0 0.0
      %v2544 = vand.u32 %v1958, 4294901760
      %v2545 = vsub.f32 %v1958, %v2544
      %v2546 = vand.u32 %v2545, 4294901760
      %v2547 = vsub.f32 %v2545, %v2546
      %v2548 = vand.u32 %v2547, 4294901760
      %2549 = vmatpush1.msra.mxu0 %v2548
      %2550 = vmatprep.subr.mxu0 0.0
      %v2551 = vand.u32 %v1959, 4294901760
      %v2552 = vsub.f32 %v1959, %v2551
      %v2553 = vand.u32 %v2552, 4294901760
      %v2554 = vsub.f32 %v2552, %v2553
      %v2555 = vand.u32 %v2554, 4294901760
      %2556 = vmatpush1.msra.mxu0 %v2555
      %2557 = vmatprep.subr.mxu0 0.0
      %v2558 = vand.u32 %v1960, 4294901760
      %v2559 = vsub.f32 %v1960, %v2558
      %v2560 = vand.u32 %v2559, 4294901760
      %v2561 = vsub.f32 %v2559, %v2560
      %v2562 = vand.u32 %v2561, 4294901760
      %2563 = vmatpush1.msra.mxu0 %v2562
      %2564 = vmatprep.subr.mxu0 0.0
      %v2565 = vand.u32 %v1961, 4294901760
      %v2566 = vsub.f32 %v1961, %v2565
      %v2567 = vand.u32 %v2566, 4294901760
      %v2568 = vsub.f32 %v2566, %v2567
      %v2569 = vand.u32 %v2568, 4294901760
      %2570 = vmatpush1.msra.mxu0 %v2569
      %2571 = vmatprep.subr.mxu0 0.0
      %v2572 = vand.u32 %v1962, 4294901760
      %v2573 = vsub.f32 %v1962, %v2572
      %v2574 = vand.u32 %v2573, 4294901760
      %v2575 = vsub.f32 %v2573, %v2574
      %v2576 = vand.u32 %v2575, 4294901760
      %2577 = vmatpush1.msra.mxu0 %v2576
      %2578 = vmatprep.subr.mxu0 0.0
      %v2579 = vand.u32 %v1963, 4294901760
      %v2580 = vsub.f32 %v1963, %v2579
      %v2581 = vand.u32 %v2580, 4294901760
      %v2582 = vsub.f32 %v2580, %v2581
      %v2583 = vand.u32 %v2582, 4294901760
      %2584 = vmatpush1.msra.mxu0 %v2583
      %2585 = vmatprep.subr.mxu0 0.0
      %v2586 = vand.u32 %v1964, 4294901760
      %v2587 = vsub.f32 %v1964, %v2586
      %v2588 = vand.u32 %v2587, 4294901760
      %v2589 = vsub.f32 %v2587, %v2588
      %v2590 = vand.u32 %v2589, 4294901760
      %2591 = vmatpush1.msra.mxu0 %v2590
      %2592 = vmatprep.subr.mxu0 0.0
      %v2593 = vand.u32 %v1965, 4294901760
      %v2594 = vsub.f32 %v1965, %v2593
      %v2595 = vand.u32 %v2594, 4294901760
      %v2596 = vsub.f32 %v2594, %v2595
      %v2597 = vand.u32 %v2596, 4294901760
      %2598 = vmatpush1.msra.mxu0 %v2597
      %2599 = vmatprep.subr.mxu0 0.0
      %2600 = vmatpush1.msra.mxu0 0.0
      %2601 = vmatprep.subr.mxu0 0.0
      %2602 = vmatpush1.msra.mxu0 0.0
      %2603 = vmatprep.subr.mxu0 0.0
      %2604 = vmatpush1.msra.mxu0 0.0
      %2605 = vmatprep.subr.mxu0 0.0
      %2606 = vmatpush1.msra.mxu0 0.0
      %2607 = vmatprep.subr.mxu0 0.0
      %2608 = vmatpush1.msra.mxu0 0.0
      %2609 = vmatprep.subr.mxu0 0.0
      %2610 = vmatpush1.msra.mxu0 0.0
      %2611 = vmatprep.subr.mxu0 0.0
      %2612 = vmatpush1.msra.mxu0 0.0
      %2613 = vmatprep.subr.mxu0 0.0
      %2614 = vmatpush1.msra.mxu0 0.0
      %2615 = vmatprep.subr.mxu0 0.0
      %2616 = vmatpush1.msra.mxu0 0.0
      %2617 = vmatprep.subr.mxu0 0.0
      %2618 = vmatpush1.msra.mxu0 0.0
      %2619 = vmatprep.subr.mxu0 0.0
      %2620 = vmatpush1.msra.mxu0 0.0
      %2621 = vmatprep.subr.mxu0 0.0
      %2622 = vmatpush1.msra.mxu0 0.0
      %2623 = vmatprep.subr.mxu0 0.0
      %2624 = vmatpush1.msra.mxu0 0.0
      %2625 = vmatprep.subr.mxu0 0.0
      %2626 = vmatpush1.msra.mxu0 0.0
      %2627 = vmatprep.subr.mxu0 0.0
      %2628 = vmatpush1.msra.mxu0 0.0
      %2629 = vmatprep.subr.mxu0 0.0
      %2630 = vmatpush1.msra.mxu0 0.0
      %2631 = vmatprep.subr.mxu0 0.0
      %2632 = vmatpush1.msra.mxu0 0.0
      %2633 = vmatprep.subr.mxu0 0.0
      %2634 = vmatpush1.msra.mxu0 0.0
      %2635 = vmatprep.subr.mxu0 0.0
      %2636 = vmatpush1.msra.mxu0 0.0
      %2637 = vmatprep.subr.mxu0 0.0
      %2638 = vmatpush1.msra.mxu0 0.0
      %2639 = vmatprep.subr.mxu0 0.0
      %2640 = vmatpush1.msra.mxu0 0.0
      %2641 = vmatprep.subr.mxu0 0.0
      %2642 = vmatpush1.msra.mxu0 0.0
      %2643 = vmatprep.subr.mxu0 0.0
      %2644 = vmatpush1.msra.mxu0 0.0
      %2645 = vmatprep.subr.mxu0 0.0
      %2646 = vmatpush1.msra.mxu0 0.0
      %2647 = vmatprep.mubr.f32.mxu0 0.0
      %v2648 = vand.u32 %v2458, 4294901760
      %2649 = vmatmul.mubr.f32.gmra.mrb[0].mxu0 %v2648
      %v2650 = vpop.f32.mrb[0].mxu0
      %v2651 = vadd.f32 %v2540, %v2650
      %v2652 = vpop.f32.mrb[0].mxu0
      %2653 = vdwg.mxu0
      %2654 = vmatprep.subr.mxu0 0.0
      %v2655 = vand.u32 %v1958, 4294901760
      %v2656 = vsub.f32 %v1958, %v2655
      %2657 = vmatpush1.msra.mxu0 %v2656
      %2658 = vmatprep.subr.mxu0 0.0
      %v2659 = vand.u32 %v1959, 4294901760
      %v2660 = vsub.f32 %v1959, %v2659
      %2661 = vmatpush1.msra.mxu0 %v2660
      %2662 = vmatprep.subr.mxu0 0.0
      %v2663 = vand.u32 %v1960, 4294901760
      %v2664 = vsub.f32 %v1960, %v2663
      %2665 = vmatpush1.msra.mxu0 %v2664
      %2666 = vmatprep.subr.mxu0 0.0
      %v2667 = vand.u32 %v1961, 4294901760
      %v2668 = vsub.f32 %v1961, %v2667
      %2669 = vmatpush1.msra.mxu0 %v2668
      %2670 = vmatprep.subr.mxu0 0.0
      %v2671 = vand.u32 %v1962, 4294901760
      %v2672 = vsub.f32 %v1962, %v2671
      %2673 = vmatpush1.msra.mxu0 %v2672
      %2674 = vmatprep.subr.mxu0 0.0
      %v2675 = vand.u32 %v1963, 4294901760
      %v2676 = vsub.f32 %v1963, %v2675
      %2677 = vmatpush1.msra.mxu0 %v2676
      %2678 = vmatprep.subr.mxu0 0.0
      %v2679 = vand.u32 %v1964, 4294901760
      %v2680 = vsub.f32 %v1964, %v2679
      %2681 = vmatpush1.msra.mxu0 %v2680
      %2682 = vmatprep.subr.mxu0 0.0
      %v2683 = vand.u32 %v1965, 4294901760
      %v2684 = vsub.f32 %v1965, %v2683
      %2685 = vmatpush1.msra.mxu0 %v2684
      %2686 = vmatprep.subr.mxu0 0.0
      %2687 = vmatpush1.msra.mxu0 0.0
      %2688 = vmatprep.subr.mxu0 0.0
      %2689 = vmatpush1.msra.mxu0 0.0
      %2690 = vmatprep.subr.mxu0 0.0
      %2691 = vmatpush1.msra.mxu0 0.0
      %2692 = vmatprep.subr.mxu0 0.0
      %2693 = vmatpush1.msra.mxu0 0.0
      %2694 = vmatprep.subr.mxu0 0.0
      %2695 = vmatpush1.msra.mxu0 0.0
      %2696 = vmatprep.subr.mxu0 0.0
      %2697 = vmatpush1.msra.mxu0 0.0
      %2698 = vmatprep.subr.mxu0 0.0
      %2699 = vmatpush1.msra.mxu0 0.0
      %2700 = vmatprep.subr.mxu0 0.0
      %2701 = vmatpush1.msra.mxu0 0.0
      %2702 = vmatprep.subr.mxu0 0.0
      %2703 = vmatpush1.msra.mxu0 0.0
      %2704 = vmatprep.subr.mxu0 0.0
      %2705 = vmatpush1.msra.mxu0 0.0
      %2706 = vmatprep.subr.mxu0 0.0
      %2707 = vmatpush1.msra.mxu0 0.0
      %2708 = vmatprep.subr.mxu0 0.0
      %2709 = vmatpush1.msra.mxu0 0.0
      %2710 = vmatprep.subr.mxu0 0.0
      %2711 = vmatpush1.msra.mxu0 0.0
      %2712 = vmatprep.subr.mxu0 0.0
      %2713 = vmatpush1.msra.mxu0 0.0
      %2714 = vmatprep.subr.mxu0 0.0
      %2715 = vmatpush1.msra.mxu0 0.0
      %2716 = vmatprep.subr.mxu0 0.0
      %2717 = vmatpush1.msra.mxu0 0.0
      %2718 = vmatprep.subr.mxu0 0.0
      %2719 = vmatpush1.msra.mxu0 0.0
      %2720 = vmatprep.subr.mxu0 0.0
      %2721 = vmatpush1.msra.mxu0 0.0
      %2722 = vmatprep.subr.mxu0 0.0
      %2723 = vmatpush1.msra.mxu0 0.0
      %2724 = vmatprep.subr.mxu0 0.0
      %2725 = vmatpush1.msra.mxu0 0.0
      %2726 = vmatprep.subr.mxu0 0.0
      %2727 = vmatpush1.msra.mxu0 0.0
      %2728 = vmatprep.subr.mxu0 0.0
      %2729 = vmatpush1.msra.mxu0 0.0
      %2730 = vmatprep.subr.mxu0 0.0
      %2731 = vmatpush1.msra.mxu0 0.0
      %2732 = vmatprep.subr.mxu0 0.0
      %2733 = vmatpush1.msra.mxu0 0.0
      %2734 = vmatprep.mubr.f32.mxu0 0.0
      %v2735 = vand.u32 %v2458, 4294901760
      %v2736 = vsub.f32 %v2458, %v2735
      %2737 = vmatmul.mubr.f32.gmra.mrb[0].mxu0 %v2736
      %v2738 = vpop.f32.mrb[0].mxu0
      %v2739 = vadd.f32 %v2651, %v2738
      %v2740 = vpop.f32.mrb[0].mxu0
      %2741 = vdwg.mxu0
      %2742 = vmatprep.subr.mxu0 0.0
      %v2743 = vand.u32 %v1958, 4294901760
      %2744 = vmatpush1.msra.mxu0 %v2743
      %2745 = vmatprep.subr.mxu0 0.0
      %v2746 = vand.u32 %v1959, 4294901760
      %2747 = vmatpush1.msra.mxu0 %v2746
      %2748 = vmatprep.subr.mxu0 0.0
      %v2749 = vand.u32 %v1960, 4294901760
      %2750 = vmatpush1.msra.mxu0 %v2749
      %2751 = vmatprep.subr.mxu0 0.0
      %v2752 = vand.u32 %v1961, 4294901760
      %2753 = vmatpush1.msra.mxu0 %v2752
      %2754 = vmatprep.subr.mxu0 0.0
      %v2755 = vand.u32 %v1962, 4294901760
      %2756 = vmatpush1.msra.mxu0 %v2755
      %2757 = vmatprep.subr.mxu0 0.0
      %v2758 = vand.u32 %v1963, 4294901760
      %2759 = vmatpush1.msra.mxu0 %v2758
      %2760 = vmatprep.subr.mxu0 0.0
      %v2761 = vand.u32 %v1964, 4294901760
      %2762 = vmatpush1.msra.mxu0 %v2761
      %2763 = vmatprep.subr.mxu0 0.0
      %v2764 = vand.u32 %v1965, 4294901760
      %2765 = vmatpush1.msra.mxu0 %v2764
      %2766 = vmatprep.subr.mxu0 0.0
      %2767 = vmatpush1.msra.mxu0 0.0
      %2768 = vmatprep.subr.mxu0 0.0
      %2769 = vmatpush1.msra.mxu0 0.0
      %2770 = vmatprep.subr.mxu0 0.0
      %2771 = vmatpush1.msra.mxu0 0.0
      %2772 = vmatprep.subr.mxu0 0.0
      %2773 = vmatpush1.msra.mxu0 0.0
      %2774 = vmatprep.subr.mxu0 0.0
      %2775 = vmatpush1.msra.mxu0 0.0
      %2776 = vmatprep.subr.mxu0 0.0
      %2777 = vmatpush1.msra.mxu0 0.0
      %2778 = vmatprep.subr.mxu0 0.0
      %2779 = vmatpush1.msra.mxu0 0.0
      %2780 = vmatprep.subr.mxu0 0.0
      %2781 = vmatpush1.msra.mxu0 0.0
      %2782 = vmatprep.subr.mxu0 0.0
      %2783 = vmatpush1.msra.mxu0 0.0
      %2784 = vmatprep.subr.mxu0 0.0
      %2785 = vmatpush1.msra.mxu0 0.0
      %2786 = vmatprep.subr.mxu0 0.0
      %2787 = vmatpush1.msra.mxu0 0.0
      %2788 = vmatprep.subr.mxu0 0.0
      %2789 = vmatpush1.msra.mxu0 0.0
      %2790 = vmatprep.subr.mxu0 0.0
      %2791 = vmatpush1.msra.mxu0 0.0
      %2792 = vmatprep.subr.mxu0 0.0
      %2793 = vmatpush1.msra.mxu0 0.0
      %2794 = vmatprep.subr.mxu0 0.0
      %2795 = vmatpush1.msra.mxu0 0.0
      %2796 = vmatprep.subr.mxu0 0.0
      %2797 = vmatpush1.msra.mxu0 0.0
      %2798 = vmatprep.subr.mxu0 0.0
      %2799 = vmatpush1.msra.mxu0 0.0
      %2800 = vmatprep.subr.mxu0 0.0
      %2801 = vmatpush1.msra.mxu0 0.0
      %2802 = vmatprep.subr.mxu0 0.0
      %2803 = vmatpush1.msra.mxu0 0.0
      %2804 = vmatprep.subr.mxu0 0.0
      %2805 = vmatpush1.msra.mxu0 0.0
      %2806 = vmatprep.subr.mxu0 0.0
      %2807 = vmatpush1.msra.mxu0 0.0
      %2808 = vmatprep.subr.mxu0 0.0
      %2809 = vmatpush1.msra.mxu0 0.0
      %2810 = vmatprep.subr.mxu0 0.0
      %2811 = vmatpush1.msra.mxu0 0.0
      %2812 = vmatprep.subr.mxu0 0.0
      %2813 = vmatpush1.msra.mxu0 0.0
      %2814 = vmatprep.mubr.f32.mxu0 0.0
      %v2815 = vand.u32 %v2458, 4294901760
      %v2816 = vsub.f32 %v2458, %v2815
      %v2817 = vand.u32 %v2816, 4294901760
      %2818 = vmatmul.mubr.f32.gmra.mrb[0].mxu0 %v2817
      %v2819 = vpop.f32.mrb[0].mxu0
      %v2820 = vadd.f32 %v2739, %v2819
      %v2821 = vpop.f32.mrb[0].mxu0
      %2822 = vdwg.mxu0
      %2823 = vmatprep.subr.mxu0 0.0
      %v2824 = vand.u32 %v1958, 4294901760
      %v2825 = vsub.f32 %v1958, %v2824
      %v2826 = vand.u32 %v2825, 4294901760
      %2827 = vmatpush1.msra.mxu0 %v2826
      %2828 = vmatprep.subr.mxu0 0.0
      %v2829 = vand.u32 %v1959, 4294901760
      %v2830 = vsub.f32 %v1959, %v2829
      %v2831 = vand.u32 %v2830, 4294901760
      %2832 = vmatpush1.msra.mxu0 %v2831
      %2833 = vmatprep.subr.mxu0 0.0
      %v2834 = vand.u32 %v1960, 4294901760
      %v2835 = vsub.f32 %v1960, %v2834
      %v2836 = vand.u32 %v2835, 4294901760
      %2837 = vmatpush1.msra.mxu0 %v2836
      %2838 = vmatprep.subr.mxu0 0.0
      %v2839 = vand.u32 %v1961, 4294901760
      %v2840 = vsub.f32 %v1961, %v2839
      %v2841 = vand.u32 %v2840, 4294901760
      %2842 = vmatpush1.msra.mxu0 %v2841
      %2843 = vmatprep.subr.mxu0 0.0
      %v2844 = vand.u32 %v1962, 4294901760
      %v2845 = vsub.f32 %v1962, %v2844
      %v2846 = vand.u32 %v2845, 4294901760
      %2847 = vmatpush1.msra.mxu0 %v2846
      %2848 = vmatprep.subr.mxu0 0.0
      %v2849 = vand.u32 %v1963, 4294901760
      %v2850 = vsub.f32 %v1963, %v2849
      %v2851 = vand.u32 %v2850, 4294901760
      %2852 = vmatpush1.msra.mxu0 %v2851
      %2853 = vmatprep.subr.mxu0 0.0
      %v2854 = vand.u32 %v1964, 4294901760
      %v2855 = vsub.f32 %v1964, %v2854
      %v2856 = vand.u32 %v2855, 4294901760
      %2857 = vmatpush1.msra.mxu0 %v2856
      %2858 = vmatprep.subr.mxu0 0.0
      %v2859 = vand.u32 %v1965, 4294901760
      %v2860 = vsub.f32 %v1965, %v2859
      %v2861 = vand.u32 %v2860, 4294901760
      %2862 = vmatpush1.msra.mxu0 %v2861
      %2863 = vmatprep.subr.mxu0 0.0
      %2864 = vmatpush1.msra.mxu0 0.0
      %2865 = vmatprep.subr.mxu0 0.0
      %2866 = vmatpush1.msra.mxu0 0.0
      %2867 = vmatprep.subr.mxu0 0.0
      %2868 = vmatpush1.msra.mxu0 0.0
      %2869 = vmatprep.subr.mxu0 0.0
      %2870 = vmatpush1.msra.mxu0 0.0
      %2871 = vmatprep.subr.mxu0 0.0
      %2872 = vmatpush1.msra.mxu0 0.0
      %2873 = vmatprep.subr.mxu0 0.0
      %2874 = vmatpush1.msra.mxu0 0.0
      %2875 = vmatprep.subr.mxu0 0.0
      %2876 = vmatpush1.msra.mxu0 0.0
      %2877 = vmatprep.subr.mxu0 0.0
      %2878 = vmatpush1.msra.mxu0 0.0
      %2879 = vmatprep.subr.mxu0 0.0
      %2880 = vmatpush1.msra.mxu0 0.0
      %2881 = vmatprep.subr.mxu0 0.0
      %2882 = vmatpush1.msra.mxu0 0.0
      %2883 = vmatprep.subr.mxu0 0.0
      %2884 = vmatpush1.msra.mxu0 0.0
      %2885 = vmatprep.subr.mxu0 0.0
      %2886 = vmatpush1.msra.mxu0 0.0
      %2887 = vmatprep.subr.mxu0 0.0
      %2888 = vmatpush1.msra.mxu0 0.0
      %2889 = vmatprep.subr.mxu0 0.0
      %2890 = vmatpush1.msra.mxu0 0.0
      %2891 = vmatprep.subr.mxu0 0.0
      %2892 = vmatpush1.msra.mxu0 0.0
      %2893 = vmatprep.subr.mxu0 0.0
      %2894 = vmatpush1.msra.mxu0 0.0
      %2895 = vmatprep.subr.mxu0 0.0
      %2896 = vmatpush1.msra.mxu0 0.0
      %2897 = vmatprep.subr.mxu0 0.0
      %2898 = vmatpush1.msra.mxu0 0.0
      %2899 = vmatprep.subr.mxu0 0.0
      %2900 = vmatpush1.msra.mxu0 0.0
      %2901 = vmatprep.subr.mxu0 0.0
      %2902 = vmatpush1.msra.mxu0 0.0
      %2903 = vmatprep.subr.mxu0 0.0
      %2904 = vmatpush1.msra.mxu0 0.0
      %2905 = vmatprep.subr.mxu0 0.0
      %2906 = vmatpush1.msra.mxu0 0.0
      %2907 = vmatprep.subr.mxu0 0.0
      %2908 = vmatpush1.msra.mxu0 0.0
      %2909 = vmatprep.subr.mxu0 0.0
      %2910 = vmatpush1.msra.mxu0 0.0
      %2911 = vmatprep.mubr.f32.mxu0 0.0
      %v2912 = vand.u32 %v2458, 4294901760
      %2913 = vmatmul.mubr.f32.gmra.mrb[0].mxu0 %v2912
      %v2914 = vpop.f32.mrb[0].mxu0
      %v2915 = vadd.f32 %v2820, %v2914
      %v2916 = vpop.f32.mrb[0].mxu0
      %2917 = vdwg.mxu0
      %2918 = vmatprep.subr.mxu0 0.0
      %v2919 = vand.u32 %v1958, 4294901760
      %2920 = vmatpush1.msra.mxu0 %v2919
      %2921 = vmatprep.subr.mxu0 0.0
      %v2922 = vand.u32 %v1959, 4294901760
      %2923 = vmatpush1.msra.mxu0 %v2922
      %2924 = vmatprep.subr.mxu0 0.0
      %v2925 = vand.u32 %v1960, 4294901760
      %2926 = vmatpush1.msra.mxu0 %v2925
      %2927 = vmatprep.subr.mxu0 0.0
      %v2928 = vand.u32 %v1961, 4294901760
      %2929 = vmatpush1.msra.mxu0 %v2928
      %2930 = vmatprep.subr.mxu0 0.0
      %v2931 = vand.u32 %v1962, 4294901760
      %2932 = vmatpush1.msra.mxu0 %v2931
      %2933 = vmatprep.subr.mxu0 0.0
      %v2934 = vand.u32 %v1963, 4294901760
      %2935 = vmatpush1.msra.mxu0 %v2934
      %2936 = vmatprep.subr.mxu0 0.0
      %v2937 = vand.u32 %v1964, 4294901760
      %2938 = vmatpush1.msra.mxu0 %v2937
      %2939 = vmatprep.subr.mxu0 0.0
      %v2940 = vand.u32 %v1965, 4294901760
      %2941 = vmatpush1.msra.mxu0 %v2940
      %2942 = vmatprep.subr.mxu0 0.0
      %2943 = vmatpush1.msra.mxu0 0.0
      %2944 = vmatprep.subr.mxu0 0.0
      %2945 = vmatpush1.msra.mxu0 0.0
      %2946 = vmatprep.subr.mxu0 0.0
      %2947 = vmatpush1.msra.mxu0 0.0
      %2948 = vmatprep.subr.mxu0 0.0
      %2949 = vmatpush1.msra.mxu0 0.0
      %2950 = vmatprep.subr.mxu0 0.0
      %2951 = vmatpush1.msra.mxu0 0.0
      %2952 = vmatprep.subr.mxu0 0.0
      %2953 = vmatpush1.msra.mxu0 0.0
      %2954 = vmatprep.subr.mxu0 0.0
      %2955 = vmatpush1.msra.mxu0 0.0
      %2956 = vmatprep.subr.mxu0 0.0
      %2957 = vmatpush1.msra.mxu0 0.0
      %2958 = vmatprep.subr.mxu0 0.0
      %2959 = vmatpush1.msra.mxu0 0.0
      %2960 = vmatprep.subr.mxu0 0.0
      %2961 = vmatpush1.msra.mxu0 0.0
      %2962 = vmatprep.subr.mxu0 0.0
      %2963 = vmatpush1.msra.mxu0 0.0
      %2964 = vmatprep.subr.mxu0 0.0
      %2965 = vmatpush1.msra.mxu0 0.0
      %2966 = vmatprep.subr.mxu0 0.0
      %2967 = vmatpush1.msra.mxu0 0.0
      %2968 = vmatprep.subr.mxu0 0.0
      %2969 = vmatpush1.msra.mxu0 0.0
      %2970 = vmatprep.subr.mxu0 0.0
      %2971 = vmatpush1.msra.mxu0 0.0
      %2972 = vmatprep.subr.mxu0 0.0
      %2973 = vmatpush1.msra.mxu0 0.0
      %2974 = vmatprep.subr.mxu0 0.0
      %2975 = vmatpush1.msra.mxu0 0.0
      %2976 = vmatprep.subr.mxu0 0.0
      %2977 = vmatpush1.msra.mxu0 0.0
      %2978 = vmatprep.subr.mxu0 0.0
      %2979 = vmatpush1.msra.mxu0 0.0
      %2980 = vmatprep.subr.mxu0 0.0
      %2981 = vmatpush1.msra.mxu0 0.0
      %2982 = vmatprep.subr.mxu0 0.0
      %2983 = vmatpush1.msra.mxu0 0.0
      %2984 = vmatprep.subr.mxu0 0.0
      %2985 = vmatpush1.msra.mxu0 0.0
      %2986 = vmatprep.subr.mxu0 0.0
      %2987 = vmatpush1.msra.mxu0 0.0
      %2988 = vmatprep.subr.mxu0 0.0
      %2989 = vmatpush1.msra.mxu0 0.0
      %2990 = vmatprep.mubr.f32.mxu0 0.0
      %v2991 = vand.u32 %v2458, 4294901760
      %2992 = vmatmul.mubr.f32.gmra.mrb[0].mxu0 %v2991
      %v2993 = vpop.f32.mrb[0].mxu0
      %v2994 = vadd.f32 %v2915, %v2993
      %v2995 = vpop.f32.mrb[0].mxu0
      %2996 = vdwg.mxu0
      %v2997 = vld [vmem:[%s13] sm:$0x1]
      %v2999 = vlaneseq
      %v3000 = vshrl.u32 %v2999, 7
      %v3001 = vsub.s32 0, %v3000
      %v3002 = vrot.slane %v2997, %v3001
      %v3004 = vadd.f32 %v2994, %v3002
      %v3005 = vld [vmem:[%s14] sm:$0xff]
      %v3006 = vld [vmem:[%s14 + $0x8] sm:$0xff]
      %v3007 = vld [vmem:[%s14 + $0x10] sm:$0xff]
      %v3008 = vld [vmem:[%s14 + $0x18] sm:$0xff]
      %v3009 = vld [vmem:[%s15] sm:$0x1]
      %v3011 = vlaneseq
      %v3012 = vshrl.u32 %v3011, 7
      %v3013 = vsub.s32 0, %v3012
      %v3014 = vrot.slane %v3009, %v3013
      %v3017 = vsel %vm1283, %v3004, 0
      %3019 = vmatprep.subr.mxu0 0.0
      %v3020 = vand.u32 %v3005, 4294901760
      %3021 = vmatpush1.msra.mxu0 %v3020
      %3022 = vmatprep.subr.mxu0 0.0
      %v3023 = vand.u32 %v3006, 4294901760
      %3024 = vmatpush1.msra.mxu0 %v3023
      %3025 = vmatprep.subr.mxu0 0.0
      %v3026 = vand.u32 %v3007, 4294901760
      %3027 = vmatpush1.msra.mxu0 %v3026
      %3028 = vmatprep.subr.mxu0 0.0
      %v3029 = vand.u32 %v3008, 4294901760
      %3030 = vmatpush1.msra.mxu0 %v3029
      %3031 = vmatprep.subr.mxu0 0.0
      %3032 = vmatpush1.msra.mxu0 0.0
      %3033 = vmatprep.subr.mxu0 0.0
      %3034 = vmatpush1.msra.mxu0 0.0
      %3035 = vmatprep.subr.mxu0 0.0
      %3036 = vmatpush1.msra.mxu0 0.0
      %3037 = vmatprep.subr.mxu0 0.0
      %3038 = vmatpush1.msra.mxu0 0.0
      %3039 = vmatprep.subr.mxu0 0.0
      %3040 = vmatpush1.msra.mxu0 0.0
      %3041 = vmatprep.subr.mxu0 0.0
      %3042 = vmatpush1.msra.mxu0 0.0
      %3043 = vmatprep.subr.mxu0 0.0
      %3044 = vmatpush1.msra.mxu0 0.0
      %3045 = vmatprep.subr.mxu0 0.0
      %3046 = vmatpush1.msra.mxu0 0.0
      %3047 = vmatprep.subr.mxu0 0.0
      %3048 = vmatpush1.msra.mxu0 0.0
      %3049 = vmatprep.subr.mxu0 0.0
      %3050 = vmatpush1.msra.mxu0 0.0
      %3051 = vmatprep.subr.mxu0 0.0
      %3052 = vmatpush1.msra.mxu0 0.0
      %3053 = vmatprep.subr.mxu0 0.0
      %3054 = vmatpush1.msra.mxu0 0.0
      %3055 = vmatprep.subr.mxu0 0.0
      %3056 = vmatpush1.msra.mxu0 0.0
      %3057 = vmatprep.subr.mxu0 0.0
      %3058 = vmatpush1.msra.mxu0 0.0
      %3059 = vmatprep.subr.mxu0 0.0
      %3060 = vmatpush1.msra.mxu0 0.0
      %3061 = vmatprep.subr.mxu0 0.0
      %3062 = vmatpush1.msra.mxu0 0.0
      %3063 = vmatprep.subr.mxu0 0.0
      %3064 = vmatpush1.msra.mxu0 0.0
      %3065 = vmatprep.subr.mxu0 0.0
      %3066 = vmatpush1.msra.mxu0 0.0
      %3067 = vmatprep.subr.mxu0 0.0
      %3068 = vmatpush1.msra.mxu0 0.0
      %3069 = vmatprep.subr.mxu0 0.0
      %3070 = vmatpush1.msra.mxu0 0.0
      %3071 = vmatprep.subr.mxu0 0.0
      %3072 = vmatpush1.msra.mxu0 0.0
      %3073 = vmatprep.subr.mxu0 0.0
      %3074 = vmatpush1.msra.mxu0 0.0
      %3075 = vmatprep.subr.mxu0 0.0
      %3076 = vmatpush1.msra.mxu0 0.0
      %3077 = vmatprep.subr.mxu0 0.0
      %3078 = vmatpush1.msra.mxu0 0.0
      %3079 = vmatprep.subr.mxu0 0.0
      %3080 = vmatpush1.msra.mxu0 0.0
      %3081 = vmatprep.subr.mxu0 0.0
      %3082 = vmatpush1.msra.mxu0 0.0
      %3083 = vmatprep.subr.mxu0 0.0
      %3084 = vmatpush1.msra.mxu0 0.0
      %3085 = vmatprep.subr.mxu0 0.0
      %3086 = vmatpush1.msra.mxu0 0.0
      %3087 = vmatprep.mubr.f32.mxu0 0.0
      %v3088 = vand.u32 %v3017, 4294901760
      %v3089 = vsub.f32 %v3017, %v3088
      %v3090 = vand.u32 %v3089, 4294901760
      %v3091 = vsub.f32 %v3089, %v3090
      %v3092 = vand.u32 %v3091, 4294901760
      %3093 = vmatmul.mubr.f32.gmra.mrb[0].mxu0 %v3092
      %v3094 = vpop.f32.mrb[0].mxu0
      %v3095 = vadd.f32 %v3014, %v3094
      %v3096 = vpop.f32.mrb[0].mxu0
      %3097 = vdwg.mxu0
      %3098 = vmatprep.subr.mxu0 0.0
      %v3099 = vand.u32 %v3005, 4294901760
      %v3100 = vsub.f32 %v3005, %v3099
      %v3101 = vand.u32 %v3100, 4294901760
      %v3102 = vsub.f32 %v3100, %v3101
      %v3103 = vand.u32 %v3102, 4294901760
      %3104 = vmatpush1.msra.mxu0 %v3103
      %3105 = vmatprep.subr.mxu0 0.0
      %v3106 = vand.u32 %v3006, 4294901760
      %v3107 = vsub.f32 %v3006, %v3106
      %v3108 = vand.u32 %v3107, 4294901760
      %v3109 = vsub.f32 %v3107, %v3108
      %v3110 = vand.u32 %v3109, 4294901760
      %3111 = vmatpush1.msra.mxu0 %v3110
      %3112 = vmatprep.subr.mxu0 0.0
      %v3113 = vand.u32 %v3007, 4294901760
      %v3114 = vsub.f32 %v3007, %v3113
      %v3115 = vand.u32 %v3114, 4294901760
      %v3116 = vsub.f32 %v3114, %v3115
      %v3117 = vand.u32 %v3116, 4294901760
      %3118 = vmatpush1.msra.mxu0 %v3117
      %3119 = vmatprep.subr.mxu0 0.0
      %v3120 = vand.u32 %v3008, 4294901760
      %v3121 = vsub.f32 %v3008, %v3120
      %v3122 = vand.u32 %v3121, 4294901760
      %v3123 = vsub.f32 %v3121, %v3122
      %v3124 = vand.u32 %v3123, 4294901760
      %3125 = vmatpush1.msra.mxu0 %v3124
      %3126 = vmatprep.subr.mxu0 0.0
      %3127 = vmatpush1.msra.mxu0 0.0
      %3128 = vmatprep.subr.mxu0 0.0
      %3129 = vmatpush1.msra.mxu0 0.0
      %3130 = vmatprep.subr.mxu0 0.0
      %3131 = vmatpush1.msra.mxu0 0.0
      %3132 = vmatprep.subr.mxu0 0.0
      %3133 = vmatpush1.msra.mxu0 0.0
      %3134 = vmatprep.subr.mxu0 0.0
      %3135 = vmatpush1.msra.mxu0 0.0
      %3136 = vmatprep.subr.mxu0 0.0
      %3137 = vmatpush1.msra.mxu0 0.0
      %3138 = vmatprep.subr.mxu0 0.0
      %3139 = vmatpush1.msra.mxu0 0.0
      %3140 = vmatprep.subr.mxu0 0.0
      %3141 = vmatpush1.msra.mxu0 0.0
      %3142 = vmatprep.subr.mxu0 0.0
      %3143 = vmatpush1.msra.mxu0 0.0
      %3144 = vmatprep.subr.mxu0 0.0
      %3145 = vmatpush1.msra.mxu0 0.0
      %3146 = vmatprep.subr.mxu0 0.0
      %3147 = vmatpush1.msra.mxu0 0.0
      %3148 = vmatprep.subr.mxu0 0.0
      %3149 = vmatpush1.msra.mxu0 0.0
      %3150 = vmatprep.subr.mxu0 0.0
      %3151 = vmatpush1.msra.mxu0 0.0
      %3152 = vmatprep.subr.mxu0 0.0
      %3153 = vmatpush1.msra.mxu0 0.0
      %3154 = vmatprep.subr.mxu0 0.0
      %3155 = vmatpush1.msra.mxu0 0.0
      %3156 = vmatprep.subr.mxu0 0.0
      %3157 = vmatpush1.msra.mxu0 0.0
      %3158 = vmatprep.subr.mxu0 0.0
      %3159 = vmatpush1.msra.mxu0 0.0
      %3160 = vmatprep.subr.mxu0 0.0
      %3161 = vmatpush1.msra.mxu0 0.0
      %3162 = vmatprep.subr.mxu0 0.0
      %3163 = vmatpush1.msra.mxu0 0.0
      %3164 = vmatprep.subr.mxu0 0.0
      %3165 = vmatpush1.msra.mxu0 0.0
      %3166 = vmatprep.subr.mxu0 0.0
      %3167 = vmatpush1.msra.mxu0 0.0
      %3168 = vmatprep.subr.mxu0 0.0
      %3169 = vmatpush1.msra.mxu0 0.0
      %3170 = vmatprep.subr.mxu0 0.0
      %3171 = vmatpush1.msra.mxu0 0.0
      %3172 = vmatprep.subr.mxu0 0.0
      %3173 = vmatpush1.msra.mxu0 0.0
      %3174 = vmatprep.subr.mxu0 0.0
      %3175 = vmatpush1.msra.mxu0 0.0
      %3176 = vmatprep.subr.mxu0 0.0
      %3177 = vmatpush1.msra.mxu0 0.0
      %3178 = vmatprep.subr.mxu0 0.0
      %3179 = vmatpush1.msra.mxu0 0.0
      %3180 = vmatprep.subr.mxu0 0.0
      %3181 = vmatpush1.msra.mxu0 0.0
      %3182 = vmatprep.mubr.f32.mxu0 0.0
      %v3183 = vand.u32 %v3017, 4294901760
      %3184 = vmatmul.mubr.f32.gmra.mrb[0].mxu0 %v3183
      %v3185 = vpop.f32.mrb[0].mxu0
      %v3186 = vadd.f32 %v3095, %v3185
      %v3187 = vpop.f32.mrb[0].mxu0
      %3188 = vdwg.mxu0
      %3189 = vmatprep.subr.mxu0 0.0
      %v3190 = vand.u32 %v3005, 4294901760
      %v3191 = vsub.f32 %v3005, %v3190
      %3192 = vmatpush1.msra.mxu0 %v3191
      %3193 = vmatprep.subr.mxu0 0.0
      %v3194 = vand.u32 %v3006, 4294901760
      %v3195 = vsub.f32 %v3006, %v3194
      %3196 = vmatpush1.msra.mxu0 %v3195
      %3197 = vmatprep.subr.mxu0 0.0
      %v3198 = vand.u32 %v3007, 4294901760
      %v3199 = vsub.f32 %v3007, %v3198
      %3200 = vmatpush1.msra.mxu0 %v3199
      %3201 = vmatprep.subr.mxu0 0.0
      %v3202 = vand.u32 %v3008, 4294901760
      %v3203 = vsub.f32 %v3008, %v3202
      %3204 = vmatpush1.msra.mxu0 %v3203
      %3205 = vmatprep.subr.mxu0 0.0
      %3206 = vmatpush1.msra.mxu0 0.0
      %3207 = vmatprep.subr.mxu0 0.0
      %3208 = vmatpush1.msra.mxu0 0.0
      %3209 = vmatprep.subr.mxu0 0.0
      %3210 = vmatpush1.msra.mxu0 0.0
      %3211 = vmatprep.subr.mxu0 0.0
      %3212 = vmatpush1.msra.mxu0 0.0
      %3213 = vmatprep.subr.mxu0 0.0
      %3214 = vmatpush1.msra.mxu0 0.0
      %3215 = vmatprep.subr.mxu0 0.0
      %3216 = vmatpush1.msra.mxu0 0.0
      %3217 = vmatprep.subr.mxu0 0.0
      %3218 = vmatpush1.msra.mxu0 0.0
      %3219 = vmatprep.subr.mxu0 0.0
      %3220 = vmatpush1.msra.mxu0 0.0
      %3221 = vmatprep.subr.mxu0 0.0
      %3222 = vmatpush1.msra.mxu0 0.0
      %3223 = vmatprep.subr.mxu0 0.0
      %3224 = vmatpush1.msra.mxu0 0.0
      %3225 = vmatprep.subr.mxu0 0.0
      %3226 = vmatpush1.msra.mxu0 0.0
      %3227 = vmatprep.subr.mxu0 0.0
      %3228 = vmatpush1.msra.mxu0 0.0
      %3229 = vmatprep.subr.mxu0 0.0
      %3230 = vmatpush1.msra.mxu0 0.0
      %3231 = vmatprep.subr.mxu0 0.0
      %3232 = vmatpush1.msra.mxu0 0.0
      %3233 = vmatprep.subr.mxu0 0.0
      %3234 = vmatpush1.msra.mxu0 0.0
      %3235 = vmatprep.subr.mxu0 0.0
      %3236 = vmatpush1.msra.mxu0 0.0
      %3237 = vmatprep.subr.mxu0 0.0
      %3238 = vmatpush1.msra.mxu0 0.0
      %3239 = vmatprep.subr.mxu0 0.0
      %3240 = vmatpush1.msra.mxu0 0.0
      %3241 = vmatprep.subr.mxu0 0.0
      %3242 = vmatpush1.msra.mxu0 0.0
      %3243 = vmatprep.subr.mxu0 0.0
      %3244 = vmatpush1.msra.mxu0 0.0
      %3245 = vmatprep.subr.mxu0 0.0
      %3246 = vmatpush1.msra.mxu0 0.0
      %3247 = vmatprep.subr.mxu0 0.0
      %3248 = vmatpush1.msra.mxu0 0.0
      %3249 = vmatprep.subr.mxu0 0.0
      %3250 = vmatpush1.msra.mxu0 0.0
      %3251 = vmatprep.subr.mxu0 0.0
      %3252 = vmatpush1.msra.mxu0 0.0
      %3253 = vmatprep.subr.mxu0 0.0
      %3254 = vmatpush1.msra.mxu0 0.0
      %3255 = vmatprep.subr.mxu0 0.0
      %3256 = vmatpush1.msra.mxu0 0.0
      %3257 = vmatprep.subr.mxu0 0.0
      %3258 = vmatpush1.msra.mxu0 0.0
      %3259 = vmatprep.subr.mxu0 0.0
      %3260 = vmatpush1.msra.mxu0 0.0
      %3261 = vmatprep.mubr.f32.mxu0 0.0
      %v3262 = vand.u32 %v3017, 4294901760
      %v3263 = vsub.f32 %v3017, %v3262
      %3264 = vmatmul.mubr.f32.gmra.mrb[0].mxu0 %v3263
      %v3265 = vpop.f32.mrb[0].mxu0
      %v3266 = vadd.f32 %v3186, %v3265
      %v3267 = vpop.f32.mrb[0].mxu0
      %3268 = vdwg.mxu0
      %3269 = vmatprep.subr.mxu0 0.0
      %v3270 = vand.u32 %v3005, 4294901760
      %3271 = vmatpush1.msra.mxu0 %v3270
      %3272 = vmatprep.subr.mxu0 0.0
      %v3273 = vand.u32 %v3006, 4294901760
      %3274 = vmatpush1.msra.mxu0 %v3273
      %3275 = vmatprep.subr.mxu0 0.0
      %v3276 = vand.u32 %v3007, 4294901760
      %3277 = vmatpush1.msra.mxu0 %v3276
      %3278 = vmatprep.subr.mxu0 0.0
      %v3279 = vand.u32 %v3008, 4294901760
      %3280 = vmatpush1.msra.mxu0 %v3279
      %3281 = vmatprep.subr.mxu0 0.0
      %3282 = vmatpush1.msra.mxu0 0.0
      %3283 = vmatprep.subr.mxu0 0.0
      %3284 = vmatpush1.msra.mxu0 0.0
      %3285 = vmatprep.subr.mxu0 0.0
      %3286 = vmatpush1.msra.mxu0 0.0
      %3287 = vmatprep.subr.mxu0 0.0
      %3288 = vmatpush1.msra.mxu0 0.0
      %3289 = vmatprep.subr.mxu0 0.0
      %3290 = vmatpush1.msra.mxu0 0.0
      %3291 = vmatprep.subr.mxu0 0.0
      %3292 = vmatpush1.msra.mxu0 0.0
      %3293 = vmatprep.subr.mxu0 0.0
      %3294 = vmatpush1.msra.mxu0 0.0
      %3295 = vmatprep.subr.mxu0 0.0
      %3296 = vmatpush1.msra.mxu0 0.0
      %3297 = vmatprep.subr.mxu0 0.0
      %3298 = vmatpush1.msra.mxu0 0.0
      %3299 = vmatprep.subr.mxu0 0.0
      %3300 = vmatpush1.msra.mxu0 0.0
      %3301 = vmatprep.subr.mxu0 0.0
      %3302 = vmatpush1.msra.mxu0 0.0
      %3303 = vmatprep.subr.mxu0 0.0
      %3304 = vmatpush1.msra.mxu0 0.0
      %3305 = vmatprep.subr.mxu0 0.0
      %3306 = vmatpush1.msra.mxu0 0.0
      %3307 = vmatprep.subr.mxu0 0.0
      %3308 = vmatpush1.msra.mxu0 0.0
      %3309 = vmatprep.subr.mxu0 0.0
      %3310 = vmatpush1.msra.mxu0 0.0
      %3311 = vmatprep.subr.mxu0 0.0
      %3312 = vmatpush1.msra.mxu0 0.0
      %3313 = vmatprep.subr.mxu0 0.0
      %3314 = vmatpush1.msra.mxu0 0.0
      %3315 = vmatprep.subr.mxu0 0.0
      %3316 = vmatpush1.msra.mxu0 0.0
      %3317 = vmatprep.subr.mxu0 0.0
      %3318 = vmatpush1.msra.mxu0 0.0
      %3319 = vmatprep.subr.mxu0 0.0
      %3320 = vmatpush1.msra.mxu0 0.0
      %3321 = vmatprep.subr.mxu0 0.0
      %3322 = vmatpush1.msra.mxu0 0.0
      %3323 = vmatprep.subr.mxu0 0.0
      %3324 = vmatpush1.msra.mxu0 0.0
      %3325 = vmatprep.subr.mxu0 0.0
      %3326 = vmatpush1.msra.mxu0 0.0
      %3327 = vmatprep.subr.mxu0 0.0
      %3328 = vmatpush1.msra.mxu0 0.0
      %3329 = vmatprep.subr.mxu0 0.0
      %3330 = vmatpush1.msra.mxu0 0.0
      %3331 = vmatprep.subr.mxu0 0.0
      %3332 = vmatpush1.msra.mxu0 0.0
      %3333 = vmatprep.subr.mxu0 0.0
      %3334 = vmatpush1.msra.mxu0 0.0
      %3335 = vmatprep.subr.mxu0 0.0
      %3336 = vmatpush1.msra.mxu0 0.0
      %3337 = vmatprep.mubr.f32.mxu0 0.0
      %v3338 = vand.u32 %v3017, 4294901760
      %v3339 = vsub.f32 %v3017, %v3338
      %v3340 = vand.u32 %v3339, 4294901760
      %3341 = vmatmul.mubr.f32.gmra.mrb[0].mxu0 %v3340
      %v3342 = vpop.f32.mrb[0].mxu0
      %v3343 = vadd.f32 %v3266, %v3342
      %v3344 = vpop.f32.mrb[0].mxu0
      %3345 = vdwg.mxu0
      %3346 = vmatprep.subr.mxu0 0.0
      %v3347 = vand.u32 %v3005, 4294901760
      %v3348 = vsub.f32 %v3005, %v3347
      %v3349 = vand.u32 %v3348, 4294901760
      %3350 = vmatpush1.msra.mxu0 %v3349
      %3351 = vmatprep.subr.mxu0 0.0
      %v3352 = vand.u32 %v3006, 4294901760
      %v3353 = vsub.f32 %v3006, %v3352
      %v3354 = vand.u32 %v3353, 4294901760
      %3355 = vmatpush1.msra.mxu0 %v3354
      %3356 = vmatprep.subr.mxu0 0.0
      %v3357 = vand.u32 %v3007, 4294901760
      %v3358 = vsub.f32 %v3007, %v3357
      %v3359 = vand.u32 %v3358, 4294901760
      %3360 = vmatpush1.msra.mxu0 %v3359
      %3361 = vmatprep.subr.mxu0 0.0
      %v3362 = vand.u32 %v3008, 4294901760
      %v3363 = vsub.f32 %v3008, %v3362
      %v3364 = vand.u32 %v3363, 4294901760
      %3365 = vmatpush1.msra.mxu0 %v3364
      %3366 = vmatprep.subr.mxu0 0.0
      %3367 = vmatpush1.msra.mxu0 0.0
      %3368 = vmatprep.subr.mxu0 0.0
      %3369 = vmatpush1.msra.mxu0 0.0
      %3370 = vmatprep.subr.mxu0 0.0
      %3371 = vmatpush1.msra.mxu0 0.0
      %3372 = vmatprep.subr.mxu0 0.0
      %3373 = vmatpush1.msra.mxu0 0.0
      %3374 = vmatprep.subr.mxu0 0.0
      %3375 = vmatpush1.msra.mxu0 0.0
      %3376 = vmatprep.subr.mxu0 0.0
      %3377 = vmatpush1.msra.mxu0 0.0
      %3378 = vmatprep.subr.mxu0 0.0
      %3379 = vmatpush1.msra.mxu0 0.0
      %3380 = vmatprep.subr.mxu0 0.0
      %3381 = vmatpush1.msra.mxu0 0.0
      %3382 = vmatprep.subr.mxu0 0.0
      %3383 = vmatpush1.msra.mxu0 0.0
      %3384 = vmatprep.subr.mxu0 0.0
      %3385 = vmatpush1.msra.mxu0 0.0
      %3386 = vmatprep.subr.mxu0 0.0
      %3387 = vmatpush1.msra.mxu0 0.0
      %3388 = vmatprep.subr.mxu0 0.0
      %3389 = vmatpush1.msra.mxu0 0.0
      %3390 = vmatprep.subr.mxu0 0.0
      %3391 = vmatpush1.msra.mxu0 0.0
      %3392 = vmatprep.subr.mxu0 0.0
      %3393 = vmatpush1.msra.mxu0 0.0
      %3394 = vmatprep.subr.mxu0 0.0
      %3395 = vmatpush1.msra.mxu0 0.0
      %3396 = vmatprep.subr.mxu0 0.0
      %3397 = vmatpush1.msra.mxu0 0.0
      %3398 = vmatprep.subr.mxu0 0.0
      %3399 = vmatpush1.msra.mxu0 0.0
      %3400 = vmatprep.subr.mxu0 0.0
      %3401 = vmatpush1.msra.mxu0 0.0
      %3402 = vmatprep.subr.mxu0 0.0
      %3403 = vmatpush1.msra.mxu0 0.0
      %3404 = vmatprep.subr.mxu0 0.0
      %3405 = vmatpush1.msra.mxu0 0.0
      %3406 = vmatprep.subr.mxu0 0.0
      %3407 = vmatpush1.msra.mxu0 0.0
      %3408 = vmatprep.subr.mxu0 0.0
      %3409 = vmatpush1.msra.mxu0 0.0
      %3410 = vmatprep.subr.mxu0 0.0
      %3411 = vmatpush1.msra.mxu0 0.0
      %3412 = vmatprep.subr.mxu0 0.0
      %3413 = vmatpush1.msra.mxu0 0.0
      %3414 = vmatprep.subr.mxu0 0.0
      %3415 = vmatpush1.msra.mxu0 0.0
      %3416 = vmatprep.subr.mxu0 0.0
      %3417 = vmatpush1.msra.mxu0 0.0
      %3418 = vmatprep.subr.mxu0 0.0
      %3419 = vmatpush1.msra.mxu0 0.0
      %3420 = vmatprep.subr.mxu0 0.0
      %3421 = vmatpush1.msra.mxu0 0.0
      %3422 = vmatprep.mubr.f32.mxu0 0.0
      %v3423 = vand.u32 %v3017, 4294901760
      %3424 = vmatmul.mubr.f32.gmra.mrb[0].mxu0 %v3423
      %v3425 = vpop.f32.mrb[0].mxu0
      %v3426 = vadd.f32 %v3343, %v3425
      %v3427 = vpop.f32.mrb[0].mxu0
      %3428 = vdwg.mxu0
      %3429 = vmatprep.subr.mxu0 0.0
      %v3430 = vand.u32 %v3005, 4294901760
      %3431 = vmatpush1.msra.mxu0 %v3430
      %3432 = vmatprep.subr.mxu0 0.0
      %v3433 = vand.u32 %v3006, 4294901760
      %3434 = vmatpush1.msra.mxu0 %v3433
      %3435 = vmatprep.subr.mxu0 0.0
      %v3436 = vand.u32 %v3007, 4294901760
      %3437 = vmatpush1.msra.mxu0 %v3436
      %3438 = vmatprep.subr.mxu0 0.0
      %v3439 = vand.u32 %v3008, 4294901760
      %3440 = vmatpush1.msra.mxu0 %v3439
      %3441 = vmatprep.subr.mxu0 0.0
      %3442 = vmatpush1.msra.mxu0 0.0
      %3443 = vmatprep.subr.mxu0 0.0
      %3444 = vmatpush1.msra.mxu0 0.0
      %3445 = vmatprep.subr.mxu0 0.0
      %3446 = vmatpush1.msra.mxu0 0.0
      %3447 = vmatprep.subr.mxu0 0.0
      %3448 = vmatpush1.msra.mxu0 0.0
      %3449 = vmatprep.subr.mxu0 0.0
      %3450 = vmatpush1.msra.mxu0 0.0
      %3451 = vmatprep.subr.mxu0 0.0
      %3452 = vmatpush1.msra.mxu0 0.0
      %3453 = vmatprep.subr.mxu0 0.0
      %3454 = vmatpush1.msra.mxu0 0.0
      %3455 = vmatprep.subr.mxu0 0.0
      %3456 = vmatpush1.msra.mxu0 0.0
      %3457 = vmatprep.subr.mxu0 0.0
      %3458 = vmatpush1.msra.mxu0 0.0
      %3459 = vmatprep.subr.mxu0 0.0
      %3460 = vmatpush1.msra.mxu0 0.0
      %3461 = vmatprep.subr.mxu0 0.0
      %3462 = vmatpush1.msra.mxu0 0.0
      %3463 = vmatprep.subr.mxu0 0.0
      %3464 = vmatpush1.msra.mxu0 0.0
      %3465 = vmatprep.subr.mxu0 0.0
      %3466 = vmatpush1.msra.mxu0 0.0
      %3467 = vmatprep.subr.mxu0 0.0
      %3468 = vmatpush1.msra.mxu0 0.0
      %3469 = vmatprep.subr.mxu0 0.0
      %3470 = vmatpush1.msra.mxu0 0.0
      %3471 = vmatprep.subr.mxu0 0.0
      %3472 = vmatpush1.msra.mxu0 0.0
      %3473 = vmatprep.subr.mxu0 0.0
      %3474 = vmatpush1.msra.mxu0 0.0
      %3475 = vmatprep.subr.mxu0 0.0
      %3476 = vmatpush1.msra.mxu0 0.0
      %3477 = vmatprep.subr.mxu0 0.0
      %3478 = vmatpush1.msra.mxu0 0.0
      %3479 = vmatprep.subr.mxu0 0.0
      %3480 = vmatpush1.msra.mxu0 0.0
      %3481 = vmatprep.subr.mxu0 0.0
      %3482 = vmatpush1.msra.mxu0 0.0
      %3483 = vmatprep.subr.mxu0 0.0
      %3484 = vmatpush1.msra.mxu0 0.0
      %3485 = vmatprep.subr.mxu0 0.0
      %3486 = vmatpush1.msra.mxu0 0.0
      %3487 = vmatprep.subr.mxu0 0.0
      %3488 = vmatpush1.msra.mxu0 0.0
      %3489 = vmatprep.subr.mxu0 0.0
      %3490 = vmatpush1.msra.mxu0 0.0
      %3491 = vmatprep.subr.mxu0 0.0
      %3492 = vmatpush1.msra.mxu0 0.0
      %3493 = vmatprep.subr.mxu0 0.0
      %3494 = vmatpush1.msra.mxu0 0.0
      %3495 = vmatprep.subr.mxu0 0.0
      %3496 = vmatpush1.msra.mxu0 0.0
      %3497 = vmatprep.mubr.f32.mxu0 0.0
      %v3498 = vand.u32 %v3017, 4294901760
      %3499 = vmatmul.mubr.f32.gmra.mrb[0].mxu0 %v3498
      %v3500 = vpop.f32.mrb[0].mxu0
      %v3501 = vadd.f32 %v3426, %v3500
      %v3502 = vpop.f32.mrb[0].mxu0
      %3503 = vdwg.mxu0
      %vm3504 = vcmask 1041408
      %v3505 = vsel %vm3504, %v3501, -inf
      %3506 = vmax.xlane.f32.xlu0 %v3505
      %v3507 = vpop.xlane.xlu0 %3506
      %v3508 = vsub.f32 %v3501, %v3507
      %v3509 = vmul.f32 %v3508, 1.442695
      %v3510 = vpow.pop %v3509
      %v3511 = vsel %vm3504, %v3510, 0.0
      %3512 = vadd.xlane.f32.xlu0 %v3511
      %v3513 = vpop.xlane.xlu0 %3512
      %v3514 = vrcp.pop %v3513
      %v3515 = vmul.f32 %v3510, %v3514
      %v3516 = vld [vmem:[%s16] sm:$0x1]
      %v3518 = vlaneseq
      %v3519 = vshrl.u32 %v3518, 7
      %v3520 = vsub.s32 0, %v3519
      %v3521 = vrot.slane %v3516, %v3520
      %v3523 = vmul.f32 %v1950, %v3521
      %v3524 = vmul.f32 %v1957, %v3521
      %v3527 = vrot.slane %v3524, 7
      %v3528 = vsel %vm1870, %v3527, %v3523
      %vm3530 = vcmask 517120
      %v3531 = vsel %vm3530, %v3528, 0.0
      %3532 = vadd.xlane.f32.xlu0 %v3531
      %v3533 = vpop.xlane.xlu0 %3532
      %v3534 = vld [vmem:[%s17] sm:$0x1]
      %v3536 = vlaneseq
      %v3537 = vshrl.u32 %v3536, 7
      %v3538 = vsub.s32 0, %v3537
      %v3539 = vrot.slane %v3534, %v3538
      %v3541 = vmul.f32 %v743, %v3539
      %v3542 = vsel %vm1275, %v3541, 0.0
      %3543 = vadd.xlane.f32.xlu0 %v3542
      %v3544 = vpop.xlane.xlu0 %3543
      %v3545 = vadd.f32 %v3533, %v3544
      %v3546 = vld [vmem:[%s707] sm:$0x3]
      %v3547 = vadd.f32 %v3545, %v3546
      %v3548 = vxor.u32 %v3547, 2147483648
      %v3549 = vmul.f32 %v3548, 1.442695
      %v3550 = vpow.pop %v3549
      %v3551 = vadd.f32 %v3550, 1.0
      %v3552 = vrcp.pop %v3551
      %v3553 = vmul.f32 1.0, %v3552
      %s3554 = smul.u32 %s36, 2
      %s3555 = scalar_lea.vmem %s703, %s3554
      %v3556 = vld [vmem:[%s3555] sm:$0x3]
      %3557 = vset.pattern.permute.xlu0 0
      %3558 = vperm.xlu0 %3557, %v3556
      %v3559 = vpop.permute.xlu0 %3558
      %vm3560 = vcmp.eq.s32.totalorder %v730, %v3559
      %v3561 = vsel %vm3560, %v3515, 0.0
      %v3562 = vsel %vm3504, %v3561, 0.0
      %3563 = vadd.xlane.f32.xlu0 %v3562
      %v3564 = vpop.xlane.xlu0 %3563
      %v3565 = vsub.f32 1.0, %v3553
      %3567 = vset.pattern.permute.xlu0 0
      %3568 = vperm.xlu0 %3567, %v3565
      %v3569 = vpop.permute.xlu0 %3568
      %v3570 = vlaneseq
      %v3571 = vshrl.u32 %v3570, 7
      %v3572 = vsub.s32 0, %v3571
      %v3573 = vrot.slane %v3569, %v3572
      %v3574 = vlaneseq
      %v3575 = vshrl.u32 %v3574, 7
      %v3576 = vsub.s32 1, %v3575
      %v3577 = vrot.slane %v3569, %v3576
      %v3580 = vmul.f32 %v1927, %v3573
      %v3581 = vmul.f32 %v1928, %v3577
      %v3582 = vld [vmem:[%s699] sm:$0x3]
      %vm3583 = vcmp.eq.s32.totalorder %v3582, %v3559
      %3586 = vset.pattern.permute.xlu0 0
      %3587 = vperm.xlu0 %3586, %v3580
      %v3588 = vpop.permute.xlu0 %3587
      %3589 = vset.pattern.permute.xlu0 0
      %3590 = vperm.xlu0 %3589, %v3581
      %v3591 = vpop.permute.xlu0 %3590
      %v3592 = vlaneseq
      %v3593 = vshrl.u32 %v3592, 7
      %v3594 = vsub.s32 %v730, %v3593
      %v3595 = vrot.slane %v3588, %v3594
      %v3596 = vlaneseq
      %v3597 = vshrl.u32 %v3596, 7
      %v3598 = vsub.s32 %v730, %v3597
      %v3599 = vrot.slane %v3591, %v3598
      %v3600 = vsel %vm1870, %v3599, %v3595
      %v3602 = vsel %vm3583, %v3600, 0.0
      %v3603 = vsel %vm1873, %v3602, 0.0
      %3604 = vadd.xlane.f32.xlu0 %v3603
      %v3605 = vpop.xlane.xlu0 %3604
      %v3606 = vmul.f32 %v3553, %v3564
      %v3607 = vadd.f32 %v3606, %v3605
      %v3608 = vlaneseq
      %v3609 = vshrl.u32 %v3608, 7
      %v3610 = vsub.s32 %v730, %v3609
      %v3611 = vrot.slane %v1934, %v3610
      %v3612 = vlaneseq
      %v3613 = vshrl.u32 %v3612, 7
      %v3614 = vsub.s32 %v730, %v3613
      %v3615 = vrot.slane %v1939, %v3614
      %v3616 = vsel %vm1870, %v3615, %v3611
      %v3618 = vmin.f32 %v1278, %v3616
      %v3619 = vsel %vm1873, %v3618, 0.0
      %3620 = vadd.xlane.f32.xlu0 %v3619
      %v3621 = vpop.xlane.xlu0 %3620
      %v3622 = vadd.f32 %v1278, %v3616
      %3623 = vst.msk [vmem:[#allocation4] sm:$0x3] %vm1873, %v3622
      %s3624 = scalar_lea.vmem %s711, %s3554
      %vm3625 = vcmask 1024
      %3626 = vst.msk [vmem:[%s3624] sm:$0x3] %vm3625, %v3607
      %s3627 = scalar_lea.vmem %s715, %s3554
      %3628 = vst.msk [vmem:[%s3627] sm:$0x3] %vm3625, %v3621
      %p3629 = scmp.lt.s32.totalorder %s35, 0
      %s3630 = scalar_select %p3629, %s35, 0
      %s3631 = smul.addr %s3630, 2
      %s3632 = scalar_lea.vmem %s18, %s3631
      %p3633 = scmp.lt.s32.totalorder %s35, 0
      %s3634 = scalar_select %p3633, %s35, 0
      %s3635 = smul.addr %s3634, 2
      %s3636 = scalar_lea.vmem %s19, %s3635
      // Predicated region
      $region104: #{s2s_forward_pallas.3} parent=91 // pred_check
        %p3637 = pneg %p469
      $region105: #{s2s_forward_pallas.3} parent=91 // pred_check_branch
        %3639 = sbr.rel (%p3637) target = $region107
      $region106: #{s2s_forward_pallas.3} parent=91 // pred_region
        _
      $region107: #{s2s_forward_pallas.3} parent=91 // pred_fallthru
        _
      // Predicated region
      $region108: #{s2s_forward_pallas.3} parent=91 // pred_check
        %p3640 = pneg %p495
      $region109: #{s2s_forward_pallas.3} parent=91 // pred_check_branch
        %3642 = sbr.rel (%p3640) target = $region111
      $region110: #{s2s_forward_pallas.3} parent=91 // pred_region
        _
      $region111: #{s2s_forward_pallas.3} parent=91 // pred_fallthru
        _
      // Predicated region
      $region112: #{s2s_forward_pallas.3} parent=91 // pred_check
        %p3643 = pneg %p469
      $region113: #{s2s_forward_pallas.3} parent=91 // pred_check_branch
        %3645 = sbr.rel (%p3643) target = $region115
      $region114: #{s2s_forward_pallas.3} parent=91 // pred_region
        %p3646 = scmp.lt.s32.totalorder %s35, 0
        %s3647 = scalar_select %p3646, %s35, 0
        %s3648 = smul.addr %s3647, 2
        %s3649 = scalar_lea.vmem %s18, %s3648
      $region115: #{s2s_forward_pallas.3} parent=91 // pred_fallthru
        _
      // Predicated region
      $region116: #{s2s_forward_pallas.3} parent=91 // pred_check
        %p3650 = pneg %p495
      $region117: #{s2s_forward_pallas.3} parent=91 // pred_check_branch
        %3652 = sbr.rel (%p3650) target = $region119
      $region118: #{s2s_forward_pallas.3} parent=91 // pred_region
        %p3653 = scmp.lt.s32.totalorder %s35, 0
        %s3654 = scalar_select %p3653, %s35, 0
        %s3655 = smul.addr %s3654, 2
        %s3656 = scalar_lea.vmem %s19, %s3655
      $region119: #{s2s_forward_pallas.3} parent=91 // pred_fallthru
        _
    $region92: #{s2s_forward_pallas.3} parent=5 // pred_fallthru
      _
    %p3657 = scmp.le.s32.totalorder 2, %s26
    // Predicated region
    $region120: #{s2s_forward_pallas.3} parent=5 // pred_check
      %p3658 = pneg %p3657
    $region121: #{s2s_forward_pallas.3} parent=5 // pred_check_branch
      %3660 = sbr.rel (%p3658) target = $region123
    $region122: #{s2s_forward_pallas.3} parent=5 // pred_region
      %s3661 = ssub.s32 %s26, 2
    $region123: #{s2s_forward_pallas.3} parent=5 // pred_fallthru
      _
  $region6: #{s2s_forward_pallas.3} parent=0 // loop_footer
    %s30 = sadd.s32 1, %s26
  $region7: #{s2s_forward_pallas.3} parent=0 // loop_footer_branch
    %25 = sbr.rel target = $region3
  $region8: #{s2s_forward_pallas.3} parent=0 // loop_exit
    _

// kernel: s2s_forward_pallas.2
$region0: #{s2s_forward_pallas.2}
  #allocation0 [shape = 'u32[]', space=smem, size = 0x4, offset = 0x4, fixed_abs, tag = 'smem constant byte address 0x4 - core index']
  #allocation1 [shape = 'u32[144,128]{1,0:T(1,128)}', space=vmem, size = 0x12000, scoped, tag = 'internal scratch']
  %s0 = inlined_call_operand.vmem [shape: f32[2,8,2,128], index: 0, kind: input, shape index: {}]
  %s1 = inlined_call_operand.vmem [shape: f32[2,32,128], index: 1, kind: input, shape index: {}]
  %s2 = inlined_call_operand.vmem [shape: f32[2,8,2,32], index: 2, kind: output, shape index: {}]
  %s3 = sld [smem:[#allocation0]]
  $region41: #{s2s_forward_pallas.2} parent=0
    _
  %s5 = ssub.s32 1, %s3
  %s6 = scalar_select 0, %s5, %s3
  loop: start=0, step=1, limit=4
  $region2: #{s2s_forward_pallas.2} parent=0 // loop_pre_header
    _
  $region3: #{s2s_forward_pallas.2} parent=0 // loop_header
    %s8 = sphi 0, %s12
    %p9 = scmp.ge.s32.totalorder %s8, 4
    %s18 = sphi 0, %s20
    %s21 = sphi 0, %s18
    %s22 = sphi 0, %s21
    %s38 = sphi 0, %s22
    %s44 = sphi 0, %s46
    %s47 = sphi 0, %s44
    %s48 = sphi 0, %s47
    %s64 = sphi 0, %s48
    %s70 = sphi 0, %s72
    %s73 = sphi 0, %s70
    %s74 = sphi 0, %s73
    %s90 = sphi 0, %s74
  $region4: #{s2s_forward_pallas.2} parent=0 // loop_header_branch
    %11 = sbr.rel (%p9) target = $region8
  $region5: #{s2s_forward_pallas.2} parent=0 // loop_body
    %s13 = ssub.s32 %s8, 1
    %s14 = ssub.s32 %s8, 2
    %s15 = sadd.s32 %s8, 1
    %s16 = ssub.s32 %s8, %s15
    %p17 = scmp.eq.s32.totalorder %s16, 0
    %s19 = sadd.s32 %s18, 1
    %s20 = scalar_select %p17, %s18, %s19
    %p23 = pneg %p17
    %p24 = scmp.eq.s32.totalorder %s8, 1
    %p25 = por %p23, %p24
    %p26 = scmp.ne.s32.totalorder %s18, %s21
    %p27 = scmp.eq.s32.totalorder %s8, 0
    %p28 = por %p26, %p27
    %p29 = scmp.ne.s32.totalorder %s18, %s21
    %p30 = scmp.eq.s32.totalorder %s13, 1
    %p31 = por %p29, %p30
    %p32 = scmp.ne.s32.totalorder %s21, %s22
    %p33 = scmp.eq.s32.totalorder %s13, 0
    %p34 = por %p32, %p33
    %p35 = scmp.ne.s32.totalorder %s21, %s22
    %p36 = scmp.eq.s32.totalorder %s14, 1
    %p37 = por %p35, %p36
    %p39 = scmp.ne.s32.totalorder %s22, %s38
    %p40 = scmp.eq.s32.totalorder %s14, 0
    %p41 = por %p39, %p40
    %s42 = ssub.s32 %s8, %s15
    %p43 = scmp.eq.s32.totalorder %s42, 0
    %s45 = sadd.s32 %s44, 1
    %s46 = scalar_select %p43, %s44, %s45
    %p49 = pneg %p43
    %p50 = scmp.eq.s32.totalorder %s8, 1
    %p51 = por %p49, %p50
    %p52 = scmp.ne.s32.totalorder %s44, %s47
    %p53 = scmp.eq.s32.totalorder %s8, 0
    %p54 = por %p52, %p53
    %p55 = scmp.ne.s32.totalorder %s44, %s47
    %p56 = scmp.eq.s32.totalorder %s13, 1
    %p57 = por %p55, %p56
    %p58 = scmp.ne.s32.totalorder %s47, %s48
    %p59 = scmp.eq.s32.totalorder %s13, 0
    %p60 = por %p58, %p59
    %p61 = scmp.ne.s32.totalorder %s47, %s48
    %p62 = scmp.eq.s32.totalorder %s14, 1
    %p63 = por %p61, %p62
    %p65 = scmp.ne.s32.totalorder %s48, %s64
    %p66 = scmp.eq.s32.totalorder %s14, 0
    %p67 = por %p65, %p66
    %s68 = ssub.s32 %s8, %s15
    %p69 = scmp.eq.s32.totalorder %s68, 0
    %s71 = sadd.s32 %s70, 1
    %s72 = scalar_select %p69, %s70, %s71
    %p75 = pneg %p69
    %p76 = scmp.eq.s32.totalorder %s8, 1
    %p77 = por %p75, %p76
    %p78 = scmp.ne.s32.totalorder %s70, %s73
    %p79 = scmp.eq.s32.totalorder %s8, 0
    %p80 = por %p78, %p79
    %p81 = scmp.ne.s32.totalorder %s70, %s73
    %p82 = scmp.eq.s32.totalorder %s13, 1
    %p83 = por %p81, %p82
    %p84 = scmp.ne.s32.totalorder %s73, %s74
    %p85 = scmp.eq.s32.totalorder %s13, 0
    %p86 = por %p84, %p85
    %p87 = scmp.ne.s32.totalorder %s73, %s74
    %p88 = scmp.eq.s32.totalorder %s14, 1
    %p89 = por %p87, %p88
    %p91 = scmp.ne.s32.totalorder %s74, %s90
    %p92 = scmp.eq.s32.totalorder %s14, 0
    %p93 = por %p91, %p92
    %p94 = scmp.le.s32.totalorder 1, %s8
    %p95 = scmp.lt.s32.totalorder %s8, 3
    %p96 = pnand %p94, %p95
    %p97 = pneg %p96
    // Predicated region
    $region9: #{s2s_forward_pallas.2} parent=5 // pred_check
      _
    $region10: #{s2s_forward_pallas.2} parent=5 // pred_check_branch
      %99 = sbr.rel (%p96) target = $region12
    $region11: #{s2s_forward_pallas.2} parent=5 // pred_region
      %s100 = ssub.s32 %s8, 1
    $region12: #{s2s_forward_pallas.2} parent=5 // pred_fallthru
      _
    %p101 = scmp.lt.s32.totalorder %s8, 2
    // Predicated region
    $region13: #{s2s_forward_pallas.2} parent=5 // pred_check
      %p102 = pneg %p101
    $region14: #{s2s_forward_pallas.2} parent=5 // pred_check_branch
      %104 = sbr.rel (%p102) target = $region16
    $region15: #{s2s_forward_pallas.2} parent=5 // pred_region
      // Predicated region
      $region17: #{s2s_forward_pallas.2} parent=15 // pred_check
        %p105 = pneg %p28
      $region18: #{s2s_forward_pallas.2} parent=15 // pred_check_branch
        %107 = sbr.rel (%p105) target = $region20
      $region19: #{s2s_forward_pallas.2} parent=15 // pred_region
        %p108 = scmp.lt.s32.totalorder %s8, 1
        %s109 = scalar_select %p108, %s8, 1
        %s110 = smul.addr %s109, 8
        %s111 = smul.addr %s110, 2
        %s112 = scalar_lea.vmem %s0, %s111
      $region20: #{s2s_forward_pallas.2} parent=15 // pred_fallthru
        _
      // Predicated region
      $region21: #{s2s_forward_pallas.2} parent=15 // pred_check
        %p113 = pneg %p54
      $region22: #{s2s_forward_pallas.2} parent=15 // pred_check_branch
        %115 = sbr.rel (%p113) target = $region24
      $region23: #{s2s_forward_pallas.2} parent=15 // pred_region
        %p116 = scmp.lt.s32.totalorder %s8, 1
        %s117 = scalar_select %p116, %s8, 1
        %s118 = smul.addr %s117, 4
        %s119 = smul.addr %s118, 8
        %s120 = scalar_lea.vmem %s1, %s119
      $region24: #{s2s_forward_pallas.2} parent=15 // pred_fallthru
        _
    $region16: #{s2s_forward_pallas.2} parent=5 // pred_fallthru
      _
    %p121 = scmp.le.s32.totalorder 1, %s8
    %p122 = scmp.lt.s32.totalorder %s8, 3
    %p123 = pnand %p121, %p122
    %p124 = pneg %p123
    // Predicated region
    $region25: #{s2s_forward_pallas.2} parent=5 // pred_check
      _
    $region26: #{s2s_forward_pallas.2} parent=5 // pred_check_branch
      %126 = sbr.rel (%p123) target = $region28
    $region27: #{s2s_forward_pallas.2} parent=5 // pred_region
      %s127 = ssub.s32 %s8, 1
      %p128 = scmp.lt.s32.totalorder %s13, 1
      %s129 = scalar_select %p128, %s13, 1
      %s130 = smul.addr %s129, 8
      %s131 = smul.addr %s130, 2
      %s132 = scalar_lea.vmem %s0, %s131
      %p133 = pneg %p34
      %p134 = pneg %p31
      %p135 = scmp.lt.s32.totalorder %s13, 1
      %s136 = scalar_select %p135, %s13, 1
      %s137 = smul.addr %s136, 4
      %s138 = smul.addr %s137, 8
      %s139 = scalar_lea.vmem %s1, %s138
      %p140 = pneg %p60
      %p141 = pneg %p57
      %p142 = pneg %p86
      %p143 = pneg %p83
      %p144 = scmp.lt.s32.totalorder %s13, 1
      %s145 = scalar_select %p144, %s13, 1
      %s146 = smul.addr %s145, 8
      %s147 = smul.addr %s146, 2
      %s148 = scalar_lea.vmem %s2, %s147
      %p149 = scmp.lt.s32.totalorder %s13, 1
      %s150 = scalar_select %p149, %s13, 1
      %s151 = smul.addr %s150, 8
      %s152 = smul.addr %s151, 2
      %s153 = scalar_lea.vmem %s0, %s152
      %p154 = scmp.lt.s32.totalorder %s13, 1
      %s155 = scalar_select %p154, %s13, 1
      %s156 = smul.addr %s155, 4
      %s157 = smul.addr %s156, 8
      %s158 = scalar_lea.vmem %s1, %s157
      %p159 = scmp.lt.s32.totalorder %s13, 1
      %s160 = scalar_select %p159, %s13, 1
      %s161 = smul.addr %s160, 8
      %s162 = smul.addr %s161, 2
      %s163 = scalar_lea.vmem %s2, %s162
      %v164 = vld [vmem:[%s158] sm:$0xff]
      %v165 = vld [vmem:[%s158 + $0x8] sm:$0xff]
      %v166 = vld [vmem:[%s158 + $0x10] sm:$0xff]
      %v167 = vld [vmem:[%s158 + $0x18] sm:$0xff]
      %v168 = vlaneseq
      %v169 = vand.u32 %v168, 127
      %vm170 = vcmp.ge.s32.totalorder %v169, 64
      %vm171 = vcmp.lt.s32.totalorder %v169, 96
      %vm172 = vmand %vm170, %vm171
      %v173 = vld [vmem:[%s153] sm:$0x3]
      %vm174 = vcmask 261120
      %v176 = vsel %vm174, 0.0, 0
      %178 = vmatprep.subr.mxu0 0.0
      %v179 = vand.u32 %v164, 4294901760
      %180 = vmatpush1.msra.mxu0 %v179
      %181 = vmatprep.subr.mxu0 0.0
      %v182 = vand.u32 %v165, 4294901760
      %183 = vmatpush1.msra.mxu0 %v182
      %184 = vmatprep.subr.mxu0 0.0
      %v185 = vand.u32 %v166, 4294901760
      %186 = vmatpush1.msra.mxu0 %v185
      %187 = vmatprep.subr.mxu0 0.0
      %v188 = vand.u32 %v167, 4294901760
      %189 = vmatpush1.msra.mxu0 %v188
      %190 = vmatprep.subr.mxu0 0.0
      %191 = vmatpush1.msra.mxu0 0.0
      %192 = vmatprep.subr.mxu0 0.0
      %193 = vmatpush1.msra.mxu0 0.0
      %194 = vmatprep.subr.mxu0 0.0
      %195 = vmatpush1.msra.mxu0 0.0
      %196 = vmatprep.subr.mxu0 0.0
      %197 = vmatpush1.msra.mxu0 0.0
      %198 = vmatprep.subr.mxu0 0.0
      %199 = vmatpush1.msra.mxu0 0.0
      %200 = vmatprep.subr.mxu0 0.0
      %201 = vmatpush1.msra.mxu0 0.0
      %202 = vmatprep.subr.mxu0 0.0
      %203 = vmatpush1.msra.mxu0 0.0
      %204 = vmatprep.subr.mxu0 0.0
      %205 = vmatpush1.msra.mxu0 0.0
      %206 = vmatprep.subr.mxu0 0.0
      %207 = vmatpush1.msra.mxu0 0.0
      %208 = vmatprep.subr.mxu0 0.0
      %209 = vmatpush1.msra.mxu0 0.0
      %210 = vmatprep.subr.mxu0 0.0
      %211 = vmatpush1.msra.mxu0 0.0
      %212 = vmatprep.subr.mxu0 0.0
      %213 = vmatpush1.msra.mxu0 0.0
      %214 = vmatprep.subr.mxu0 0.0
      %215 = vmatpush1.msra.mxu0 0.0
      %216 = vmatprep.subr.mxu0 0.0
      %217 = vmatpush1.msra.mxu0 0.0
      %218 = vmatprep.subr.mxu0 0.0
      %219 = vmatpush1.msra.mxu0 0.0
      %220 = vmatprep.subr.mxu0 0.0
      %221 = vmatpush1.msra.mxu0 0.0
      %222 = vmatprep.subr.mxu0 0.0
      %223 = vmatpush1.msra.mxu0 0.0
      %224 = vmatprep.subr.mxu0 0.0
      %225 = vmatpush1.msra.mxu0 0.0
      %226 = vmatprep.subr.mxu0 0.0
      %227 = vmatpush1.msra.mxu0 0.0
      %228 = vmatprep.subr.mxu0 0.0
      %229 = vmatpush1.msra.mxu0 0.0
      %230 = vmatprep.subr.mxu0 0.0
      %231 = vmatpush1.msra.mxu0 0.0
      %232 = vmatprep.subr.mxu0 0.0
      %233 = vmatpush1.msra.mxu0 0.0
      %234 = vmatprep.subr.mxu0 0.0
      %235 = vmatpush1.msra.mxu0 0.0
      %236 = vmatprep.subr.mxu0 0.0
      %237 = vmatpush1.msra.mxu0 0.0
      %238 = vmatprep.subr.mxu0 0.0
      %239 = vmatpush1.msra.mxu0 0.0
      %240 = vmatprep.subr.mxu0 0.0
      %241 = vmatpush1.msra.mxu0 0.0
      %242 = vmatprep.subr.mxu0 0.0
      %243 = vmatpush1.msra.mxu0 0.0
      %244 = vmatprep.subr.mxu0 0.0
      %245 = vmatpush1.msra.mxu0 0.0
      %246 = vmatprep.mubr.f32.mxu0 0.0
      %v247 = vand.u32 %v176, 4294901760
      %v248 = vsub.f32 %v176, %v247
      %v249 = vand.u32 %v248, 4294901760
      %v250 = vsub.f32 %v248, %v249
      %v251 = vand.u32 %v250, 4294901760
      %252 = vmatmul.mubr.f32.gmra.mrb[0].mxu0 %v251
      %v253 = vpop.f32.mrb[0].mxu0
      %v254 = vadd.f32 0.0, %v253
      %v255 = vpop.f32.mrb[0].mxu0
      %256 = vdwg.mxu0
      %257 = vmatprep.subr.mxu0 0.0
      %v258 = vand.u32 %v164, 4294901760
      %v259 = vsub.f32 %v164, %v258
      %v260 = vand.u32 %v259, 4294901760
      %v261 = vsub.f32 %v259, %v260
      %v262 = vand.u32 %v261, 4294901760
      %263 = vmatpush1.msra.mxu0 %v262
      %264 = vmatprep.subr.mxu0 0.0
      %v265 = vand.u32 %v165, 4294901760
      %v266 = vsub.f32 %v165, %v265
      %v267 = vand.u32 %v266, 4294901760
      %v268 = vsub.f32 %v266, %v267
      %v269 = vand.u32 %v268, 4294901760
      %270 = vmatpush1.msra.mxu0 %v269
      %271 = vmatprep.subr.mxu0 0.0
      %v272 = vand.u32 %v166, 4294901760
      %v273 = vsub.f32 %v166, %v272
      %v274 = vand.u32 %v273, 4294901760
      %v275 = vsub.f32 %v273, %v274
      %v276 = vand.u32 %v275, 4294901760
      %277 = vmatpush1.msra.mxu0 %v276
      %278 = vmatprep.subr.mxu0 0.0
      %v279 = vand.u32 %v167, 4294901760
      %v280 = vsub.f32 %v167, %v279
      %v281 = vand.u32 %v280, 4294901760
      %v282 = vsub.f32 %v280, %v281
      %v283 = vand.u32 %v282, 4294901760
      %284 = vmatpush1.msra.mxu0 %v283
      %285 = vmatprep.subr.mxu0 0.0
      %286 = vmatpush1.msra.mxu0 0.0
      %287 = vmatprep.subr.mxu0 0.0
      %288 = vmatpush1.msra.mxu0 0.0
      %289 = vmatprep.subr.mxu0 0.0
      %290 = vmatpush1.msra.mxu0 0.0
      %291 = vmatprep.subr.mxu0 0.0
      %292 = vmatpush1.msra.mxu0 0.0
      %293 = vmatprep.subr.mxu0 0.0
      %294 = vmatpush1.msra.mxu0 0.0
      %295 = vmatprep.subr.mxu0 0.0
      %296 = vmatpush1.msra.mxu0 0.0
      %297 = vmatprep.subr.mxu0 0.0
      %298 = vmatpush1.msra.mxu0 0.0
      %299 = vmatprep.subr.mxu0 0.0
      %300 = vmatpush1.msra.mxu0 0.0
      %301 = vmatprep.subr.mxu0 0.0
      %302 = vmatpush1.msra.mxu0 0.0
      %303 = vmatprep.subr.mxu0 0.0
      %304 = vmatpush1.msra.mxu0 0.0
      %305 = vmatprep.subr.mxu0 0.0
      %306 = vmatpush1.msra.mxu0 0.0
      %307 = vmatprep.subr.mxu0 0.0
      %308 = vmatpush1.msra.mxu0 0.0
      %309 = vmatprep.subr.mxu0 0.0
      %310 = vmatpush1.msra.mxu0 0.0
      %311 = vmatprep.subr.mxu0 0.0
      %312 = vmatpush1.msra.mxu0 0.0
      %313 = vmatprep.subr.mxu0 0.0
      %314 = vmatpush1.msra.mxu0 0.0
      %315 = vmatprep.subr.mxu0 0.0
      %316 = vmatpush1.msra.mxu0 0.0
      %317 = vmatprep.subr.mxu0 0.0
      %318 = vmatpush1.msra.mxu0 0.0
      %319 = vmatprep.subr.mxu0 0.0
      %320 = vmatpush1.msra.mxu0 0.0
      %321 = vmatprep.subr.mxu0 0.0
      %322 = vmatpush1.msra.mxu0 0.0
      %323 = vmatprep.subr.mxu0 0.0
      %324 = vmatpush1.msra.mxu0 0.0
      %325 = vmatprep.subr.mxu0 0.0
      %326 = vmatpush1.msra.mxu0 0.0
      %327 = vmatprep.subr.mxu0 0.0
      %328 = vmatpush1.msra.mxu0 0.0
      %329 = vmatprep.subr.mxu0 0.0
      %330 = vmatpush1.msra.mxu0 0.0
      %331 = vmatprep.subr.mxu0 0.0
      %332 = vmatpush1.msra.mxu0 0.0
      %333 = vmatprep.subr.mxu0 0.0
      %334 = vmatpush1.msra.mxu0 0.0
      %335 = vmatprep.subr.mxu0 0.0
      %336 = vmatpush1.msra.mxu0 0.0
      %337 = vmatprep.subr.mxu0 0.0
      %338 = vmatpush1.msra.mxu0 0.0
      %339 = vmatprep.subr.mxu0 0.0
      %340 = vmatpush1.msra.mxu0 0.0
      %341 = vmatprep.mubr.f32.mxu0 0.0
      %v342 = vand.u32 %v176, 4294901760
      %343 = vmatmul.mubr.f32.gmra.mrb[0].mxu0 %v342
      %v344 = vpop.f32.mrb[0].mxu0
      %v345 = vadd.f32 %v254, %v344
      %v346 = vpop.f32.mrb[0].mxu0
      %347 = vdwg.mxu0
      %348 = vmatprep.subr.mxu0 0.0
      %v349 = vand.u32 %v164, 4294901760
      %v350 = vsub.f32 %v164, %v349
      %351 = vmatpush1.msra.mxu0 %v350
      %352 = vmatprep.subr.mxu0 0.0
      %v353 = vand.u32 %v165, 4294901760
      %v354 = vsub.f32 %v165, %v353
      %355 = vmatpush1.msra.mxu0 %v354
      %356 = vmatprep.subr.mxu0 0.0
      %v357 = vand.u32 %v166, 4294901760
      %v358 = vsub.f32 %v166, %v357
      %359 = vmatpush1.msra.mxu0 %v358
      %360 = vmatprep.subr.mxu0 0.0
      %v361 = vand.u32 %v167, 4294901760
      %v362 = vsub.f32 %v167, %v361
      %363 = vmatpush1.msra.mxu0 %v362
      %364 = vmatprep.subr.mxu0 0.0
      %365 = vmatpush1.msra.mxu0 0.0
      %366 = vmatprep.subr.mxu0 0.0
      %367 = vmatpush1.msra.mxu0 0.0
      %368 = vmatprep.subr.mxu0 0.0
      %369 = vmatpush1.msra.mxu0 0.0
      %370 = vmatprep.subr.mxu0 0.0
      %371 = vmatpush1.msra.mxu0 0.0
      %372 = vmatprep.subr.mxu0 0.0
      %373 = vmatpush1.msra.mxu0 0.0
      %374 = vmatprep.subr.mxu0 0.0
      %375 = vmatpush1.msra.mxu0 0.0
      %376 = vmatprep.subr.mxu0 0.0
      %377 = vmatpush1.msra.mxu0 0.0
      %378 = vmatprep.subr.mxu0 0.0
      %379 = vmatpush1.msra.mxu0 0.0
      %380 = vmatprep.subr.mxu0 0.0
      %381 = vmatpush1.msra.mxu0 0.0
      %382 = vmatprep.subr.mxu0 0.0
      %383 = vmatpush1.msra.mxu0 0.0
      %384 = vmatprep.subr.mxu0 0.0
      %385 = vmatpush1.msra.mxu0 0.0
      %386 = vmatprep.subr.mxu0 0.0
      %387 = vmatpush1.msra.mxu0 0.0
      %388 = vmatprep.subr.mxu0 0.0
      %389 = vmatpush1.msra.mxu0 0.0
      %390 = vmatprep.subr.mxu0 0.0
      %391 = vmatpush1.msra.mxu0 0.0
      %392 = vmatprep.subr.mxu0 0.0
      %393 = vmatpush1.msra.mxu0 0.0
      %394 = vmatprep.subr.mxu0 0.0
      %395 = vmatpush1.msra.mxu0 0.0
      %396 = vmatprep.subr.mxu0 0.0
      %397 = vmatpush1.msra.mxu0 0.0
      %398 = vmatprep.subr.mxu0 0.0
      %399 = vmatpush1.msra.mxu0 0.0
      %400 = vmatprep.subr.mxu0 0.0
      %401 = vmatpush1.msra.mxu0 0.0
      %402 = vmatprep.subr.mxu0 0.0
      %403 = vmatpush1.msra.mxu0 0.0
      %404 = vmatprep.subr.mxu0 0.0
      %405 = vmatpush1.msra.mxu0 0.0
      %406 = vmatprep.subr.mxu0 0.0
      %407 = vmatpush1.msra.mxu0 0.0
      %408 = vmatprep.subr.mxu0 0.0
      %409 = vmatpush1.msra.mxu0 0.0
      %410 = vmatprep.subr.mxu0 0.0
      %411 = vmatpush1.msra.mxu0 0.0
      %412 = vmatprep.subr.mxu0 0.0
      %413 = vmatpush1.msra.mxu0 0.0
      %414 = vmatprep.subr.mxu0 0.0
      %415 = vmatpush1.msra.mxu0 0.0
      %416 = vmatprep.subr.mxu0 0.0
      %417 = vmatpush1.msra.mxu0 0.0
      %418 = vmatprep.subr.mxu0 0.0
      %419 = vmatpush1.msra.mxu0 0.0
      %420 = vmatprep.mubr.f32.mxu0 0.0
      %v421 = vand.u32 %v176, 4294901760
      %v422 = vsub.f32 %v176, %v421
      %423 = vmatmul.mubr.f32.gmra.mrb[0].mxu0 %v422
      %v424 = vpop.f32.mrb[0].mxu0
      %v425 = vadd.f32 %v345, %v424
      %v426 = vpop.f32.mrb[0].mxu0
      %427 = vdwg.mxu0
      %428 = vmatprep.subr.mxu0 0.0
      %v429 = vand.u32 %v164, 4294901760
      %430 = vmatpush1.msra.mxu0 %v429
      %431 = vmatprep.subr.mxu0 0.0
      %v432 = vand.u32 %v165, 4294901760
      %433 = vmatpush1.msra.mxu0 %v432
      %434 = vmatprep.subr.mxu0 0.0
      %v435 = vand.u32 %v166, 4294901760
      %436 = vmatpush1.msra.mxu0 %v435
      %437 = vmatprep.subr.mxu0 0.0
      %v438 = vand.u32 %v167, 4294901760
      %439 = vmatpush1.msra.mxu0 %v438
      %440 = vmatprep.subr.mxu0 0.0
      %441 = vmatpush1.msra.mxu0 0.0
      %442 = vmatprep.subr.mxu0 0.0
      %443 = vmatpush1.msra.mxu0 0.0
      %444 = vmatprep.subr.mxu0 0.0
      %445 = vmatpush1.msra.mxu0 0.0
      %446 = vmatprep.subr.mxu0 0.0
      %447 = vmatpush1.msra.mxu0 0.0
      %448 = vmatprep.subr.mxu0 0.0
      %449 = vmatpush1.msra.mxu0 0.0
      %450 = vmatprep.subr.mxu0 0.0
      %451 = vmatpush1.msra.mxu0 0.0
      %452 = vmatprep.subr.mxu0 0.0
      %453 = vmatpush1.msra.mxu0 0.0
      %454 = vmatprep.subr.mxu0 0.0
      %455 = vmatpush1.msra.mxu0 0.0
      %456 = vmatprep.subr.mxu0 0.0
      %457 = vmatpush1.msra.mxu0 0.0
      %458 = vmatprep.subr.mxu0 0.0
      %459 = vmatpush1.msra.mxu0 0.0
      %460 = vmatprep.subr.mxu0 0.0
      %461 = vmatpush1.msra.mxu0 0.0
      %462 = vmatprep.subr.mxu0 0.0
      %463 = vmatpush1.msra.mxu0 0.0
      %464 = vmatprep.subr.mxu0 0.0
      %465 = vmatpush1.msra.mxu0 0.0
      %466 = vmatprep.subr.mxu0 0.0
      %467 = vmatpush1.msra.mxu0 0.0
      %468 = vmatprep.subr.mxu0 0.0
      %469 = vmatpush1.msra.mxu0 0.0
      %470 = vmatprep.subr.mxu0 0.0
      %471 = vmatpush1.msra.mxu0 0.0
      %472 = vmatprep.subr.mxu0 0.0
      %473 = vmatpush1.msra.mxu0 0.0
      %474 = vmatprep.subr.mxu0 0.0
      %475 = vmatpush1.msra.mxu0 0.0
      %476 = vmatprep.subr.mxu0 0.0
      %477 = vmatpush1.msra.mxu0 0.0
      %478 = vmatprep.subr.mxu0 0.0
      %479 = vmatpush1.msra.mxu0 0.0
      %480 = vmatprep.subr.mxu0 0.0
      %481 = vmatpush1.msra.mxu0 0.0
      %482 = vmatprep.subr.mxu0 0.0
      %483 = vmatpush1.msra.mxu0 0.0
      %484 = vmatprep.subr.mxu0 0.0
      %485 = vmatpush1.msra.mxu0 0.0
      %486 = vmatprep.subr.mxu0 0.0
      %487 = vmatpush1.msra.mxu0 0.0
      %488 = vmatprep.subr.mxu0 0.0
      %489 = vmatpush1.msra.mxu0 0.0
      %490 = vmatprep.subr.mxu0 0.0
      %491 = vmatpush1.msra.mxu0 0.0
      %492 = vmatprep.subr.mxu0 0.0
      %493 = vmatpush1.msra.mxu0 0.0
      %494 = vmatprep.subr.mxu0 0.0
      %495 = vmatpush1.msra.mxu0 0.0
      %496 = vmatprep.mubr.f32.mxu0 0.0
      %v497 = vand.u32 %v176, 4294901760
      %v498 = vsub.f32 %v176, %v497
      %v499 = vand.u32 %v498, 4294901760
      %500 = vmatmul.mubr.f32.gmra.mrb[0].mxu0 %v499
      %v501 = vpop.f32.mrb[0].mxu0
      %v502 = vadd.f32 %v425, %v501
      %v503 = vpop.f32.mrb[0].mxu0
      %504 = vdwg.mxu0
      %505 = vmatprep.subr.mxu0 0.0
      %v506 = vand.u32 %v164, 4294901760
      %v507 = vsub.f32 %v164, %v506
      %v508 = vand.u32 %v507, 4294901760
      %509 = vmatpush1.msra.mxu0 %v508
      %510 = vmatprep.subr.mxu0 0.0
      %v511 = vand.u32 %v165, 4294901760
      %v512 = vsub.f32 %v165, %v511
      %v513 = vand.u32 %v512, 4294901760
      %514 = vmatpush1.msra.mxu0 %v513
      %515 = vmatprep.subr.mxu0 0.0
      %v516 = vand.u32 %v166, 4294901760
      %v517 = vsub.f32 %v166, %v516
      %v518 = vand.u32 %v517, 4294901760
      %519 = vmatpush1.msra.mxu0 %v518
      %520 = vmatprep.subr.mxu0 0.0
      %v521 = vand.u32 %v167, 4294901760
      %v522 = vsub.f32 %v167, %v521
      %v523 = vand.u32 %v522, 4294901760
      %524 = vmatpush1.msra.mxu0 %v523
      %525 = vmatprep.subr.mxu0 0.0
      %526 = vmatpush1.msra.mxu0 0.0
      %527 = vmatprep.subr.mxu0 0.0
      %528 = vmatpush1.msra.mxu0 0.0
      %529 = vmatprep.subr.mxu0 0.0
      %530 = vmatpush1.msra.mxu0 0.0
      %531 = vmatprep.subr.mxu0 0.0
      %532 = vmatpush1.msra.mxu0 0.0
      %533 = vmatprep.subr.mxu0 0.0
      %534 = vmatpush1.msra.mxu0 0.0
      %535 = vmatprep.subr.mxu0 0.0
      %536 = vmatpush1.msra.mxu0 0.0
      %537 = vmatprep.subr.mxu0 0.0
      %538 = vmatpush1.msra.mxu0 0.0
      %539 = vmatprep.subr.mxu0 0.0
      %540 = vmatpush1.msra.mxu0 0.0
      %541 = vmatprep.subr.mxu0 0.0
      %542 = vmatpush1.msra.mxu0 0.0
      %543 = vmatprep.subr.mxu0 0.0
      %544 = vmatpush1.msra.mxu0 0.0
      %545 = vmatprep.subr.mxu0 0.0
      %546 = vmatpush1.msra.mxu0 0.0
      %547 = vmatprep.subr.mxu0 0.0
      %548 = vmatpush1.msra.mxu0 0.0
      %549 = vmatprep.subr.mxu0 0.0
      %550 = vmatpush1.msra.mxu0 0.0
      %551 = vmatprep.subr.mxu0 0.0
      %552 = vmatpush1.msra.mxu0 0.0
      %553 = vmatprep.subr.mxu0 0.0
      %554 = vmatpush1.msra.mxu0 0.0
      %555 = vmatprep.subr.mxu0 0.0
      %556 = vmatpush1.msra.mxu0 0.0
      %557 = vmatprep.subr.mxu0 0.0
      %558 = vmatpush1.msra.mxu0 0.0
      %559 = vmatprep.subr.mxu0 0.0
      %560 = vmatpush1.msra.mxu0 0.0
      %561 = vmatprep.subr.mxu0 0.0
      %562 = vmatpush1.msra.mxu0 0.0
      %563 = vmatprep.subr.mxu0 0.0
      %564 = vmatpush1.msra.mxu0 0.0
      %565 = vmatprep.subr.mxu0 0.0
      %566 = vmatpush1.msra.mxu0 0.0
      %567 = vmatprep.subr.mxu0 0.0
      %568 = vmatpush1.msra.mxu0 0.0
      %569 = vmatprep.subr.mxu0 0.0
      %570 = vmatpush1.msra.mxu0 0.0
      %571 = vmatprep.subr.mxu0 0.0
      %572 = vmatpush1.msra.mxu0 0.0
      %573 = vmatprep.subr.mxu0 0.0
      %574 = vmatpush1.msra.mxu0 0.0
      %575 = vmatprep.subr.mxu0 0.0
      %576 = vmatpush1.msra.mxu0 0.0
      %577 = vmatprep.subr.mxu0 0.0
      %578 = vmatpush1.msra.mxu0 0.0
      %579 = vmatprep.subr.mxu0 0.0
      %580 = vmatpush1.msra.mxu0 0.0
      %581 = vmatprep.mubr.f32.mxu0 0.0
      %v582 = vand.u32 %v176, 4294901760
      %583 = vmatmul.mubr.f32.gmra.mrb[0].mxu0 %v582
      %v584 = vpop.f32.mrb[0].mxu0
      %v585 = vadd.f32 %v502, %v584
      %v586 = vpop.f32.mrb[0].mxu0
      %587 = vdwg.mxu0
      %588 = vmatprep.subr.mxu0 0.0
      %v589 = vand.u32 %v164, 4294901760
      %590 = vmatpush1.msra.mxu0 %v589
      %591 = vmatprep.subr.mxu0 0.0
      %v592 = vand.u32 %v165, 4294901760
      %593 = vmatpush1.msra.mxu0 %v592
      %594 = vmatprep.subr.mxu0 0.0
      %v595 = vand.u32 %v166, 4294901760
      %596 = vmatpush1.msra.mxu0 %v595
      %597 = vmatprep.subr.mxu0 0.0
      %v598 = vand.u32 %v167, 4294901760
      %599 = vmatpush1.msra.mxu0 %v598
      %600 = vmatprep.subr.mxu0 0.0
      %601 = vmatpush1.msra.mxu0 0.0
      %602 = vmatprep.subr.mxu0 0.0
      %603 = vmatpush1.msra.mxu0 0.0
      %604 = vmatprep.subr.mxu0 0.0
      %605 = vmatpush1.msra.mxu0 0.0
      %606 = vmatprep.subr.mxu0 0.0
      %607 = vmatpush1.msra.mxu0 0.0
      %608 = vmatprep.subr.mxu0 0.0
      %609 = vmatpush1.msra.mxu0 0.0
      %610 = vmatprep.subr.mxu0 0.0
      %611 = vmatpush1.msra.mxu0 0.0
      %612 = vmatprep.subr.mxu0 0.0
      %613 = vmatpush1.msra.mxu0 0.0
      %614 = vmatprep.subr.mxu0 0.0
      %615 = vmatpush1.msra.mxu0 0.0
      %616 = vmatprep.subr.mxu0 0.0
      %617 = vmatpush1.msra.mxu0 0.0
      %618 = vmatprep.subr.mxu0 0.0
      %619 = vmatpush1.msra.mxu0 0.0
      %620 = vmatprep.subr.mxu0 0.0
      %621 = vmatpush1.msra.mxu0 0.0
      %622 = vmatprep.subr.mxu0 0.0
      %623 = vmatpush1.msra.mxu0 0.0
      %624 = vmatprep.subr.mxu0 0.0
      %625 = vmatpush1.msra.mxu0 0.0
      %626 = vmatprep.subr.mxu0 0.0
      %627 = vmatpush1.msra.mxu0 0.0
      %628 = vmatprep.subr.mxu0 0.0
      %629 = vmatpush1.msra.mxu0 0.0
      %630 = vmatprep.subr.mxu0 0.0
      %631 = vmatpush1.msra.mxu0 0.0
      %632 = vmatprep.subr.mxu0 0.0
      %633 = vmatpush1.msra.mxu0 0.0
      %634 = vmatprep.subr.mxu0 0.0
      %635 = vmatpush1.msra.mxu0 0.0
      %636 = vmatprep.subr.mxu0 0.0
      %637 = vmatpush1.msra.mxu0 0.0
      %638 = vmatprep.subr.mxu0 0.0
      %639 = vmatpush1.msra.mxu0 0.0
      %640 = vmatprep.subr.mxu0 0.0
      %641 = vmatpush1.msra.mxu0 0.0
      %642 = vmatprep.subr.mxu0 0.0
      %643 = vmatpush1.msra.mxu0 0.0
      %644 = vmatprep.subr.mxu0 0.0
      %645 = vmatpush1.msra.mxu0 0.0
      %646 = vmatprep.subr.mxu0 0.0
      %647 = vmatpush1.msra.mxu0 0.0
      %648 = vmatprep.subr.mxu0 0.0
      %649 = vmatpush1.msra.mxu0 0.0
      %650 = vmatprep.subr.mxu0 0.0
      %651 = vmatpush1.msra.mxu0 0.0
      %652 = vmatprep.subr.mxu0 0.0
      %653 = vmatpush1.msra.mxu0 0.0
      %654 = vmatprep.subr.mxu0 0.0
      %655 = vmatpush1.msra.mxu0 0.0
      %656 = vmatprep.mubr.f32.mxu0 0.0
      %v657 = vand.u32 %v176, 4294901760
      %658 = vmatmul.mubr.f32.gmra.mrb[0].mxu0 %v657
      %v659 = vpop.f32.mrb[0].mxu0
      %v660 = vadd.f32 %v585, %v659
      %v661 = vpop.f32.mrb[0].mxu0
      %662 = vdwg.mxu0
      %v663 = vadd.f32 %v173, %v660
      %v664 = vtanh.pop %v663
      %v665 = vxor.u32 %v663, 2147483648
      %v666 = vmul.f32 %v665, 1.442695
      %v667 = vpow.pop %v666
      %v668 = vadd.f32 %v667, 1.0
      %v669 = vrcp.pop %v668
      %v670 = vmul.f32 1.0, %v669
      %v671 = vsel %vm172, %v664, %v670
      %v672 = vmul.f32 %v671, 0.0
      %674 = vrot.lane.b32.xlu0 %v671, 64
      %v675 = vpop.permute.xlu0 %674
      %v677 = vmul.f32 %v671, %v675
      %679 = vrot.lane.b32.xlu0 %v677, 32
      %v680 = vpop.permute.xlu0 %679
      %v682 = vadd.f32 %v672, %v680
      %v683 = vtanh.pop %v682
      %685 = vrot.lane.b32.xlu0 %v683, 64
      %v686 = vpop.permute.xlu0 %685
      %v688 = vmul.f32 %v671, %v686
      %690 = vrot.lane.b32.xlu0 %v688, 32
      %v691 = vpop.permute.xlu0 %690
      %vm693 = vcmask 254976
      %694 = vst.msk [vmem:[%s163] sm:$0x3] %vm693, %v691
      %s695 = scalar_lea.vmem %s153, 2
      %v696 = vld [vmem:[%s695] sm:$0x3]
      %v697 = vsel %vm174, %v691, 0
      %699 = vmatprep.subr.mxu0 0.0
      %v700 = vand.u32 %v164, 4294901760
      %701 = vmatpush1.msra.mxu0 %v700
      %702 = vmatprep.subr.mxu0 0.0
      %v703 = vand.u32 %v165, 4294901760
      %704 = vmatpush1.msra.mxu0 %v703
      %705 = vmatprep.subr.mxu0 0.0
      %v706 = vand.u32 %v166, 4294901760
      %707 = vmatpush1.msra.mxu0 %v706
      %708 = vmatprep.subr.mxu0 0.0
      %v709 = vand.u32 %v167, 4294901760
      %710 = vmatpush1.msra.mxu0 %v709
      %711 = vmatprep.subr.mxu0 0.0
      %712 = vmatpush1.msra.mxu0 0.0
      %713 = vmatprep.subr.mxu0 0.0
      %714 = vmatpush1.msra.mxu0 0.0
      %715 = vmatprep.subr.mxu0 0.0
      %716 = vmatpush1.msra.mxu0 0.0
      %717 = vmatprep.subr.mxu0 0.0
      %718 = vmatpush1.msra.mxu0 0.0
      %719 = vmatprep.subr.mxu0 0.0
      %720 = vmatpush1.msra.mxu0 0.0
      %721 = vmatprep.subr.mxu0 0.0
      %722 = vmatpush1.msra.mxu0 0.0
      %723 = vmatprep.subr.mxu0 0.0
      %724 = vmatpush1.msra.mxu0 0.0
      %725 = vmatprep.subr.mxu0 0.0
      %726 = vmatpush1.msra.mxu0 0.0
      %727 = vmatprep.subr.mxu0 0.0
      %728 = vmatpush1.msra.mxu0 0.0
      %729 = vmatprep.subr.mxu0 0.0
      %730 = vmatpush1.msra.mxu0 0.0
      %731 = vmatprep.subr.mxu0 0.0
      %732 = vmatpush1.msra.mxu0 0.0
      %733 = vmatprep.subr.mxu0 0.0
      %734 = vmatpush1.msra.mxu0 0.0
      %735 = vmatprep.subr.mxu0 0.0
      %736 = vmatpush1.msra.mxu0 0.0
      %737 = vmatprep.subr.mxu0 0.0
      %738 = vmatpush1.msra.mxu0 0.0
      %739 = vmatprep.subr.mxu0 0.0
      %740 = vmatpush1.msra.mxu0 0.0
      %741 = vmatprep.subr.mxu0 0.0
      %742 = vmatpush1.msra.mxu0 0.0
      %743 = vmatprep.subr.mxu0 0.0
      %744 = vmatpush1.msra.mxu0 0.0
      %745 = vmatprep.subr.mxu0 0.0
      %746 = vmatpush1.msra.mxu0 0.0
      %747 = vmatprep.subr.mxu0 0.0
      %748 = vmatpush1.msra.mxu0 0.0
      %749 = vmatprep.subr.mxu0 0.0
      %750 = vmatpush1.msra.mxu0 0.0
      %751 = vmatprep.subr.mxu0 0.0
      %752 = vmatpush1.msra.mxu0 0.0
      %753 = vmatprep.subr.mxu0 0.0
      %754 = vmatpush1.msra.mxu0 0.0
      %755 = vmatprep.subr.mxu0 0.0
      %756 = vmatpush1.msra.mxu0 0.0
      %757 = vmatprep.subr.mxu0 0.0
      %758 = vmatpush1.msra.mxu0 0.0
      %759 = vmatprep.subr.mxu0 0.0
      %760 = vmatpush1.msra.mxu0 0.0
      %761 = vmatprep.subr.mxu0 0.0
      %762 = vmatpush1.msra.mxu0 0.0
      %763 = vmatprep.subr.mxu0 0.0
      %764 = vmatpush1.msra.mxu0 0.0
      %765 = vmatprep.subr.mxu0 0.0
      %766 = vmatpush1.msra.mxu0 0.0
      %767 = vmatprep.mubr.f32.mxu0 0.0
      %v768 = vand.u32 %v697, 4294901760
      %v769 = vsub.f32 %v697, %v768
      %v770 = vand.u32 %v769, 4294901760
      %v771 = vsub.f32 %v769, %v770
      %v772 = vand.u32 %v771, 4294901760
      %773 = vmatmul.mubr.f32.gmra.mrb[0].mxu0 %v772
      %v774 = vpop.f32.mrb[0].mxu0
      %v775 = vadd.f32 0.0, %v774
      %v776 = vpop.f32.mrb[0].mxu0
      %777 = vdwg.mxu0
      %778 = vmatprep.subr.mxu0 0.0
      %v779 = vand.u32 %v164, 4294901760
      %v780 = vsub.f32 %v164, %v779
      %v781 = vand.u32 %v780, 4294901760
      %v782 = vsub.f32 %v780, %v781
      %v783 = vand.u32 %v782, 4294901760
      %784 = vmatpush1.msra.mxu0 %v783
      %785 = vmatprep.subr.mxu0 0.0
      %v786 = vand.u32 %v165, 4294901760
      %v787 = vsub.f32 %v165, %v786
      %v788 = vand.u32 %v787, 4294901760
      %v789 = vsub.f32 %v787, %v788
      %v790 = vand.u32 %v789, 4294901760
      %791 = vmatpush1.msra.mxu0 %v790
      %792 = vmatprep.subr.mxu0 0.0
      %v793 = vand.u32 %v166, 4294901760
      %v794 = vsub.f32 %v166, %v793
      %v795 = vand.u32 %v794, 4294901760
      %v796 = vsub.f32 %v794, %v795
      %v797 = vand.u32 %v796, 4294901760
      %798 = vmatpush1.msra.mxu0 %v797
      %799 = vmatprep.subr.mxu0 0.0
      %v800 = vand.u32 %v167, 4294901760
      %v801 = vsub.f32 %v167, %v800
      %v802 = vand.u32 %v801, 4294901760
      %v803 = vsub.f32 %v801, %v802
      %v804 = vand.u32 %v803, 4294901760
      %805 = vmatpush1.msra.mxu0 %v804
      %806 = vmatprep.subr.mxu0 0.0
      %807 = vmatpush1.msra.mxu0 0.0
      %808 = vmatprep.subr.mxu0 0.0
      %809 = vmatpush1.msra.mxu0 0.0
      %810 = vmatprep.subr.mxu0 0.0
      %811 = vmatpush1.msra.mxu0 0.0
      %812 = vmatprep.subr.mxu0 0.0
      %813 = vmatpush1.msra.mxu0 0.0
      %814 = vmatprep.subr.mxu0 0.0
      %815 = vmatpush1.msra.mxu0 0.0
      %816 = vmatprep.subr.mxu0 0.0
      %817 = vmatpush1.msra.mxu0 0.0
      %818 = vmatprep.subr.mxu0 0.0
      %819 = vmatpush1.msra.mxu0 0.0
      %820 = vmatprep.subr.mxu0 0.0
      %821 = vmatpush1.msra.mxu0 0.0
      %822 = vmatprep.subr.mxu0 0.0
      %823 = vmatpush1.msra.mxu0 0.0
      %824 = vmatprep.subr.mxu0 0.0
      %825 = vmatpush1.msra.mxu0 0.0
      %826 = vmatprep.subr.mxu0 0.0
      %827 = vmatpush1.msra.mxu0 0.0
      %828 = vmatprep.subr.mxu0 0.0
      %829 = vmatpush1.msra.mxu0 0.0
      %830 = vmatprep.subr.mxu0 0.0
      %831 = vmatpush1.msra.mxu0 0.0
      %832 = vmatprep.subr.mxu0 0.0
      %833 = vmatpush1.msra.mxu0 0.0
      %834 = vmatprep.subr.mxu0 0.0
      %835 = vmatpush1.msra.mxu0 0.0
      %836 = vmatprep.subr.mxu0 0.0
      %837 = vmatpush1.msra.mxu0 0.0
      %838 = vmatprep.subr.mxu0 0.0
      %839 = vmatpush1.msra.mxu0 0.0
      %840 = vmatprep.subr.mxu0 0.0
      %841 = vmatpush1.msra.mxu0 0.0
      %842 = vmatprep.subr.mxu0 0.0
      %843 = vmatpush1.msra.mxu0 0.0
      %844 = vmatprep.subr.mxu0 0.0
      %845 = vmatpush1.msra.mxu0 0.0
      %846 = vmatprep.subr.mxu0 0.0
      %847 = vmatpush1.msra.mxu0 0.0
      %848 = vmatprep.subr.mxu0 0.0
      %849 = vmatpush1.msra.mxu0 0.0
      %850 = vmatprep.subr.mxu0 0.0
      %851 = vmatpush1.msra.mxu0 0.0
      %852 = vmatprep.subr.mxu0 0.0
      %853 = vmatpush1.msra.mxu0 0.0
      %854 = vmatprep.subr.mxu0 0.0
      %855 = vmatpush1.msra.mxu0 0.0
      %856 = vmatprep.subr.mxu0 0.0
      %857 = vmatpush1.msra.mxu0 0.0
      %858 = vmatprep.subr.mxu0 0.0
      %859 = vmatpush1.msra.mxu0 0.0
      %860 = vmatprep.subr.mxu0 0.0
      %861 = vmatpush1.msra.mxu0 0.0
      %862 = vmatprep.mubr.f32.mxu0 0.0
      %v863 = vand.u32 %v697, 4294901760
      %864 = vmatmul.mubr.f32.gmra.mrb[0].mxu0 %v863
      %v865 = vpop.f32.mrb[0].mxu0
      %v866 = vadd.f32 %v775, %v865
      %v867 = vpop.f32.mrb[0].mxu0
      %868 = vdwg.mxu0
      %869 = vmatprep.subr.mxu0 0.0
      %v870 = vand.u32 %v164, 4294901760
      %v871 = vsub.f32 %v164, %v870
      %872 = vmatpush1.msra.mxu0 %v871
      %873 = vmatprep.subr.mxu0 0.0
      %v874 = vand.u32 %v165, 4294901760
      %v875 = vsub.f32 %v165, %v874
      %876 = vmatpush1.msra.mxu0 %v875
      %877 = vmatprep.subr.mxu0 0.0
      %v878 = vand.u32 %v166, 4294901760
      %v879 = vsub.f32 %v166, %v878
      %880 = vmatpush1.msra.mxu0 %v879
      %881 = vmatprep.subr.mxu0 0.0
      %v882 = vand.u32 %v167, 4294901760
      %v883 = vsub.f32 %v167, %v882
      %884 = vmatpush1.msra.mxu0 %v883
      %885 = vmatprep.subr.mxu0 0.0
      %886 = vmatpush1.msra.mxu0 0.0
      %887 = vmatprep.subr.mxu0 0.0
      %888 = vmatpush1.msra.mxu0 0.0
      %889 = vmatprep.subr.mxu0 0.0
      %890 = vmatpush1.msra.mxu0 0.0
      %891 = vmatprep.subr.mxu0 0.0
      %892 = vmatpush1.msra.mxu0 0.0
      %893 = vmatprep.subr.mxu0 0.0
      %894 = vmatpush1.msra.mxu0 0.0
      %895 = vmatprep.subr.mxu0 0.0
      %896 = vmatpush1.msra.mxu0 0.0
      %897 = vmatprep.subr.mxu0 0.0
      %898 = vmatpush1.msra.mxu0 0.0
      %899 = vmatprep.subr.mxu0 0.0
      %900 = vmatpush1.msra.mxu0 0.0
      %901 = vmatprep.subr.mxu0 0.0
      %902 = vmatpush1.msra.mxu0 0.0
      %903 = vmatprep.subr.mxu0 0.0
      %904 = vmatpush1.msra.mxu0 0.0
      %905 = vmatprep.subr.mxu0 0.0
      %906 = vmatpush1.msra.mxu0 0.0
      %907 = vmatprep.subr.mxu0 0.0
      %908 = vmatpush1.msra.mxu0 0.0
      %909 = vmatprep.subr.mxu0 0.0
      %910 = vmatpush1.msra.mxu0 0.0
      %911 = vmatprep.subr.mxu0 0.0
      %912 = vmatpush1.msra.mxu0 0.0
      %913 = vmatprep.subr.mxu0 0.0
      %914 = vmatpush1.msra.mxu0 0.0
      %915 = vmatprep.subr.mxu0 0.0
      %916 = vmatpush1.msra.mxu0 0.0
      %917 = vmatprep.subr.mxu0 0.0
      %918 = vmatpush1.msra.mxu0 0.0
      %919 = vmatprep.subr.mxu0 0.0
      %920 = vmatpush1.msra.mxu0 0.0
      %921 = vmatprep.subr.mxu0 0.0
      %922 = vmatpush1.msra.mxu0 0.0
      %923 = vmatprep.subr.mxu0 0.0
      %924 = vmatpush1.msra.mxu0 0.0
      %925 = vmatprep.subr.mxu0 0.0
      %926 = vmatpush1.msra.mxu0 0.0
      %927 = vmatprep.subr.mxu0 0.0
      %928 = vmatpush1.msra.mxu0 0.0
      %929 = vmatprep.subr.mxu0 0.0
      %930 = vmatpush1.msra.mxu0 0.0
      %931 = vmatprep.subr.mxu0 0.0
      %932 = vmatpush1.msra.mxu0 0.0
      %933 = vmatprep.subr.mxu0 0.0
      %934 = vmatpush1.msra.mxu0 0.0
      %935 = vmatprep.subr.mxu0 0.0
      %936 = vmatpush1.msra.mxu0 0.0
      %937 = vmatprep.subr.mxu0 0.0
      %938 = vmatpush1.msra.mxu0 0.0
      %939 = vmatprep.subr.mxu0 0.0
      %940 = vmatpush1.msra.mxu0 0.0
      %941 = vmatprep.mubr.f32.mxu0 0.0
      %v942 = vand.u32 %v697, 4294901760
      %v943 = vsub.f32 %v697, %v942
      %944 = vmatmul.mubr.f32.gmra.mrb[0].mxu0 %v943
      %v945 = vpop.f32.mrb[0].mxu0
      %v946 = vadd.f32 %v866, %v945
      %v947 = vpop.f32.mrb[0].mxu0
      %948 = vdwg.mxu0
      %949 = vmatprep.subr.mxu0 0.0
      %v950 = vand.u32 %v164, 4294901760
      %951 = vmatpush1.msra.mxu0 %v950
      %952 = vmatprep.subr.mxu0 0.0
      %v953 = vand.u32 %v165, 4294901760
      %954 = vmatpush1.msra.mxu0 %v953
      %955 = vmatprep.subr.mxu0 0.0
      %v956 = vand.u32 %v166, 4294901760
      %957 = vmatpush1.msra.mxu0 %v956
      %958 = vmatprep.subr.mxu0 0.0
      %v959 = vand.u32 %v167, 4294901760
      %960 = vmatpush1.msra.mxu0 %v959
      %961 = vmatprep.subr.mxu0 0.0
      %962 = vmatpush1.msra.mxu0 0.0
      %963 = vmatprep.subr.mxu0 0.0
      %964 = vmatpush1.msra.mxu0 0.0
      %965 = vmatprep.subr.mxu0 0.0
      %966 = vmatpush1.msra.mxu0 0.0
      %967 = vmatprep.subr.mxu0 0.0
      %968 = vmatpush1.msra.mxu0 0.0
      %969 = vmatprep.subr.mxu0 0.0
      %970 = vmatpush1.msra.mxu0 0.0
      %971 = vmatprep.subr.mxu0 0.0
      %972 = vmatpush1.msra.mxu0 0.0
      %973 = vmatprep.subr.mxu0 0.0
      %974 = vmatpush1.msra.mxu0 0.0
      %975 = vmatprep.subr.mxu0 0.0
      %976 = vmatpush1.msra.mxu0 0.0
      %977 = vmatprep.subr.mxu0 0.0
      %978 = vmatpush1.msra.mxu0 0.0
      %979 = vmatprep.subr.mxu0 0.0
      %980 = vmatpush1.msra.mxu0 0.0
      %981 = vmatprep.subr.mxu0 0.0
      %982 = vmatpush1.msra.mxu0 0.0
      %983 = vmatprep.subr.mxu0 0.0
      %984 = vmatpush1.msra.mxu0 0.0
      %985 = vmatprep.subr.mxu0 0.0
      %986 = vmatpush1.msra.mxu0 0.0
      %987 = vmatprep.subr.mxu0 0.0
      %988 = vmatpush1.msra.mxu0 0.0
      %989 = vmatprep.subr.mxu0 0.0
      %990 = vmatpush1.msra.mxu0 0.0
      %991 = vmatprep.subr.mxu0 0.0
      %992 = vmatpush1.msra.mxu0 0.0
      %993 = vmatprep.subr.mxu0 0.0
      %994 = vmatpush1.msra.mxu0 0.0
      %995 = vmatprep.subr.mxu0 0.0
      %996 = vmatpush1.msra.mxu0 0.0
      %997 = vmatprep.subr.mxu0 0.0
      %998 = vmatpush1.msra.mxu0 0.0
      %999 = vmatprep.subr.mxu0 0.0
      %1000 = vmatpush1.msra.mxu0 0.0
      %1001 = vmatprep.subr.mxu0 0.0
      %1002 = vmatpush1.msra.mxu0 0.0
      %1003 = vmatprep.subr.mxu0 0.0
      %1004 = vmatpush1.msra.mxu0 0.0
      %1005 = vmatprep.subr.mxu0 0.0
      %1006 = vmatpush1.msra.mxu0 0.0
      %1007 = vmatprep.subr.mxu0 0.0
      %1008 = vmatpush1.msra.mxu0 0.0
      %1009 = vmatprep.subr.mxu0 0.0
      %1010 = vmatpush1.msra.mxu0 0.0
      %1011 = vmatprep.subr.mxu0 0.0
      %1012 = vmatpush1.msra.mxu0 0.0
      %1013 = vmatprep.subr.mxu0 0.0
      %1014 = vmatpush1.msra.mxu0 0.0
      %1015 = vmatprep.subr.mxu0 0.0
      %1016 = vmatpush1.msra.mxu0 0.0
      %1017 = vmatprep.mubr.f32.mxu0 0.0
      %v1018 = vand.u32 %v697, 4294901760
      %v1019 = vsub.f32 %v697, %v1018
      %v1020 = vand.u32 %v1019, 4294901760
      %1021 = vmatmul.mubr.f32.gmra.mrb[0].mxu0 %v1020
      %v1022 = vpop.f32.mrb[0].mxu0
      %v1023 = vadd.f32 %v946, %v1022
      %v1024 = vpop.f32.mrb[0].mxu0
      %1025 = vdwg.mxu0
      %1026 = vmatprep.subr.mxu0 0.0
      %v1027 = vand.u32 %v164, 4294901760
      %v1028 = vsub.f32 %v164, %v1027
      %v1029 = vand.u32 %v1028, 4294901760
      %1030 = vmatpush1.msra.mxu0 %v1029
      %1031 = vmatprep.subr.mxu0 0.0
      %v1032 = vand.u32 %v165, 4294901760
      %v1033 = vsub.f32 %v165, %v1032
      %v1034 = vand.u32 %v1033, 4294901760
      %1035 = vmatpush1.msra.mxu0 %v1034
      %1036 = vmatprep.subr.mxu0 0.0
      %v1037 = vand.u32 %v166, 4294901760
      %v1038 = vsub.f32 %v166, %v1037
      %v1039 = vand.u32 %v1038, 4294901760
      %1040 = vmatpush1.msra.mxu0 %v1039
      %1041 = vmatprep.subr.mxu0 0.0
      %v1042 = vand.u32 %v167, 4294901760
      %v1043 = vsub.f32 %v167, %v1042
      %v1044 = vand.u32 %v1043, 4294901760
      %1045 = vmatpush1.msra.mxu0 %v1044
      %1046 = vmatprep.subr.mxu0 0.0
      %1047 = vmatpush1.msra.mxu0 0.0
      %1048 = vmatprep.subr.mxu0 0.0
      %1049 = vmatpush1.msra.mxu0 0.0
      %1050 = vmatprep.subr.mxu0 0.0
      %1051 = vmatpush1.msra.mxu0 0.0
      %1052 = vmatprep.subr.mxu0 0.0
      %1053 = vmatpush1.msra.mxu0 0.0
      %1054 = vmatprep.subr.mxu0 0.0
      %1055 = vmatpush1.msra.mxu0 0.0
      %1056 = vmatprep.subr.mxu0 0.0
      %1057 = vmatpush1.msra.mxu0 0.0
      %1058 = vmatprep.subr.mxu0 0.0
      %1059 = vmatpush1.msra.mxu0 0.0
      %1060 = vmatprep.subr.mxu0 0.0
      %1061 = vmatpush1.msra.mxu0 0.0
      %1062 = vmatprep.subr.mxu0 0.0
      %1063 = vmatpush1.msra.mxu0 0.0
      %1064 = vmatprep.subr.mxu0 0.0
      %1065 = vmatpush1.msra.mxu0 0.0
      %1066 = vmatprep.subr.mxu0 0.0
      %1067 = vmatpush1.msra.mxu0 0.0
      %1068 = vmatprep.subr.mxu0 0.0
      %1069 = vmatpush1.msra.mxu0 0.0
      %1070 = vmatprep.subr.mxu0 0.0
      %1071 = vmatpush1.msra.mxu0 0.0
      %1072 = vmatprep.subr.mxu0 0.0
      %1073 = vmatpush1.msra.mxu0 0.0
      %1074 = vmatprep.subr.mxu0 0.0
      %1075 = vmatpush1.msra.mxu0 0.0
      %1076 = vmatprep.subr.mxu0 0.0
      %1077 = vmatpush1.msra.mxu0 0.0
      %1078 = vmatprep.subr.mxu0 0.0
      %1079 = vmatpush1.msra.mxu0 0.0
      %1080 = vmatprep.subr.mxu0 0.0
      %1081 = vmatpush1.msra.mxu0 0.0
      %1082 = vmatprep.subr.mxu0 0.0
      %1083 = vmatpush1.msra.mxu0 0.0
      %1084 = vmatprep.subr.mxu0 0.0
      %1085 = vmatpush1.msra.mxu0 0.0
      %1086 = vmatprep.subr.mxu0 0.0
      %1087 = vmatpush1.msra.mxu0 0.0
      %1088 = vmatprep.subr.mxu0 0.0
      %1089 = vmatpush1.msra.mxu0 0.0
      %1090 = vmatprep.subr.mxu0 0.0
      %1091 = vmatpush1.msra.mxu0 0.0
      %1092 = vmatprep.subr.mxu0 0.0
      %1093 = vmatpush1.msra.mxu0 0.0
      %1094 = vmatprep.subr.mxu0 0.0
      %1095 = vmatpush1.msra.mxu0 0.0
      %1096 = vmatprep.subr.mxu0 0.0
      %1097 = vmatpush1.msra.mxu0 0.0
      %1098 = vmatprep.subr.mxu0 0.0
      %1099 = vmatpush1.msra.mxu0 0.0
      %1100 = vmatprep.subr.mxu0 0.0
      %1101 = vmatpush1.msra.mxu0 0.0
      %1102 = vmatprep.mubr.f32.mxu0 0.0
      %v1103 = vand.u32 %v697, 4294901760
      %1104 = vmatmul.mubr.f32.gmra.mrb[0].mxu0 %v1103
      %v1105 = vpop.f32.mrb[0].mxu0
      %v1106 = vadd.f32 %v1023, %v1105
      %v1107 = vpop.f32.mrb[0].mxu0
      %1108 = vdwg.mxu0
      %1109 = vmatprep.subr.mxu0 0.0
      %v1110 = vand.u32 %v164, 4294901760
      %1111 = vmatpush1.msra.mxu0 %v1110
      %1112 = vmatprep.subr.mxu0 0.0
      %v1113 = vand.u32 %v165, 4294901760
      %1114 = vmatpush1.msra.mxu0 %v1113
      %1115 = vmatprep.subr.mxu0 0.0
      %v1116 = vand.u32 %v166, 4294901760
      %1117 = vmatpush1.msra.mxu0 %v1116
      %1118 = vmatprep.subr.mxu0 0.0
      %v1119 = vand.u32 %v167, 4294901760
      %1120 = vmatpush1.msra.mxu0 %v1119
      %1121 = vmatprep.subr.mxu0 0.0
      %1122 = vmatpush1.msra.mxu0 0.0
      %1123 = vmatprep.subr.mxu0 0.0
      %1124 = vmatpush1.msra.mxu0 0.0
      %1125 = vmatprep.subr.mxu0 0.0
      %1126 = vmatpush1.msra.mxu0 0.0
      %1127 = vmatprep.subr.mxu0 0.0
      %1128 = vmatpush1.msra.mxu0 0.0
      %1129 = vmatprep.subr.mxu0 0.0
      %1130 = vmatpush1.msra.mxu0 0.0
      %1131 = vmatprep.subr.mxu0 0.0
      %1132 = vmatpush1.msra.mxu0 0.0
      %1133 = vmatprep.subr.mxu0 0.0
      %1134 = vmatpush1.msra.mxu0 0.0
      %1135 = vmatprep.subr.mxu0 0.0
      %1136 = vmatpush1.msra.mxu0 0.0
      %1137 = vmatprep.subr.mxu0 0.0
      %1138 = vmatpush1.msra.mxu0 0.0
      %1139 = vmatprep.subr.mxu0 0.0
      %1140 = vmatpush1.msra.mxu0 0.0
      %1141 = vmatprep.subr.mxu0 0.0
      %1142 = vmatpush1.msra.mxu0 0.0
      %1143 = vmatprep.subr.mxu0 0.0
      %1144 = vmatpush1.msra.mxu0 0.0
      %1145 = vmatprep.subr.mxu0 0.0
      %1146 = vmatpush1.msra.mxu0 0.0
      %1147 = vmatprep.subr.mxu0 0.0
      %1148 = vmatpush1.msra.mxu0 0.0
      %1149 = vmatprep.subr.mxu0 0.0
      %1150 = vmatpush1.msra.mxu0 0.0
      %1151 = vmatprep.subr.mxu0 0.0
      %1152 = vmatpush1.msra.mxu0 0.0
      %1153 = vmatprep.subr.mxu0 0.0
      %1154 = vmatpush1.msra.mxu0 0.0
      %1155 = vmatprep.subr.mxu0 0.0
      %1156 = vmatpush1.msra.mxu0 0.0
      %1157 = vmatprep.subr.mxu0 0.0
      %1158 = vmatpush1.msra.mxu0 0.0
      %1159 = vmatprep.subr.mxu0 0.0
      %1160 = vmatpush1.msra.mxu0 0.0
      %1161 = vmatprep.subr.mxu0 0.0
      %1162 = vmatpush1.msra.mxu0 0.0
      %1163 = vmatprep.subr.mxu0 0.0
      %1164 = vmatpush1.msra.mxu0 0.0
      %1165 = vmatprep.subr.mxu0 0.0
      %1166 = vmatpush1.msra.mxu0 0.0
      %1167 = vmatprep.subr.mxu0 0.0
      %1168 = vmatpush1.msra.mxu0 0.0
      %1169 = vmatprep.subr.mxu0 0.0
      %1170 = vmatpush1.msra.mxu0 0.0
      %1171 = vmatprep.subr.mxu0 0.0
      %1172 = vmatpush1.msra.mxu0 0.0
      %1173 = vmatprep.subr.mxu0 0.0
      %1174 = vmatpush1.msra.mxu0 0.0
      %1175 = vmatprep.subr.mxu0 0.0
      %1176 = vmatpush1.msra.mxu0 0.0
      %1177 = vmatprep.mubr.f32.mxu0 0.0
      %v1178 = vand.u32 %v697, 4294901760
      %1179 = vmatmul.mubr.f32.gmra.mrb[0].mxu0 %v1178
      %v1180 = vpop.f32.mrb[0].mxu0
      %v1181 = vadd.f32 %v1106, %v1180
      %v1182 = vpop.f32.mrb[0].mxu0
      %1183 = vdwg.mxu0
      %v1184 = vadd.f32 %v696, %v1181
      %v1185 = vtanh.pop %v1184
      %v1186 = vxor.u32 %v1184, 2147483648
      %v1187 = vmul.f32 %v1186, 1.442695
      %v1188 = vpow.pop %v1187
      %v1189 = vadd.f32 %v1188, 1.0
      %v1190 = vrcp.pop %v1189
      %v1191 = vmul.f32 1.0, %v1190
      %v1192 = vsel %vm172, %v1185, %v1191
      %v1193 = vmul.f32 %v1192, %v682
      %1195 = vrot.lane.b32.xlu0 %v1192, 64
      %v1196 = vpop.permute.xlu0 %1195
      %v1198 = vmul.f32 %v1192, %v1196
      %1200 = vrot.lane.b32.xlu0 %v1198, 32
      %v1201 = vpop.permute.xlu0 %1200
      %v1203 = vadd.f32 %v1193, %v1201
      %v1204 = vtanh.pop %v1203
      %1206 = vrot.lane.b32.xlu0 %v1204, 64
      %v1207 = vpop.permute.xlu0 %1206
      %v1209 = vmul.f32 %v1192, %v1207
      %1211 = vrot.lane.b32.xlu0 %v1209, 32
      %v1212 = vpop.permute.xlu0 %1211
      %s1214 = scalar_lea.vmem %s163, 2
      %1215 = vst.msk [vmem:[%s1214] sm:$0x3] %vm693, %v1212
      %s1216 = scalar_lea.vmem %s153, 4
      %v1217 = vld [vmem:[%s1216] sm:$0x3]
      %v1218 = vsel %vm174, %v1212, 0
      %1220 = vmatprep.subr.mxu0 0.0
      %v1221 = vand.u32 %v164, 4294901760
      %1222 = vmatpush1.msra.mxu0 %v1221
      %1223 = vmatprep.subr.mxu0 0.0
      %v1224 = vand.u32 %v165, 4294901760
      %1225 = vmatpush1.msra.mxu0 %v1224
      %1226 = vmatprep.subr.mxu0 0.0
      %v1227 = vand.u32 %v166, 4294901760
      %1228 = vmatpush1.msra.mxu0 %v1227
      %1229 = vmatprep.subr.mxu0 0.0
      %v1230 = vand.u32 %v167, 4294901760
      %1231 = vmatpush1.msra.mxu0 %v1230
      %1232 = vmatprep.subr.mxu0 0.0
      %1233 = vmatpush1.msra.mxu0 0.0
      %1234 = vmatprep.subr.mxu0 0.0
      %1235 = vmatpush1.msra.mxu0 0.0
      %1236 = vmatprep.subr.mxu0 0.0
      %1237 = vmatpush1.msra.mxu0 0.0
      %1238 = vmatprep.subr.mxu0 0.0
      %1239 = vmatpush1.msra.mxu0 0.0
      %1240 = vmatprep.subr.mxu0 0.0
      %1241 = vmatpush1.msra.mxu0 0.0
      %1242 = vmatprep.subr.mxu0 0.0
      %1243 = vmatpush1.msra.mxu0 0.0
      %1244 = vmatprep.subr.mxu0 0.0
      %1245 = vmatpush1.msra.mxu0 0.0
      %1246 = vmatprep.subr.mxu0 0.0
      %1247 = vmatpush1.msra.mxu0 0.0
      %1248 = vmatprep.subr.mxu0 0.0
      %1249 = vmatpush1.msra.mxu0 0.0
      %1250 = vmatprep.subr.mxu0 0.0
      %1251 = vmatpush1.msra.mxu0 0.0
      %1252 = vmatprep.subr.mxu0 0.0
      %1253 = vmatpush1.msra.mxu0 0.0
      %1254 = vmatprep.subr.mxu0 0.0
      %1255 = vmatpush1.msra.mxu0 0.0
      %1256 = vmatprep.subr.mxu0 0.0
      %1257 = vmatpush1.msra.mxu0 0.0
      %1258 = vmatprep.subr.mxu0 0.0
      %1259 = vmatpush1.msra.mxu0 0.0
      %1260 = vmatprep.subr.mxu0 0.0
      %1261 = vmatpush1.msra.mxu0 0.0
      %1262 = vmatprep.subr.mxu0 0.0
      %1263 = vmatpush1.msra.mxu0 0.0
      %1264 = vmatprep.subr.mxu0 0.0
      %1265 = vmatpush1.msra.mxu0 0.0
      %1266 = vmatprep.subr.mxu0 0.0
      %1267 = vmatpush1.msra.mxu0 0.0
      %1268 = vmatprep.subr.mxu0 0.0
      %1269 = vmatpush1.msra.mxu0 0.0
      %1270 = vmatprep.subr.mxu0 0.0
      %1271 = vmatpush1.msra.mxu0 0.0
      %1272 = vmatprep.subr.mxu0 0.0
      %1273 = vmatpush1.msra.mxu0 0.0
      %1274 = vmatprep.subr.mxu0 0.0
      %1275 = vmatpush1.msra.mxu0 0.0
      %1276 = vmatprep.subr.mxu0 0.0
      %1277 = vmatpush1.msra.mxu0 0.0
      %1278 = vmatprep.subr.mxu0 0.0
      %1279 = vmatpush1.msra.mxu0 0.0
      %1280 = vmatprep.subr.mxu0 0.0
      %1281 = vmatpush1.msra.mxu0 0.0
      %1282 = vmatprep.subr.mxu0 0.0
      %1283 = vmatpush1.msra.mxu0 0.0
      %1284 = vmatprep.subr.mxu0 0.0
      %1285 = vmatpush1.msra.mxu0 0.0
      %1286 = vmatprep.subr.mxu0 0.0
      %1287 = vmatpush1.msra.mxu0 0.0
      %1288 = vmatprep.mubr.f32.mxu0 0.0
      %v1289 = vand.u32 %v1218, 4294901760
      %v1290 = vsub.f32 %v1218, %v1289
      %v1291 = vand.u32 %v1290, 4294901760
      %v1292 = vsub.f32 %v1290, %v1291
      %v1293 = vand.u32 %v1292, 4294901760
      %1294 = vmatmul.mubr.f32.gmra.mrb[0].mxu0 %v1293
      %v1295 = vpop.f32.mrb[0].mxu0
      %v1296 = vadd.f32 0.0, %v1295
      %v1297 = vpop.f32.mrb[0].mxu0
      %1298 = vdwg.mxu0
      %1299 = vmatprep.subr.mxu0 0.0
      %v1300 = vand.u32 %v164, 4294901760
      %v1301 = vsub.f32 %v164, %v1300
      %v1302 = vand.u32 %v1301, 4294901760
      %v1303 = vsub.f32 %v1301, %v1302
      %v1304 = vand.u32 %v1303, 4294901760
      %1305 = vmatpush1.msra.mxu0 %v1304
      %1306 = vmatprep.subr.mxu0 0.0
      %v1307 = vand.u32 %v165, 4294901760
      %v1308 = vsub.f32 %v165, %v1307
      %v1309 = vand.u32 %v1308, 4294901760
      %v1310 = vsub.f32 %v1308, %v1309
      %v1311 = vand.u32 %v1310, 4294901760
      %1312 = vmatpush1.msra.mxu0 %v1311
      %1313 = vmatprep.subr.mxu0 0.0
      %v1314 = vand.u32 %v166, 4294901760
      %v1315 = vsub.f32 %v166, %v1314
      %v1316 = vand.u32 %v1315, 4294901760
      %v1317 = vsub.f32 %v1315, %v1316
      %v1318 = vand.u32 %v1317, 4294901760
      %1319 = vmatpush1.msra.mxu0 %v1318
      %1320 = vmatprep.subr.mxu0 0.0
      %v1321 = vand.u32 %v167, 4294901760
      %v1322 = vsub.f32 %v167, %v1321
      %v1323 = vand.u32 %v1322, 4294901760
      %v1324 = vsub.f32 %v1322, %v1323
      %v1325 = vand.u32 %v1324, 4294901760
      %1326 = vmatpush1.msra.mxu0 %v1325
      %1327 = vmatprep.subr.mxu0 0.0
      %1328 = vmatpush1.msra.mxu0 0.0
      %1329 = vmatprep.subr.mxu0 0.0
      %1330 = vmatpush1.msra.mxu0 0.0
      %1331 = vmatprep.subr.mxu0 0.0
      %1332 = vmatpush1.msra.mxu0 0.0
      %1333 = vmatprep.subr.mxu0 0.0
      %1334 = vmatpush1.msra.mxu0 0.0
      %1335 = vmatprep.subr.mxu0 0.0
      %1336 = vmatpush1.msra.mxu0 0.0
      %1337 = vmatprep.subr.mxu0 0.0
      %1338 = vmatpush1.msra.mxu0 0.0
      %1339 = vmatprep.subr.mxu0 0.0
      %1340 = vmatpush1.msra.mxu0 0.0
      %1341 = vmatprep.subr.mxu0 0.0
      %1342 = vmatpush1.msra.mxu0 0.0
      %1343 = vmatprep.subr.mxu0 0.0
      %1344 = vmatpush1.msra.mxu0 0.0
      %1345 = vmatprep.subr.mxu0 0.0
      %1346 = vmatpush1.msra.mxu0 0.0
      %1347 = vmatprep.subr.mxu0 0.0
      %1348 = vmatpush1.msra.mxu0 0.0
      %1349 = vmatprep.subr.mxu0 0.0
      %1350 = vmatpush1.msra.mxu0 0.0
      %1351 = vmatprep.subr.mxu0 0.0
      %1352 = vmatpush1.msra.mxu0 0.0
      %1353 = vmatprep.subr.mxu0 0.0
      %1354 = vmatpush1.msra.mxu0 0.0
      %1355 = vmatprep.subr.mxu0 0.0
      %1356 = vmatpush1.msra.mxu0 0.0
      %1357 = vmatprep.subr.mxu0 0.0
      %1358 = vmatpush1.msra.mxu0 0.0
      %1359 = vmatprep.subr.mxu0 0.0
      %1360 = vmatpush1.msra.mxu0 0.0
      %1361 = vmatprep.subr.mxu0 0.0
      %1362 = vmatpush1.msra.mxu0 0.0
      %1363 = vmatprep.subr.mxu0 0.0
      %1364 = vmatpush1.msra.mxu0 0.0
      %1365 = vmatprep.subr.mxu0 0.0
      %1366 = vmatpush1.msra.mxu0 0.0
      %1367 = vmatprep.subr.mxu0 0.0
      %1368 = vmatpush1.msra.mxu0 0.0
      %1369 = vmatprep.subr.mxu0 0.0
      %1370 = vmatpush1.msra.mxu0 0.0
      %1371 = vmatprep.subr.mxu0 0.0
      %1372 = vmatpush1.msra.mxu0 0.0
      %1373 = vmatprep.subr.mxu0 0.0
      %1374 = vmatpush1.msra.mxu0 0.0
      %1375 = vmatprep.subr.mxu0 0.0
      %1376 = vmatpush1.msra.mxu0 0.0
      %1377 = vmatprep.subr.mxu0 0.0
      %1378 = vmatpush1.msra.mxu0 0.0
      %1379 = vmatprep.subr.mxu0 0.0
      %1380 = vmatpush1.msra.mxu0 0.0
      %1381 = vmatprep.subr.mxu0 0.0
      %1382 = vmatpush1.msra.mxu0 0.0
      %1383 = vmatprep.mubr.f32.mxu0 0.0
      %v1384 = vand.u32 %v1218, 4294901760
      %1385 = vmatmul.mubr.f32.gmra.mrb[0].mxu0 %v1384
      %v1386 = vpop.f32.mrb[0].mxu0
      %v1387 = vadd.f32 %v1296, %v1386
      %v1388 = vpop.f32.mrb[0].mxu0
      %1389 = vdwg.mxu0
      %1390 = vmatprep.subr.mxu0 0.0
      %v1391 = vand.u32 %v164, 4294901760
      %v1392 = vsub.f32 %v164, %v1391
      %1393 = vmatpush1.msra.mxu0 %v1392
      %1394 = vmatprep.subr.mxu0 0.0
      %v1395 = vand.u32 %v165, 4294901760
      %v1396 = vsub.f32 %v165, %v1395
      %1397 = vmatpush1.msra.mxu0 %v1396
      %1398 = vmatprep.subr.mxu0 0.0
      %v1399 = vand.u32 %v166, 4294901760
      %v1400 = vsub.f32 %v166, %v1399
      %1401 = vmatpush1.msra.mxu0 %v1400
      %1402 = vmatprep.subr.mxu0 0.0
      %v1403 = vand.u32 %v167, 4294901760
      %v1404 = vsub.f32 %v167, %v1403
      %1405 = vmatpush1.msra.mxu0 %v1404
      %1406 = vmatprep.subr.mxu0 0.0
      %1407 = vmatpush1.msra.mxu0 0.0
      %1408 = vmatprep.subr.mxu0 0.0
      %1409 = vmatpush1.msra.mxu0 0.0
      %1410 = vmatprep.subr.mxu0 0.0
      %1411 = vmatpush1.msra.mxu0 0.0
      %1412 = vmatprep.subr.mxu0 0.0
      %1413 = vmatpush1.msra.mxu0 0.0
      %1414 = vmatprep.subr.mxu0 0.0
      %1415 = vmatpush1.msra.mxu0 0.0
      %1416 = vmatprep.subr.mxu0 0.0
      %1417 = vmatpush1.msra.mxu0 0.0
      %1418 = vmatprep.subr.mxu0 0.0
      %1419 = vmatpush1.msra.mxu0 0.0
      %1420 = vmatprep.subr.mxu0 0.0
      %1421 = vmatpush1.msra.mxu0 0.0
      %1422 = vmatprep.subr.mxu0 0.0
      %1423 = vmatpush1.msra.mxu0 0.0
      %1424 = vmatprep.subr.mxu0 0.0
      %1425 = vmatpush1.msra.mxu0 0.0
      %1426 = vmatprep.subr.mxu0 0.0
      %1427 = vmatpush1.msra.mxu0 0.0
      %1428 = vmatprep.subr.mxu0 0.0
      %1429 = vmatpush1.msra.mxu0 0.0
      %1430 = vmatprep.subr.mxu0 0.0
      %1431 = vmatpush1.msra.mxu0 0.0
      %1432 = vmatprep.subr.mxu0 0.0
      %1433 = vmatpush1.msra.mxu0 0.0
      %1434 = vmatprep.subr.mxu0 0.0
      %1435 = vmatpush1.msra.mxu0 0.0
      %1436 = vmatprep.subr.mxu0 0.0
      %1437 = vmatpush1.msra.mxu0 0.0
      %1438 = vmatprep.subr.mxu0 0.0
      %1439 = vmatpush1.msra.mxu0 0.0
      %1440 = vmatprep.subr.mxu0 0.0
      %1441 = vmatpush1.msra.mxu0 0.0
      %1442 = vmatprep.subr.mxu0 0.0
      %1443 = vmatpush1.msra.mxu0 0.0
      %1444 = vmatprep.subr.mxu0 0.0
      %1445 = vmatpush1.msra.mxu0 0.0
      %1446 = vmatprep.subr.mxu0 0.0
      %1447 = vmatpush1.msra.mxu0 0.0
      %1448 = vmatprep.subr.mxu0 0.0
      %1449 = vmatpush1.msra.mxu0 0.0
      %1450 = vmatprep.subr.mxu0 0.0
      %1451 = vmatpush1.msra.mxu0 0.0
      %1452 = vmatprep.subr.mxu0 0.0
      %1453 = vmatpush1.msra.mxu0 0.0
      %1454 = vmatprep.subr.mxu0 0.0
      %1455 = vmatpush1.msra.mxu0 0.0
      %1456 = vmatprep.subr.mxu0 0.0
      %1457 = vmatpush1.msra.mxu0 0.0
      %1458 = vmatprep.subr.mxu0 0.0
      %1459 = vmatpush1.msra.mxu0 0.0
      %1460 = vmatprep.subr.mxu0 0.0
      %1461 = vmatpush1.msra.mxu0 0.0
      %1462 = vmatprep.mubr.f32.mxu0 0.0
      %v1463 = vand.u32 %v1218, 4294901760
      %v1464 = vsub.f32 %v1218, %v1463
      %1465 = vmatmul.mubr.f32.gmra.mrb[0].mxu0 %v1464
      %v1466 = vpop.f32.mrb[0].mxu0
      %v1467 = vadd.f32 %v1387, %v1466
      %v1468 = vpop.f32.mrb[0].mxu0
      %1469 = vdwg.mxu0
      %1470 = vmatprep.subr.mxu0 0.0
      %v1471 = vand.u32 %v164, 4294901760
      %1472 = vmatpush1.msra.mxu0 %v1471
      %1473 = vmatprep.subr.mxu0 0.0
      %v1474 = vand.u32 %v165, 4294901760
      %1475 = vmatpush1.msra.mxu0 %v1474
      %1476 = vmatprep.subr.mxu0 0.0
      %v1477 = vand.u32 %v166, 4294901760
      %1478 = vmatpush1.msra.mxu0 %v1477
      %1479 = vmatprep.subr.mxu0 0.0
      %v1480 = vand.u32 %v167, 4294901760
      %1481 = vmatpush1.msra.mxu0 %v1480
      %1482 = vmatprep.subr.mxu0 0.0
      %1483 = vmatpush1.msra.mxu0 0.0
      %1484 = vmatprep.subr.mxu0 0.0
      %1485 = vmatpush1.msra.mxu0 0.0
      %1486 = vmatprep.subr.mxu0 0.0
      %1487 = vmatpush1.msra.mxu0 0.0
      %1488 = vmatprep.subr.mxu0 0.0
      %1489 = vmatpush1.msra.mxu0 0.0
      %1490 = vmatprep.subr.mxu0 0.0
      %1491 = vmatpush1.msra.mxu0 0.0
      %1492 = vmatprep.subr.mxu0 0.0
      %1493 = vmatpush1.msra.mxu0 0.0
      %1494 = vmatprep.subr.mxu0 0.0
      %1495 = vmatpush1.msra.mxu0 0.0
      %1496 = vmatprep.subr.mxu0 0.0
      %1497 = vmatpush1.msra.mxu0 0.0
      %1498 = vmatprep.subr.mxu0 0.0
      %1499 = vmatpush1.msra.mxu0 0.0
      %1500 = vmatprep.subr.mxu0 0.0
      %1501 = vmatpush1.msra.mxu0 0.0
      %1502 = vmatprep.subr.mxu0 0.0
      %1503 = vmatpush1.msra.mxu0 0.0
      %1504 = vmatprep.subr.mxu0 0.0
      %1505 = vmatpush1.msra.mxu0 0.0
      %1506 = vmatprep.subr.mxu0 0.0
      %1507 = vmatpush1.msra.mxu0 0.0
      %1508 = vmatprep.subr.mxu0 0.0
      %1509 = vmatpush1.msra.mxu0 0.0
      %1510 = vmatprep.subr.mxu0 0.0
      %1511 = vmatpush1.msra.mxu0 0.0
      %1512 = vmatprep.subr.mxu0 0.0
      %1513 = vmatpush1.msra.mxu0 0.0
      %1514 = vmatprep.subr.mxu0 0.0
      %1515 = vmatpush1.msra.mxu0 0.0
      %1516 = vmatprep.subr.mxu0 0.0
      %1517 = vmatpush1.msra.mxu0 0.0
      %1518 = vmatprep.subr.mxu0 0.0
      %1519 = vmatpush1.msra.mxu0 0.0
      %1520 = vmatprep.subr.mxu0 0.0
      %1521 = vmatpush1.msra.mxu0 0.0
      %1522 = vmatprep.subr.mxu0 0.0
      %1523 = vmatpush1.msra.mxu0 0.0
      %1524 = vmatprep.subr.mxu0 0.0
      %1525 = vmatpush1.msra.mxu0 0.0
      %1526 = vmatprep.subr.mxu0 0.0
      %1527 = vmatpush1.msra.mxu0 0.0
      %1528 = vmatprep.subr.mxu0 0.0
      %1529 = vmatpush1.msra.mxu0 0.0
      %1530 = vmatprep.subr.mxu0 0.0
      %1531 = vmatpush1.msra.mxu0 0.0
      %1532 = vmatprep.subr.mxu0 0.0
      %1533 = vmatpush1.msra.mxu0 0.0
      %1534 = vmatprep.subr.mxu0 0.0
      %1535 = vmatpush1.msra.mxu0 0.0
      %1536 = vmatprep.subr.mxu0 0.0
      %1537 = vmatpush1.msra.mxu0 0.0
      %1538 = vmatprep.mubr.f32.mxu0 0.0
      %v1539 = vand.u32 %v1218, 4294901760
      %v1540 = vsub.f32 %v1218, %v1539
      %v1541 = vand.u32 %v1540, 4294901760
      %1542 = vmatmul.mubr.f32.gmra.mrb[0].mxu0 %v1541
      %v1543 = vpop.f32.mrb[0].mxu0
      %v1544 = vadd.f32 %v1467, %v1543
      %v1545 = vpop.f32.mrb[0].mxu0
      %1546 = vdwg.mxu0
      %1547 = vmatprep.subr.mxu0 0.0
      %v1548 = vand.u32 %v164, 4294901760
      %v1549 = vsub.f32 %v164, %v1548
      %v1550 = vand.u32 %v1549, 4294901760
      %1551 = vmatpush1.msra.mxu0 %v1550
      %1552 = vmatprep.subr.mxu0 0.0
      %v1553 = vand.u32 %v165, 4294901760
      %v1554 = vsub.f32 %v165, %v1553
      %v1555 = vand.u32 %v1554, 4294901760
      %1556 = vmatpush1.msra.mxu0 %v1555
      %1557 = vmatprep.subr.mxu0 0.0
      %v1558 = vand.u32 %v166, 4294901760
      %v1559 = vsub.f32 %v166, %v1558
      %v1560 = vand.u32 %v1559, 4294901760
      %1561 = vmatpush1.msra.mxu0 %v1560
      %1562 = vmatprep.subr.mxu0 0.0
      %v1563 = vand.u32 %v167, 4294901760
      %v1564 = vsub.f32 %v167, %v1563
      %v1565 = vand.u32 %v1564, 4294901760
      %1566 = vmatpush1.msra.mxu0 %v1565
      %1567 = vmatprep.subr.mxu0 0.0
      %1568 = vmatpush1.msra.mxu0 0.0
      %1569 = vmatprep.subr.mxu0 0.0
      %1570 = vmatpush1.msra.mxu0 0.0
      %1571 = vmatprep.subr.mxu0 0.0
      %1572 = vmatpush1.msra.mxu0 0.0
      %1573 = vmatprep.subr.mxu0 0.0
      %1574 = vmatpush1.msra.mxu0 0.0
      %1575 = vmatprep.subr.mxu0 0.0
      %1576 = vmatpush1.msra.mxu0 0.0
      %1577 = vmatprep.subr.mxu0 0.0
      %1578 = vmatpush1.msra.mxu0 0.0
      %1579 = vmatprep.subr.mxu0 0.0
      %1580 = vmatpush1.msra.mxu0 0.0
      %1581 = vmatprep.subr.mxu0 0.0
      %1582 = vmatpush1.msra.mxu0 0.0
      %1583 = vmatprep.subr.mxu0 0.0
      %1584 = vmatpush1.msra.mxu0 0.0
      %1585 = vmatprep.subr.mxu0 0.0
      %1586 = vmatpush1.msra.mxu0 0.0
      %1587 = vmatprep.subr.mxu0 0.0
      %1588 = vmatpush1.msra.mxu0 0.0
      %1589 = vmatprep.subr.mxu0 0.0
      %1590 = vmatpush1.msra.mxu0 0.0
      %1591 = vmatprep.subr.mxu0 0.0
      %1592 = vmatpush1.msra.mxu0 0.0
      %1593 = vmatprep.subr.mxu0 0.0
      %1594 = vmatpush1.msra.mxu0 0.0
      %1595 = vmatprep.subr.mxu0 0.0
      %1596 = vmatpush1.msra.mxu0 0.0
      %1597 = vmatprep.subr.mxu0 0.0
      %1598 = vmatpush1.msra.mxu0 0.0
      %1599 = vmatprep.subr.mxu0 0.0
      %1600 = vmatpush1.msra.mxu0 0.0
      %1601 = vmatprep.subr.mxu0 0.0
      %1602 = vmatpush1.msra.mxu0 0.0
      %1603 = vmatprep.subr.mxu0 0.0
      %1604 = vmatpush1.msra.mxu0 0.0
      %1605 = vmatprep.subr.mxu0 0.0
      %1606 = vmatpush1.msra.mxu0 0.0
      %1607 = vmatprep.subr.mxu0 0.0
      %1608 = vmatpush1.msra.mxu0 0.0
      %1609 = vmatprep.subr.mxu0 0.0
      %1610 = vmatpush1.msra.mxu0 0.0
      %1611 = vmatprep.subr.mxu0 0.0
      %1612 = vmatpush1.msra.mxu0 0.0
      %1613 = vmatprep.subr.mxu0 0.0
      %1614 = vmatpush1.msra.mxu0 0.0
      %1615 = vmatprep.subr.mxu0 0.0
      %1616 = vmatpush1.msra.mxu0 0.0
      %1617 = vmatprep.subr.mxu0 0.0
      %1618 = vmatpush1.msra.mxu0 0.0
      %1619 = vmatprep.subr.mxu0 0.0
      %1620 = vmatpush1.msra.mxu0 0.0
      %1621 = vmatprep.subr.mxu0 0.0
      %1622 = vmatpush1.msra.mxu0 0.0
      %1623 = vmatprep.mubr.f32.mxu0 0.0
      %v1624 = vand.u32 %v1218, 4294901760
      %1625 = vmatmul.mubr.f32.gmra.mrb[0].mxu0 %v1624
      %v1626 = vpop.f32.mrb[0].mxu0
      %v1627 = vadd.f32 %v1544, %v1626
      %v1628 = vpop.f32.mrb[0].mxu0
      %1629 = vdwg.mxu0
      %1630 = vmatprep.subr.mxu0 0.0
      %v1631 = vand.u32 %v164, 4294901760
      %1632 = vmatpush1.msra.mxu0 %v1631
      %1633 = vmatprep.subr.mxu0 0.0
      %v1634 = vand.u32 %v165, 4294901760
      %1635 = vmatpush1.msra.mxu0 %v1634
      %1636 = vmatprep.subr.mxu0 0.0
      %v1637 = vand.u32 %v166, 4294901760
      %1638 = vmatpush1.msra.mxu0 %v1637
      %1639 = vmatprep.subr.mxu0 0.0
      %v1640 = vand.u32 %v167, 4294901760
      %1641 = vmatpush1.msra.mxu0 %v1640
      %1642 = vmatprep.subr.mxu0 0.0
      %1643 = vmatpush1.msra.mxu0 0.0
      %1644 = vmatprep.subr.mxu0 0.0
      %1645 = vmatpush1.msra.mxu0 0.0
      %1646 = vmatprep.subr.mxu0 0.0
      %1647 = vmatpush1.msra.mxu0 0.0
      %1648 = vmatprep.subr.mxu0 0.0
      %1649 = vmatpush1.msra.mxu0 0.0
      %1650 = vmatprep.subr.mxu0 0.0
      %1651 = vmatpush1.msra.mxu0 0.0
      %1652 = vmatprep.subr.mxu0 0.0
      %1653 = vmatpush1.msra.mxu0 0.0
      %1654 = vmatprep.subr.mxu0 0.0
      %1655 = vmatpush1.msra.mxu0 0.0
      %1656 = vmatprep.subr.mxu0 0.0
      %1657 = vmatpush1.msra.mxu0 0.0
      %1658 = vmatprep.subr.mxu0 0.0
      %1659 = vmatpush1.msra.mxu0 0.0
      %1660 = vmatprep.subr.mxu0 0.0
      %1661 = vmatpush1.msra.mxu0 0.0
      %1662 = vmatprep.subr.mxu0 0.0
      %1663 = vmatpush1.msra.mxu0 0.0
      %1664 = vmatprep.subr.mxu0 0.0
      %1665 = vmatpush1.msra.mxu0 0.0
      %1666 = vmatprep.subr.mxu0 0.0
      %1667 = vmatpush1.msra.mxu0 0.0
      %1668 = vmatprep.subr.mxu0 0.0
      %1669 = vmatpush1.msra.mxu0 0.0
      %1670 = vmatprep.subr.mxu0 0.0
      %1671 = vmatpush1.msra.mxu0 0.0
      %1672 = vmatprep.subr.mxu0 0.0
      %1673 = vmatpush1.msra.mxu0 0.0
      %1674 = vmatprep.subr.mxu0 0.0
      %1675 = vmatpush1.msra.mxu0 0.0
      %1676 = vmatprep.subr.mxu0 0.0
      %1677 = vmatpush1.msra.mxu0 0.0
      %1678 = vmatprep.subr.mxu0 0.0
      %1679 = vmatpush1.msra.mxu0 0.0
      %1680 = vmatprep.subr.mxu0 0.0
      %1681 = vmatpush1.msra.mxu0 0.0
      %1682 = vmatprep.subr.mxu0 0.0
      %1683 = vmatpush1.msra.mxu0 0.0
      %1684 = vmatprep.subr.mxu0 0.0
      %1685 = vmatpush1.msra.mxu0 0.0
      %1686 = vmatprep.subr.mxu0 0.0
      %1687 = vmatpush1.msra.mxu0 0.0
      %1688 = vmatprep.subr.mxu0 0.0
      %1689 = vmatpush1.msra.mxu0 0.0
      %1690 = vmatprep.subr.mxu0 0.0
      %1691 = vmatpush1.msra.mxu0 0.0
      %1692 = vmatprep.subr.mxu0 0.0
      %1693 = vmatpush1.msra.mxu0 0.0
      %1694 = vmatprep.subr.mxu0 0.0
      %1695 = vmatpush1.msra.mxu0 0.0
      %1696 = vmatprep.subr.mxu0 0.0
      %1697 = vmatpush1.msra.mxu0 0.0
      %1698 = vmatprep.mubr.f32.mxu0 0.0
      %v1699 = vand.u32 %v1218, 4294901760
      %1700 = vmatmul.mubr.f32.gmra.mrb[0].mxu0 %v1699
      %v1701 = vpop.f32.mrb[0].mxu0
      %v1702 = vadd.f32 %v1627, %v1701
      %v1703 = vpop.f32.mrb[0].mxu0
      %1704 = vdwg.mxu0
      %v1705 = vadd.f32 %v1217, %v1702
      %v1706 = vtanh.pop %v1705
      %v1707 = vxor.u32 %v1705, 2147483648
      %v1708 = vmul.f32 %v1707, 1.442695
      %v1709 = vpow.pop %v1708
      %v1710 = vadd.f32 %v1709, 1.0
      %v1711 = vrcp.pop %v1710
      %v1712 = vmul.f32 1.0, %v1711
      %v1713 = vsel %vm172, %v1706, %v1712
      %v1714 = vmul.f32 %v1713, %v1203
      %1716 = vrot.lane.b32.xlu0 %v1713, 64
      %v1717 = vpop.permute.xlu0 %1716
      %v1719 = vmul.f32 %v1713, %v1717
      %1721 = vrot.lane.b32.xlu0 %v1719, 32
      %v1722 = vpop.permute.xlu0 %1721
      %v1724 = vadd.f32 %v1714, %v1722
      %v1725 = vtanh.pop %v1724
      %1727 = vrot.lane.b32.xlu0 %v1725, 64
      %v1728 = vpop.permute.xlu0 %1727
      %v1730 = vmul.f32 %v1713, %v1728
      %1732 = vrot.lane.b32.xlu0 %v1730, 32
      %v1733 = vpop.permute.xlu0 %1732
      %s1735 = scalar_lea.vmem %s163, 4
      %1736 = vst.msk [vmem:[%s1735] sm:$0x3] %vm693, %v1733
      %s1737 = scalar_lea.vmem %s153, 6
      %v1738 = vld [vmem:[%s1737] sm:$0x3]
      %v1739 = vsel %vm174, %v1733, 0
      %1741 = vmatprep.subr.mxu0 0.0
      %v1742 = vand.u32 %v164, 4294901760
      %1743 = vmatpush1.msra.mxu0 %v1742
      %1744 = vmatprep.subr.mxu0 0.0
      %v1745 = vand.u32 %v165, 4294901760
      %1746 = vmatpush1.msra.mxu0 %v1745
      %1747 = vmatprep.subr.mxu0 0.0
      %v1748 = vand.u32 %v166, 4294901760
      %1749 = vmatpush1.msra.mxu0 %v1748
      %1750 = vmatprep.subr.mxu0 0.0
      %v1751 = vand.u32 %v167, 4294901760
      %1752 = vmatpush1.msra.mxu0 %v1751
      %1753 = vmatprep.subr.mxu0 0.0
      %1754 = vmatpush1.msra.mxu0 0.0
      %1755 = vmatprep.subr.mxu0 0.0
      %1756 = vmatpush1.msra.mxu0 0.0
      %1757 = vmatprep.subr.mxu0 0.0
      %1758 = vmatpush1.msra.mxu0 0.0
      %1759 = vmatprep.subr.mxu0 0.0
      %1760 = vmatpush1.msra.mxu0 0.0
      %1761 = vmatprep.subr.mxu0 0.0
      %1762 = vmatpush1.msra.mxu0 0.0
      %1763 = vmatprep.subr.mxu0 0.0
      %1764 = vmatpush1.msra.mxu0 0.0
      %1765 = vmatprep.subr.mxu0 0.0
      %1766 = vmatpush1.msra.mxu0 0.0
      %1767 = vmatprep.subr.mxu0 0.0
      %1768 = vmatpush1.msra.mxu0 0.0
      %1769 = vmatprep.subr.mxu0 0.0
      %1770 = vmatpush1.msra.mxu0 0.0
      %1771 = vmatprep.subr.mxu0 0.0
      %1772 = vmatpush1.msra.mxu0 0.0
      %1773 = vmatprep.subr.mxu0 0.0
      %1774 = vmatpush1.msra.mxu0 0.0
      %1775 = vmatprep.subr.mxu0 0.0
      %1776 = vmatpush1.msra.mxu0 0.0
      %1777 = vmatprep.subr.mxu0 0.0
      %1778 = vmatpush1.msra.mxu0 0.0
      %1779 = vmatprep.subr.mxu0 0.0
      %1780 = vmatpush1.msra.mxu0 0.0
      %1781 = vmatprep.subr.mxu0 0.0
      %1782 = vmatpush1.msra.mxu0 0.0
      %1783 = vmatprep.subr.mxu0 0.0
      %1784 = vmatpush1.msra.mxu0 0.0
      %1785 = vmatprep.subr.mxu0 0.0
      %1786 = vmatpush1.msra.mxu0 0.0
      %1787 = vmatprep.subr.mxu0 0.0
      %1788 = vmatpush1.msra.mxu0 0.0
      %1789 = vmatprep.subr.mxu0 0.0
      %1790 = vmatpush1.msra.mxu0 0.0
      %1791 = vmatprep.subr.mxu0 0.0
      %1792 = vmatpush1.msra.mxu0 0.0
      %1793 = vmatprep.subr.mxu0 0.0
      %1794 = vmatpush1.msra.mxu0 0.0
      %1795 = vmatprep.subr.mxu0 0.0
      %1796 = vmatpush1.msra.mxu0 0.0
      %1797 = vmatprep.subr.mxu0 0.0
      %1798 = vmatpush1.msra.mxu0 0.0
      %1799 = vmatprep.subr.mxu0 0.0
      %1800 = vmatpush1.msra.mxu0 0.0
      %1801 = vmatprep.subr.mxu0 0.0
      %1802 = vmatpush1.msra.mxu0 0.0
      %1803 = vmatprep.subr.mxu0 0.0
      %1804 = vmatpush1.msra.mxu0 0.0
      %1805 = vmatprep.subr.mxu0 0.0
      %1806 = vmatpush1.msra.mxu0 0.0
      %1807 = vmatprep.subr.mxu0 0.0
      %1808 = vmatpush1.msra.mxu0 0.0
      %1809 = vmatprep.mubr.f32.mxu0 0.0
      %v1810 = vand.u32 %v1739, 4294901760
      %v1811 = vsub.f32 %v1739, %v1810
      %v1812 = vand.u32 %v1811, 4294901760
      %v1813 = vsub.f32 %v1811, %v1812
      %v1814 = vand.u32 %v1813, 4294901760
      %1815 = vmatmul.mubr.f32.gmra.mrb[0].mxu0 %v1814
      %v1816 = vpop.f32.mrb[0].mxu0
      %v1817 = vadd.f32 0.0, %v1816
      %v1818 = vpop.f32.mrb[0].mxu0
      %1819 = vdwg.mxu0
      %1820 = vmatprep.subr.mxu0 0.0
      %v1821 = vand.u32 %v164, 4294901760
      %v1822 = vsub.f32 %v164, %v1821
      %v1823 = vand.u32 %v1822, 4294901760
      %v1824 = vsub.f32 %v1822, %v1823
      %v1825 = vand.u32 %v1824, 4294901760
      %1826 = vmatpush1.msra.mxu0 %v1825
      %1827 = vmatprep.subr.mxu0 0.0
      %v1828 = vand.u32 %v165, 4294901760
      %v1829 = vsub.f32 %v165, %v1828
      %v1830 = vand.u32 %v1829, 4294901760
      %v1831 = vsub.f32 %v1829, %v1830
      %v1832 = vand.u32 %v1831, 4294901760
      %1833 = vmatpush1.msra.mxu0 %v1832
      %1834 = vmatprep.subr.mxu0 0.0
      %v1835 = vand.u32 %v166, 4294901760
      %v1836 = vsub.f32 %v166, %v1835
      %v1837 = vand.u32 %v1836, 4294901760
      %v1838 = vsub.f32 %v1836, %v1837
      %v1839 = vand.u32 %v1838, 4294901760
      %1840 = vmatpush1.msra.mxu0 %v1839
      %1841 = vmatprep.subr.mxu0 0.0
      %v1842 = vand.u32 %v167, 4294901760
      %v1843 = vsub.f32 %v167, %v1842
      %v1844 = vand.u32 %v1843, 4294901760
      %v1845 = vsub.f32 %v1843, %v1844
      %v1846 = vand.u32 %v1845, 4294901760
      %1847 = vmatpush1.msra.mxu0 %v1846
      %1848 = vmatprep.subr.mxu0 0.0
      %1849 = vmatpush1.msra.mxu0 0.0
      %1850 = vmatprep.subr.mxu0 0.0
      %1851 = vmatpush1.msra.mxu0 0.0
      %1852 = vmatprep.subr.mxu0 0.0
      %1853 = vmatpush1.msra.mxu0 0.0
      %1854 = vmatprep.subr.mxu0 0.0
      %1855 = vmatpush1.msra.mxu0 0.0
      %1856 = vmatprep.subr.mxu0 0.0
      %1857 = vmatpush1.msra.mxu0 0.0
      %1858 = vmatprep.subr.mxu0 0.0
      %1859 = vmatpush1.msra.mxu0 0.0
      %1860 = vmatprep.subr.mxu0 0.0
      %1861 = vmatpush1.msra.mxu0 0.0
      %1862 = vmatprep.subr.mxu0 0.0
      %1863 = vmatpush1.msra.mxu0 0.0
      %1864 = vmatprep.subr.mxu0 0.0
      %1865 = vmatpush1.msra.mxu0 0.0
      %1866 = vmatprep.subr.mxu0 0.0
      %1867 = vmatpush1.msra.mxu0 0.0
      %1868 = vmatprep.subr.mxu0 0.0
      %1869 = vmatpush1.msra.mxu0 0.0
      %1870 = vmatprep.subr.mxu0 0.0
      %1871 = vmatpush1.msra.mxu0 0.0
      %1872 = vmatprep.subr.mxu0 0.0
      %1873 = vmatpush1.msra.mxu0 0.0
      %1874 = vmatprep.subr.mxu0 0.0
      %1875 = vmatpush1.msra.mxu0 0.0
      %1876 = vmatprep.subr.mxu0 0.0
      %1877 = vmatpush1.msra.mxu0 0.0
      %1878 = vmatprep.subr.mxu0 0.0
      %1879 = vmatpush1.msra.mxu0 0.0
      %1880 = vmatprep.subr.mxu0 0.0
      %1881 = vmatpush1.msra.mxu0 0.0
      %1882 = vmatprep.subr.mxu0 0.0
      %1883 = vmatpush1.msra.mxu0 0.0
      %1884 = vmatprep.subr.mxu0 0.0
      %1885 = vmatpush1.msra.mxu0 0.0
      %1886 = vmatprep.subr.mxu0 0.0
      %1887 = vmatpush1.msra.mxu0 0.0
      %1888 = vmatprep.subr.mxu0 0.0
      %1889 = vmatpush1.msra.mxu0 0.0
      %1890 = vmatprep.subr.mxu0 0.0
      %1891 = vmatpush1.msra.mxu0 0.0
      %1892 = vmatprep.subr.mxu0 0.0
      %1893 = vmatpush1.msra.mxu0 0.0
      %1894 = vmatprep.subr.mxu0 0.0
      %1895 = vmatpush1.msra.mxu0 0.0
      %1896 = vmatprep.subr.mxu0 0.0
      %1897 = vmatpush1.msra.mxu0 0.0
      %1898 = vmatprep.subr.mxu0 0.0
      %1899 = vmatpush1.msra.mxu0 0.0
      %1900 = vmatprep.subr.mxu0 0.0
      %1901 = vmatpush1.msra.mxu0 0.0
      %1902 = vmatprep.subr.mxu0 0.0
      %1903 = vmatpush1.msra.mxu0 0.0
      %1904 = vmatprep.mubr.f32.mxu0 0.0
      %v1905 = vand.u32 %v1739, 4294901760
      %1906 = vmatmul.mubr.f32.gmra.mrb[0].mxu0 %v1905
      %v1907 = vpop.f32.mrb[0].mxu0
      %v1908 = vadd.f32 %v1817, %v1907
      %v1909 = vpop.f32.mrb[0].mxu0
      %1910 = vdwg.mxu0
      %1911 = vmatprep.subr.mxu0 0.0
      %v1912 = vand.u32 %v164, 4294901760
      %v1913 = vsub.f32 %v164, %v1912
      %1914 = vmatpush1.msra.mxu0 %v1913
      %1915 = vmatprep.subr.mxu0 0.0
      %v1916 = vand.u32 %v165, 4294901760
      %v1917 = vsub.f32 %v165, %v1916
      %1918 = vmatpush1.msra.mxu0 %v1917
      %1919 = vmatprep.subr.mxu0 0.0
      %v1920 = vand.u32 %v166, 4294901760
      %v1921 = vsub.f32 %v166, %v1920
      %1922 = vmatpush1.msra.mxu0 %v1921
      %1923 = vmatprep.subr.mxu0 0.0
      %v1924 = vand.u32 %v167, 4294901760
      %v1925 = vsub.f32 %v167, %v1924
      %1926 = vmatpush1.msra.mxu0 %v1925
      %1927 = vmatprep.subr.mxu0 0.0
      %1928 = vmatpush1.msra.mxu0 0.0
      %1929 = vmatprep.subr.mxu0 0.0
      %1930 = vmatpush1.msra.mxu0 0.0
      %1931 = vmatprep.subr.mxu0 0.0
      %1932 = vmatpush1.msra.mxu0 0.0
      %1933 = vmatprep.subr.mxu0 0.0
      %1934 = vmatpush1.msra.mxu0 0.0
      %1935 = vmatprep.subr.mxu0 0.0
      %1936 = vmatpush1.msra.mxu0 0.0
      %1937 = vmatprep.subr.mxu0 0.0
      %1938 = vmatpush1.msra.mxu0 0.0
      %1939 = vmatprep.subr.mxu0 0.0
      %1940 = vmatpush1.msra.mxu0 0.0
      %1941 = vmatprep.subr.mxu0 0.0
      %1942 = vmatpush1.msra.mxu0 0.0
      %1943 = vmatprep.subr.mxu0 0.0
      %1944 = vmatpush1.msra.mxu0 0.0
      %1945 = vmatprep.subr.mxu0 0.0
      %1946 = vmatpush1.msra.mxu0 0.0
      %1947 = vmatprep.subr.mxu0 0.0
      %1948 = vmatpush1.msra.mxu0 0.0
      %1949 = vmatprep.subr.mxu0 0.0
      %1950 = vmatpush1.msra.mxu0 0.0
      %1951 = vmatprep.subr.mxu0 0.0
      %1952 = vmatpush1.msra.mxu0 0.0
      %1953 = vmatprep.subr.mxu0 0.0
      %1954 = vmatpush1.msra.mxu0 0.0
      %1955 = vmatprep.subr.mxu0 0.0
      %1956 = vmatpush1.msra.mxu0 0.0
      %1957 = vmatprep.subr.mxu0 0.0
      %1958 = vmatpush1.msra.mxu0 0.0
      %1959 = vmatprep.subr.mxu0 0.0
      %1960 = vmatpush1.msra.mxu0 0.0
      %1961 = vmatprep.subr.mxu0 0.0
      %1962 = vmatpush1.msra.mxu0 0.0
      %1963 = vmatprep.subr.mxu0 0.0
      %1964 = vmatpush1.msra.mxu0 0.0
      %1965 = vmatprep.subr.mxu0 0.0
      %1966 = vmatpush1.msra.mxu0 0.0
      %1967 = vmatprep.subr.mxu0 0.0
      %1968 = vmatpush1.msra.mxu0 0.0
      %1969 = vmatprep.subr.mxu0 0.0
      %1970 = vmatpush1.msra.mxu0 0.0
      %1971 = vmatprep.subr.mxu0 0.0
      %1972 = vmatpush1.msra.mxu0 0.0
      %1973 = vmatprep.subr.mxu0 0.0
      %1974 = vmatpush1.msra.mxu0 0.0
      %1975 = vmatprep.subr.mxu0 0.0
      %1976 = vmatpush1.msra.mxu0 0.0
      %1977 = vmatprep.subr.mxu0 0.0
      %1978 = vmatpush1.msra.mxu0 0.0
      %1979 = vmatprep.subr.mxu0 0.0
      %1980 = vmatpush1.msra.mxu0 0.0
      %1981 = vmatprep.subr.mxu0 0.0
      %1982 = vmatpush1.msra.mxu0 0.0
      %1983 = vmatprep.mubr.f32.mxu0 0.0
      %v1984 = vand.u32 %v1739, 4294901760
      %v1985 = vsub.f32 %v1739, %v1984
      %1986 = vmatmul.mubr.f32.gmra.mrb[0].mxu0 %v1985
      %v1987 = vpop.f32.mrb[0].mxu0
      %v1988 = vadd.f32 %v1908, %v1987
      %v1989 = vpop.f32.mrb[0].mxu0
      %1990 = vdwg.mxu0
      %1991 = vmatprep.subr.mxu0 0.0
      %v1992 = vand.u32 %v164, 4294901760
      %1993 = vmatpush1.msra.mxu0 %v1992
      %1994 = vmatprep.subr.mxu0 0.0
      %v1995 = vand.u32 %v165, 4294901760
      %1996 = vmatpush1.msra.mxu0 %v1995
      %1997 = vmatprep.subr.mxu0 0.0
      %v1998 = vand.u32 %v166, 4294901760
      %1999 = vmatpush1.msra.mxu0 %v1998
      %2000 = vmatprep.subr.mxu0 0.0
      %v2001 = vand.u32 %v167, 4294901760
      %2002 = vmatpush1.msra.mxu0 %v2001
      %2003 = vmatprep.subr.mxu0 0.0
      %2004 = vmatpush1.msra.mxu0 0.0
      %2005 = vmatprep.subr.mxu0 0.0
      %2006 = vmatpush1.msra.mxu0 0.0
      %2007 = vmatprep.subr.mxu0 0.0
      %2008 = vmatpush1.msra.mxu0 0.0
      %2009 = vmatprep.subr.mxu0 0.0
      %2010 = vmatpush1.msra.mxu0 0.0
      %2011 = vmatprep.subr.mxu0 0.0
      %2012 = vmatpush1.msra.mxu0 0.0
      %2013 = vmatprep.subr.mxu0 0.0
      %2014 = vmatpush1.msra.mxu0 0.0
      %2015 = vmatprep.subr.mxu0 0.0
      %2016 = vmatpush1.msra.mxu0 0.0
      %2017 = vmatprep.subr.mxu0 0.0
      %2018 = vmatpush1.msra.mxu0 0.0
      %2019 = vmatprep.subr.mxu0 0.0
      %2020 = vmatpush1.msra.mxu0 0.0
      %2021 = vmatprep.subr.mxu0 0.0
      %2022 = vmatpush1.msra.mxu0 0.0
      %2023 = vmatprep.subr.mxu0 0.0
      %2024 = vmatpush1.msra.mxu0 0.0
      %2025 = vmatprep.subr.mxu0 0.0
      %2026 = vmatpush1.msra.mxu0 0.0
      %2027 = vmatprep.subr.mxu0 0.0
      %2028 = vmatpush1.msra.mxu0 0.0
      %2029 = vmatprep.subr.mxu0 0.0
      %2030 = vmatpush1.msra.mxu0 0.0
      %2031 = vmatprep.subr.mxu0 0.0
      %2032 = vmatpush1.msra.mxu0 0.0
      %2033 = vmatprep.subr.mxu0 0.0
      %2034 = vmatpush1.msra.mxu0 0.0
      %2035 = vmatprep.subr.mxu0 0.0
      %2036 = vmatpush1.msra.mxu0 0.0
      %2037 = vmatprep.subr.mxu0 0.0
      %2038 = vmatpush1.msra.mxu0 0.0
      %2039 = vmatprep.subr.mxu0 0.0
      %2040 = vmatpush1.msra.mxu0 0.0
      %2041 = vmatprep.subr.mxu0 0.0
      %2042 = vmatpush1.msra.mxu0 0.0
      %2043 = vmatprep.subr.mxu0 0.0
      %2044 = vmatpush1.msra.mxu0 0.0
      %2045 = vmatprep.subr.mxu0 0.0
      %2046 = vmatpush1.msra.mxu0 0.0
      %2047 = vmatprep.subr.mxu0 0.0
      %2048 = vmatpush1.msra.mxu0 0.0
      %2049 = vmatprep.subr.mxu0 0.0
      %2050 = vmatpush1.msra.mxu0 0.0
      %2051 = vmatprep.subr.mxu0 0.0
      %2052 = vmatpush1.msra.mxu0 0.0
      %2053 = vmatprep.subr.mxu0 0.0
      %2054 = vmatpush1.msra.mxu0 0.0
      %2055 = vmatprep.subr.mxu0 0.0
      %2056 = vmatpush1.msra.mxu0 0.0
      %2057 = vmatprep.subr.mxu0 0.0
      %2058 = vmatpush1.msra.mxu0 0.0
      %2059 = vmatprep.mubr.f32.mxu0 0.0
      %v2060 = vand.u32 %v1739, 4294901760
      %v2061 = vsub.f32 %v1739, %v2060
      %v2062 = vand.u32 %v2061, 4294901760
      %2063 = vmatmul.mubr.f32.gmra.mrb[0].mxu0 %v2062
      %v2064 = vpop.f32.mrb[0].mxu0
      %v2065 = vadd.f32 %v1988, %v2064
      %v2066 = vpop.f32.mrb[0].mxu0
      %2067 = vdwg.mxu0
      %2068 = vmatprep.subr.mxu0 0.0
      %v2069 = vand.u32 %v164, 4294901760
      %v2070 = vsub.f32 %v164, %v2069
      %v2071 = vand.u32 %v2070, 4294901760
      %2072 = vmatpush1.msra.mxu0 %v2071
      %2073 = vmatprep.subr.mxu0 0.0
      %v2074 = vand.u32 %v165, 4294901760
      %v2075 = vsub.f32 %v165, %v2074
      %v2076 = vand.u32 %v2075, 4294901760
      %2077 = vmatpush1.msra.mxu0 %v2076
      %2078 = vmatprep.subr.mxu0 0.0
      %v2079 = vand.u32 %v166, 4294901760
      %v2080 = vsub.f32 %v166, %v2079
      %v2081 = vand.u32 %v2080, 4294901760
      %2082 = vmatpush1.msra.mxu0 %v2081
      %2083 = vmatprep.subr.mxu0 0.0
      %v2084 = vand.u32 %v167, 4294901760
      %v2085 = vsub.f32 %v167, %v2084
      %v2086 = vand.u32 %v2085, 4294901760
      %2087 = vmatpush1.msra.mxu0 %v2086
      %2088 = vmatprep.subr.mxu0 0.0
      %2089 = vmatpush1.msra.mxu0 0.0
      %2090 = vmatprep.subr.mxu0 0.0
      %2091 = vmatpush1.msra.mxu0 0.0
      %2092 = vmatprep.subr.mxu0 0.0
      %2093 = vmatpush1.msra.mxu0 0.0
      %2094 = vmatprep.subr.mxu0 0.0
      %2095 = vmatpush1.msra.mxu0 0.0
      %2096 = vmatprep.subr.mxu0 0.0
      %2097 = vmatpush1.msra.mxu0 0.0
      %2098 = vmatprep.subr.mxu0 0.0
      %2099 = vmatpush1.msra.mxu0 0.0
      %2100 = vmatprep.subr.mxu0 0.0
      %2101 = vmatpush1.msra.mxu0 0.0
      %2102 = vmatprep.subr.mxu0 0.0
      %2103 = vmatpush1.msra.mxu0 0.0
      %2104 = vmatprep.subr.mxu0 0.0
      %2105 = vmatpush1.msra.mxu0 0.0
      %2106 = vmatprep.subr.mxu0 0.0
      %2107 = vmatpush1.msra.mxu0 0.0
      %2108 = vmatprep.subr.mxu0 0.0
      %2109 = vmatpush1.msra.mxu0 0.0
      %2110 = vmatprep.subr.mxu0 0.0
      %2111 = vmatpush1.msra.mxu0 0.0
      %2112 = vmatprep.subr.mxu0 0.0
      %2113 = vmatpush1.msra.mxu0 0.0
      %2114 = vmatprep.subr.mxu0 0.0
      %2115 = vmatpush1.msra.mxu0 0.0
      %2116 = vmatprep.subr.mxu0 0.0
      %2117 = vmatpush1.msra.mxu0 0.0
      %2118 = vmatprep.subr.mxu0 0.0
      %2119 = vmatpush1.msra.mxu0 0.0
      %2120 = vmatprep.subr.mxu0 0.0
      %2121 = vmatpush1.msra.mxu0 0.0
      %2122 = vmatprep.subr.mxu0 0.0
      %2123 = vmatpush1.msra.mxu0 0.0
      %2124 = vmatprep.subr.mxu0 0.0
      %2125 = vmatpush1.msra.mxu0 0.0
      %2126 = vmatprep.subr.mxu0 0.0
      %2127 = vmatpush1.msra.mxu0 0.0
      %2128 = vmatprep.subr.mxu0 0.0
      %2129 = vmatpush1.msra.mxu0 0.0
      %2130 = vmatprep.subr.mxu0 0.0
      %2131 = vmatpush1.msra.mxu0 0.0
      %2132 = vmatprep.subr.mxu0 0.0
      %2133 = vmatpush1.msra.mxu0 0.0
      %2134 = vmatprep.subr.mxu0 0.0
      %2135 = vmatpush1.msra.mxu0 0.0
      %2136 = vmatprep.subr.mxu0 0.0
      %2137 = vmatpush1.msra.mxu0 0.0
      %2138 = vmatprep.subr.mxu0 0.0
      %2139 = vmatpush1.msra.mxu0 0.0
      %2140 = vmatprep.subr.mxu0 0.0
      %2141 = vmatpush1.msra.mxu0 0.0
      %2142 = vmatprep.subr.mxu0 0.0
      %2143 = vmatpush1.msra.mxu0 0.0
      %2144 = vmatprep.mubr.f32.mxu0 0.0
      %v2145 = vand.u32 %v1739, 4294901760
      %2146 = vmatmul.mubr.f32.gmra.mrb[0].mxu0 %v2145
      %v2147 = vpop.f32.mrb[0].mxu0
      %v2148 = vadd.f32 %v2065, %v2147
      %v2149 = vpop.f32.mrb[0].mxu0
      %2150 = vdwg.mxu0
      %2151 = vmatprep.subr.mxu0 0.0
      %v2152 = vand.u32 %v164, 4294901760
      %2153 = vmatpush1.msra.mxu0 %v2152
      %2154 = vmatprep.subr.mxu0 0.0
      %v2155 = vand.u32 %v165, 4294901760
      %2156 = vmatpush1.msra.mxu0 %v2155
      %2157 = vmatprep.subr.mxu0 0.0
      %v2158 = vand.u32 %v166, 4294901760
      %2159 = vmatpush1.msra.mxu0 %v2158
      %2160 = vmatprep.subr.mxu0 0.0
      %v2161 = vand.u32 %v167, 4294901760
      %2162 = vmatpush1.msra.mxu0 %v2161
      %2163 = vmatprep.subr.mxu0 0.0
      %2164 = vmatpush1.msra.mxu0 0.0
      %2165 = vmatprep.subr.mxu0 0.0
      %2166 = vmatpush1.msra.mxu0 0.0
      %2167 = vmatprep.subr.mxu0 0.0
      %2168 = vmatpush1.msra.mxu0 0.0
      %2169 = vmatprep.subr.mxu0 0.0
      %2170 = vmatpush1.msra.mxu0 0.0
      %2171 = vmatprep.subr.mxu0 0.0
      %2172 = vmatpush1.msra.mxu0 0.0
      %2173 = vmatprep.subr.mxu0 0.0
      %2174 = vmatpush1.msra.mxu0 0.0
      %2175 = vmatprep.subr.mxu0 0.0
      %2176 = vmatpush1.msra.mxu0 0.0
      %2177 = vmatprep.subr.mxu0 0.0
      %2178 = vmatpush1.msra.mxu0 0.0
      %2179 = vmatprep.subr.mxu0 0.0
      %2180 = vmatpush1.msra.mxu0 0.0
      %2181 = vmatprep.subr.mxu0 0.0
      %2182 = vmatpush1.msra.mxu0 0.0
      %2183 = vmatprep.subr.mxu0 0.0
      %2184 = vmatpush1.msra.mxu0 0.0
      %2185 = vmatprep.subr.mxu0 0.0
      %2186 = vmatpush1.msra.mxu0 0.0
      %2187 = vmatprep.subr.mxu0 0.0
      %2188 = vmatpush1.msra.mxu0 0.0
      %2189 = vmatprep.subr.mxu0 0.0
      %2190 = vmatpush1.msra.mxu0 0.0
      %2191 = vmatprep.subr.mxu0 0.0
      %2192 = vmatpush1.msra.mxu0 0.0
      %2193 = vmatprep.subr.mxu0 0.0
      %2194 = vmatpush1.msra.mxu0 0.0
      %2195 = vmatprep.subr.mxu0 0.0
      %2196 = vmatpush1.msra.mxu0 0.0
      %2197 = vmatprep.subr.mxu0 0.0
      %2198 = vmatpush1.msra.mxu0 0.0
      %2199 = vmatprep.subr.mxu0 0.0
      %2200 = vmatpush1.msra.mxu0 0.0
      %2201 = vmatprep.subr.mxu0 0.0
      %2202 = vmatpush1.msra.mxu0 0.0
      %2203 = vmatprep.subr.mxu0 0.0
      %2204 = vmatpush1.msra.mxu0 0.0
      %2205 = vmatprep.subr.mxu0 0.0
      %2206 = vmatpush1.msra.mxu0 0.0
      %2207 = vmatprep.subr.mxu0 0.0
      %2208 = vmatpush1.msra.mxu0 0.0
      %2209 = vmatprep.subr.mxu0 0.0
      %2210 = vmatpush1.msra.mxu0 0.0
      %2211 = vmatprep.subr.mxu0 0.0
      %2212 = vmatpush1.msra.mxu0 0.0
      %2213 = vmatprep.subr.mxu0 0.0
      %2214 = vmatpush1.msra.mxu0 0.0
      %2215 = vmatprep.subr.mxu0 0.0
      %2216 = vmatpush1.msra.mxu0 0.0
      %2217 = vmatprep.subr.mxu0 0.0
      %2218 = vmatpush1.msra.mxu0 0.0
      %2219 = vmatprep.mubr.f32.mxu0 0.0
      %v2220 = vand.u32 %v1739, 4294901760
      %2221 = vmatmul.mubr.f32.gmra.mrb[0].mxu0 %v2220
      %v2222 = vpop.f32.mrb[0].mxu0
      %v2223 = vadd.f32 %v2148, %v2222
      %v2224 = vpop.f32.mrb[0].mxu0
      %2225 = vdwg.mxu0
      %v2226 = vadd.f32 %v1738, %v2223
      %v2227 = vtanh.pop %v2226
      %v2228 = vxor.u32 %v2226, 2147483648
      %v2229 = vmul.f32 %v2228, 1.442695
      %v2230 = vpow.pop %v2229
      %v2231 = vadd.f32 %v2230, 1.0
      %v2232 = vrcp.pop %v2231
      %v2233 = vmul.f32 1.0, %v2232
      %v2234 = vsel %vm172, %v2227, %v2233
      %v2235 = vmul.f32 %v2234, %v1724
      %2237 = vrot.lane.b32.xlu0 %v2234, 64
      %v2238 = vpop.permute.xlu0 %2237
      %v2240 = vmul.f32 %v2234, %v2238
      %2242 = vrot.lane.b32.xlu0 %v2240, 32
      %v2243 = vpop.permute.xlu0 %2242
      %v2245 = vadd.f32 %v2235, %v2243
      %v2246 = vtanh.pop %v2245
      %2248 = vrot.lane.b32.xlu0 %v2246, 64
      %v2249 = vpop.permute.xlu0 %2248
      %v2251 = vmul.f32 %v2234, %v2249
      %2253 = vrot.lane.b32.xlu0 %v2251, 32
      %v2254 = vpop.permute.xlu0 %2253
      %s2256 = scalar_lea.vmem %s163, 6
      %2257 = vst.msk [vmem:[%s2256] sm:$0x3] %vm693, %v2254
      %s2258 = scalar_lea.vmem %s153, 8
      %v2259 = vld [vmem:[%s2258] sm:$0x3]
      %v2260 = vsel %vm174, %v2254, 0
      %2262 = vmatprep.subr.mxu0 0.0
      %v2263 = vand.u32 %v164, 4294901760
      %2264 = vmatpush1.msra.mxu0 %v2263
      %2265 = vmatprep.subr.mxu0 0.0
      %v2266 = vand.u32 %v165, 4294901760
      %2267 = vmatpush1.msra.mxu0 %v2266
      %2268 = vmatprep.subr.mxu0 0.0
      %v2269 = vand.u32 %v166, 4294901760
      %2270 = vmatpush1.msra.mxu0 %v2269
      %2271 = vmatprep.subr.mxu0 0.0
      %v2272 = vand.u32 %v167, 4294901760
      %2273 = vmatpush1.msra.mxu0 %v2272
      %2274 = vmatprep.subr.mxu0 0.0
      %2275 = vmatpush1.msra.mxu0 0.0
      %2276 = vmatprep.subr.mxu0 0.0
      %2277 = vmatpush1.msra.mxu0 0.0
      %2278 = vmatprep.subr.mxu0 0.0
      %2279 = vmatpush1.msra.mxu0 0.0
      %2280 = vmatprep.subr.mxu0 0.0
      %2281 = vmatpush1.msra.mxu0 0.0
      %2282 = vmatprep.subr.mxu0 0.0
      %2283 = vmatpush1.msra.mxu0 0.0
      %2284 = vmatprep.subr.mxu0 0.0
      %2285 = vmatpush1.msra.mxu0 0.0
      %2286 = vmatprep.subr.mxu0 0.0
      %2287 = vmatpush1.msra.mxu0 0.0
      %2288 = vmatprep.subr.mxu0 0.0
      %2289 = vmatpush1.msra.mxu0 0.0
      %2290 = vmatprep.subr.mxu0 0.0
      %2291 = vmatpush1.msra.mxu0 0.0
      %2292 = vmatprep.subr.mxu0 0.0
      %2293 = vmatpush1.msra.mxu0 0.0
      %2294 = vmatprep.subr.mxu0 0.0
      %2295 = vmatpush1.msra.mxu0 0.0
      %2296 = vmatprep.subr.mxu0 0.0
      %2297 = vmatpush1.msra.mxu0 0.0
      %2298 = vmatprep.subr.mxu0 0.0
      %2299 = vmatpush1.msra.mxu0 0.0
      %2300 = vmatprep.subr.mxu0 0.0
      %2301 = vmatpush1.msra.mxu0 0.0
      %2302 = vmatprep.subr.mxu0 0.0
      %2303 = vmatpush1.msra.mxu0 0.0
      %2304 = vmatprep.subr.mxu0 0.0
      %2305 = vmatpush1.msra.mxu0 0.0
      %2306 = vmatprep.subr.mxu0 0.0
      %2307 = vmatpush1.msra.mxu0 0.0
      %2308 = vmatprep.subr.mxu0 0.0
      %2309 = vmatpush1.msra.mxu0 0.0
      %2310 = vmatprep.subr.mxu0 0.0
      %2311 = vmatpush1.msra.mxu0 0.0
      %2312 = vmatprep.subr.mxu0 0.0
      %2313 = vmatpush1.msra.mxu0 0.0
      %2314 = vmatprep.subr.mxu0 0.0
      %2315 = vmatpush1.msra.mxu0 0.0
      %2316 = vmatprep.subr.mxu0 0.0
      %2317 = vmatpush1.msra.mxu0 0.0
      %2318 = vmatprep.subr.mxu0 0.0
      %2319 = vmatpush1.msra.mxu0 0.0
      %2320 = vmatprep.subr.mxu0 0.0
      %2321 = vmatpush1.msra.mxu0 0.0
      %2322 = vmatprep.subr.mxu0 0.0
      %2323 = vmatpush1.msra.mxu0 0.0
      %2324 = vmatprep.subr.mxu0 0.0
      %2325 = vmatpush1.msra.mxu0 0.0
      %2326 = vmatprep.subr.mxu0 0.0
      %2327 = vmatpush1.msra.mxu0 0.0
      %2328 = vmatprep.subr.mxu0 0.0
      %2329 = vmatpush1.msra.mxu0 0.0
      %2330 = vmatprep.mubr.f32.mxu0 0.0
      %v2331 = vand.u32 %v2260, 4294901760
      %v2332 = vsub.f32 %v2260, %v2331
      %v2333 = vand.u32 %v2332, 4294901760
      %v2334 = vsub.f32 %v2332, %v2333
      %v2335 = vand.u32 %v2334, 4294901760
      %2336 = vmatmul.mubr.f32.gmra.mrb[0].mxu0 %v2335
      %v2337 = vpop.f32.mrb[0].mxu0
      %v2338 = vadd.f32 0.0, %v2337
      %v2339 = vpop.f32.mrb[0].mxu0
      %2340 = vdwg.mxu0
      %2341 = vmatprep.subr.mxu0 0.0
      %v2342 = vand.u32 %v164, 4294901760
      %v2343 = vsub.f32 %v164, %v2342
      %v2344 = vand.u32 %v2343, 4294901760
      %v2345 = vsub.f32 %v2343, %v2344
      %v2346 = vand.u32 %v2345, 4294901760
      %2347 = vmatpush1.msra.mxu0 %v2346
      %2348 = vmatprep.subr.mxu0 0.0
      %v2349 = vand.u32 %v165, 4294901760
      %v2350 = vsub.f32 %v165, %v2349
      %v2351 = vand.u32 %v2350, 4294901760
      %v2352 = vsub.f32 %v2350, %v2351
      %v2353 = vand.u32 %v2352, 4294901760
      %2354 = vmatpush1.msra.mxu0 %v2353
      %2355 = vmatprep.subr.mxu0 0.0
      %v2356 = vand.u32 %v166, 4294901760
      %v2357 = vsub.f32 %v166, %v2356
      %v2358 = vand.u32 %v2357, 4294901760
      %v2359 = vsub.f32 %v2357, %v2358
      %v2360 = vand.u32 %v2359, 4294901760
      %2361 = vmatpush1.msra.mxu0 %v2360
      %2362 = vmatprep.subr.mxu0 0.0
      %v2363 = vand.u32 %v167, 4294901760
      %v2364 = vsub.f32 %v167, %v2363
      %v2365 = vand.u32 %v2364, 4294901760
      %v2366 = vsub.f32 %v2364, %v2365
      %v2367 = vand.u32 %v2366, 4294901760
      %2368 = vmatpush1.msra.mxu0 %v2367
      %2369 = vmatprep.subr.mxu0 0.0
      %2370 = vmatpush1.msra.mxu0 0.0
      %2371 = vmatprep.subr.mxu0 0.0
      %2372 = vmatpush1.msra.mxu0 0.0
      %2373 = vmatprep.subr.mxu0 0.0
      %2374 = vmatpush1.msra.mxu0 0.0
      %2375 = vmatprep.subr.mxu0 0.0
      %2376 = vmatpush1.msra.mxu0 0.0
      %2377 = vmatprep.subr.mxu0 0.0
      %2378 = vmatpush1.msra.mxu0 0.0
      %2379 = vmatprep.subr.mxu0 0.0
      %2380 = vmatpush1.msra.mxu0 0.0
      %2381 = vmatprep.subr.mxu0 0.0
      %2382 = vmatpush1.msra.mxu0 0.0
      %2383 = vmatprep.subr.mxu0 0.0
      %2384 = vmatpush1.msra.mxu0 0.0
      %2385 = vmatprep.subr.mxu0 0.0
      %2386 = vmatpush1.msra.mxu0 0.0
      %2387 = vmatprep.subr.mxu0 0.0
      %2388 = vmatpush1.msra.mxu0 0.0
      %2389 = vmatprep.subr.mxu0 0.0
      %2390 = vmatpush1.msra.mxu0 0.0
      %2391 = vmatprep.subr.mxu0 0.0
      %2392 = vmatpush1.msra.mxu0 0.0
      %2393 = vmatprep.subr.mxu0 0.0
      %2394 = vmatpush1.msra.mxu0 0.0
      %2395 = vmatprep.subr.mxu0 0.0
      %2396 = vmatpush1.msra.mxu0 0.0
      %2397 = vmatprep.subr.mxu0 0.0
      %2398 = vmatpush1.msra.mxu0 0.0
      %2399 = vmatprep.subr.mxu0 0.0
      %2400 = vmatpush1.msra.mxu0 0.0
      %2401 = vmatprep.subr.mxu0 0.0
      %2402 = vmatpush1.msra.mxu0 0.0
      %2403 = vmatprep.subr.mxu0 0.0
      %2404 = vmatpush1.msra.mxu0 0.0
      %2405 = vmatprep.subr.mxu0 0.0
      %2406 = vmatpush1.msra.mxu0 0.0
      %2407 = vmatprep.subr.mxu0 0.0
      %2408 = vmatpush1.msra.mxu0 0.0
      %2409 = vmatprep.subr.mxu0 0.0
      %2410 = vmatpush1.msra.mxu0 0.0
      %2411 = vmatprep.subr.mxu0 0.0
      %2412 = vmatpush1.msra.mxu0 0.0
      %2413 = vmatprep.subr.mxu0 0.0
      %2414 = vmatpush1.msra.mxu0 0.0
      %2415 = vmatprep.subr.mxu0 0.0
      %2416 = vmatpush1.msra.mxu0 0.0
      %2417 = vmatprep.subr.mxu0 0.0
      %2418 = vmatpush1.msra.mxu0 0.0
      %2419 = vmatprep.subr.mxu0 0.0
      %2420 = vmatpush1.msra.mxu0 0.0
      %2421 = vmatprep.subr.mxu0 0.0
      %2422 = vmatpush1.msra.mxu0 0.0
      %2423 = vmatprep.subr.mxu0 0.0
      %2424 = vmatpush1.msra.mxu0 0.0
      %2425 = vmatprep.mubr.f32.mxu0 0.0
      %v2426 = vand.u32 %v2260, 4294901760
      %2427 = vmatmul.mubr.f32.gmra.mrb[0].mxu0 %v2426
      %v2428 = vpop.f32.mrb[0].mxu0
      %v2429 = vadd.f32 %v2338, %v2428
      %v2430 = vpop.f32.mrb[0].mxu0
      %2431 = vdwg.mxu0
      %2432 = vmatprep.subr.mxu0 0.0
      %v2433 = vand.u32 %v164, 4294901760
      %v2434 = vsub.f32 %v164, %v2433
      %2435 = vmatpush1.msra.mxu0 %v2434
      %2436 = vmatprep.subr.mxu0 0.0
      %v2437 = vand.u32 %v165, 4294901760
      %v2438 = vsub.f32 %v165, %v2437
      %2439 = vmatpush1.msra.mxu0 %v2438
      %2440 = vmatprep.subr.mxu0 0.0
      %v2441 = vand.u32 %v166, 4294901760
      %v2442 = vsub.f32 %v166, %v2441
      %2443 = vmatpush1.msra.mxu0 %v2442
      %2444 = vmatprep.subr.mxu0 0.0
      %v2445 = vand.u32 %v167, 4294901760
      %v2446 = vsub.f32 %v167, %v2445
      %2447 = vmatpush1.msra.mxu0 %v2446
      %2448 = vmatprep.subr.mxu0 0.0
      %2449 = vmatpush1.msra.mxu0 0.0
      %2450 = vmatprep.subr.mxu0 0.0
      %2451 = vmatpush1.msra.mxu0 0.0
      %2452 = vmatprep.subr.mxu0 0.0
      %2453 = vmatpush1.msra.mxu0 0.0
      %2454 = vmatprep.subr.mxu0 0.0
      %2455 = vmatpush1.msra.mxu0 0.0
      %2456 = vmatprep.subr.mxu0 0.0
      %2457 = vmatpush1.msra.mxu0 0.0
      %2458 = vmatprep.subr.mxu0 0.0
      %2459 = vmatpush1.msra.mxu0 0.0
      %2460 = vmatprep.subr.mxu0 0.0
      %2461 = vmatpush1.msra.mxu0 0.0
      %2462 = vmatprep.subr.mxu0 0.0
      %2463 = vmatpush1.msra.mxu0 0.0
      %2464 = vmatprep.subr.mxu0 0.0
      %2465 = vmatpush1.msra.mxu0 0.0
      %2466 = vmatprep.subr.mxu0 0.0
      %2467 = vmatpush1.msra.mxu0 0.0
      %2468 = vmatprep.subr.mxu0 0.0
      %2469 = vmatpush1.msra.mxu0 0.0
      %2470 = vmatprep.subr.mxu0 0.0
      %2471 = vmatpush1.msra.mxu0 0.0
      %2472 = vmatprep.subr.mxu0 0.0
      %2473 = vmatpush1.msra.mxu0 0.0
      %2474 = vmatprep.subr.mxu0 0.0
      %2475 = vmatpush1.msra.mxu0 0.0
      %2476 = vmatprep.subr.mxu0 0.0
      %2477 = vmatpush1.msra.mxu0 0.0
      %2478 = vmatprep.subr.mxu0 0.0
      %2479 = vmatpush1.msra.mxu0 0.0
      %2480 = vmatprep.subr.mxu0 0.0
      %2481 = vmatpush1.msra.mxu0 0.0
      %2482 = vmatprep.subr.mxu0 0.0
      %2483 = vmatpush1.msra.mxu0 0.0
      %2484 = vmatprep.subr.mxu0 0.0
      %2485 = vmatpush1.msra.mxu0 0.0
      %2486 = vmatprep.subr.mxu0 0.0
      %2487 = vmatpush1.msra.mxu0 0.0
      %2488 = vmatprep.subr.mxu0 0.0
      %2489 = vmatpush1.msra.mxu0 0.0
      %2490 = vmatprep.subr.mxu0 0.0
      %2491 = vmatpush1.msra.mxu0 0.0
      %2492 = vmatprep.subr.mxu0 0.0
      %2493 = vmatpush1.msra.mxu0 0.0
      %2494 = vmatprep.subr.mxu0 0.0
      %2495 = vmatpush1.msra.mxu0 0.0
      %2496 = vmatprep.subr.mxu0 0.0
      %2497 = vmatpush1.msra.mxu0 0.0
      %2498 = vmatprep.subr.mxu0 0.0
      %2499 = vmatpush1.msra.mxu0 0.0
      %2500 = vmatprep.subr.mxu0 0.0
      %2501 = vmatpush1.msra.mxu0 0.0
      %2502 = vmatprep.subr.mxu0 0.0
      %2503 = vmatpush1.msra.mxu0 0.0
      %2504 = vmatprep.mubr.f32.mxu0 0.0
      %v2505 = vand.u32 %v2260, 4294901760
      %v2506 = vsub.f32 %v2260, %v2505
      %2507 = vmatmul.mubr.f32.gmra.mrb[0].mxu0 %v2506
      %v2508 = vpop.f32.mrb[0].mxu0
      %v2509 = vadd.f32 %v2429, %v2508
      %v2510 = vpop.f32.mrb[0].mxu0
      %2511 = vdwg.mxu0
      %2512 = vmatprep.subr.mxu0 0.0
      %v2513 = vand.u32 %v164, 4294901760
      %2514 = vmatpush1.msra.mxu0 %v2513
      %2515 = vmatprep.subr.mxu0 0.0
      %v2516 = vand.u32 %v165, 4294901760
      %2517 = vmatpush1.msra.mxu0 %v2516
      %2518 = vmatprep.subr.mxu0 0.0
      %v2519 = vand.u32 %v166, 4294901760
      %2520 = vmatpush1.msra.mxu0 %v2519
      %2521 = vmatprep.subr.mxu0 0.0
      %v2522 = vand.u32 %v167, 4294901760
      %2523 = vmatpush1.msra.mxu0 %v2522
      %2524 = vmatprep.subr.mxu0 0.0
      %2525 = vmatpush1.msra.mxu0 0.0
      %2526 = vmatprep.subr.mxu0 0.0
      %2527 = vmatpush1.msra.mxu0 0.0
      %2528 = vmatprep.subr.mxu0 0.0
      %2529 = vmatpush1.msra.mxu0 0.0
      %2530 = vmatprep.subr.mxu0 0.0
      %2531 = vmatpush1.msra.mxu0 0.0
      %2532 = vmatprep.subr.mxu0 0.0
      %2533 = vmatpush1.msra.mxu0 0.0
      %2534 = vmatprep.subr.mxu0 0.0
      %2535 = vmatpush1.msra.mxu0 0.0
      %2536 = vmatprep.subr.mxu0 0.0
      %2537 = vmatpush1.msra.mxu0 0.0
      %2538 = vmatprep.subr.mxu0 0.0
      %2539 = vmatpush1.msra.mxu0 0.0
      %2540 = vmatprep.subr.mxu0 0.0
      %2541 = vmatpush1.msra.mxu0 0.0
      %2542 = vmatprep.subr.mxu0 0.0
      %2543 = vmatpush1.msra.mxu0 0.0
      %2544 = vmatprep.subr.mxu0 0.0
      %2545 = vmatpush1.msra.mxu0 0.0
      %2546 = vmatprep.subr.mxu0 0.0
      %2547 = vmatpush1.msra.mxu0 0.0
      %2548 = vmatprep.subr.mxu0 0.0
      %2549 = vmatpush1.msra.mxu0 0.0
      %2550 = vmatprep.subr.mxu0 0.0
      %2551 = vmatpush1.msra.mxu0 0.0
      %2552 = vmatprep.subr.mxu0 0.0
      %2553 = vmatpush1.msra.mxu0 0.0
      %2554 = vmatprep.subr.mxu0 0.0
      %2555 = vmatpush1.msra.mxu0 0.0
      %2556 = vmatprep.subr.mxu0 0.0
      %2557 = vmatpush1.msra.mxu0 0.0
      %2558 = vmatprep.subr.mxu0 0.0
      %2559 = vmatpush1.msra.mxu0 0.0
      %2560 = vmatprep.subr.mxu0 0.0
      %2561 = vmatpush1.msra.mxu0 0.0
      %2562 = vmatprep.subr.mxu0 0.0
      %2563 = vmatpush1.msra.mxu0 0.0
      %2564 = vmatprep.subr.mxu0 0.0
      %2565 = vmatpush1.msra.mxu0 0.0
      %2566 = vmatprep.subr.mxu0 0.0
      %2567 = vmatpush1.msra.mxu0 0.0
      %2568 = vmatprep.subr.mxu0 0.0
      %2569 = vmatpush1.msra.mxu0 0.0
      %2570 = vmatprep.subr.mxu0 0.0
      %2571 = vmatpush1.msra.mxu0 0.0
      %2572 = vmatprep.subr.mxu0 0.0
      %2573 = vmatpush1.msra.mxu0 0.0
      %2574 = vmatprep.subr.mxu0 0.0
      %2575 = vmatpush1.msra.mxu0 0.0
      %2576 = vmatprep.subr.mxu0 0.0
      %2577 = vmatpush1.msra.mxu0 0.0
      %2578 = vmatprep.subr.mxu0 0.0
      %2579 = vmatpush1.msra.mxu0 0.0
      %2580 = vmatprep.mubr.f32.mxu0 0.0
      %v2581 = vand.u32 %v2260, 4294901760
      %v2582 = vsub.f32 %v2260, %v2581
      %v2583 = vand.u32 %v2582, 4294901760
      %2584 = vmatmul.mubr.f32.gmra.mrb[0].mxu0 %v2583
      %v2585 = vpop.f32.mrb[0].mxu0
      %v2586 = vadd.f32 %v2509, %v2585
      %v2587 = vpop.f32.mrb[0].mxu0
      %2588 = vdwg.mxu0
      %2589 = vmatprep.subr.mxu0 0.0
      %v2590 = vand.u32 %v164, 4294901760
      %v2591 = vsub.f32 %v164, %v2590
      %v2592 = vand.u32 %v2591, 4294901760
      %2593 = vmatpush1.msra.mxu0 %v2592
      %2594 = vmatprep.subr.mxu0 0.0
      %v2595 = vand.u32 %v165, 4294901760
      %v2596 = vsub.f32 %v165, %v2595
      %v2597 = vand.u32 %v2596, 4294901760
      %2598 = vmatpush1.msra.mxu0 %v2597
      %2599 = vmatprep.subr.mxu0 0.0
      %v2600 = vand.u32 %v166, 4294901760
      %v2601 = vsub.f32 %v166, %v2600
      %v2602 = vand.u32 %v2601, 4294901760
      %2603 = vmatpush1.msra.mxu0 %v2602
      %2604 = vmatprep.subr.mxu0 0.0
      %v2605 = vand.u32 %v167, 4294901760
      %v2606 = vsub.f32 %v167, %v2605
      %v2607 = vand.u32 %v2606, 4294901760
      %2608 = vmatpush1.msra.mxu0 %v2607
      %2609 = vmatprep.subr.mxu0 0.0
      %2610 = vmatpush1.msra.mxu0 0.0
      %2611 = vmatprep.subr.mxu0 0.0
      %2612 = vmatpush1.msra.mxu0 0.0
      %2613 = vmatprep.subr.mxu0 0.0
      %2614 = vmatpush1.msra.mxu0 0.0
      %2615 = vmatprep.subr.mxu0 0.0
      %2616 = vmatpush1.msra.mxu0 0.0
      %2617 = vmatprep.subr.mxu0 0.0
      %2618 = vmatpush1.msra.mxu0 0.0
      %2619 = vmatprep.subr.mxu0 0.0
      %2620 = vmatpush1.msra.mxu0 0.0
      %2621 = vmatprep.subr.mxu0 0.0
      %2622 = vmatpush1.msra.mxu0 0.0
      %2623 = vmatprep.subr.mxu0 0.0
      %2624 = vmatpush1.msra.mxu0 0.0
      %2625 = vmatprep.subr.mxu0 0.0
      %2626 = vmatpush1.msra.mxu0 0.0
      %2627 = vmatprep.subr.mxu0 0.0
      %2628 = vmatpush1.msra.mxu0 0.0
      %2629 = vmatprep.subr.mxu0 0.0
      %2630 = vmatpush1.msra.mxu0 0.0
      %2631 = vmatprep.subr.mxu0 0.0
      %2632 = vmatpush1.msra.mxu0 0.0
      %2633 = vmatprep.subr.mxu0 0.0
      %2634 = vmatpush1.msra.mxu0 0.0
      %2635 = vmatprep.subr.mxu0 0.0
      %2636 = vmatpush1.msra.mxu0 0.0
      %2637 = vmatprep.subr.mxu0 0.0
      %2638 = vmatpush1.msra.mxu0 0.0
      %2639 = vmatprep.subr.mxu0 0.0
      %2640 = vmatpush1.msra.mxu0 0.0
      %2641 = vmatprep.subr.mxu0 0.0
      %2642 = vmatpush1.msra.mxu0 0.0
      %2643 = vmatprep.subr.mxu0 0.0
      %2644 = vmatpush1.msra.mxu0 0.0
      %2645 = vmatprep.subr.mxu0 0.0
      %2646 = vmatpush1.msra.mxu0 0.0
      %2647 = vmatprep.subr.mxu0 0.0
      %2648 = vmatpush1.msra.mxu0 0.0
      %2649 = vmatprep.subr.mxu0 0.0
      %2650 = vmatpush1.msra.mxu0 0.0
      %2651 = vmatprep.subr.mxu0 0.0
      %2652 = vmatpush1.msra.mxu0 0.0
      %2653 = vmatprep.subr.mxu0 0.0
      %2654 = vmatpush1.msra.mxu0 0.0
      %2655 = vmatprep.subr.mxu0 0.0
      %2656 = vmatpush1.msra.mxu0 0.0
      %2657 = vmatprep.subr.mxu0 0.0
      %2658 = vmatpush1.msra.mxu0 0.0
      %2659 = vmatprep.subr.mxu0 0.0
      %2660 = vmatpush1.msra.mxu0 0.0
      %2661 = vmatprep.subr.mxu0 0.0
      %2662 = vmatpush1.msra.mxu0 0.0
      %2663 = vmatprep.subr.mxu0 0.0
      %2664 = vmatpush1.msra.mxu0 0.0
      %2665 = vmatprep.mubr.f32.mxu0 0.0
      %v2666 = vand.u32 %v2260, 4294901760
      %2667 = vmatmul.mubr.f32.gmra.mrb[0].mxu0 %v2666
      %v2668 = vpop.f32.mrb[0].mxu0
      %v2669 = vadd.f32 %v2586, %v2668
      %v2670 = vpop.f32.mrb[0].mxu0
      %2671 = vdwg.mxu0
      %2672 = vmatprep.subr.mxu0 0.0
      %v2673 = vand.u32 %v164, 4294901760
      %2674 = vmatpush1.msra.mxu0 %v2673
      %2675 = vmatprep.subr.mxu0 0.0
      %v2676 = vand.u32 %v165, 4294901760
      %2677 = vmatpush1.msra.mxu0 %v2676
      %2678 = vmatprep.subr.mxu0 0.0
      %v2679 = vand.u32 %v166, 4294901760
      %2680 = vmatpush1.msra.mxu0 %v2679
      %2681 = vmatprep.subr.mxu0 0.0
      %v2682 = vand.u32 %v167, 4294901760
      %2683 = vmatpush1.msra.mxu0 %v2682
      %2684 = vmatprep.subr.mxu0 0.0
      %2685 = vmatpush1.msra.mxu0 0.0
      %2686 = vmatprep.subr.mxu0 0.0
      %2687 = vmatpush1.msra.mxu0 0.0
      %2688 = vmatprep.subr.mxu0 0.0
      %2689 = vmatpush1.msra.mxu0 0.0
      %2690 = vmatprep.subr.mxu0 0.0
      %2691 = vmatpush1.msra.mxu0 0.0
      %2692 = vmatprep.subr.mxu0 0.0
      %2693 = vmatpush1.msra.mxu0 0.0
      %2694 = vmatprep.subr.mxu0 0.0
      %2695 = vmatpush1.msra.mxu0 0.0
      %2696 = vmatprep.subr.mxu0 0.0
      %2697 = vmatpush1.msra.mxu0 0.0
      %2698 = vmatprep.subr.mxu0 0.0
      %2699 = vmatpush1.msra.mxu0 0.0
      %2700 = vmatprep.subr.mxu0 0.0
      %2701 = vmatpush1.msra.mxu0 0.0
      %2702 = vmatprep.subr.mxu0 0.0
      %2703 = vmatpush1.msra.mxu0 0.0
      %2704 = vmatprep.subr.mxu0 0.0
      %2705 = vmatpush1.msra.mxu0 0.0
      %2706 = vmatprep.subr.mxu0 0.0
      %2707 = vmatpush1.msra.mxu0 0.0
      %2708 = vmatprep.subr.mxu0 0.0
      %2709 = vmatpush1.msra.mxu0 0.0
      %2710 = vmatprep.subr.mxu0 0.0
      %2711 = vmatpush1.msra.mxu0 0.0
      %2712 = vmatprep.subr.mxu0 0.0
      %2713 = vmatpush1.msra.mxu0 0.0
      %2714 = vmatprep.subr.mxu0 0.0
      %2715 = vmatpush1.msra.mxu0 0.0
      %2716 = vmatprep.subr.mxu0 0.0
      %2717 = vmatpush1.msra.mxu0 0.0
      %2718 = vmatprep.subr.mxu0 0.0
      %2719 = vmatpush1.msra.mxu0 0.0
      %2720 = vmatprep.subr.mxu0 0.0
      %2721 = vmatpush1.msra.mxu0 0.0
      %2722 = vmatprep.subr.mxu0 0.0
      %2723 = vmatpush1.msra.mxu0 0.0
      %2724 = vmatprep.subr.mxu0 0.0
      %2725 = vmatpush1.msra.mxu0 0.0
      %2726 = vmatprep.subr.mxu0 0.0
      %2727 = vmatpush1.msra.mxu0 0.0
      %2728 = vmatprep.subr.mxu0 0.0
      %2729 = vmatpush1.msra.mxu0 0.0
      %2730 = vmatprep.subr.mxu0 0.0
      %2731 = vmatpush1.msra.mxu0 0.0
      %2732 = vmatprep.subr.mxu0 0.0
      %2733 = vmatpush1.msra.mxu0 0.0
      %2734 = vmatprep.subr.mxu0 0.0
      %2735 = vmatpush1.msra.mxu0 0.0
      %2736 = vmatprep.subr.mxu0 0.0
      %2737 = vmatpush1.msra.mxu0 0.0
      %2738 = vmatprep.subr.mxu0 0.0
      %2739 = vmatpush1.msra.mxu0 0.0
      %2740 = vmatprep.mubr.f32.mxu0 0.0
      %v2741 = vand.u32 %v2260, 4294901760
      %2742 = vmatmul.mubr.f32.gmra.mrb[0].mxu0 %v2741
      %v2743 = vpop.f32.mrb[0].mxu0
      %v2744 = vadd.f32 %v2669, %v2743
      %v2745 = vpop.f32.mrb[0].mxu0
      %2746 = vdwg.mxu0
      %v2747 = vadd.f32 %v2259, %v2744
      %v2748 = vtanh.pop %v2747
      %v2749 = vxor.u32 %v2747, 2147483648
      %v2750 = vmul.f32 %v2749, 1.442695
      %v2751 = vpow.pop %v2750
      %v2752 = vadd.f32 %v2751, 1.0
      %v2753 = vrcp.pop %v2752
      %v2754 = vmul.f32 1.0, %v2753
      %v2755 = vsel %vm172, %v2748, %v2754
      %v2756 = vmul.f32 %v2755, %v2245
      %2758 = vrot.lane.b32.xlu0 %v2755, 64
      %v2759 = vpop.permute.xlu0 %2758
      %v2761 = vmul.f32 %v2755, %v2759
      %2763 = vrot.lane.b32.xlu0 %v2761, 32
      %v2764 = vpop.permute.xlu0 %2763
      %v2766 = vadd.f32 %v2756, %v2764
      %v2767 = vtanh.pop %v2766
      %2769 = vrot.lane.b32.xlu0 %v2767, 64
      %v2770 = vpop.permute.xlu0 %2769
      %v2772 = vmul.f32 %v2755, %v2770
      %2774 = vrot.lane.b32.xlu0 %v2772, 32
      %v2775 = vpop.permute.xlu0 %2774
      %s2777 = scalar_lea.vmem %s163, 8
      %2778 = vst.msk [vmem:[%s2777] sm:$0x3] %vm693, %v2775
      %s2779 = scalar_lea.vmem %s153, 10
      %v2780 = vld [vmem:[%s2779] sm:$0x3]
      %v2781 = vsel %vm174, %v2775, 0
      %2783 = vmatprep.subr.mxu0 0.0
      %v2784 = vand.u32 %v164, 4294901760
      %2785 = vmatpush1.msra.mxu0 %v2784
      %2786 = vmatprep.subr.mxu0 0.0
      %v2787 = vand.u32 %v165, 4294901760
      %2788 = vmatpush1.msra.mxu0 %v2787
      %2789 = vmatprep.subr.mxu0 0.0
      %v2790 = vand.u32 %v166, 4294901760
      %2791 = vmatpush1.msra.mxu0 %v2790
      %2792 = vmatprep.subr.mxu0 0.0
      %v2793 = vand.u32 %v167, 4294901760
      %2794 = vmatpush1.msra.mxu0 %v2793
      %2795 = vmatprep.subr.mxu0 0.0
      %2796 = vmatpush1.msra.mxu0 0.0
      %2797 = vmatprep.subr.mxu0 0.0
      %2798 = vmatpush1.msra.mxu0 0.0
      %2799 = vmatprep.subr.mxu0 0.0
      %2800 = vmatpush1.msra.mxu0 0.0
      %2801 = vmatprep.subr.mxu0 0.0
      %2802 = vmatpush1.msra.mxu0 0.0
      %2803 = vmatprep.subr.mxu0 0.0
      %2804 = vmatpush1.msra.mxu0 0.0
      %2805 = vmatprep.subr.mxu0 0.0
      %2806 = vmatpush1.msra.mxu0 0.0
      %2807 = vmatprep.subr.mxu0 0.0
      %2808 = vmatpush1.msra.mxu0 0.0
      %2809 = vmatprep.subr.mxu0 0.0
      %2810 = vmatpush1.msra.mxu0 0.0
      %2811 = vmatprep.subr.mxu0 0.0
      %2812 = vmatpush1.msra.mxu0 0.0
      %2813 = vmatprep.subr.mxu0 0.0
      %2814 = vmatpush1.msra.mxu0 0.0
      %2815 = vmatprep.subr.mxu0 0.0
      %2816 = vmatpush1.msra.mxu0 0.0
      %2817 = vmatprep.subr.mxu0 0.0
      %2818 = vmatpush1.msra.mxu0 0.0
      %2819 = vmatprep.subr.mxu0 0.0
      %2820 = vmatpush1.msra.mxu0 0.0
      %2821 = vmatprep.subr.mxu0 0.0
      %2822 = vmatpush1.msra.mxu0 0.0
      %2823 = vmatprep.subr.mxu0 0.0
      %2824 = vmatpush1.msra.mxu0 0.0
      %2825 = vmatprep.subr.mxu0 0.0
      %2826 = vmatpush1.msra.mxu0 0.0
      %2827 = vmatprep.subr.mxu0 0.0
      %2828 = vmatpush1.msra.mxu0 0.0
      %2829 = vmatprep.subr.mxu0 0.0
      %2830 = vmatpush1.msra.mxu0 0.0
      %2831 = vmatprep.subr.mxu0 0.0
      %2832 = vmatpush1.msra.mxu0 0.0
      %2833 = vmatprep.subr.mxu0 0.0
      %2834 = vmatpush1.msra.mxu0 0.0
      %2835 = vmatprep.subr.mxu0 0.0
      %2836 = vmatpush1.msra.mxu0 0.0
      %2837 = vmatprep.subr.mxu0 0.0
      %2838 = vmatpush1.msra.mxu0 0.0
      %2839 = vmatprep.subr.mxu0 0.0
      %2840 = vmatpush1.msra.mxu0 0.0
      %2841 = vmatprep.subr.mxu0 0.0
      %2842 = vmatpush1.msra.mxu0 0.0
      %2843 = vmatprep.subr.mxu0 0.0
      %2844 = vmatpush1.msra.mxu0 0.0
      %2845 = vmatprep.subr.mxu0 0.0
      %2846 = vmatpush1.msra.mxu0 0.0
      %2847 = vmatprep.subr.mxu0 0.0
      %2848 = vmatpush1.msra.mxu0 0.0
      %2849 = vmatprep.subr.mxu0 0.0
      %2850 = vmatpush1.msra.mxu0 0.0
      %2851 = vmatprep.mubr.f32.mxu0 0.0
      %v2852 = vand.u32 %v2781, 4294901760
      %v2853 = vsub.f32 %v2781, %v2852
      %v2854 = vand.u32 %v2853, 4294901760
      %v2855 = vsub.f32 %v2853, %v2854
      %v2856 = vand.u32 %v2855, 4294901760
      %2857 = vmatmul.mubr.f32.gmra.mrb[0].mxu0 %v2856
      %v2858 = vpop.f32.mrb[0].mxu0
      %v2859 = vadd.f32 0.0, %v2858
      %v2860 = vpop.f32.mrb[0].mxu0
      %2861 = vdwg.mxu0
      %2862 = vmatprep.subr.mxu0 0.0
      %v2863 = vand.u32 %v164, 4294901760
      %v2864 = vsub.f32 %v164, %v2863
      %v2865 = vand.u32 %v2864, 4294901760
      %v2866 = vsub.f32 %v2864, %v2865
      %v2867 = vand.u32 %v2866, 4294901760
      %2868 = vmatpush1.msra.mxu0 %v2867
      %2869 = vmatprep.subr.mxu0 0.0
      %v2870 = vand.u32 %v165, 4294901760
      %v2871 = vsub.f32 %v165, %v2870
      %v2872 = vand.u32 %v2871, 4294901760
      %v2873 = vsub.f32 %v2871, %v2872
      %v2874 = vand.u32 %v2873, 4294901760
      %2875 = vmatpush1.msra.mxu0 %v2874
      %2876 = vmatprep.subr.mxu0 0.0
      %v2877 = vand.u32 %v166, 4294901760
      %v2878 = vsub.f32 %v166, %v2877
      %v2879 = vand.u32 %v2878, 4294901760
      %v2880 = vsub.f32 %v2878, %v2879
      %v2881 = vand.u32 %v2880, 4294901760
      %2882 = vmatpush1.msra.mxu0 %v2881
      %2883 = vmatprep.subr.mxu0 0.0
      %v2884 = vand.u32 %v167, 4294901760
      %v2885 = vsub.f32 %v167, %v2884
      %v2886 = vand.u32 %v2885, 4294901760
      %v2887 = vsub.f32 %v2885, %v2886
      %v2888 = vand.u32 %v2887, 4294901760
      %2889 = vmatpush1.msra.mxu0 %v2888
      %2890 = vmatprep.subr.mxu0 0.0
      %2891 = vmatpush1.msra.mxu0 0.0
      %2892 = vmatprep.subr.mxu0 0.0
      %2893 = vmatpush1.msra.mxu0 0.0
      %2894 = vmatprep.subr.mxu0 0.0
      %2895 = vmatpush1.msra.mxu0 0.0
      %2896 = vmatprep.subr.mxu0 0.0
      %2897 = vmatpush1.msra.mxu0 0.0
      %2898 = vmatprep.subr.mxu0 0.0
      %2899 = vmatpush1.msra.mxu0 0.0
      %2900 = vmatprep.subr.mxu0 0.0
      %2901 = vmatpush1.msra.mxu0 0.0
      %2902 = vmatprep.subr.mxu0 0.0
      %2903 = vmatpush1.msra.mxu0 0.0
      %2904 = vmatprep.subr.mxu0 0.0
      %2905 = vmatpush1.msra.mxu0 0.0
      %2906 = vmatprep.subr.mxu0 0.0
      %2907 = vmatpush1.msra.mxu0 0.0
      %2908 = vmatprep.subr.mxu0 0.0
      %2909 = vmatpush1.msra.mxu0 0.0
      %2910 = vmatprep.subr.mxu0 0.0
      %2911 = vmatpush1.msra.mxu0 0.0
      %2912 = vmatprep.subr.mxu0 0.0
      %2913 = vmatpush1.msra.mxu0 0.0
      %2914 = vmatprep.subr.mxu0 0.0
      %2915 = vmatpush1.msra.mxu0 0.0
      %2916 = vmatprep.subr.mxu0 0.0
      %2917 = vmatpush1.msra.mxu0 0.0
      %2918 = vmatprep.subr.mxu0 0.0
      %2919 = vmatpush1.msra.mxu0 0.0
      %2920 = vmatprep.subr.mxu0 0.0
      %2921 = vmatpush1.msra.mxu0 0.0
      %2922 = vmatprep.subr.mxu0 0.0
      %2923 = vmatpush1.msra.mxu0 0.0
      %2924 = vmatprep.subr.mxu0 0.0
      %2925 = vmatpush1.msra.mxu0 0.0
      %2926 = vmatprep.subr.mxu0 0.0
      %2927 = vmatpush1.msra.mxu0 0.0
      %2928 = vmatprep.subr.mxu0 0.0
      %2929 = vmatpush1.msra.mxu0 0.0
      %2930 = vmatprep.subr.mxu0 0.0
      %2931 = vmatpush1.msra.mxu0 0.0
      %2932 = vmatprep.subr.mxu0 0.0
      %2933 = vmatpush1.msra.mxu0 0.0
      %2934 = vmatprep.subr.mxu0 0.0
      %2935 = vmatpush1.msra.mxu0 0.0
      %2936 = vmatprep.subr.mxu0 0.0
      %2937 = vmatpush1.msra.mxu0 0.0
      %2938 = vmatprep.subr.mxu0 0.0
      %2939 = vmatpush1.msra.mxu0 0.0
      %2940 = vmatprep.subr.mxu0 0.0
      %2941 = vmatpush1.msra.mxu0 0.0
      %2942 = vmatprep.subr.mxu0 0.0
      %2943 = vmatpush1.msra.mxu0 0.0
      %2944 = vmatprep.subr.mxu0 0.0
      %2945 = vmatpush1.msra.mxu0 0.0
      %2946 = vmatprep.mubr.f32.mxu0 0.0
      %v2947 = vand.u32 %v2781, 4294901760
      %2948 = vmatmul.mubr.f32.gmra.mrb[0].mxu0 %v2947
      %v2949 = vpop.f32.mrb[0].mxu0
      %v2950 = vadd.f32 %v2859, %v2949
      %v2951 = vpop.f32.mrb[0].mxu0
      %2952 = vdwg.mxu0
      %2953 = vmatprep.subr.mxu0 0.0
      %v2954 = vand.u32 %v164, 4294901760
      %v2955 = vsub.f32 %v164, %v2954
      %2956 = vmatpush1.msra.mxu0 %v2955
      %2957 = vmatprep.subr.mxu0 0.0
      %v2958 = vand.u32 %v165, 4294901760
      %v2959 = vsub.f32 %v165, %v2958
      %2960 = vmatpush1.msra.mxu0 %v2959
      %2961 = vmatprep.subr.mxu0 0.0
      %v2962 = vand.u32 %v166, 4294901760
      %v2963 = vsub.f32 %v166, %v2962
      %2964 = vmatpush1.msra.mxu0 %v2963
      %2965 = vmatprep.subr.mxu0 0.0
      %v2966 = vand.u32 %v167, 4294901760
      %v2967 = vsub.f32 %v167, %v2966
      %2968 = vmatpush1.msra.mxu0 %v2967
      %2969 = vmatprep.subr.mxu0 0.0
      %2970 = vmatpush1.msra.mxu0 0.0
      %2971 = vmatprep.subr.mxu0 0.0
      %2972 = vmatpush1.msra.mxu0 0.0
      %2973 = vmatprep.subr.mxu0 0.0
      %2974 = vmatpush1.msra.mxu0 0.0
      %2975 = vmatprep.subr.mxu0 0.0
      %2976 = vmatpush1.msra.mxu0 0.0
      %2977 = vmatprep.subr.mxu0 0.0
      %2978 = vmatpush1.msra.mxu0 0.0
      %2979 = vmatprep.subr.mxu0 0.0
      %2980 = vmatpush1.msra.mxu0 0.0
      %2981 = vmatprep.subr.mxu0 0.0
      %2982 = vmatpush1.msra.mxu0 0.0
      %2983 = vmatprep.subr.mxu0 0.0
      %2984 = vmatpush1.msra.mxu0 0.0
      %2985 = vmatprep.subr.mxu0 0.0
      %2986 = vmatpush1.msra.mxu0 0.0
      %2987 = vmatprep.subr.mxu0 0.0
      %2988 = vmatpush1.msra.mxu0 0.0
      %2989 = vmatprep.subr.mxu0 0.0
      %2990 = vmatpush1.msra.mxu0 0.0
      %2991 = vmatprep.subr.mxu0 0.0
      %2992 = vmatpush1.msra.mxu0 0.0
      %2993 = vmatprep.subr.mxu0 0.0
      %2994 = vmatpush1.msra.mxu0 0.0
      %2995 = vmatprep.subr.mxu0 0.0
      %2996 = vmatpush1.msra.mxu0 0.0
      %2997 = vmatprep.subr.mxu0 0.0
      %2998 = vmatpush1.msra.mxu0 0.0
      %2999 = vmatprep.subr.mxu0 0.0
      %3000 = vmatpush1.msra.mxu0 0.0
      %3001 = vmatprep.subr.mxu0 0.0
      %3002 = vmatpush1.msra.mxu0 0.0
      %3003 = vmatprep.subr.mxu0 0.0
      %3004 = vmatpush1.msra.mxu0 0.0
      %3005 = vmatprep.subr.mxu0 0.0
      %3006 = vmatpush1.msra.mxu0 0.0
      %3007 = vmatprep.subr.mxu0 0.0
      %3008 = vmatpush1.msra.mxu0 0.0
      %3009 = vmatprep.subr.mxu0 0.0
      %3010 = vmatpush1.msra.mxu0 0.0
      %3011 = vmatprep.subr.mxu0 0.0
      %3012 = vmatpush1.msra.mxu0 0.0
      %3013 = vmatprep.subr.mxu0 0.0
      %3014 = vmatpush1.msra.mxu0 0.0
      %3015 = vmatprep.subr.mxu0 0.0
      %3016 = vmatpush1.msra.mxu0 0.0
      %3017 = vmatprep.subr.mxu0 0.0
      %3018 = vmatpush1.msra.mxu0 0.0
      %3019 = vmatprep.subr.mxu0 0.0
      %3020 = vmatpush1.msra.mxu0 0.0
      %3021 = vmatprep.subr.mxu0 0.0
      %3022 = vmatpush1.msra.mxu0 0.0
      %3023 = vmatprep.subr.mxu0 0.0
      %3024 = vmatpush1.msra.mxu0 0.0
      %3025 = vmatprep.mubr.f32.mxu0 0.0
      %v3026 = vand.u32 %v2781, 4294901760
      %v3027 = vsub.f32 %v2781, %v3026
      %3028 = vmatmul.mubr.f32.gmra.mrb[0].mxu0 %v3027
      %v3029 = vpop.f32.mrb[0].mxu0
      %v3030 = vadd.f32 %v2950, %v3029
      %v3031 = vpop.f32.mrb[0].mxu0
      %3032 = vdwg.mxu0
      %3033 = vmatprep.subr.mxu0 0.0
      %v3034 = vand.u32 %v164, 4294901760
      %3035 = vmatpush1.msra.mxu0 %v3034
      %3036 = vmatprep.subr.mxu0 0.0
      %v3037 = vand.u32 %v165, 4294901760
      %3038 = vmatpush1.msra.mxu0 %v3037
      %3039 = vmatprep.subr.mxu0 0.0
      %v3040 = vand.u32 %v166, 4294901760
      %3041 = vmatpush1.msra.mxu0 %v3040
      %3042 = vmatprep.subr.mxu0 0.0
      %v3043 = vand.u32 %v167, 4294901760
      %3044 = vmatpush1.msra.mxu0 %v3043
      %3045 = vmatprep.subr.mxu0 0.0
      %3046 = vmatpush1.msra.mxu0 0.0
      %3047 = vmatprep.subr.mxu0 0.0
      %3048 = vmatpush1.msra.mxu0 0.0
      %3049 = vmatprep.subr.mxu0 0.0
      %3050 = vmatpush1.msra.mxu0 0.0
      %3051 = vmatprep.subr.mxu0 0.0
      %3052 = vmatpush1.msra.mxu0 0.0
      %3053 = vmatprep.subr.mxu0 0.0
      %3054 = vmatpush1.msra.mxu0 0.0
      %3055 = vmatprep.subr.mxu0 0.0
      %3056 = vmatpush1.msra.mxu0 0.0
      %3057 = vmatprep.subr.mxu0 0.0
      %3058 = vmatpush1.msra.mxu0 0.0
      %3059 = vmatprep.subr.mxu0 0.0
      %3060 = vmatpush1.msra.mxu0 0.0
      %3061 = vmatprep.subr.mxu0 0.0
      %3062 = vmatpush1.msra.mxu0 0.0
      %3063 = vmatprep.subr.mxu0 0.0
      %3064 = vmatpush1.msra.mxu0 0.0
      %3065 = vmatprep.subr.mxu0 0.0
      %3066 = vmatpush1.msra.mxu0 0.0
      %3067 = vmatprep.subr.mxu0 0.0
      %3068 = vmatpush1.msra.mxu0 0.0
      %3069 = vmatprep.subr.mxu0 0.0
      %3070 = vmatpush1.msra.mxu0 0.0
      %3071 = vmatprep.subr.mxu0 0.0
      %3072 = vmatpush1.msra.mxu0 0.0
      %3073 = vmatprep.subr.mxu0 0.0
      %3074 = vmatpush1.msra.mxu0 0.0
      %3075 = vmatprep.subr.mxu0 0.0
      %3076 = vmatpush1.msra.mxu0 0.0
      %3077 = vmatprep.subr.mxu0 0.0
      %3078 = vmatpush1.msra.mxu0 0.0
      %3079 = vmatprep.subr.mxu0 0.0
      %3080 = vmatpush1.msra.mxu0 0.0
      %3081 = vmatprep.subr.mxu0 0.0
      %3082 = vmatpush1.msra.mxu0 0.0
      %3083 = vmatprep.subr.mxu0 0.0
      %3084 = vmatpush1.msra.mxu0 0.0
      %3085 = vmatprep.subr.mxu0 0.0
      %3086 = vmatpush1.msra.mxu0 0.0
      %3087 = vmatprep.subr.mxu0 0.0
      %3088 = vmatpush1.msra.mxu0 0.0
      %3089 = vmatprep.subr.mxu0 0.0
      %3090 = vmatpush1.msra.mxu0 0.0
      %3091 = vmatprep.subr.mxu0 0.0
      %3092 = vmatpush1.msra.mxu0 0.0
      %3093 = vmatprep.subr.mxu0 0.0
      %3094 = vmatpush1.msra.mxu0 0.0
      %3095 = vmatprep.subr.mxu0 0.0
      %3096 = vmatpush1.msra.mxu0 0.0
      %3097 = vmatprep.subr.mxu0 0.0
      %3098 = vmatpush1.msra.mxu0 0.0
      %3099 = vmatprep.subr.mxu0 0.0
      %3100 = vmatpush1.msra.mxu0 0.0
      %3101 = vmatprep.mubr.f32.mxu0 0.0
      %v3102 = vand.u32 %v2781, 4294901760
      %v3103 = vsub.f32 %v2781, %v3102
      %v3104 = vand.u32 %v3103, 4294901760
      %3105 = vmatmul.mubr.f32.gmra.mrb[0].mxu0 %v3104
      %v3106 = vpop.f32.mrb[0].mxu0
      %v3107 = vadd.f32 %v3030, %v3106
      %v3108 = vpop.f32.mrb[0].mxu0
      %3109 = vdwg.mxu0
      %3110 = vmatprep.subr.mxu0 0.0
      %v3111 = vand.u32 %v164, 4294901760
      %v3112 = vsub.f32 %v164, %v3111
      %v3113 = vand.u32 %v3112, 4294901760
      %3114 = vmatpush1.msra.mxu0 %v3113
      %3115 = vmatprep.subr.mxu0 0.0
      %v3116 = vand.u32 %v165, 4294901760
      %v3117 = vsub.f32 %v165, %v3116
      %v3118 = vand.u32 %v3117, 4294901760
      %3119 = vmatpush1.msra.mxu0 %v3118
      %3120 = vmatprep.subr.mxu0 0.0
      %v3121 = vand.u32 %v166, 4294901760
      %v3122 = vsub.f32 %v166, %v3121
      %v3123 = vand.u32 %v3122, 4294901760
      %3124 = vmatpush1.msra.mxu0 %v3123
      %3125 = vmatprep.subr.mxu0 0.0
      %v3126 = vand.u32 %v167, 4294901760
      %v3127 = vsub.f32 %v167, %v3126
      %v3128 = vand.u32 %v3127, 4294901760
      %3129 = vmatpush1.msra.mxu0 %v3128
      %3130 = vmatprep.subr.mxu0 0.0
      %3131 = vmatpush1.msra.mxu0 0.0
      %3132 = vmatprep.subr.mxu0 0.0
      %3133 = vmatpush1.msra.mxu0 0.0
      %3134 = vmatprep.subr.mxu0 0.0
      %3135 = vmatpush1.msra.mxu0 0.0
      %3136 = vmatprep.subr.mxu0 0.0
      %3137 = vmatpush1.msra.mxu0 0.0
      %3138 = vmatprep.subr.mxu0 0.0
      %3139 = vmatpush1.msra.mxu0 0.0
      %3140 = vmatprep.subr.mxu0 0.0
      %3141 = vmatpush1.msra.mxu0 0.0
      %3142 = vmatprep.subr.mxu0 0.0
      %3143 = vmatpush1.msra.mxu0 0.0
      %3144 = vmatprep.subr.mxu0 0.0
      %3145 = vmatpush1.msra.mxu0 0.0
      %3146 = vmatprep.subr.mxu0 0.0
      %3147 = vmatpush1.msra.mxu0 0.0
      %3148 = vmatprep.subr.mxu0 0.0
      %3149 = vmatpush1.msra.mxu0 0.0
      %3150 = vmatprep.subr.mxu0 0.0
      %3151 = vmatpush1.msra.mxu0 0.0
      %3152 = vmatprep.subr.mxu0 0.0
      %3153 = vmatpush1.msra.mxu0 0.0
      %3154 = vmatprep.subr.mxu0 0.0
      %3155 = vmatpush1.msra.mxu0 0.0
      %3156 = vmatprep.subr.mxu0 0.0
      %3157 = vmatpush1.msra.mxu0 0.0
      %3158 = vmatprep.subr.mxu0 0.0
      %3159 = vmatpush1.msra.mxu0 0.0
      %3160 = vmatprep.subr.mxu0 0.0
      %3161 = vmatpush1.msra.mxu0 0.0
      %3162 = vmatprep.subr.mxu0 0.0
      %3163 = vmatpush1.msra.mxu0 0.0
      %3164 = vmatprep.subr.mxu0 0.0
      %3165 = vmatpush1.msra.mxu0 0.0
      %3166 = vmatprep.subr.mxu0 0.0
      %3167 = vmatpush1.msra.mxu0 0.0
      %3168 = vmatprep.subr.mxu0 0.0
      %3169 = vmatpush1.msra.mxu0 0.0
      %3170 = vmatprep.subr.mxu0 0.0
      %3171 = vmatpush1.msra.mxu0 0.0
      %3172 = vmatprep.subr.mxu0 0.0
      %3173 = vmatpush1.msra.mxu0 0.0
      %3174 = vmatprep.subr.mxu0 0.0
      %3175 = vmatpush1.msra.mxu0 0.0
      %3176 = vmatprep.subr.mxu0 0.0
      %3177 = vmatpush1.msra.mxu0 0.0
      %3178 = vmatprep.subr.mxu0 0.0
      %3179 = vmatpush1.msra.mxu0 0.0
      %3180 = vmatprep.subr.mxu0 0.0
      %3181 = vmatpush1.msra.mxu0 0.0
      %3182 = vmatprep.subr.mxu0 0.0
      %3183 = vmatpush1.msra.mxu0 0.0
      %3184 = vmatprep.subr.mxu0 0.0
      %3185 = vmatpush1.msra.mxu0 0.0
      %3186 = vmatprep.mubr.f32.mxu0 0.0
      %v3187 = vand.u32 %v2781, 4294901760
      %3188 = vmatmul.mubr.f32.gmra.mrb[0].mxu0 %v3187
      %v3189 = vpop.f32.mrb[0].mxu0
      %v3190 = vadd.f32 %v3107, %v3189
      %v3191 = vpop.f32.mrb[0].mxu0
      %3192 = vdwg.mxu0
      %3193 = vmatprep.subr.mxu0 0.0
      %v3194 = vand.u32 %v164, 4294901760
      %3195 = vmatpush1.msra.mxu0 %v3194
      %3196 = vmatprep.subr.mxu0 0.0
      %v3197 = vand.u32 %v165, 4294901760
      %3198 = vmatpush1.msra.mxu0 %v3197
      %3199 = vmatprep.subr.mxu0 0.0
      %v3200 = vand.u32 %v166, 4294901760
      %3201 = vmatpush1.msra.mxu0 %v3200
      %3202 = vmatprep.subr.mxu0 0.0
      %v3203 = vand.u32 %v167, 4294901760
      %3204 = vmatpush1.msra.mxu0 %v3203
      %3205 = vmatprep.subr.mxu0 0.0
      %3206 = vmatpush1.msra.mxu0 0.0
      %3207 = vmatprep.subr.mxu0 0.0
      %3208 = vmatpush1.msra.mxu0 0.0
      %3209 = vmatprep.subr.mxu0 0.0
      %3210 = vmatpush1.msra.mxu0 0.0
      %3211 = vmatprep.subr.mxu0 0.0
      %3212 = vmatpush1.msra.mxu0 0.0
      %3213 = vmatprep.subr.mxu0 0.0
      %3214 = vmatpush1.msra.mxu0 0.0
      %3215 = vmatprep.subr.mxu0 0.0
      %3216 = vmatpush1.msra.mxu0 0.0
      %3217 = vmatprep.subr.mxu0 0.0
      %3218 = vmatpush1.msra.mxu0 0.0
      %3219 = vmatprep.subr.mxu0 0.0
      %3220 = vmatpush1.msra.mxu0 0.0
      %3221 = vmatprep.subr.mxu0 0.0
      %3222 = vmatpush1.msra.mxu0 0.0
      %3223 = vmatprep.subr.mxu0 0.0
      %3224 = vmatpush1.msra.mxu0 0.0
      %3225 = vmatprep.subr.mxu0 0.0
      %3226 = vmatpush1.msra.mxu0 0.0
      %3227 = vmatprep.subr.mxu0 0.0
      %3228 = vmatpush1.msra.mxu0 0.0
      %3229 = vmatprep.subr.mxu0 0.0
      %3230 = vmatpush1.msra.mxu0 0.0
      %3231 = vmatprep.subr.mxu0 0.0
      %3232 = vmatpush1.msra.mxu0 0.0
      %3233 = vmatprep.subr.mxu0 0.0
      %3234 = vmatpush1.msra.mxu0 0.0
      %3235 = vmatprep.subr.mxu0 0.0
      %3236 = vmatpush1.msra.mxu0 0.0
      %3237 = vmatprep.subr.mxu0 0.0
      %3238 = vmatpush1.msra.mxu0 0.0
      %3239 = vmatprep.subr.mxu0 0.0
      %3240 = vmatpush1.msra.mxu0 0.0
      %3241 = vmatprep.subr.mxu0 0.0
      %3242 = vmatpush1.msra.mxu0 0.0
      %3243 = vmatprep.subr.mxu0 0.0
      %3244 = vmatpush1.msra.mxu0 0.0
      %3245 = vmatprep.subr.mxu0 0.0
      %3246 = vmatpush1.msra.mxu0 0.0
      %3247 = vmatprep.subr.mxu0 0.0
      %3248 = vmatpush1.msra.mxu0 0.0
      %3249 = vmatprep.subr.mxu0 0.0
      %3250 = vmatpush1.msra.mxu0 0.0
      %3251 = vmatprep.subr.mxu0 0.0
      %3252 = vmatpush1.msra.mxu0 0.0
      %3253 = vmatprep.subr.mxu0 0.0
      %3254 = vmatpush1.msra.mxu0 0.0
      %3255 = vmatprep.subr.mxu0 0.0
      %3256 = vmatpush1.msra.mxu0 0.0
      %3257 = vmatprep.subr.mxu0 0.0
      %3258 = vmatpush1.msra.mxu0 0.0
      %3259 = vmatprep.subr.mxu0 0.0
      %3260 = vmatpush1.msra.mxu0 0.0
      %3261 = vmatprep.mubr.f32.mxu0 0.0
      %v3262 = vand.u32 %v2781, 4294901760
      %3263 = vmatmul.mubr.f32.gmra.mrb[0].mxu0 %v3262
      %v3264 = vpop.f32.mrb[0].mxu0
      %v3265 = vadd.f32 %v3190, %v3264
      %v3266 = vpop.f32.mrb[0].mxu0
      %3267 = vdwg.mxu0
      %v3268 = vadd.f32 %v2780, %v3265
      %v3269 = vtanh.pop %v3268
      %v3270 = vxor.u32 %v3268, 2147483648
      %v3271 = vmul.f32 %v3270, 1.442695
      %v3272 = vpow.pop %v3271
      %v3273 = vadd.f32 %v3272, 1.0
      %v3274 = vrcp.pop %v3273
      %v3275 = vmul.f32 1.0, %v3274
      %v3276 = vsel %vm172, %v3269, %v3275
      %v3277 = vmul.f32 %v3276, %v2766
      %3279 = vrot.lane.b32.xlu0 %v3276, 64
      %v3280 = vpop.permute.xlu0 %3279
      %v3282 = vmul.f32 %v3276, %v3280
      %3284 = vrot.lane.b32.xlu0 %v3282, 32
      %v3285 = vpop.permute.xlu0 %3284
      %v3287 = vadd.f32 %v3277, %v3285
      %v3288 = vtanh.pop %v3287
      %3290 = vrot.lane.b32.xlu0 %v3288, 64
      %v3291 = vpop.permute.xlu0 %3290
      %v3293 = vmul.f32 %v3276, %v3291
      %3295 = vrot.lane.b32.xlu0 %v3293, 32
      %v3296 = vpop.permute.xlu0 %3295
      %s3298 = scalar_lea.vmem %s163, 10
      %3299 = vst.msk [vmem:[%s3298] sm:$0x3] %vm693, %v3296
      %s3300 = scalar_lea.vmem %s153, 12
      %v3301 = vld [vmem:[%s3300] sm:$0x3]
      %v3302 = vsel %vm174, %v3296, 0
      %3304 = vmatprep.subr.mxu0 0.0
      %v3305 = vand.u32 %v164, 4294901760
      %3306 = vmatpush1.msra.mxu0 %v3305
      %3307 = vmatprep.subr.mxu0 0.0
      %v3308 = vand.u32 %v165, 4294901760
      %3309 = vmatpush1.msra.mxu0 %v3308
      %3310 = vmatprep.subr.mxu0 0.0
      %v3311 = vand.u32 %v166, 4294901760
      %3312 = vmatpush1.msra.mxu0 %v3311
      %3313 = vmatprep.subr.mxu0 0.0
      %v3314 = vand.u32 %v167, 4294901760
      %3315 = vmatpush1.msra.mxu0 %v3314
      %3316 = vmatprep.subr.mxu0 0.0
      %3317 = vmatpush1.msra.mxu0 0.0
      %3318 = vmatprep.subr.mxu0 0.0
      %3319 = vmatpush1.msra.mxu0 0.0
      %3320 = vmatprep.subr.mxu0 0.0
      %3321 = vmatpush1.msra.mxu0 0.0
      %3322 = vmatprep.subr.mxu0 0.0
      %3323 = vmatpush1.msra.mxu0 0.0
      %3324 = vmatprep.subr.mxu0 0.0
      %3325 = vmatpush1.msra.mxu0 0.0
      %3326 = vmatprep.subr.mxu0 0.0
      %3327 = vmatpush1.msra.mxu0 0.0
      %3328 = vmatprep.subr.mxu0 0.0
      %3329 = vmatpush1.msra.mxu0 0.0
      %3330 = vmatprep.subr.mxu0 0.0
      %3331 = vmatpush1.msra.mxu0 0.0
      %3332 = vmatprep.subr.mxu0 0.0
      %3333 = vmatpush1.msra.mxu0 0.0
      %3334 = vmatprep.subr.mxu0 0.0
      %3335 = vmatpush1.msra.mxu0 0.0
      %3336 = vmatprep.subr.mxu0 0.0
      %3337 = vmatpush1.msra.mxu0 0.0
      %3338 = vmatprep.subr.mxu0 0.0
      %3339 = vmatpush1.msra.mxu0 0.0
      %3340 = vmatprep.subr.mxu0 0.0
      %3341 = vmatpush1.msra.mxu0 0.0
      %3342 = vmatprep.subr.mxu0 0.0
      %3343 = vmatpush1.msra.mxu0 0.0
      %3344 = vmatprep.subr.mxu0 0.0
      %3345 = vmatpush1.msra.mxu0 0.0
      %3346 = vmatprep.subr.mxu0 0.0
      %3347 = vmatpush1.msra.mxu0 0.0
      %3348 = vmatprep.subr.mxu0 0.0
      %3349 = vmatpush1.msra.mxu0 0.0
      %3350 = vmatprep.subr.mxu0 0.0
      %3351 = vmatpush1.msra.mxu0 0.0
      %3352 = vmatprep.subr.mxu0 0.0
      %3353 = vmatpush1.msra.mxu0 0.0
      %3354 = vmatprep.subr.mxu0 0.0
      %3355 = vmatpush1.msra.mxu0 0.0
      %3356 = vmatprep.subr.mxu0 0.0
      %3357 = vmatpush1.msra.mxu0 0.0
      %3358 = vmatprep.subr.mxu0 0.0
      %3359 = vmatpush1.msra.mxu0 0.0
      %3360 = vmatprep.subr.mxu0 0.0
      %3361 = vmatpush1.msra.mxu0 0.0
      %3362 = vmatprep.subr.mxu0 0.0
      %3363 = vmatpush1.msra.mxu0 0.0
      %3364 = vmatprep.subr.mxu0 0.0
      %3365 = vmatpush1.msra.mxu0 0.0
      %3366 = vmatprep.subr.mxu0 0.0
      %3367 = vmatpush1.msra.mxu0 0.0
      %3368 = vmatprep.subr.mxu0 0.0
      %3369 = vmatpush1.msra.mxu0 0.0
      %3370 = vmatprep.subr.mxu0 0.0
      %3371 = vmatpush1.msra.mxu0 0.0
      %3372 = vmatprep.mubr.f32.mxu0 0.0
      %v3373 = vand.u32 %v3302, 4294901760
      %v3374 = vsub.f32 %v3302, %v3373
      %v3375 = vand.u32 %v3374, 4294901760
      %v3376 = vsub.f32 %v3374, %v3375
      %v3377 = vand.u32 %v3376, 4294901760
      %3378 = vmatmul.mubr.f32.gmra.mrb[0].mxu0 %v3377
      %v3379 = vpop.f32.mrb[0].mxu0
      %v3380 = vadd.f32 0.0, %v3379
      %v3381 = vpop.f32.mrb[0].mxu0
      %3382 = vdwg.mxu0
      %3383 = vmatprep.subr.mxu0 0.0
      %v3384 = vand.u32 %v164, 4294901760
      %v3385 = vsub.f32 %v164, %v3384
      %v3386 = vand.u32 %v3385, 4294901760
      %v3387 = vsub.f32 %v3385, %v3386
      %v3388 = vand.u32 %v3387, 4294901760
      %3389 = vmatpush1.msra.mxu0 %v3388
      %3390 = vmatprep.subr.mxu0 0.0
      %v3391 = vand.u32 %v165, 4294901760
      %v3392 = vsub.f32 %v165, %v3391
      %v3393 = vand.u32 %v3392, 4294901760
      %v3394 = vsub.f32 %v3392, %v3393
      %v3395 = vand.u32 %v3394, 4294901760
      %3396 = vmatpush1.msra.mxu0 %v3395
      %3397 = vmatprep.subr.mxu0 0.0
      %v3398 = vand.u32 %v166, 4294901760
      %v3399 = vsub.f32 %v166, %v3398
      %v3400 = vand.u32 %v3399, 4294901760
      %v3401 = vsub.f32 %v3399, %v3400
      %v3402 = vand.u32 %v3401, 4294901760
      %3403 = vmatpush1.msra.mxu0 %v3402
      %3404 = vmatprep.subr.mxu0 0.0
      %v3405 = vand.u32 %v167, 4294901760
      %v3406 = vsub.f32 %v167, %v3405
      %v3407 = vand.u32 %v3406, 4294901760
      %v3408 = vsub.f32 %v3406, %v3407
      %v3409 = vand.u32 %v3408, 4294901760
      %3410 = vmatpush1.msra.mxu0 %v3409
      %3411 = vmatprep.subr.mxu0 0.0
      %3412 = vmatpush1.msra.mxu0 0.0
      %3413 = vmatprep.subr.mxu0 0.0
      %3414 = vmatpush1.msra.mxu0 0.0
      %3415 = vmatprep.subr.mxu0 0.0
      %3416 = vmatpush1.msra.mxu0 0.0
      %3417 = vmatprep.subr.mxu0 0.0
      %3418 = vmatpush1.msra.mxu0 0.0
      %3419 = vmatprep.subr.mxu0 0.0
      %3420 = vmatpush1.msra.mxu0 0.0
      %3421 = vmatprep.subr.mxu0 0.0
      %3422 = vmatpush1.msra.mxu0 0.0
      %3423 = vmatprep.subr.mxu0 0.0
      %3424 = vmatpush1.msra.mxu0 0.0
      %3425 = vmatprep.subr.mxu0 0.0
      %3426 = vmatpush1.msra.mxu0 0.0
      %3427 = vmatprep.subr.mxu0 0.0
      %3428 = vmatpush1.msra.mxu0 0.0
      %3429 = vmatprep.subr.mxu0 0.0
      %3430 = vmatpush1.msra.mxu0 0.0
      %3431 = vmatprep.subr.mxu0 0.0
      %3432 = vmatpush1.msra.mxu0 0.0
      %3433 = vmatprep.subr.mxu0 0.0
      %3434 = vmatpush1.msra.mxu0 0.0
      %3435 = vmatprep.subr.mxu0 0.0
      %3436 = vmatpush1.msra.mxu0 0.0
      %3437 = vmatprep.subr.mxu0 0.0
      %3438 = vmatpush1.msra.mxu0 0.0
      %3439 = vmatprep.subr.mxu0 0.0
      %3440 = vmatpush1.msra.mxu0 0.0
      %3441 = vmatprep.subr.mxu0 0.0
      %3442 = vmatpush1.msra.mxu0 0.0
      %3443 = vmatprep.subr.mxu0 0.0
      %3444 = vmatpush1.msra.mxu0 0.0
      %3445 = vmatprep.subr.mxu0 0.0
      %3446 = vmatpush1.msra.mxu0 0.0
      %3447 = vmatprep.subr.mxu0 0.0
      %3448 = vmatpush1.msra.mxu0 0.0
      %3449 = vmatprep.subr.mxu0 0.0
      %3450 = vmatpush1.msra.mxu0 0.0
      %3451 = vmatprep.subr.mxu0 0.0
      %3452 = vmatpush1.msra.mxu0 0.0
      %3453 = vmatprep.subr.mxu0 0.0
      %3454 = vmatpush1.msra.mxu0 0.0
      %3455 = vmatprep.subr.mxu0 0.0
      %3456 = vmatpush1.msra.mxu0 0.0
      %3457 = vmatprep.subr.mxu0 0.0
      %3458 = vmatpush1.msra.mxu0 0.0
      %3459 = vmatprep.subr.mxu0 0.0
      %3460 = vmatpush1.msra.mxu0 0.0
      %3461 = vmatprep.subr.mxu0 0.0
      %3462 = vmatpush1.msra.mxu0 0.0
      %3463 = vmatprep.subr.mxu0 0.0
      %3464 = vmatpush1.msra.mxu0 0.0
      %3465 = vmatprep.subr.mxu0 0.0
      %3466 = vmatpush1.msra.mxu0 0.0
      %3467 = vmatprep.mubr.f32.mxu0 0.0
      %v3468 = vand.u32 %v3302, 4294901760
      %3469 = vmatmul.mubr.f32.gmra.mrb[0].mxu0 %v3468
      %v3470 = vpop.f32.mrb[0].mxu0
      %v3471 = vadd.f32 %v3380, %v3470
      %v3472 = vpop.f32.mrb[0].mxu0
      %3473 = vdwg.mxu0
      %3474 = vmatprep.subr.mxu0 0.0
      %v3475 = vand.u32 %v164, 4294901760
      %v3476 = vsub.f32 %v164, %v3475
      %3477 = vmatpush1.msra.mxu0 %v3476
      %3478 = vmatprep.subr.mxu0 0.0
      %v3479 = vand.u32 %v165, 4294901760
      %v3480 = vsub.f32 %v165, %v3479
      %3481 = vmatpush1.msra.mxu0 %v3480
      %3482 = vmatprep.subr.mxu0 0.0
      %v3483 = vand.u32 %v166, 4294901760
      %v3484 = vsub.f32 %v166, %v3483
      %3485 = vmatpush1.msra.mxu0 %v3484
      %3486 = vmatprep.subr.mxu0 0.0
      %v3487 = vand.u32 %v167, 4294901760
      %v3488 = vsub.f32 %v167, %v3487
      %3489 = vmatpush1.msra.mxu0 %v3488
      %3490 = vmatprep.subr.mxu0 0.0
      %3491 = vmatpush1.msra.mxu0 0.0
      %3492 = vmatprep.subr.mxu0 0.0
      %3493 = vmatpush1.msra.mxu0 0.0
      %3494 = vmatprep.subr.mxu0 0.0
      %3495 = vmatpush1.msra.mxu0 0.0
      %3496 = vmatprep.subr.mxu0 0.0
      %3497 = vmatpush1.msra.mxu0 0.0
      %3498 = vmatprep.subr.mxu0 0.0
      %3499 = vmatpush1.msra.mxu0 0.0
      %3500 = vmatprep.subr.mxu0 0.0
      %3501 = vmatpush1.msra.mxu0 0.0
      %3502 = vmatprep.subr.mxu0 0.0
      %3503 = vmatpush1.msra.mxu0 0.0
      %3504 = vmatprep.subr.mxu0 0.0
      %3505 = vmatpush1.msra.mxu0 0.0
      %3506 = vmatprep.subr.mxu0 0.0
      %3507 = vmatpush1.msra.mxu0 0.0
      %3508 = vmatprep.subr.mxu0 0.0
      %3509 = vmatpush1.msra.mxu0 0.0
      %3510 = vmatprep.subr.mxu0 0.0
      %3511 = vmatpush1.msra.mxu0 0.0
      %3512 = vmatprep.subr.mxu0 0.0
      %3513 = vmatpush1.msra.mxu0 0.0
      %3514 = vmatprep.subr.mxu0 0.0
      %3515 = vmatpush1.msra.mxu0 0.0
      %3516 = vmatprep.subr.mxu0 0.0
      %3517 = vmatpush1.msra.mxu0 0.0
      %3518 = vmatprep.subr.mxu0 0.0
      %3519 = vmatpush1.msra.mxu0 0.0
      %3520 = vmatprep.subr.mxu0 0.0
      %3521 = vmatpush1.msra.mxu0 0.0
      %3522 = vmatprep.subr.mxu0 0.0
      %3523 = vmatpush1.msra.mxu0 0.0
      %3524 = vmatprep.subr.mxu0 0.0
      %3525 = vmatpush1.msra.mxu0 0.0
      %3526 = vmatprep.subr.mxu0 0.0
      %3527 = vmatpush1.msra.mxu0 0.0
      %3528 = vmatprep.subr.mxu0 0.0
      %3529 = vmatpush1.msra.mxu0 0.0
      %3530 = vmatprep.subr.mxu0 0.0
      %3531 = vmatpush1.msra.mxu0 0.0
      %3532 = vmatprep.subr.mxu0 0.0
      %3533 = vmatpush1.msra.mxu0 0.0
      %3534 = vmatprep.subr.mxu0 0.0
      %3535 = vmatpush1.msra.mxu0 0.0
      %3536 = vmatprep.subr.mxu0 0.0
      %3537 = vmatpush1.msra.mxu0 0.0
      %3538 = vmatprep.subr.mxu0 0.0
      %3539 = vmatpush1.msra.mxu0 0.0
      %3540 = vmatprep.subr.mxu0 0.0
      %3541 = vmatpush1.msra.mxu0 0.0
      %3542 = vmatprep.subr.mxu0 0.0
      %3543 = vmatpush1.msra.mxu0 0.0
      %3544 = vmatprep.subr.mxu0 0.0
      %3545 = vmatpush1.msra.mxu0 0.0
      %3546 = vmatprep.mubr.f32.mxu0 0.0
      %v3547 = vand.u32 %v3302, 4294901760
      %v3548 = vsub.f32 %v3302, %v3547
      %3549 = vmatmul.mubr.f32.gmra.mrb[0].mxu0 %v3548
      %v3550 = vpop.f32.mrb[0].mxu0
      %v3551 = vadd.f32 %v3471, %v3550
      %v3552 = vpop.f32.mrb[0].mxu0
      %3553 = vdwg.mxu0
      %3554 = vmatprep.subr.mxu0 0.0
      %v3555 = vand.u32 %v164, 4294901760
      %3556 = vmatpush1.msra.mxu0 %v3555
      %3557 = vmatprep.subr.mxu0 0.0
      %v3558 = vand.u32 %v165, 4294901760
      %3559 = vmatpush1.msra.mxu0 %v3558
      %3560 = vmatprep.subr.mxu0 0.0
      %v3561 = vand.u32 %v166, 4294901760
      %3562 = vmatpush1.msra.mxu0 %v3561
      %3563 = vmatprep.subr.mxu0 0.0
      %v3564 = vand.u32 %v167, 4294901760
      %3565 = vmatpush1.msra.mxu0 %v3564
      %3566 = vmatprep.subr.mxu0 0.0
      %3567 = vmatpush1.msra.mxu0 0.0
      %3568 = vmatprep.subr.mxu0 0.0
      %3569 = vmatpush1.msra.mxu0 0.0
      %3570 = vmatprep.subr.mxu0 0.0
      %3571 = vmatpush1.msra.mxu0 0.0
      %3572 = vmatprep.subr.mxu0 0.0
      %3573 = vmatpush1.msra.mxu0 0.0
      %3574 = vmatprep.subr.mxu0 0.0
      %3575 = vmatpush1.msra.mxu0 0.0
      %3576 = vmatprep.subr.mxu0 0.0
      %3577 = vmatpush1.msra.mxu0 0.0
      %3578 = vmatprep.subr.mxu0 0.0
      %3579 = vmatpush1.msra.mxu0 0.0
      %3580 = vmatprep.subr.mxu0 0.0
      %3581 = vmatpush1.msra.mxu0 0.0
      %3582 = vmatprep.subr.mxu0 0.0
      %3583 = vmatpush1.msra.mxu0 0.0
      %3584 = vmatprep.subr.mxu0 0.0
      %3585 = vmatpush1.msra.mxu0 0.0
      %3586 = vmatprep.subr.mxu0 0.0
      %3587 = vmatpush1.msra.mxu0 0.0
      %3588 = vmatprep.subr.mxu0 0.0
      %3589 = vmatpush1.msra.mxu0 0.0
      %3590 = vmatprep.subr.mxu0 0.0
      %3591 = vmatpush1.msra.mxu0 0.0
      %3592 = vmatprep.subr.mxu0 0.0
      %3593 = vmatpush1.msra.mxu0 0.0
      %3594 = vmatprep.subr.mxu0 0.0
      %3595 = vmatpush1.msra.mxu0 0.0
      %3596 = vmatprep.subr.mxu0 0.0
      %3597 = vmatpush1.msra.mxu0 0.0
      %3598 = vmatprep.subr.mxu0 0.0
      %3599 = vmatpush1.msra.mxu0 0.0
      %3600 = vmatprep.subr.mxu0 0.0
      %3601 = vmatpush1.msra.mxu0 0.0
      %3602 = vmatprep.subr.mxu0 0.0
      %3603 = vmatpush1.msra.mxu0 0.0
      %3604 = vmatprep.subr.mxu0 0.0
      %3605 = vmatpush1.msra.mxu0 0.0
      %3606 = vmatprep.subr.mxu0 0.0
      %3607 = vmatpush1.msra.mxu0 0.0
      %3608 = vmatprep.subr.mxu0 0.0
      %3609 = vmatpush1.msra.mxu0 0.0
      %3610 = vmatprep.subr.mxu0 0.0
      %3611 = vmatpush1.msra.mxu0 0.0
      %3612 = vmatprep.subr.mxu0 0.0
      %3613 = vmatpush1.msra.mxu0 0.0
      %3614 = vmatprep.subr.mxu0 0.0
      %3615 = vmatpush1.msra.mxu0 0.0
      %3616 = vmatprep.subr.mxu0 0.0
      %3617 = vmatpush1.msra.mxu0 0.0
      %3618 = vmatprep.subr.mxu0 0.0
      %3619 = vmatpush1.msra.mxu0 0.0
      %3620 = vmatprep.subr.mxu0 0.0
      %3621 = vmatpush1.msra.mxu0 0.0
      %3622 = vmatprep.mubr.f32.mxu0 0.0
      %v3623 = vand.u32 %v3302, 4294901760
      %v3624 = vsub.f32 %v3302, %v3623
      %v3625 = vand.u32 %v3624, 4294901760
      %3626 = vmatmul.mubr.f32.gmra.mrb[0].mxu0 %v3625
      %v3627 = vpop.f32.mrb[0].mxu0
      %v3628 = vadd.f32 %v3551, %v3627
      %v3629 = vpop.f32.mrb[0].mxu0
      %3630 = vdwg.mxu0
      %3631 = vmatprep.subr.mxu0 0.0
      %v3632 = vand.u32 %v164, 4294901760
      %v3633 = vsub.f32 %v164, %v3632
      %v3634 = vand.u32 %v3633, 4294901760
      %3635 = vmatpush1.msra.mxu0 %v3634
      %3636 = vmatprep.subr.mxu0 0.0
      %v3637 = vand.u32 %v165, 4294901760
      %v3638 = vsub.f32 %v165, %v3637
      %v3639 = vand.u32 %v3638, 4294901760
      %3640 = vmatpush1.msra.mxu0 %v3639
      %3641 = vmatprep.subr.mxu0 0.0
      %v3642 = vand.u32 %v166, 4294901760
      %v3643 = vsub.f32 %v166, %v3642
      %v3644 = vand.u32 %v3643, 4294901760
      %3645 = vmatpush1.msra.mxu0 %v3644
      %3646 = vmatprep.subr.mxu0 0.0
      %v3647 = vand.u32 %v167, 4294901760
      %v3648 = vsub.f32 %v167, %v3647
      %v3649 = vand.u32 %v3648, 4294901760
      %3650 = vmatpush1.msra.mxu0 %v3649
      %3651 = vmatprep.subr.mxu0 0.0
      %3652 = vmatpush1.msra.mxu0 0.0
      %3653 = vmatprep.subr.mxu0 0.0
      %3654 = vmatpush1.msra.mxu0 0.0
      %3655 = vmatprep.subr.mxu0 0.0
      %3656 = vmatpush1.msra.mxu0 0.0
      %3657 = vmatprep.subr.mxu0 0.0
      %3658 = vmatpush1.msra.mxu0 0.0
      %3659 = vmatprep.subr.mxu0 0.0
      %3660 = vmatpush1.msra.mxu0 0.0
      %3661 = vmatprep.subr.mxu0 0.0
      %3662 = vmatpush1.msra.mxu0 0.0
      %3663 = vmatprep.subr.mxu0 0.0
      %3664 = vmatpush1.msra.mxu0 0.0
      %3665 = vmatprep.subr.mxu0 0.0
      %3666 = vmatpush1.msra.mxu0 0.0
      %3667 = vmatprep.subr.mxu0 0.0
      %3668 = vmatpush1.msra.mxu0 0.0
      %3669 = vmatprep.subr.mxu0 0.0
      %3670 = vmatpush1.msra.mxu0 0.0
      %3671 = vmatprep.subr.mxu0 0.0
      %3672 = vmatpush1.msra.mxu0 0.0
      %3673 = vmatprep.subr.mxu0 0.0
      %3674 = vmatpush1.msra.mxu0 0.0
      %3675 = vmatprep.subr.mxu0 0.0
      %3676 = vmatpush1.msra.mxu0 0.0
      %3677 = vmatprep.subr.mxu0 0.0
      %3678 = vmatpush1.msra.mxu0 0.0
      %3679 = vmatprep.subr.mxu0 0.0
      %3680 = vmatpush1.msra.mxu0 0.0
      %3681 = vmatprep.subr.mxu0 0.0
      %3682 = vmatpush1.msra.mxu0 0.0
      %3683 = vmatprep.subr.mxu0 0.0
      %3684 = vmatpush1.msra.mxu0 0.0
      %3685 = vmatprep.subr.mxu0 0.0
      %3686 = vmatpush1.msra.mxu0 0.0
      %3687 = vmatprep.subr.mxu0 0.0
      %3688 = vmatpush1.msra.mxu0 0.0
      %3689 = vmatprep.subr.mxu0 0.0
      %3690 = vmatpush1.msra.mxu0 0.0
      %3691 = vmatprep.subr.mxu0 0.0
      %3692 = vmatpush1.msra.mxu0 0.0
      %3693 = vmatprep.subr.mxu0 0.0
      %3694 = vmatpush1.msra.mxu0 0.0
      %3695 = vmatprep.subr.mxu0 0.0
      %3696 = vmatpush1.msra.mxu0 0.0
      %3697 = vmatprep.subr.mxu0 0.0
      %3698 = vmatpush1.msra.mxu0 0.0
      %3699 = vmatprep.subr.mxu0 0.0
      %3700 = vmatpush1.msra.mxu0 0.0
      %3701 = vmatprep.subr.mxu0 0.0
      %3702 = vmatpush1.msra.mxu0 0.0
      %3703 = vmatprep.subr.mxu0 0.0
      %3704 = vmatpush1.msra.mxu0 0.0
      %3705 = vmatprep.subr.mxu0 0.0
      %3706 = vmatpush1.msra.mxu0 0.0
      %3707 = vmatprep.mubr.f32.mxu0 0.0
      %v3708 = vand.u32 %v3302, 4294901760
      %3709 = vmatmul.mubr.f32.gmra.mrb[0].mxu0 %v3708
      %v3710 = vpop.f32.mrb[0].mxu0
      %v3711 = vadd.f32 %v3628, %v3710
      %v3712 = vpop.f32.mrb[0].mxu0
      %3713 = vdwg.mxu0
      %3714 = vmatprep.subr.mxu0 0.0
      %v3715 = vand.u32 %v164, 4294901760
      %3716 = vmatpush1.msra.mxu0 %v3715
      %3717 = vmatprep.subr.mxu0 0.0
      %v3718 = vand.u32 %v165, 4294901760
      %3719 = vmatpush1.msra.mxu0 %v3718
      %3720 = vmatprep.subr.mxu0 0.0
      %v3721 = vand.u32 %v166, 4294901760
      %3722 = vmatpush1.msra.mxu0 %v3721
      %3723 = vmatprep.subr.mxu0 0.0
      %v3724 = vand.u32 %v167, 4294901760
      %3725 = vmatpush1.msra.mxu0 %v3724
      %3726 = vmatprep.subr.mxu0 0.0
      %3727 = vmatpush1.msra.mxu0 0.0
      %3728 = vmatprep.subr.mxu0 0.0
      %3729 = vmatpush1.msra.mxu0 0.0
      %3730 = vmatprep.subr.mxu0 0.0
      %3731 = vmatpush1.msra.mxu0 0.0
      %3732 = vmatprep.subr.mxu0 0.0
      %3733 = vmatpush1.msra.mxu0 0.0
      %3734 = vmatprep.subr.mxu0 0.0
      %3735 = vmatpush1.msra.mxu0 0.0
      %3736 = vmatprep.subr.mxu0 0.0
      %3737 = vmatpush1.msra.mxu0 0.0
      %3738 = vmatprep.subr.mxu0 0.0
      %3739 = vmatpush1.msra.mxu0 0.0
      %3740 = vmatprep.subr.mxu0 0.0
      %3741 = vmatpush1.msra.mxu0 0.0
      %3742 = vmatprep.subr.mxu0 0.0
      %3743 = vmatpush1.msra.mxu0 0.0
      %3744 = vmatprep.subr.mxu0 0.0
      %3745 = vmatpush1.msra.mxu0 0.0
      %3746 = vmatprep.subr.mxu0 0.0
      %3747 = vmatpush1.msra.mxu0 0.0
      %3748 = vmatprep.subr.mxu0 0.0
      %3749 = vmatpush1.msra.mxu0 0.0
      %3750 = vmatprep.subr.mxu0 0.0
      %3751 = vmatpush1.msra.mxu0 0.0
      %3752 = vmatprep.subr.mxu0 0.0
      %3753 = vmatpush1.msra.mxu0 0.0
      %3754 = vmatprep.subr.mxu0 0.0
      %3755 = vmatpush1.msra.mxu0 0.0
      %3756 = vmatprep.subr.mxu0 0.0
      %3757 = vmatpush1.msra.mxu0 0.0
      %3758 = vmatprep.subr.mxu0 0.0
      %3759 = vmatpush1.msra.mxu0 0.0
      %3760 = vmatprep.subr.mxu0 0.0
      %3761 = vmatpush1.msra.mxu0 0.0
      %3762 = vmatprep.subr.mxu0 0.0
      %3763 = vmatpush1.msra.mxu0 0.0
      %3764 = vmatprep.subr.mxu0 0.0
      %3765 = vmatpush1.msra.mxu0 0.0
      %3766 = vmatprep.subr.mxu0 0.0
      %3767 = vmatpush1.msra.mxu0 0.0
      %3768 = vmatprep.subr.mxu0 0.0
      %3769 = vmatpush1.msra.mxu0 0.0
      %3770 = vmatprep.subr.mxu0 0.0
      %3771 = vmatpush1.msra.mxu0 0.0
      %3772 = vmatprep.subr.mxu0 0.0
      %3773 = vmatpush1.msra.mxu0 0.0
      %3774 = vmatprep.subr.mxu0 0.0
      %3775 = vmatpush1.msra.mxu0 0.0
      %3776 = vmatprep.subr.mxu0 0.0
      %3777 = vmatpush1.msra.mxu0 0.0
      %3778 = vmatprep.subr.mxu0 0.0
      %3779 = vmatpush1.msra.mxu0 0.0
      %3780 = vmatprep.subr.mxu0 0.0
      %3781 = vmatpush1.msra.mxu0 0.0
      %3782 = vmatprep.mubr.f32.mxu0 0.0
      %v3783 = vand.u32 %v3302, 4294901760
      %3784 = vmatmul.mubr.f32.gmra.mrb[0].mxu0 %v3783
      %v3785 = vpop.f32.mrb[0].mxu0
      %v3786 = vadd.f32 %v3711, %v3785
      %v3787 = vpop.f32.mrb[0].mxu0
      %3788 = vdwg.mxu0
      %v3789 = vadd.f32 %v3301, %v3786
      %v3790 = vtanh.pop %v3789
      %v3791 = vxor.u32 %v3789, 2147483648
      %v3792 = vmul.f32 %v3791, 1.442695
      %v3793 = vpow.pop %v3792
      %v3794 = vadd.f32 %v3793, 1.0
      %v3795 = vrcp.pop %v3794
      %v3796 = vmul.f32 1.0, %v3795
      %v3797 = vsel %vm172, %v3790, %v3796
      %v3798 = vmul.f32 %v3797, %v3287
      %3800 = vrot.lane.b32.xlu0 %v3797, 64
      %v3801 = vpop.permute.xlu0 %3800
      %v3803 = vmul.f32 %v3797, %v3801
      %3805 = vrot.lane.b32.xlu0 %v3803, 32
      %v3806 = vpop.permute.xlu0 %3805
      %v3808 = vadd.f32 %v3798, %v3806
      %v3809 = vtanh.pop %v3808
      %3811 = vrot.lane.b32.xlu0 %v3809, 64
      %v3812 = vpop.permute.xlu0 %3811
      %v3814 = vmul.f32 %v3797, %v3812
      %3816 = vrot.lane.b32.xlu0 %v3814, 32
      %v3817 = vpop.permute.xlu0 %3816
      %s3819 = scalar_lea.vmem %s163, 12
      %3820 = vst.msk [vmem:[%s3819] sm:$0x3] %vm693, %v3817
      %s3821 = scalar_lea.vmem %s153, 14
      %v3822 = vld [vmem:[%s3821] sm:$0x3]
      %v3823 = vsel %vm174, %v3817, 0
      %3825 = vmatprep.subr.mxu0 0.0
      %v3826 = vand.u32 %v164, 4294901760
      %3827 = vmatpush1.msra.mxu0 %v3826
      %3828 = vmatprep.subr.mxu0 0.0
      %v3829 = vand.u32 %v165, 4294901760
      %3830 = vmatpush1.msra.mxu0 %v3829
      %3831 = vmatprep.subr.mxu0 0.0
      %v3832 = vand.u32 %v166, 4294901760
      %3833 = vmatpush1.msra.mxu0 %v3832
      %3834 = vmatprep.subr.mxu0 0.0
      %v3835 = vand.u32 %v167, 4294901760
      %3836 = vmatpush1.msra.mxu0 %v3835
      %3837 = vmatprep.subr.mxu0 0.0
      %3838 = vmatpush1.msra.mxu0 0.0
      %3839 = vmatprep.subr.mxu0 0.0
      %3840 = vmatpush1.msra.mxu0 0.0
      %3841 = vmatprep.subr.mxu0 0.0
      %3842 = vmatpush1.msra.mxu0 0.0
      %3843 = vmatprep.subr.mxu0 0.0
      %3844 = vmatpush1.msra.mxu0 0.0
      %3845 = vmatprep.subr.mxu0 0.0
      %3846 = vmatpush1.msra.mxu0 0.0
      %3847 = vmatprep.subr.mxu0 0.0
      %3848 = vmatpush1.msra.mxu0 0.0
      %3849 = vmatprep.subr.mxu0 0.0
      %3850 = vmatpush1.msra.mxu0 0.0
      %3851 = vmatprep.subr.mxu0 0.0
      %3852 = vmatpush1.msra.mxu0 0.0
      %3853 = vmatprep.subr.mxu0 0.0
      %3854 = vmatpush1.msra.mxu0 0.0
      %3855 = vmatprep.subr.mxu0 0.0
      %3856 = vmatpush1.msra.mxu0 0.0
      %3857 = vmatprep.subr.mxu0 0.0
      %3858 = vmatpush1.msra.mxu0 0.0
      %3859 = vmatprep.subr.mxu0 0.0
      %3860 = vmatpush1.msra.mxu0 0.0
      %3861 = vmatprep.subr.mxu0 0.0
      %3862 = vmatpush1.msra.mxu0 0.0
      %3863 = vmatprep.subr.mxu0 0.0
      %3864 = vmatpush1.msra.mxu0 0.0
      %3865 = vmatprep.subr.mxu0 0.0
      %3866 = vmatpush1.msra.mxu0 0.0
      %3867 = vmatprep.subr.mxu0 0.0
      %3868 = vmatpush1.msra.mxu0 0.0
      %3869 = vmatprep.subr.mxu0 0.0
      %3870 = vmatpush1.msra.mxu0 0.0
      %3871 = vmatprep.subr.mxu0 0.0
      %3872 = vmatpush1.msra.mxu0 0.0
      %3873 = vmatprep.subr.mxu0 0.0
      %3874 = vmatpush1.msra.mxu0 0.0
      %3875 = vmatprep.subr.mxu0 0.0
      %3876 = vmatpush1.msra.mxu0 0.0
      %3877 = vmatprep.subr.mxu0 0.0
      %3878 = vmatpush1.msra.mxu0 0.0
      %3879 = vmatprep.subr.mxu0 0.0
      %3880 = vmatpush1.msra.mxu0 0.0
      %3881 = vmatprep.subr.mxu0 0.0
      %3882 = vmatpush1.msra.mxu0 0.0
      %3883 = vmatprep.subr.mxu0 0.0
      %3884 = vmatpush1.msra.mxu0 0.0
      %3885 = vmatprep.subr.mxu0 0.0
      %3886 = vmatpush1.msra.mxu0 0.0
      %3887 = vmatprep.subr.mxu0 0.0
      %3888 = vmatpush1.msra.mxu0 0.0
      %3889 = vmatprep.subr.mxu0 0.0
      %3890 = vmatpush1.msra.mxu0 0.0
      %3891 = vmatprep.subr.mxu0 0.0
      %3892 = vmatpush1.msra.mxu0 0.0
      %3893 = vmatprep.mubr.f32.mxu0 0.0
      %v3894 = vand.u32 %v3823, 4294901760
      %v3895 = vsub.f32 %v3823, %v3894
      %v3896 = vand.u32 %v3895, 4294901760
      %v3897 = vsub.f32 %v3895, %v3896
      %v3898 = vand.u32 %v3897, 4294901760
      %3899 = vmatmul.mubr.f32.gmra.mrb[0].mxu0 %v3898
      %v3900 = vpop.f32.mrb[0].mxu0
      %v3901 = vadd.f32 0.0, %v3900
      %v3902 = vpop.f32.mrb[0].mxu0
      %3903 = vdwg.mxu0
      %3904 = vmatprep.subr.mxu0 0.0
      %v3905 = vand.u32 %v164, 4294901760
      %v3906 = vsub.f32 %v164, %v3905
      %v3907 = vand.u32 %v3906, 4294901760
      %v3908 = vsub.f32 %v3906, %v3907
      %v3909 = vand.u32 %v3908, 4294901760
      %3910 = vmatpush1.msra.mxu0 %v3909
      %3911 = vmatprep.subr.mxu0 0.0
      %v3912 = vand.u32 %v165, 4294901760
      %v3913 = vsub.f32 %v165, %v3912
      %v3914 = vand.u32 %v3913, 4294901760
      %v3915 = vsub.f32 %v3913, %v3914
      %v3916 = vand.u32 %v3915, 4294901760
      %3917 = vmatpush1.msra.mxu0 %v3916
      %3918 = vmatprep.subr.mxu0 0.0
      %v3919 = vand.u32 %v166, 4294901760
      %v3920 = vsub.f32 %v166, %v3919
      %v3921 = vand.u32 %v3920, 4294901760
      %v3922 = vsub.f32 %v3920, %v3921
      %v3923 = vand.u32 %v3922, 4294901760
      %3924 = vmatpush1.msra.mxu0 %v3923
      %3925 = vmatprep.subr.mxu0 0.0
      %v3926 = vand.u32 %v167, 4294901760
      %v3927 = vsub.f32 %v167, %v3926
      %v3928 = vand.u32 %v3927, 4294901760
      %v3929 = vsub.f32 %v3927, %v3928
      %v3930 = vand.u32 %v3929, 4294901760
      %3931 = vmatpush1.msra.mxu0 %v3930
      %3932 = vmatprep.subr.mxu0 0.0
      %3933 = vmatpush1.msra.mxu0 0.0
      %3934 = vmatprep.subr.mxu0 0.0
      %3935 = vmatpush1.msra.mxu0 0.0
      %3936 = vmatprep.subr.mxu0 0.0
      %3937 = vmatpush1.msra.mxu0 0.0
      %3938 = vmatprep.subr.mxu0 0.0
      %3939 = vmatpush1.msra.mxu0 0.0
      %3940 = vmatprep.subr.mxu0 0.0
      %3941 = vmatpush1.msra.mxu0 0.0
      %3942 = vmatprep.subr.mxu0 0.0
      %3943 = vmatpush1.msra.mxu0 0.0
      %3944 = vmatprep.subr.mxu0 0.0
      %3945 = vmatpush1.msra.mxu0 0.0
      %3946 = vmatprep.subr.mxu0 0.0
      %3947 = vmatpush1.msra.mxu0 0.0
      %3948 = vmatprep.subr.mxu0 0.0
      %3949 = vmatpush1.msra.mxu0 0.0
      %3950 = vmatprep.subr.mxu0 0.0
      %3951 = vmatpush1.msra.mxu0 0.0
      %3952 = vmatprep.subr.mxu0 0.0
      %3953 = vmatpush1.msra.mxu0 0.0
      %3954 = vmatprep.subr.mxu0 0.0
      %3955 = vmatpush1.msra.mxu0 0.0
      %3956 = vmatprep.subr.mxu0 0.0
      %3957 = vmatpush1.msra.mxu0 0.0
      %3958 = vmatprep.subr.mxu0 0.0
      %3959 = vmatpush1.msra.mxu0 0.0
      %3960 = vmatprep.subr.mxu0 0.0
      %3961 = vmatpush1.msra.mxu0 0.0
      %3962 = vmatprep.subr.mxu0 0.0
      %3963 = vmatpush1.msra.mxu0 0.0
      %3964 = vmatprep.subr.mxu0 0.0
      %3965 = vmatpush1.msra.mxu0 0.0
      %3966 = vmatprep.subr.mxu0 0.0
      %3967 = vmatpush1.msra.mxu0 0.0
      %3968 = vmatprep.subr.mxu0 0.0
      %3969 = vmatpush1.msra.mxu0 0.0
      %3970 = vmatprep.subr.mxu0 0.0
      %3971 = vmatpush1.msra.mxu0 0.0
      %3972 = vmatprep.subr.mxu0 0.0
      %3973 = vmatpush1.msra.mxu0 0.0
      %3974 = vmatprep.subr.mxu0 0.0
      %3975 = vmatpush1.msra.mxu0 0.0
      %3976 = vmatprep.subr.mxu0 0.0
      %3977 = vmatpush1.msra.mxu0 0.0
      %3978 = vmatprep.subr.mxu0 0.0
      %3979 = vmatpush1.msra.mxu0 0.0
      %3980 = vmatprep.subr.mxu0 0.0
      %3981 = vmatpush1.msra.mxu0 0.0
      %3982 = vmatprep.subr.mxu0 0.0
      %3983 = vmatpush1.msra.mxu0 0.0
      %3984 = vmatprep.subr.mxu0 0.0
      %3985 = vmatpush1.msra.mxu0 0.0
      %3986 = vmatprep.subr.mxu0 0.0
      %3987 = vmatpush1.msra.mxu0 0.0
      %3988 = vmatprep.mubr.f32.mxu0 0.0
      %v3989 = vand.u32 %v3823, 4294901760
      %3990 = vmatmul.mubr.f32.gmra.mrb[0].mxu0 %v3989
      %v3991 = vpop.f32.mrb[0].mxu0
      %v3992 = vadd.f32 %v3901, %v3991
      %v3993 = vpop.f32.mrb[0].mxu0
      %3994 = vdwg.mxu0
      %3995 = vmatprep.subr.mxu0 0.0
      %v3996 = vand.u32 %v164, 4294901760
      %v3997 = vsub.f32 %v164, %v3996
      %3998 = vmatpush1.msra.mxu0 %v3997
      %3999 = vmatprep.subr.mxu0 0.0
      %v4000 = vand.u32 %v165, 4294901760
      %v4001 = vsub.f32 %v165, %v4000
      %4002 = vmatpush1.msra.mxu0 %v4001
      %4003 = vmatprep.subr.mxu0 0.0
      %v4004 = vand.u32 %v166, 4294901760
      %v4005 = vsub.f32 %v166, %v4004
      %4006 = vmatpush1.msra.mxu0 %v4005
      %4007 = vmatprep.subr.mxu0 0.0
      %v4008 = vand.u32 %v167, 4294901760
      %v4009 = vsub.f32 %v167, %v4008
      %4010 = vmatpush1.msra.mxu0 %v4009
      %4011 = vmatprep.subr.mxu0 0.0
      %4012 = vmatpush1.msra.mxu0 0.0
      %4013 = vmatprep.subr.mxu0 0.0
      %4014 = vmatpush1.msra.mxu0 0.0
      %4015 = vmatprep.subr.mxu0 0.0
      %4016 = vmatpush1.msra.mxu0 0.0
      %4017 = vmatprep.subr.mxu0 0.0
      %4018 = vmatpush1.msra.mxu0 0.0
      %4019 = vmatprep.subr.mxu0 0.0
      %4020 = vmatpush1.msra.mxu0 0.0
      %4021 = vmatprep.subr.mxu0 0.0
      %4022 = vmatpush1.msra.mxu0 0.0
      %4023 = vmatprep.subr.mxu0 0.0
      %4024 = vmatpush1.msra.mxu0 0.0
      %4025 = vmatprep.subr.mxu0 0.0
      %4026 = vmatpush1.msra.mxu0 0.0
      %4027 = vmatprep.subr.mxu0 0.0
      %4028 = vmatpush1.msra.mxu0 0.0
      %4029 = vmatprep.subr.mxu0 0.0
      %4030 = vmatpush1.msra.mxu0 0.0
      %4031 = vmatprep.subr.mxu0 0.0
      %4032 = vmatpush1.msra.mxu0 0.0
      %4033 = vmatprep.subr.mxu0 0.0
      %4034 = vmatpush1.msra.mxu0 0.0
      %4035 = vmatprep.subr.mxu0 0.0
      %4036 = vmatpush1.msra.mxu0 0.0
      %4037 = vmatprep.subr.mxu0 0.0
      %4038 = vmatpush1.msra.mxu0 0.0
      %4039 = vmatprep.subr.mxu0 0.0
      %4040 = vmatpush1.msra.mxu0 0.0
      %4041 = vmatprep.subr.mxu0 0.0
      %4042 = vmatpush1.msra.mxu0 0.0
      %4043 = vmatprep.subr.mxu0 0.0
      %4044 = vmatpush1.msra.mxu0 0.0
      %4045 = vmatprep.subr.mxu0 0.0
      %4046 = vmatpush1.msra.mxu0 0.0
      %4047 = vmatprep.subr.mxu0 0.0
      %4048 = vmatpush1.msra.mxu0 0.0
      %4049 = vmatprep.subr.mxu0 0.0
      %4050 = vmatpush1.msra.mxu0 0.0
      %4051 = vmatprep.subr.mxu0 0.0
      %4052 = vmatpush1.msra.mxu0 0.0
      %4053 = vmatprep.subr.mxu0 0.0
      %4054 = vmatpush1.msra.mxu0 0.0
      %4055 = vmatprep.subr.mxu0 0.0
      %4056 = vmatpush1.msra.mxu0 0.0
      %4057 = vmatprep.subr.mxu0 0.0
      %4058 = vmatpush1.msra.mxu0 0.0
      %4059 = vmatprep.subr.mxu0 0.0
      %4060 = vmatpush1.msra.mxu0 0.0
      %4061 = vmatprep.subr.mxu0 0.0
      %4062 = vmatpush1.msra.mxu0 0.0
      %4063 = vmatprep.subr.mxu0 0.0
      %4064 = vmatpush1.msra.mxu0 0.0
      %4065 = vmatprep.subr.mxu0 0.0
      %4066 = vmatpush1.msra.mxu0 0.0
      %4067 = vmatprep.mubr.f32.mxu0 0.0
      %v4068 = vand.u32 %v3823, 4294901760
      %v4069 = vsub.f32 %v3823, %v4068
      %4070 = vmatmul.mubr.f32.gmra.mrb[0].mxu0 %v4069
      %v4071 = vpop.f32.mrb[0].mxu0
      %v4072 = vadd.f32 %v3992, %v4071
      %v4073 = vpop.f32.mrb[0].mxu0
      %4074 = vdwg.mxu0
      %4075 = vmatprep.subr.mxu0 0.0
      %v4076 = vand.u32 %v164, 4294901760
      %4077 = vmatpush1.msra.mxu0 %v4076
      %4078 = vmatprep.subr.mxu0 0.0
      %v4079 = vand.u32 %v165, 4294901760
      %4080 = vmatpush1.msra.mxu0 %v4079
      %4081 = vmatprep.subr.mxu0 0.0
      %v4082 = vand.u32 %v166, 4294901760
      %4083 = vmatpush1.msra.mxu0 %v4082
      %4084 = vmatprep.subr.mxu0 0.0
      %v4085 = vand.u32 %v167, 4294901760
      %4086 = vmatpush1.msra.mxu0 %v4085
      %4087 = vmatprep.subr.mxu0 0.0
      %4088 = vmatpush1.msra.mxu0 0.0
      %4089 = vmatprep.subr.mxu0 0.0
      %4090 = vmatpush1.msra.mxu0 0.0
      %4091 = vmatprep.subr.mxu0 0.0
      %4092 = vmatpush1.msra.mxu0 0.0
      %4093 = vmatprep.subr.mxu0 0.0
      %4094 = vmatpush1.msra.mxu0 0.0
      %4095 = vmatprep.subr.mxu0 0.0
      %4096 = vmatpush1.msra.mxu0 0.0
      %4097 = vmatprep.subr.mxu0 0.0
      %4098 = vmatpush1.msra.mxu0 0.0
      %4099 = vmatprep.subr.mxu0 0.0
      %4100 = vmatpush1.msra.mxu0 0.0
      %4101 = vmatprep.subr.mxu0 0.0
      %4102 = vmatpush1.msra.mxu0 0.0
      %4103 = vmatprep.subr.mxu0 0.0
      %4104 = vmatpush1.msra.mxu0 0.0
      %4105 = vmatprep.subr.mxu0 0.0
      %4106 = vmatpush1.msra.mxu0 0.0
      %4107 = vmatprep.subr.mxu0 0.0
      %4108 = vmatpush1.msra.mxu0 0.0
      %4109 = vmatprep.subr.mxu0 0.0
      %4110 = vmatpush1.msra.mxu0 0.0
      %4111 = vmatprep.subr.mxu0 0.0
      %4112 = vmatpush1.msra.mxu0 0.0
      %4113 = vmatprep.subr.mxu0 0.0
      %4114 = vmatpush1.msra.mxu0 0.0
      %4115 = vmatprep.subr.mxu0 0.0
      %4116 = vmatpush1.msra.mxu0 0.0
      %4117 = vmatprep.subr.mxu0 0.0
      %4118 = vmatpush1.msra.mxu0 0.0
      %4119 = vmatprep.subr.mxu0 0.0
      %4120 = vmatpush1.msra.mxu0 0.0
      %4121 = vmatprep.subr.mxu0 0.0
      %4122 = vmatpush1.msra.mxu0 0.0
      %4123 = vmatprep.subr.mxu0 0.0
      %4124 = vmatpush1.msra.mxu0 0.0
      %4125 = vmatprep.subr.mxu0 0.0
      %4126 = vmatpush1.msra.mxu0 0.0
      %4127 = vmatprep.subr.mxu0 0.0
      %4128 = vmatpush1.msra.mxu0 0.0
      %4129 = vmatprep.subr.mxu0 0.0
      %4130 = vmatpush1.msra.mxu0 0.0
      %4131 = vmatprep.subr.mxu0 0.0
      %4132 = vmatpush1.msra.mxu0 0.0
      %4133 = vmatprep.subr.mxu0 0.0
      %4134 = vmatpush1.msra.mxu0 0.0
      %4135 = vmatprep.subr.mxu0 0.0
      %4136 = vmatpush1.msra.mxu0 0.0
      %4137 = vmatprep.subr.mxu0 0.0
      %4138 = vmatpush1.msra.mxu0 0.0
      %4139 = vmatprep.subr.mxu0 0.0
      %4140 = vmatpush1.msra.mxu0 0.0
      %4141 = vmatprep.subr.mxu0 0.0
      %4142 = vmatpush1.msra.mxu0 0.0
      %4143 = vmatprep.mubr.f32.mxu0 0.0
      %v4144 = vand.u32 %v3823, 4294901760
      %v4145 = vsub.f32 %v3823, %v4144
      %v4146 = vand.u32 %v4145, 4294901760
      %4147 = vmatmul.mubr.f32.gmra.mrb[0].mxu0 %v4146
      %v4148 = vpop.f32.mrb[0].mxu0
      %v4149 = vadd.f32 %v4072, %v4148
      %v4150 = vpop.f32.mrb[0].mxu0
      %4151 = vdwg.mxu0
      %4152 = vmatprep.subr.mxu0 0.0
      %v4153 = vand.u32 %v164, 4294901760
      %v4154 = vsub.f32 %v164, %v4153
      %v4155 = vand.u32 %v4154, 4294901760
      %4156 = vmatpush1.msra.mxu0 %v4155
      %4157 = vmatprep.subr.mxu0 0.0
      %v4158 = vand.u32 %v165, 4294901760
      %v4159 = vsub.f32 %v165, %v4158
      %v4160 = vand.u32 %v4159, 4294901760
      %4161 = vmatpush1.msra.mxu0 %v4160
      %4162 = vmatprep.subr.mxu0 0.0
      %v4163 = vand.u32 %v166, 4294901760
      %v4164 = vsub.f32 %v166, %v4163
      %v4165 = vand.u32 %v4164, 4294901760
      %4166 = vmatpush1.msra.mxu0 %v4165
      %4167 = vmatprep.subr.mxu0 0.0
      %v4168 = vand.u32 %v167, 4294901760
      %v4169 = vsub.f32 %v167, %v4168
      %v4170 = vand.u32 %v4169, 4294901760
      %4171 = vmatpush1.msra.mxu0 %v4170
      %4172 = vmatprep.subr.mxu0 0.0
      %4173 = vmatpush1.msra.mxu0 0.0
      %4174 = vmatprep.subr.mxu0 0.0
      %4175 = vmatpush1.msra.mxu0 0.0
      %4176 = vmatprep.subr.mxu0 0.0
      %4177 = vmatpush1.msra.mxu0 0.0
      %4178 = vmatprep.subr.mxu0 0.0
      %4179 = vmatpush1.msra.mxu0 0.0
      %4180 = vmatprep.subr.mxu0 0.0
      %4181 = vmatpush1.msra.mxu0 0.0
      %4182 = vmatprep.subr.mxu0 0.0
      %4183 = vmatpush1.msra.mxu0 0.0
      %4184 = vmatprep.subr.mxu0 0.0
      %4185 = vmatpush1.msra.mxu0 0.0
      %4186 = vmatprep.subr.mxu0 0.0
      %4187 = vmatpush1.msra.mxu0 0.0
      %4188 = vmatprep.subr.mxu0 0.0
      %4189 = vmatpush1.msra.mxu0 0.0
      %4190 = vmatprep.subr.mxu0 0.0
      %4191 = vmatpush1.msra.mxu0 0.0
      %4192 = vmatprep.subr.mxu0 0.0
      %4193 = vmatpush1.msra.mxu0 0.0
      %4194 = vmatprep.subr.mxu0 0.0
      %4195 = vmatpush1.msra.mxu0 0.0
      %4196 = vmatprep.subr.mxu0 0.0
      %4197 = vmatpush1.msra.mxu0 0.0
      %4198 = vmatprep.subr.mxu0 0.0
      %4199 = vmatpush1.msra.mxu0 0.0
      %4200 = vmatprep.subr.mxu0 0.0
      %4201 = vmatpush1.msra.mxu0 0.0
      %4202 = vmatprep.subr.mxu0 0.0
      %4203 = vmatpush1.msra.mxu0 0.0
      %4204 = vmatprep.subr.mxu0 0.0
      %4205 = vmatpush1.msra.mxu0 0.0
      %4206 = vmatprep.subr.mxu0 0.0
      %4207 = vmatpush1.msra.mxu0 0.0
      %4208 = vmatprep.subr.mxu0 0.0
      %4209 = vmatpush1.msra.mxu0 0.0
      %4210 = vmatprep.subr.mxu0 0.0
      %4211 = vmatpush1.msra.mxu0 0.0
      %4212 = vmatprep.subr.mxu0 0.0
      %4213 = vmatpush1.msra.mxu0 0.0
      %4214 = vmatprep.subr.mxu0 0.0
      %4215 = vmatpush1.msra.mxu0 0.0
      %4216 = vmatprep.subr.mxu0 0.0
      %4217 = vmatpush1.msra.mxu0 0.0
      %4218 = vmatprep.subr.mxu0 0.0
      %4219 = vmatpush1.msra.mxu0 0.0
      %4220 = vmatprep.subr.mxu0 0.0
      %4221 = vmatpush1.msra.mxu0 0.0
      %4222 = vmatprep.subr.mxu0 0.0
      %4223 = vmatpush1.msra.mxu0 0.0
      %4224 = vmatprep.subr.mxu0 0.0
      %4225 = vmatpush1.msra.mxu0 0.0
      %4226 = vmatprep.subr.mxu0 0.0
      %4227 = vmatpush1.msra.mxu0 0.0
      %4228 = vmatprep.mubr.f32.mxu0 0.0
      %v4229 = vand.u32 %v3823, 4294901760
      %4230 = vmatmul.mubr.f32.gmra.mrb[0].mxu0 %v4229
      %v4231 = vpop.f32.mrb[0].mxu0
      %v4232 = vadd.f32 %v4149, %v4231
      %v4233 = vpop.f32.mrb[0].mxu0
      %4234 = vdwg.mxu0
      %4235 = vmatprep.subr.mxu0 0.0
      %v4236 = vand.u32 %v164, 4294901760
      %4237 = vmatpush1.msra.mxu0 %v4236
      %4238 = vmatprep.subr.mxu0 0.0
      %v4239 = vand.u32 %v165, 4294901760
      %4240 = vmatpush1.msra.mxu0 %v4239
      %4241 = vmatprep.subr.mxu0 0.0
      %v4242 = vand.u32 %v166, 4294901760
      %4243 = vmatpush1.msra.mxu0 %v4242
      %4244 = vmatprep.subr.mxu0 0.0
      %v4245 = vand.u32 %v167, 4294901760
      %4246 = vmatpush1.msra.mxu0 %v4245
      %4247 = vmatprep.subr.mxu0 0.0
      %4248 = vmatpush1.msra.mxu0 0.0
      %4249 = vmatprep.subr.mxu0 0.0
      %4250 = vmatpush1.msra.mxu0 0.0
      %4251 = vmatprep.subr.mxu0 0.0
      %4252 = vmatpush1.msra.mxu0 0.0
      %4253 = vmatprep.subr.mxu0 0.0
      %4254 = vmatpush1.msra.mxu0 0.0
      %4255 = vmatprep.subr.mxu0 0.0
      %4256 = vmatpush1.msra.mxu0 0.0
      %4257 = vmatprep.subr.mxu0 0.0
      %4258 = vmatpush1.msra.mxu0 0.0
      %4259 = vmatprep.subr.mxu0 0.0
      %4260 = vmatpush1.msra.mxu0 0.0
      %4261 = vmatprep.subr.mxu0 0.0
      %4262 = vmatpush1.msra.mxu0 0.0
      %4263 = vmatprep.subr.mxu0 0.0
      %4264 = vmatpush1.msra.mxu0 0.0
      %4265 = vmatprep.subr.mxu0 0.0
      %4266 = vmatpush1.msra.mxu0 0.0
      %4267 = vmatprep.subr.mxu0 0.0
      %4268 = vmatpush1.msra.mxu0 0.0
      %4269 = vmatprep.subr.mxu0 0.0
      %4270 = vmatpush1.msra.mxu0 0.0
      %4271 = vmatprep.subr.mxu0 0.0
      %4272 = vmatpush1.msra.mxu0 0.0
      %4273 = vmatprep.subr.mxu0 0.0
      %4274 = vmatpush1.msra.mxu0 0.0
      %4275 = vmatprep.subr.mxu0 0.0
      %4276 = vmatpush1.msra.mxu0 0.0
      %4277 = vmatprep.subr.mxu0 0.0
      %4278 = vmatpush1.msra.mxu0 0.0
      %4279 = vmatprep.subr.mxu0 0.0
      %4280 = vmatpush1.msra.mxu0 0.0
      %4281 = vmatprep.subr.mxu0 0.0
      %4282 = vmatpush1.msra.mxu0 0.0
      %4283 = vmatprep.subr.mxu0 0.0
      %4284 = vmatpush1.msra.mxu0 0.0
      %4285 = vmatprep.subr.mxu0 0.0
      %4286 = vmatpush1.msra.mxu0 0.0
      %4287 = vmatprep.subr.mxu0 0.0
      %4288 = vmatpush1.msra.mxu0 0.0
      %4289 = vmatprep.subr.mxu0 0.0
      %4290 = vmatpush1.msra.mxu0 0.0
      %4291 = vmatprep.subr.mxu0 0.0
      %4292 = vmatpush1.msra.mxu0 0.0
      %4293 = vmatprep.subr.mxu0 0.0
      %4294 = vmatpush1.msra.mxu0 0.0
      %4295 = vmatprep.subr.mxu0 0.0
      %4296 = vmatpush1.msra.mxu0 0.0
      %4297 = vmatprep.subr.mxu0 0.0
      %4298 = vmatpush1.msra.mxu0 0.0
      %4299 = vmatprep.subr.mxu0 0.0
      %4300 = vmatpush1.msra.mxu0 0.0
      %4301 = vmatprep.subr.mxu0 0.0
      %4302 = vmatpush1.msra.mxu0 0.0
      %4303 = vmatprep.mubr.f32.mxu0 0.0
      %v4304 = vand.u32 %v3823, 4294901760
      %4305 = vmatmul.mubr.f32.gmra.mrb[0].mxu0 %v4304
      %v4306 = vpop.f32.mrb[0].mxu0
      %v4307 = vadd.f32 %v4232, %v4306
      %v4308 = vpop.f32.mrb[0].mxu0
      %4309 = vdwg.mxu0
      %v4310 = vadd.f32 %v3822, %v4307
      %v4311 = vtanh.pop %v4310
      %v4312 = vxor.u32 %v4310, 2147483648
      %v4313 = vmul.f32 %v4312, 1.442695
      %v4314 = vpow.pop %v4313
      %v4315 = vadd.f32 %v4314, 1.0
      %v4316 = vrcp.pop %v4315
      %v4317 = vmul.f32 1.0, %v4316
      %v4318 = vsel %vm172, %v4311, %v4317
      %v4319 = vmul.f32 %v4318, %v3808
      %4321 = vrot.lane.b32.xlu0 %v4318, 64
      %v4322 = vpop.permute.xlu0 %4321
      %v4324 = vmul.f32 %v4318, %v4322
      %4326 = vrot.lane.b32.xlu0 %v4324, 32
      %v4327 = vpop.permute.xlu0 %4326
      %v4329 = vadd.f32 %v4319, %v4327
      %v4330 = vtanh.pop %v4329
      %4332 = vrot.lane.b32.xlu0 %v4330, 64
      %v4333 = vpop.permute.xlu0 %4332
      %v4335 = vmul.f32 %v4318, %v4333
      %4337 = vrot.lane.b32.xlu0 %v4335, 32
      %v4338 = vpop.permute.xlu0 %4337
      %s4340 = scalar_lea.vmem %s163, 14
      %4341 = vst.msk [vmem:[%s4340] sm:$0x3] %vm693, %v4338
      %p4342 = scmp.lt.s32.totalorder %s13, 1
      %s4343 = scalar_select %p4342, %s13, 1
      %s4344 = smul.addr %s4343, 8
      %s4345 = smul.addr %s4344, 2
      %s4346 = scalar_lea.vmem %s2, %s4345
      // Predicated region
      $region29: #{s2s_forward_pallas.2} parent=27 // pred_check
        %p4347 = pneg %p83
      $region30: #{s2s_forward_pallas.2} parent=27 // pred_check_branch
        %4349 = sbr.rel (%p4347) target = $region32
      $region31: #{s2s_forward_pallas.2} parent=27 // pred_region
        _
      $region32: #{s2s_forward_pallas.2} parent=27 // pred_fallthru
        _
    $region28: #{s2s_forward_pallas.2} parent=5 // pred_fallthru
      _
    %p4350 = scmp.le.s32.totalorder 2, %s8
    // Predicated region
    $region33: #{s2s_forward_pallas.2} parent=5 // pred_check
      %p4351 = pneg %p4350
    $region34: #{s2s_forward_pallas.2} parent=5 // pred_check_branch
      %4353 = sbr.rel (%p4351) target = $region36
    $region35: #{s2s_forward_pallas.2} parent=5 // pred_region
      %s4354 = ssub.s32 %s8, 2
      // Predicated region
      $region37: #{s2s_forward_pallas.2} parent=35 // pred_check
        %p4355 = pneg %p89
      $region38: #{s2s_forward_pallas.2} parent=35 // pred_check_branch
        %4357 = sbr.rel (%p4355) target = $region40
      $region39: #{s2s_forward_pallas.2} parent=35 // pred_region
        %p4358 = scmp.lt.s32.totalorder %s14, 1
        %s4359 = scalar_select %p4358, %s14, 1
        %s4360 = smul.addr %s4359, 8
        %s4361 = smul.addr %s4360, 2
        %s4362 = scalar_lea.vmem %s2, %s4361
      $region40: #{s2s_forward_pallas.2} parent=35 // pred_fallthru
        _
    $region36: #{s2s_forward_pallas.2} parent=5 // pred_fallthru
      _
  $region6: #{s2s_forward_pallas.2} parent=0 // loop_footer
    %s12 = sadd.s32 1, %s8
  $region7: #{s2s_forward_pallas.2} parent=0 // loop_footer_branch
    %7 = sbr.rel target = $region3
  $region8: #{s2s_forward_pallas.2} parent=0 // loop_exit
    _

</llo_original>
